<compile_context>
chip_gen: v7x
topology: tpu7x:2x2x1
jax: 0.10.0
libtpu: 0.0.40
codegen_flags: <defaults>
</compile_context>

<pallas_src>
import functools
import math

import numpy as np
import jax
import jax.numpy as jnp
from jax import lax
from jax.experimental import pallas as pl
from jax.experimental.pallas import tpu as pltpu

# ----------------------------- configuration -------------------------------
IMG_SIZE = 16
PATCH = 8
NUM_FRAMES = 2
TUB = 1
IN_CHANS = 3
EMBED = 32
DEPTH = 2
NUM_HEADS = 4
DEC_EMBED = 32
DEC_DEPTH = 1
DEC_HEADS = 4
MLP_RATIO = 4.0
LN_EPS = 1e-5

GRID = (NUM_FRAMES // TUB, IMG_SIZE // PATCH, IMG_SIZE // PATCH)
NUM_PATCHES = GRID[0] * GRID[1] * GRID[2]
PATCH_DIM = TUB * PATCH * PATCH * IN_CHANS

# ordering of the 16 stacked per-block weight tensors (wrapper + kernel agree)
_BLOCK_KEYS = ('ln1_w', 'ln1_b', 'q_w', 'q_b', 'k_w', 'k_b', 'v_w', 'v_b',
               'proj_w', 'proj_b', 'ln2_w', 'ln2_b',
               'fc1_w', 'fc1_b', 'fc2_w', 'fc2_b')


# ------------------------- sincos positional embed -------------------------
def _sincos_1d(embed_dim, pos):
    omega = np.arange(embed_dim // 2, dtype=np.float64)
    omega /= embed_dim / 2.0
    omega = 1.0 / 10000 ** omega
    out = np.einsum("m,d->md", pos.reshape(-1).astype(np.float64), omega)
    return np.concatenate([np.sin(out), np.cos(out)], axis=1)


def get_3d_sincos_pos_embed(embed_dim, grid_size, cls_token=False):
    t, h, w = grid_size
    w_dim = embed_dim // 16 * 6
    h_dim = embed_dim // 16 * 6
    t_dim = embed_dim // 16 * 4
    w_pe = _sincos_1d(w_dim, np.arange(w))
    h_pe = _sincos_1d(h_dim, np.arange(h))
    t_pe = _sincos_1d(t_dim, np.arange(t))
    w_pe = np.tile(w_pe, (t * h, 1))
    h_pe = np.tile(np.repeat(h_pe, w, axis=0), (t, 1))
    t_pe = np.repeat(t_pe, h * w, axis=0)
    pe = np.concatenate([w_pe, h_pe, t_pe], axis=1)
    if cls_token:
        pe = np.concatenate([np.zeros([1, embed_dim]), pe], axis=0)
    return pe.astype(np.float32)


# --------------------------- in-kernel math helpers --------------------------
def _ln(v, w, b):
    mu = jnp.mean(v, axis=-1, keepdims=True)
    var = jnp.mean((v - mu) ** 2, axis=-1, keepdims=True)
    return (v - mu) * lax.rsqrt(var + LN_EPS) * w + b


def _gelu_tanh(x):
    # TODO(synk): nn.GELU default is the exact erf GELU; tanh approximation used here.
    return 0.5 * x * (1.0 + jnp.tanh(0.7978845608028654 * (x + 0.044715 * x * x * x)))


def _block(x, l, blk, num_heads):
    """Pre-LN ViT block on a (S, E) activation, fully in VMEM/vregs.

    Per-head q/k weights are indexed via a flattened (depth*heads) leading
    axis (free Ref views, no lane slicing).  V weights are band-padded to the
    full E lanes so head outputs are combined with adds and projected with a
    single (S,E)@(E,E) matmul.
    """
    (ln1w, ln1b, qw, qb, kw, kb, vw, vb, prw, prb,
     ln2w, ln2b, f1w, f1b, f2w, f2b) = blk
    S, E = x.shape
    hd = E // num_heads
    scale = 1.0 / math.sqrt(hd)

    # ---- attention branch ----
    h = _ln(x, ln1w[l], ln1b[l])
    o = jnp.zeros((S, E), jnp.float32)
    for hh in range(num_heads):
        i = l * num_heads + hh
        q = (jnp.dot(h, qw[i], preferred_element_type=jnp.float32) + qb[i]) * scale
        k = jnp.dot(h, kw[i], preferred_element_type=jnp.float32) + kb[i]
        v = jnp.dot(h, vw[i], preferred_element_type=jnp.float32) + vb[i]   # (S, E) band
        # q @ k^T expressed via dot_general dimension numbers (no transpose)
        logits = lax.dot_general(q, k, (((1,), (1,)), ((), ())),
                                 preferred_element_type=jnp.float32)        # (S, S)
        mx = jnp.max(logits, axis=-1, keepdims=True)
        p = jnp.exp(logits - mx)
        p = p * pl.reciprocal(jnp.sum(p, axis=-1, keepdims=True), approx=True)
        o = o + jnp.dot(p, v, preferred_element_type=jnp.float32)           # band-disjoint
    x = x + jnp.dot(o, prw[l], preferred_element_type=jnp.float32) + prb[l]

    # ---- MLP branch ----
    h2 = _ln(x, ln2w[l], ln2b[l])
    h2 = jnp.dot(h2, f1w[l], preferred_element_type=jnp.float32) + f1b[l]
    h2 = _gelu_tanh(h2)
    h2 = jnp.dot(h2, f2w[l], preferred_element_type=jnp.float32) + f2b[l]
    return x + h2


# ------------------------------- fused kernel --------------------------------
def _mae_kernel(idk_ref, idr_ref, *refs, len_keep, depth, dec_depth,
                num_heads, dec_heads):
    it = iter(refs)
    patch_ref = next(it)          # (1, L, PATCH_DIM): embed input AND MSE target
    mask_ref = next(it)           # (1, L, 1)
    pe_w = next(it); pe_add = next(it); cls_row = next(it)
    eblk = [next(it) for _ in range(len(_BLOCK_KEYS))]
    norm_w = next(it); norm_b = next(it); dew = next(it); deb = next(it)
    mtok = next(it); dpos = next(it)
    dblk = [next(it) for _ in range(len(_BLOCK_KEYS))]
    dnw = next(it); dnb = next(it); prw = next(it); prb = next(it)
    pred_ref = next(it); num_ref = next(it)
    emb_ref = next(it); xenc_ref = next(it); lat_ref = next(it); xdec_ref = next(it)
    assert next(it, None) is None

    b = pl.program_id(0)
    L = patch_ref.shape[1]

    # ---- patch embed of ALL L tokens (Conv3d-as-matmul); pe_add folds the
    #      conv bias and pos_embed[1:] ----
    emb_ref[...] = (jnp.dot(patch_ref[0], pe_w[...],
                            preferred_element_type=jnp.float32) + pe_add[...])

    # ---- encoder input: row 0 = cls(+pos), rows 1..len_keep = kept tokens
    #      gathered in-kernel via the SMEM-prefetched ids_keep ----
    xenc_ref[0:1, :] = cls_row[...]
    for j in range(len_keep):
        xenc_ref[j + 1:j + 2, :] = emb_ref[pl.ds(idk_ref[b, j], 1), :]
    x = xenc_ref[...]                                           # (SE, E)

    for l in range(depth):
        x = _block(x, l, eblk, num_heads)
    x = _ln(x, norm_w[...], norm_b[...])
    # decoder_embed fused in; latent stays in VMEM scratch for the row gather
    lat_ref[...] = (jnp.dot(x, dew[...], preferred_element_type=jnp.float32)
                    + deb[...])                                 # (SE, DE)

    # ---- decoder un-shuffle (cls-LAST layout): rows 0..L-1 = patch tokens,
    #      row L = cls.  Kept patch i -> latent row 1+ids_restore[i], masked
    #      patch -> mask_token. ----
    for i in range(L):
        r = idr_ref[b, i]
        w = (r < len_keep).astype(jnp.float32)
        rsafe = jnp.minimum(r, len_keep - 1)
        src = lat_ref[pl.ds(rsafe + 1, 1), :]                   # (1, DE)
        xdec_ref[i:i + 1, :] = src * w + mtok[...] * (1.0 - w)
    xdec_ref[L:L + 1, :] = lat_ref[0:1, :]

    x = xdec_ref[...] + dpos[...]                               # (L+1, DE)
    for l in range(dec_depth):
        x = _block(x, l, dblk, dec_heads)
    x = _ln(x, dnw[...], dnb[...])

    # cls is the last row, so the prediction slice starts at sublane 0.
    pred = (jnp.dot(x[0:L, :], prw[...], preferred_element_type=jnp.float32)
            + prb[...])                                         # (L, PATCH_DIM)
    pred_ref[0] = pred.astype(pred_ref.dtype)

    # masked-MSE numerator while pred is still resident in VMEM
    d = pred - patch_ref[0]
    per = jnp.mean(d * d, axis=-1, keepdims=True)               # (L, 1)
    num_ref[0] = jnp.sum(per * mask_ref[0], axis=0, keepdims=True)


# ------------------------------ kernel wrapper -------------------------------
def _const_spec(a):
    zeros = (0,) * a.ndim
    return pl.BlockSpec(a.shape, lambda *args, _z=zeros: _z)


def run_mae(ids_keep, ids_restore, patches, mask3, params, len_keep):
    B, L, PD = patches.shape
    SE = len_keep + 1
    enc = params['enc_blocks']
    dec = params['dec_blocks']
    weights = ([params['pe_w'], params['pe_add'], params['cls_row']]
               + [enc[k] for k in _BLOCK_KEYS]
               + [params['norm_w'], params['norm_b'],
                  params['dec_embed_w'], params['dec_embed_b'],
                  params['mask_token'], params['dec_pos_perm']]
               + [dec[k] for k in _BLOCK_KEYS]
               + [params['dec_norm_w'], params['dec_norm_b'],
                  params['dec_pred_w'], params['dec_pred_b']])

    in_specs = ([pl.BlockSpec((1, L, PD), lambda b, *_: (b, 0, 0)),
                 pl.BlockSpec((1, L, 1), lambda b, *_: (b, 0, 0))]
                + [_const_spec(w) for w in weights])
    out_shape = (jax.ShapeDtypeStruct((B, L, PD), jnp.float32),
                 jax.ShapeDtypeStruct((B, 1, 1), jnp.float32))
    out_specs = (pl.BlockSpec((1, L, PD), lambda b, *_: (b, 0, 0)),
                 pl.BlockSpec((1, 1, 1), lambda b, *_: (b, 0, 0)))
    scratch = [pltpu.VMEM((L, EMBED), jnp.float32),        # all-token embeddings
               pltpu.VMEM((SE, EMBED), jnp.float32),       # encoder input
               pltpu.VMEM((SE, DEC_EMBED), jnp.float32),   # latent (dec width)
               pltpu.VMEM((L + 1, DEC_EMBED), jnp.float32)]  # decoder input

    kern = functools.partial(_mae_kernel, len_keep=len_keep,
                             depth=DEPTH, dec_depth=DEC_DEPTH,
                             num_heads=NUM_HEADS, dec_heads=DEC_HEADS)
    return pl.pallas_call(
        kern,
        out_shape=out_shape,
        grid_spec=pltpu.PrefetchScalarGridSpec(
            num_scalar_prefetch=2,
            grid=(B,),
            in_specs=in_specs,
            out_specs=out_specs,
            scratch_shapes=scratch),
        compiler_params=pltpu.CompilerParams(
            dimension_semantics=("parallel",),
            vmem_limit_bytes=32 * 1024 * 1024),
    )(ids_keep, ids_restore, patches, mask3, *weights)


# ------------------------------ parameter init ------------------------------
def xavier_uniform(key, shape, fan_in, fan_out):
    bound = math.sqrt(6.0 / (fan_in + fan_out))
    return jax.random.uniform(key, shape, jnp.float32, -bound, bound)


def init_blocks(key, depth, dim, num_heads, mlp_ratio):
    hd = dim // num_heads
    hidden = int(dim * mlp_ratio)
    keys = jax.random.split(key, depth * 4)
    qkv_w = jnp.stack([xavier_uniform(keys[4 * l + 0], (dim, 3 * dim), dim, 3 * dim)
                       for l in range(depth)])                  # (D, dim, 3*dim)
    proj_w = jnp.stack([xavier_uniform(keys[4 * l + 1], (dim, dim), dim, dim)
                        for l in range(depth)])
    fc1_w = jnp.stack([xavier_uniform(keys[4 * l + 2], (dim, hidden), dim, hidden)
                       for l in range(depth)])
    fc2_w = jnp.stack([xavier_uniform(keys[4 * l + 3], (hidden, dim), hidden, dim)
                       for l in range(depth)])

    q_full = qkv_w[:, :, 0 * dim:1 * dim]
    k_full = qkv_w[:, :, 1 * dim:2 * dim]
    v_full = qkv_w[:, :, 2 * dim:3 * dim]

    def per_head(w):  # (D, dim, dim) -> (D*H, dim, hd), flat index = l*H + h
        return (w.reshape(depth, dim, num_heads, hd)
                 .transpose(0, 2, 1, 3)
                 .reshape(depth * num_heads, dim, hd))

    # V band-padded: head h's output columns live in lanes [h*hd, (h+1)*hd),
    # zeros elsewhere -> head outputs combine with adds, single projection.
    col = jnp.arange(dim)
    band = (col[None, :] // hd == jnp.arange(num_heads)[:, None]).astype(jnp.float32)
    v_w = (v_full[:, None, :, :] * band[None, :, None, :]).reshape(
        depth * num_heads, dim, dim)

    return {
        'ln1_w': jnp.ones((depth, 1, dim), jnp.float32),
        'ln1_b': jnp.zeros((depth, 1, dim), jnp.float32),
        'q_w': per_head(q_full),
        'q_b': jnp.zeros((depth * num_heads, 1, hd), jnp.float32),
        'k_w': per_head(k_full),
        'k_b': jnp.zeros((depth * num_heads, 1, hd), jnp.float32),
        'v_w': v_w,
        'v_b': jnp.zeros((depth * num_heads, 1, dim), jnp.float32),
        'proj_w': proj_w,
        'proj_b': jnp.zeros((depth, 1, dim), jnp.float32),
        'ln2_w': jnp.ones((depth, 1, dim), jnp.float32),
        'ln2_b': jnp.zeros((depth, 1, dim), jnp.float32),
        'fc1_w': fc1_w,
        'fc1_b': jnp.zeros((depth, 1, hidden), jnp.float32),
        'fc2_w': fc2_w,
        'fc2_b': jnp.zeros((depth, 1, dim), jnp.float32),
    }


def init_params(key):
    keys = jax.random.split(key, 10)
    params = {}
    # Patch embed: Conv3d(in, E, k=stride=(tub,p,p)) as a matmul.  pe_w rows
    # are laid out in (tub, p, q, c) order (permute the Conv3d weight rows the
    # same way when loading a checkpoint) so ONE patchified array serves both
    # as the embed input and as the reconstruction target.
    params['pe_w'] = xavier_uniform(keys[0], (PATCH_DIM, EMBED), PATCH_DIM, EMBED)
    bound = 1.0 / math.sqrt(PATCH_DIM)
    pe_b = jax.random.uniform(keys[1], (1, EMBED), jnp.float32, -bound, bound)
    cls_token = 0.02 * jax.random.normal(keys[2], (1, EMBED), jnp.float32)
    mask_token = 0.02 * jax.random.normal(keys[3], (1, DEC_EMBED), jnp.float32)

    pos_embed = jnp.asarray(get_3d_sincos_pos_embed(EMBED, GRID, cls_token=True))
    dec_pos_embed = jnp.asarray(get_3d_sincos_pos_embed(DEC_EMBED, GRID, cls_token=True))

    params['pe_add'] = pos_embed[1:, :] + pe_b               # conv bias + pos folded
    params['cls_row'] = cls_token + pos_embed[:1, :]
    params['enc_blocks'] = init_blocks(keys[4], DEPTH, EMBED, NUM_HEADS, MLP_RATIO)
    params['norm_w'] = jnp.ones((1, EMBED), jnp.float32)
    params['norm_b'] = jnp.zeros((1, EMBED), jnp.float32)
    params['dec_embed_w'] = xavier_uniform(keys[6], (EMBED, DEC_EMBED), EMBED, DEC_EMBED)
    params['dec_embed_b'] = jnp.zeros((1, DEC_EMBED), jnp.float32)
    params['mask_token'] = mask_token
    # decoder pos-embed permuted to the kernel's cls-LAST token order
    params['dec_pos_perm'] = jnp.concatenate(
        [dec_pos_embed[1:, :], dec_pos_embed[:1, :]], axis=0)
    params['dec_blocks'] = init_blocks(keys[5], DEC_DEPTH, DEC_EMBED, DEC_HEADS, MLP_RATIO)
    params['dec_norm_w'] = jnp.ones((1, DEC_EMBED), jnp.float32)
    params['dec_norm_b'] = jnp.zeros((1, DEC_EMBED), jnp.float32)
    params['dec_pred_w'] = xavier_uniform(keys[7], (DEC_EMBED, PATCH_DIM), DEC_EMBED, PATCH_DIM)
    params['dec_pred_b'] = jnp.zeros((1, PATCH_DIM), jnp.float32)
    return params


# --------------------------------- forward ----------------------------------
def patchify(imgs):
    # 'b c (t tub) (h p) (w q) -> b (t h w) (tub p q c)'
    B, C, T, H, W = imgs.shape
    x = imgs.reshape(B, C, T // TUB, TUB, H // PATCH, PATCH, W // PATCH, PATCH)
    x = x.transpose(0, 2, 4, 6, 3, 5, 7, 1)
    return x.reshape(B, NUM_PATCHES, TUB * PATCH * PATCH * IN_CHANS)


def forward(params, imgs, mask_ratio, mask_key):
    B = imgs.shape[0]
    L = NUM_PATCHES
    len_keep = int(L * (1 - mask_ratio))

    # --- random masking bookkeeping (argsort stays plain-JAX glue) ---
    noise = jax.random.uniform(mask_key, (B, L))
    ids_shuffle = jnp.argsort(noise, axis=1).astype(jnp.int32)
    ids_restore = jnp.argsort(ids_shuffle, axis=1).astype(jnp.int32)
    ids_keep = ids_shuffle[:, :len_keep]
    # patch i is masked iff its shuffled position is >= len_keep
    mask = (ids_restore >= len_keep).astype(jnp.float32)

    patches = patchify(imgs)                                    # (B, L, PATCH_DIM)

    # --- single fused kernel: patch-embed -> encoder -> decoder_embed ->
    #     un-shuffle -> decoder -> pred -> masked-MSE numerator ---
    pred, num = run_mae(ids_keep, ids_restore, patches, mask[:, :, None],
                        params, len_keep)

    # exactly (L - len_keep) masked tokens per sample -> constant denominator
    loss = jnp.sum(num) / float(B * (L - len_keep))
    return loss, pred, mask


# ----------------------------------- main ------------------------------------
if __name__ == "__main__":
    root = jax.random.PRNGKey(0)
    k_param, k_img, k_mask = jax.random.split(root, 3)

    params = init_params(k_param)
    imgs = jax.random.normal(k_img, (2, IN_CHANS, NUM_FRAMES, IMG_SIZE, IMG_SIZE),
                             dtype=jnp.float32)

    fwd = jax.jit(forward, static_argnames=("mask_ratio",))
    loss, pred, mask = fwd(params, imgs, mask_ratio=0.75, mask_key=k_mask)
    jax.block_until_ready((loss, pred, mask))
    assert pred.shape == (2, NUM_PATCHES, PATCH_DIM)
    assert mask.shape == (2, NUM_PATCHES)
    print("KERNEL_OK")
</pallas_src>

<mosaic_0001>
module attributes {stable_mosaic.version = 11 : i64} {
  func.func @_mae_kernel(%arg0: i32, %arg1: memref<2x2xi32, #tpu.memory_space<smem>>, %arg2: memref<2x8xi32, #tpu.memory_space<smem>>, %arg3: memref<1x8x192xf32, #tpu.memory_space<vmem>>, %arg4: memref<1x8x1xf32, #tpu.memory_space<vmem>>, %arg5: memref<192x32xf32, #tpu.memory_space<vmem>>, %arg6: memref<8x32xf32, #tpu.memory_space<vmem>>, %arg7: memref<1x32xf32, #tpu.memory_space<vmem>>, %arg8: memref<2x1x32xf32, #tpu.memory_space<vmem>>, %arg9: memref<2x1x32xf32, #tpu.memory_space<vmem>>, %arg10: memref<8x32x8xf32, #tpu.memory_space<vmem>>, %arg11: memref<8x1x8xf32, #tpu.memory_space<vmem>>, %arg12: memref<8x32x8xf32, #tpu.memory_space<vmem>>, %arg13: memref<8x1x8xf32, #tpu.memory_space<vmem>>, %arg14: memref<8x32x32xf32, #tpu.memory_space<vmem>>, %arg15: memref<8x1x32xf32, #tpu.memory_space<vmem>>, %arg16: memref<2x32x32xf32, #tpu.memory_space<vmem>>, %arg17: memref<2x1x32xf32, #tpu.memory_space<vmem>>, %arg18: memref<2x1x32xf32, #tpu.memory_space<vmem>>, %arg19: memref<2x1x32xf32, #tpu.memory_space<vmem>>, %arg20: memref<2x32x128xf32, #tpu.memory_space<vmem>>, %arg21: memref<2x1x128xf32, #tpu.memory_space<vmem>>, %arg22: memref<2x128x32xf32, #tpu.memory_space<vmem>>, %arg23: memref<2x1x32xf32, #tpu.memory_space<vmem>>, %arg24: memref<1x32xf32, #tpu.memory_space<vmem>>, %arg25: memref<1x32xf32, #tpu.memory_space<vmem>>, %arg26: memref<32x32xf32, #tpu.memory_space<vmem>>, %arg27: memref<1x32xf32, #tpu.memory_space<vmem>>, %arg28: memref<1x32xf32, #tpu.memory_space<vmem>>, %arg29: memref<9x32xf32, #tpu.memory_space<vmem>>, %arg30: memref<1x1x32xf32, #tpu.memory_space<vmem>>, %arg31: memref<1x1x32xf32, #tpu.memory_space<vmem>>, %arg32: memref<4x32x8xf32, #tpu.memory_space<vmem>>, %arg33: memref<4x1x8xf32, #tpu.memory_space<vmem>>, %arg34: memref<4x32x8xf32, #tpu.memory_space<vmem>>, %arg35: memref<4x1x8xf32, #tpu.memory_space<vmem>>, %arg36: memref<4x32x32xf32, #tpu.memory_space<vmem>>, %arg37: memref<4x1x32xf32, #tpu.memory_space<vmem>>, %arg38: memref<1x32x32xf32, #tpu.memory_space<vmem>>, %arg39: memref<1x1x32xf32, #tpu.memory_space<vmem>>, %arg40: memref<1x1x32xf32, #tpu.memory_space<vmem>>, %arg41: memref<1x1x32xf32, #tpu.memory_space<vmem>>, %arg42: memref<1x32x128xf32, #tpu.memory_space<vmem>>, %arg43: memref<1x1x128xf32, #tpu.memory_space<vmem>>, %arg44: memref<1x128x32xf32, #tpu.memory_space<vmem>>, %arg45: memref<1x1x32xf32, #tpu.memory_space<vmem>>, %arg46: memref<1x32xf32, #tpu.memory_space<vmem>>, %arg47: memref<1x32xf32, #tpu.memory_space<vmem>>, %arg48: memref<32x192xf32, #tpu.memory_space<vmem>>, %arg49: memref<1x192xf32, #tpu.memory_space<vmem>>, %arg50: memref<1x8x192xf32, #tpu.memory_space<vmem>>, %arg51: memref<1x1x1xf32, #tpu.memory_space<vmem>>, %arg52: memref<8x32xf32, #tpu.memory_space<vmem>>, %arg53: memref<3x32xf32, #tpu.memory_space<vmem>>, %arg54: memref<3x32xf32, #tpu.memory_space<vmem>>, %arg55: memref<9x32xf32, #tpu.memory_space<vmem>>) attributes {dimension_semantics = [#tpu.dimension_semantics<parallel>], iteration_bounds = array<i64: 2>, scalar_prefetch = 2 : i64, scratch_operands = 4 : i64, tpu.core_type = #tpu.core_type<tc>, window_params = [{transform_indices = @transform_0, window_bounds = array<i64: 1, 8, 192>}, {transform_indices = @transform_1, window_bounds = array<i64: 1, 8, 1>}, {pipeline_mode = #tpu.pipeline_mode<synchronous>, transform_indices = @transform_2, window_bounds = array<i64: 192, 32>}, {pipeline_mode = #tpu.pipeline_mode<synchronous>, transform_indices = @transform_3, window_bounds = array<i64: 8, 32>}, {pipeline_mode = #tpu.pipeline_mode<synchronous>, transform_indices = @transform_4, window_bounds = array<i64: 1, 32>}, {pipeline_mode = #tpu.pipeline_mode<synchronous>, transform_indices = @transform_5, window_bounds = array<i64: 2, 1, 32>}, {pipeline_mode = #tpu.pipeline_mode<synchronous>, transform_indices = @transform_6, window_bounds = array<i64: 2, 1, 32>}, {pipeline_mode = #tpu.pipeline_mode<synchronous>, transform_indices = @transform_7, window_bounds = array<i64: 8, 32, 8>}, {pipeline_mode = #tpu.pipeline_mode<synchronous>, transform_indices = @transform_8, window_bounds = array<i64: 8, 1, 8>}, {pipeline_mode = #tpu.pipeline_mode<synchronous>, transform_indices = @transform_9, window_bounds = array<i64: 8, 32, 8>}, {pipeline_mode = #tpu.pipeline_mode<synchronous>, transform_indices = @transform_10, window_bounds = array<i64: 8, 1, 8>}, {pipeline_mode = #tpu.pipeline_mode<synchronous>, transform_indices = @transform_11, window_bounds = array<i64: 8, 32, 32>}, {pipeline_mode = #tpu.pipeline_mode<synchronous>, transform_indices = @transform_12, window_bounds = array<i64: 8, 1, 32>}, {pipeline_mode = #tpu.pipeline_mode<synchronous>, transform_indices = @transform_13, window_bounds = array<i64: 2, 32, 32>}, {pipeline_mode = #tpu.pipeline_mode<synchronous>, transform_indices = @transform_14, window_bounds = array<i64: 2, 1, 32>}, {pipeline_mode = #tpu.pipeline_mode<synchronous>, transform_indices = @transform_15, window_bounds = array<i64: 2, 1, 32>}, {pipeline_mode = #tpu.pipeline_mode<synchronous>, transform_indices = @transform_16, window_bounds = array<i64: 2, 1, 32>}, {pipeline_mode = #tpu.pipeline_mode<synchronous>, transform_indices = @transform_17, window_bounds = array<i64: 2, 32, 128>}, {pipeline_mode = #tpu.pipeline_mode<synchronous>, transform_indices = @transform_18, window_bounds = array<i64: 2, 1, 128>}, {pipeline_mode = #tpu.pipeline_mode<synchronous>, transform_indices = @transform_19, window_bounds = array<i64: 2, 128, 32>}, {pipeline_mode = #tpu.pipeline_mode<synchronous>, transform_indices = @transform_20, window_bounds = array<i64: 2, 1, 32>}, {pipeline_mode = #tpu.pipeline_mode<synchronous>, transform_indices = @transform_21, window_bounds = array<i64: 1, 32>}, {pipeline_mode = #tpu.pipeline_mode<synchronous>, transform_indices = @transform_22, window_bounds = array<i64: 1, 32>}, {pipeline_mode = #tpu.pipeline_mode<synchronous>, transform_indices = @transform_23, window_bounds = array<i64: 32, 32>}, {pipeline_mode = #tpu.pipeline_mode<synchronous>, transform_indices = @transform_24, window_bounds = array<i64: 1, 32>}, {pipeline_mode = #tpu.pipeline_mode<synchronous>, transform_indices = @transform_25, window_bounds = array<i64: 1, 32>}, {pipeline_mode = #tpu.pipeline_mode<synchronous>, transform_indices = @transform_26, window_bounds = array<i64: 9, 32>}, {pipeline_mode = #tpu.pipeline_mode<synchronous>, transform_indices = @transform_27, window_bounds = array<i64: 1, 1, 32>}, {pipeline_mode = #tpu.pipeline_mode<synchronous>, transform_indices = @transform_28, window_bounds = array<i64: 1, 1, 32>}, {pipeline_mode = #tpu.pipeline_mode<synchronous>, transform_indices = @transform_29, window_bounds = array<i64: 4, 32, 8>}, {pipeline_mode = #tpu.pipeline_mode<synchronous>, transform_indices = @transform_30, window_bounds = array<i64: 4, 1, 8>}, {pipeline_mode = #tpu.pipeline_mode<synchronous>, transform_indices = @transform_31, window_bounds = array<i64: 4, 32, 8>}, {pipeline_mode = #tpu.pipeline_mode<synchronous>, transform_indices = @transform_32, window_bounds = array<i64: 4, 1, 8>}, {pipeline_mode = #tpu.pipeline_mode<synchronous>, transform_indices = @transform_33, window_bounds = array<i64: 4, 32, 32>}, {pipeline_mode = #tpu.pipeline_mode<synchronous>, transform_indices = @transform_34, window_bounds = array<i64: 4, 1, 32>}, {pipeline_mode = #tpu.pipeline_mode<synchronous>, transform_indices = @transform_35, window_bounds = array<i64: 1, 32, 32>}, {pipeline_mode = #tpu.pipeline_mode<synchronous>, transform_indices = @transform_36, window_bounds = array<i64: 1, 1, 32>}, {pipeline_mode = #tpu.pipeline_mode<synchronous>, transform_indices = @transform_37, window_bounds = array<i64: 1, 1, 32>}, {pipeline_mode = #tpu.pipeline_mode<synchronous>, transform_indices = @transform_38, window_bounds = array<i64: 1, 1, 32>}, {pipeline_mode = #tpu.pipeline_mode<synchronous>, transform_indices = @transform_39, window_bounds = array<i64: 1, 32, 128>}, {pipeline_mode = #tpu.pipeline_mode<synchronous>, transform_indices = @transform_40, window_bounds = array<i64: 1, 1, 128>}, {pipeline_mode = #tpu.pipeline_mode<synchronous>, transform_indices = @transform_41, window_bounds = array<i64: 1, 128, 32>}, {pipeline_mode = #tpu.pipeline_mode<synchronous>, transform_indices = @transform_42, window_bounds = array<i64: 1, 1, 32>}, {pipeline_mode = #tpu.pipeline_mode<synchronous>, transform_indices = @transform_43, window_bounds = array<i64: 1, 32>}, {pipeline_mode = #tpu.pipeline_mode<synchronous>, transform_indices = @transform_44, window_bounds = array<i64: 1, 32>}, {pipeline_mode = #tpu.pipeline_mode<synchronous>, transform_indices = @transform_45, window_bounds = array<i64: 32, 192>}, {pipeline_mode = #tpu.pipeline_mode<synchronous>, transform_indices = @transform_46, window_bounds = array<i64: 1, 192>}, {transform_indices = @transform_47, window_bounds = array<i64: 1, 8, 192>}, {transform_indices = @transform_48, window_bounds = array<i64: 1, 1, 1>}]} {
    %c0 = arith.constant 0 : index
    %c0_0 = arith.constant 0 : index
    %c0_1 = arith.constant 0 : index
    %0 = vector.load %arg3[%c0, %c0_0, %c0_1] : memref<1x8x192xf32, #tpu.memory_space<vmem>>, vector<1x8x192xf32>
    %1 = vector.shape_cast %0 : vector<1x8x192xf32> to vector<8x192xf32>
    %c0_2 = arith.constant 0 : index
    %c0_3 = arith.constant 0 : index
    %2 = vector.load %arg5[%c0_2, %c0_3] : memref<192x32xf32, #tpu.memory_space<vmem>>, vector<192x32xf32>
    %cst = arith.constant dense<0.000000e+00> : vector<8x32xf32>
    %3 = tpu.matmul %1, %2, %cst {dimension_numbers = #tpu.dot_dimension_numbers<[1], [0], [0], [1], [0, 0, 1, 1], [], []>} : vector<8x192xf32>, vector<192x32xf32>, vector<8x32xf32> -> vector<8x32xf32>
    %c0_4 = arith.constant 0 : index
    %c0_5 = arith.constant 0 : index
    %4 = vector.load %arg6[%c0_4, %c0_5] : memref<8x32xf32, #tpu.memory_space<vmem>>, vector<8x32xf32>
    %5 = arith.addf %3, %4 : vector<8x32xf32>
    %c0_6 = arith.constant 0 : index
    %c0_7 = arith.constant 0 : index
    %6 = vector.load %arg52[%c0_6, %c0_7] : memref<8x32xf32, #tpu.memory_space<vmem>>, vector<8x32xf32>
    tpu.vector_store %arg52[%c0_6, %c0_7], %5 {strides = array<i32>} : memref<8x32xf32, #tpu.memory_space<vmem>>, vector<8x32xf32>,
    %c0_8 = arith.constant 0 : index
    %c0_9 = arith.constant 0 : index
    %7 = vector.load %arg7[%c0_8, %c0_9] : memref<1x32xf32, #tpu.memory_space<vmem>>, vector<1x32xf32>
    %c0_10 = arith.constant 0 : index
    %c0_11 = arith.constant 0 : index
    %8 = vector.load %arg53[%c0_10, %c0_11] : memref<3x32xf32, #tpu.memory_space<vmem>>, vector<1x32xf32>
    tpu.vector_store %arg53[%c0_10, %c0_11], %7 {strides = array<i32>} : memref<3x32xf32, #tpu.memory_space<vmem>>, vector<1x32xf32>,
    %9 = arith.index_cast %arg0 : i32 to index
    %c0_12 = arith.constant 0 : index
    %10 = memref.load %arg1[%9, %c0_12] : memref<2x2xi32, #tpu.memory_space<smem>>
    %11 = arith.index_cast %10 : i32 to index
    %c0_13 = arith.constant 0 : index
    %12 = vector.load %arg52[%11, %c0_13] : memref<8x32xf32, #tpu.memory_space<vmem>>, vector<1x32xf32>
    %c1 = arith.constant 1 : index
    %c0_14 = arith.constant 0 : index
    %13 = vector.load %arg53[%c1, %c0_14] : memref<3x32xf32, #tpu.memory_space<vmem>>, vector<1x32xf32>
    tpu.vector_store %arg53[%c1, %c0_14], %12 {strides = array<i32>} : memref<3x32xf32, #tpu.memory_space<vmem>>, vector<1x32xf32>,
    %14 = arith.index_cast %arg0 : i32 to index
    %c1_15 = arith.constant 1 : index
    %15 = memref.load %arg1[%14, %c1_15] : memref<2x2xi32, #tpu.memory_space<smem>>
    %16 = arith.index_cast %15 : i32 to index
    %c0_16 = arith.constant 0 : index
    %17 = vector.load %arg52[%16, %c0_16] : memref<8x32xf32, #tpu.memory_space<vmem>>, vector<1x32xf32>
    %c2 = arith.constant 2 : index
    %c0_17 = arith.constant 0 : index
    %18 = vector.load %arg53[%c2, %c0_17] : memref<3x32xf32, #tpu.memory_space<vmem>>, vector<1x32xf32>
    tpu.vector_store %arg53[%c2, %c0_17], %17 {strides = array<i32>} : memref<3x32xf32, #tpu.memory_space<vmem>>, vector<1x32xf32>,
    %c0_18 = arith.constant 0 : index
    %c0_19 = arith.constant 0 : index
    %19 = vector.load %arg53[%c0_18, %c0_19] : memref<3x32xf32, #tpu.memory_space<vmem>>, vector<3x32xf32>
    %c0_20 = arith.constant 0 : index
    %c0_21 = arith.constant 0 : index
    %c0_22 = arith.constant 0 : index
    %20 = vector.load %arg8[%c0_20, %c0_21, %c0_22] : memref<2x1x32xf32, #tpu.memory_space<vmem>>, vector<1x1x32xf32>
    %21 = vector.shape_cast %20 : vector<1x1x32xf32> to vector<1x32xf32>
    %c0_23 = arith.constant 0 : index
    %c0_24 = arith.constant 0 : index
    %c0_25 = arith.constant 0 : index
    %22 = vector.load %arg9[%c0_23, %c0_24, %c0_25] : memref<2x1x32xf32, #tpu.memory_space<vmem>>, vector<1x1x32xf32>
    %23 = vector.shape_cast %22 : vector<1x1x32xf32> to vector<1x32xf32>
    %cst_26 = arith.constant dense<0.000000e+00> : vector<3xf32>
    %24 = vector.multi_reduction <add>, %19, %cst_26 [1] : vector<3x32xf32> to vector<3xf32>
    %25 = vector.shape_cast %24 : vector<3xf32> to vector<3x1xf32>
    %cst_27 = arith.constant 3.200000e+01 : f32
    %26 = vector.broadcast %cst_27 : f32 to vector<3x1xf32>
    %27 = arith.divf %25, %26 : vector<3x1xf32>
    %28 = vector.broadcast %27 : vector<3x1xf32> to vector<3x32xf32>
    %29 = arith.subf %19, %28 : vector<3x32xf32>
    %30 = arith.mulf %29, %29 : vector<3x32xf32>
    %cst_28 = arith.constant dense<0.000000e+00> : vector<3xf32>
    %31 = vector.multi_reduction <add>, %30, %cst_28 [1] : vector<3x32xf32> to vector<3xf32>
    %32 = vector.shape_cast %31 : vector<3xf32> to vector<3x1xf32>
    %cst_29 = arith.constant 3.200000e+01 : f32
    %33 = vector.broadcast %cst_29 : f32 to vector<3x1xf32>
    %34 = arith.divf %32, %33 : vector<3x1xf32>
    %35 = vector.broadcast %27 : vector<3x1xf32> to vector<3x32xf32>
    %36 = arith.subf %19, %35 : vector<3x32xf32>
    %cst_30 = arith.constant 9.99999974E-6 : f32
    %37 = vector.broadcast %cst_30 : f32 to vector<3x1xf32>
    %38 = arith.addf %34, %37 : vector<3x1xf32>
    %39 = math.rsqrt %38 : vector<3x1xf32>
    %40 = vector.broadcast %39 : vector<3x1xf32> to vector<3x32xf32>
    %41 = arith.mulf %36, %40 : vector<3x32xf32>
    %42 = vector.broadcast %21 : vector<1x32xf32> to vector<3x32xf32>
    %43 = arith.mulf %41, %42 : vector<3x32xf32>
    %44 = vector.broadcast %23 : vector<1x32xf32> to vector<3x32xf32>
    %45 = arith.addf %43, %44 : vector<3x32xf32>
    %cst_31 = arith.constant 0.000000e+00 : f32
    %46 = vector.broadcast %cst_31 : f32 to vector<3x32xf32>
    %c0_32 = arith.constant 0 : index
    %c0_33 = arith.constant 0 : index
    %c0_34 = arith.constant 0 : index
    %47 = vector.load %arg10[%c0_32, %c0_33, %c0_34] : memref<8x32x8xf32, #tpu.memory_space<vmem>>, vector<1x32x8xf32>
    %48 = vector.shape_cast %47 : vector<1x32x8xf32> to vector<32x8xf32>
    %cst_35 = arith.constant dense<0.000000e+00> : vector<3x8xf32>
    %49 = tpu.matmul %45, %48, %cst_35 {dimension_numbers = #tpu.dot_dimension_numbers<[1], [0], [0], [1], [0, 0, 1, 1], [], []>} : vector<3x32xf32>, vector<32x8xf32>, vector<3x8xf32> -> vector<3x8xf32>
    %c0_36 = arith.constant 0 : index
    %c0_37 = arith.constant 0 : index
    %c0_38 = arith.constant 0 : index
    %50 = vector.load %arg11[%c0_36, %c0_37, %c0_38] : memref<8x1x8xf32, #tpu.memory_space<vmem>>, vector<1x1x8xf32>
    %51 = vector.shape_cast %50 : vector<1x1x8xf32> to vector<1x8xf32>
    %52 = vector.broadcast %51 : vector<1x8xf32> to vector<3x8xf32>
    %53 = arith.addf %49, %52 : vector<3x8xf32>
    %cst_39 = arith.constant 0.353553385 : f32
    %54 = vector.broadcast %cst_39 : f32 to vector<3x8xf32>
    %55 = arith.mulf %53, %54 : vector<3x8xf32>
    %c0_40 = arith.constant 0 : index
    %c0_41 = arith.constant 0 : index
    %c0_42 = arith.constant 0 : index
    %56 = vector.load %arg12[%c0_40, %c0_41, %c0_42] : memref<8x32x8xf32, #tpu.memory_space<vmem>>, vector<1x32x8xf32>
    %57 = vector.shape_cast %56 : vector<1x32x8xf32> to vector<32x8xf32>
    %cst_43 = arith.constant dense<0.000000e+00> : vector<3x8xf32>
    %58 = tpu.matmul %45, %57, %cst_43 {dimension_numbers = #tpu.dot_dimension_numbers<[1], [0], [0], [1], [0, 0, 1, 1], [], []>} : vector<3x32xf32>, vector<32x8xf32>, vector<3x8xf32> -> vector<3x8xf32>
    %c0_44 = arith.constant 0 : index
    %c0_45 = arith.constant 0 : index
    %c0_46 = arith.constant 0 : index
    %59 = vector.load %arg13[%c0_44, %c0_45, %c0_46] : memref<8x1x8xf32, #tpu.memory_space<vmem>>, vector<1x1x8xf32>
    %60 = vector.shape_cast %59 : vector<1x1x8xf32> to vector<1x8xf32>
    %61 = vector.broadcast %60 : vector<1x8xf32> to vector<3x8xf32>
    %62 = arith.addf %58, %61 : vector<3x8xf32>
    %c0_47 = arith.constant 0 : index
    %c0_48 = arith.constant 0 : index
    %c0_49 = arith.constant 0 : index
    %63 = vector.load %arg14[%c0_47, %c0_48, %c0_49] : memref<8x32x32xf32, #tpu.memory_space<vmem>>, vector<1x32x32xf32>
    %64 = vector.shape_cast %63 : vector<1x32x32xf32> to vector<32x32xf32>
    %cst_50 = arith.constant dense<0.000000e+00> : vector<3x32xf32>
    %65 = tpu.matmul %45, %64, %cst_50 {dimension_numbers = #tpu.dot_dimension_numbers<[1], [0], [0], [1], [0, 0, 1, 1], [], []>} : vector<3x32xf32>, vector<32x32xf32>, vector<3x32xf32> -> vector<3x32xf32>
    %c0_51 = arith.constant 0 : index
    %c0_52 = arith.constant 0 : index
    %c0_53 = arith.constant 0 : index
    %66 = vector.load %arg15[%c0_51, %c0_52, %c0_53] : memref<8x1x32xf32, #tpu.memory_space<vmem>>, vector<1x1x32xf32>
    %67 = vector.shape_cast %66 : vector<1x1x32xf32> to vector<1x32xf32>
    %68 = vector.broadcast %67 : vector<1x32xf32> to vector<3x32xf32>
    %69 = arith.addf %65, %68 : vector<3x32xf32>
    %cst_54 = arith.constant dense<0.000000e+00> : vector<3x3xf32>
    %70 = tpu.matmul %55, %62, %cst_54 {dimension_numbers = #tpu.dot_dimension_numbers<[1], [1], [0], [0], [0, 0, 1, 0], [], []>} : vector<3x8xf32>, vector<3x8xf32>, vector<3x3xf32> -> vector<3x3xf32>
    %cst_55 = arith.constant dense<0xFF800000> : vector<3xf32>
    %71 = vector.multi_reduction <maximumf>, %70, %cst_55 [1] : vector<3x3xf32> to vector<3xf32>
    %72 = vector.shape_cast %71 : vector<3xf32> to vector<3x1xf32>
    %73 = vector.broadcast %72 : vector<3x1xf32> to vector<3x3xf32>
    %74 = arith.subf %70, %73 : vector<3x3xf32>
    %75 = math.exp %74 : vector<3x3xf32>
    %cst_56 = arith.constant dense<0.000000e+00> : vector<3xf32>
    %76 = vector.multi_reduction <add>, %75, %cst_56 [1] : vector<3x3xf32> to vector<3xf32>
    %77 = vector.shape_cast %76 : vector<3xf32> to vector<3x1xf32>
    %78 = tpu.reciprocal %77 {approx = true} : vector<3x1xf32> -> vector<3x1xf32>
    %79 = vector.broadcast %78 : vector<3x1xf32> to vector<3x3xf32>
    %80 = arith.mulf %75, %79 : vector<3x3xf32>
    %cst_57 = arith.constant dense<0.000000e+00> : vector<3x32xf32>
    %81 = tpu.matmul %80, %69, %cst_57 {dimension_numbers = #tpu.dot_dimension_numbers<[1], [0], [0], [1], [0, 0, 1, 1], [], []>} : vector<3x3xf32>, vector<3x32xf32>, vector<3x32xf32> -> vector<3x32xf32>
    %82 = arith.addf %46, %81 : vector<3x32xf32>
    %c1_58 = arith.constant 1 : index
    %c0_59 = arith.constant 0 : index
    %c0_60 = arith.constant 0 : index
    %83 = vector.load %arg10[%c1_58, %c0_59, %c0_60] : memref<8x32x8xf32, #tpu.memory_space<vmem>>, vector<1x32x8xf32>
    %84 = vector.shape_cast %83 : vector<1x32x8xf32> to vector<32x8xf32>
    %cst_61 = arith.constant dense<0.000000e+00> : vector<3x8xf32>
    %85 = tpu.matmul %45, %84, %cst_61 {dimension_numbers = #tpu.dot_dimension_numbers<[1], [0], [0], [1], [0, 0, 1, 1], [], []>} : vector<3x32xf32>, vector<32x8xf32>, vector<3x8xf32> -> vector<3x8xf32>
    %c1_62 = arith.constant 1 : index
    %c0_63 = arith.constant 0 : index
    %c0_64 = arith.constant 0 : index
    %86 = vector.load %arg11[%c1_62, %c0_63, %c0_64] : memref<8x1x8xf32, #tpu.memory_space<vmem>>, vector<1x1x8xf32>
    %87 = vector.shape_cast %86 : vector<1x1x8xf32> to vector<1x8xf32>
    %88 = vector.broadcast %87 : vector<1x8xf32> to vector<3x8xf32>
    %89 = arith.addf %85, %88 : vector<3x8xf32>
    %cst_65 = arith.constant 0.353553385 : f32
    %90 = vector.broadcast %cst_65 : f32 to vector<3x8xf32>
    %91 = arith.mulf %89, %90 : vector<3x8xf32>
    %c1_66 = arith.constant 1 : index
    %c0_67 = arith.constant 0 : index
    %c0_68 = arith.constant 0 : index
    %92 = vector.load %arg12[%c1_66, %c0_67, %c0_68] : memref<8x32x8xf32, #tpu.memory_space<vmem>>, vector<1x32x8xf32>
    %93 = vector.shape_cast %92 : vector<1x32x8xf32> to vector<32x8xf32>
    %cst_69 = arith.constant dense<0.000000e+00> : vector<3x8xf32>
    %94 = tpu.matmul %45, %93, %cst_69 {dimension_numbers = #tpu.dot_dimension_numbers<[1], [0], [0], [1], [0, 0, 1, 1], [], []>} : vector<3x32xf32>, vector<32x8xf32>, vector<3x8xf32> -> vector<3x8xf32>
    %c1_70 = arith.constant 1 : index
    %c0_71 = arith.constant 0 : index
    %c0_72 = arith.constant 0 : index
    %95 = vector.load %arg13[%c1_70, %c0_71, %c0_72] : memref<8x1x8xf32, #tpu.memory_space<vmem>>, vector<1x1x8xf32>
    %96 = vector.shape_cast %95 : vector<1x1x8xf32> to vector<1x8xf32>
    %97 = vector.broadcast %96 : vector<1x8xf32> to vector<3x8xf32>
    %98 = arith.addf %94, %97 : vector<3x8xf32>
    %c1_73 = arith.constant 1 : index
    %c0_74 = arith.constant 0 : index
    %c0_75 = arith.constant 0 : index
    %99 = vector.load %arg14[%c1_73, %c0_74, %c0_75] : memref<8x32x32xf32, #tpu.memory_space<vmem>>, vector<1x32x32xf32>
    %100 = vector.shape_cast %99 : vector<1x32x32xf32> to vector<32x32xf32>
    %cst_76 = arith.constant dense<0.000000e+00> : vector<3x32xf32>
    %101 = tpu.matmul %45, %100, %cst_76 {dimension_numbers = #tpu.dot_dimension_numbers<[1], [0], [0], [1], [0, 0, 1, 1], [], []>} : vector<3x32xf32>, vector<32x32xf32>, vector<3x32xf32> -> vector<3x32xf32>
    %c1_77 = arith.constant 1 : index
    %c0_78 = arith.constant 0 : index
    %c0_79 = arith.constant 0 : index
    %102 = vector.load %arg15[%c1_77, %c0_78, %c0_79] : memref<8x1x32xf32, #tpu.memory_space<vmem>>, vector<1x1x32xf32>
    %103 = vector.shape_cast %102 : vector<1x1x32xf32> to vector<1x32xf32>
    %104 = vector.broadcast %103 : vector<1x32xf32> to vector<3x32xf32>
    %105 = arith.addf %101, %104 : vector<3x32xf32>
    %cst_80 = arith.constant dense<0.000000e+00> : vector<3x3xf32>
    %106 = tpu.matmul %91, %98, %cst_80 {dimension_numbers = #tpu.dot_dimension_numbers<[1], [1], [0], [0], [0, 0, 1, 0], [], []>} : vector<3x8xf32>, vector<3x8xf32>, vector<3x3xf32> -> vector<3x3xf32>
    %cst_81 = arith.constant dense<0xFF800000> : vector<3xf32>
    %107 = vector.multi_reduction <maximumf>, %106, %cst_81 [1] : vector<3x3xf32> to vector<3xf32>
    %108 = vector.shape_cast %107 : vector<3xf32> to vector<3x1xf32>
    %109 = vector.broadcast %108 : vector<3x1xf32> to vector<3x3xf32>
    %110 = arith.subf %106, %109 : vector<3x3xf32>
    %111 = math.exp %110 : vector<3x3xf32>
    %cst_82 = arith.constant dense<0.000000e+00> : vector<3xf32>
    %112 = vector.multi_reduction <add>, %111, %cst_82 [1] : vector<3x3xf32> to vector<3xf32>
    %113 = vector.shape_cast %112 : vector<3xf32> to vector<3x1xf32>
    %114 = tpu.reciprocal %113 {approx = true} : vector<3x1xf32> -> vector<3x1xf32>
    %115 = vector.broadcast %114 : vector<3x1xf32> to vector<3x3xf32>
    %116 = arith.mulf %111, %115 : vector<3x3xf32>
    %cst_83 = arith.constant dense<0.000000e+00> : vector<3x32xf32>
    %117 = tpu.matmul %116, %105, %cst_83 {dimension_numbers = #tpu.dot_dimension_numbers<[1], [0], [0], [1], [0, 0, 1, 1], [], []>} : vector<3x3xf32>, vector<3x32xf32>, vector<3x32xf32> -> vector<3x32xf32>
    %118 = arith.addf %82, %117 : vector<3x32xf32>
    %c2_84 = arith.constant 2 : index
    %c0_85 = arith.constant 0 : index
    %c0_86 = arith.constant 0 : index
    %119 = vector.load %arg10[%c2_84, %c0_85, %c0_86] : memref<8x32x8xf32, #tpu.memory_space<vmem>>, vector<1x32x8xf32>
    %120 = vector.shape_cast %119 : vector<1x32x8xf32> to vector<32x8xf32>
    %cst_87 = arith.constant dense<0.000000e+00> : vector<3x8xf32>
    %121 = tpu.matmul %45, %120, %cst_87 {dimension_numbers = #tpu.dot_dimension_numbers<[1], [0], [0], [1], [0, 0, 1, 1], [], []>} : vector<3x32xf32>, vector<32x8xf32>, vector<3x8xf32> -> vector<3x8xf32>
    %c2_88 = arith.constant 2 : index
    %c0_89 = arith.constant 0 : index
    %c0_90 = arith.constant 0 : index
    %122 = vector.load %arg11[%c2_88, %c0_89, %c0_90] : memref<8x1x8xf32, #tpu.memory_space<vmem>>, vector<1x1x8xf32>
    %123 = vector.shape_cast %122 : vector<1x1x8xf32> to vector<1x8xf32>
    %124 = vector.broadcast %123 : vector<1x8xf32> to vector<3x8xf32>
    %125 = arith.addf %121, %124 : vector<3x8xf32>
    %cst_91 = arith.constant 0.353553385 : f32
    %126 = vector.broadcast %cst_91 : f32 to vector<3x8xf32>
    %127 = arith.mulf %125, %126 : vector<3x8xf32>
    %c2_92 = arith.constant 2 : index
    %c0_93 = arith.constant 0 : index
    %c0_94 = arith.constant 0 : index
    %128 = vector.load %arg12[%c2_92, %c0_93, %c0_94] : memref<8x32x8xf32, #tpu.memory_space<vmem>>, vector<1x32x8xf32>
    %129 = vector.shape_cast %128 : vector<1x32x8xf32> to vector<32x8xf32>
    %cst_95 = arith.constant dense<0.000000e+00> : vector<3x8xf32>
    %130 = tpu.matmul %45, %129, %cst_95 {dimension_numbers = #tpu.dot_dimension_numbers<[1], [0], [0], [1], [0, 0, 1, 1], [], []>} : vector<3x32xf32>, vector<32x8xf32>, vector<3x8xf32> -> vector<3x8xf32>
    %c2_96 = arith.constant 2 : index
    %c0_97 = arith.constant 0 : index
    %c0_98 = arith.constant 0 : index
    %131 = vector.load %arg13[%c2_96, %c0_97, %c0_98] : memref<8x1x8xf32, #tpu.memory_space<vmem>>, vector<1x1x8xf32>
    %132 = vector.shape_cast %131 : vector<1x1x8xf32> to vector<1x8xf32>
    %133 = vector.broadcast %132 : vector<1x8xf32> to vector<3x8xf32>
    %134 = arith.addf %130, %133 : vector<3x8xf32>
    %c2_99 = arith.constant 2 : index
    %c0_100 = arith.constant 0 : index
    %c0_101 = arith.constant 0 : index
    %135 = vector.load %arg14[%c2_99, %c0_100, %c0_101] : memref<8x32x32xf32, #tpu.memory_space<vmem>>, vector<1x32x32xf32>
    %136 = vector.shape_cast %135 : vector<1x32x32xf32> to vector<32x32xf32>
    %cst_102 = arith.constant dense<0.000000e+00> : vector<3x32xf32>
    %137 = tpu.matmul %45, %136, %cst_102 {dimension_numbers = #tpu.dot_dimension_numbers<[1], [0], [0], [1], [0, 0, 1, 1], [], []>} : vector<3x32xf32>, vector<32x32xf32>, vector<3x32xf32> -> vector<3x32xf32>
    %c2_103 = arith.constant 2 : index
    %c0_104 = arith.constant 0 : index
    %c0_105 = arith.constant 0 : index
    %138 = vector.load %arg15[%c2_103, %c0_104, %c0_105] : memref<8x1x32xf32, #tpu.memory_space<vmem>>, vector<1x1x32xf32>
    %139 = vector.shape_cast %138 : vector<1x1x32xf32> to vector<1x32xf32>
    %140 = vector.broadcast %139 : vector<1x32xf32> to vector<3x32xf32>
    %141 = arith.addf %137, %140 : vector<3x32xf32>
    %cst_106 = arith.constant dense<0.000000e+00> : vector<3x3xf32>
    %142 = tpu.matmul %127, %134, %cst_106 {dimension_numbers = #tpu.dot_dimension_numbers<[1], [1], [0], [0], [0, 0, 1, 0], [], []>} : vector<3x8xf32>, vector<3x8xf32>, vector<3x3xf32> -> vector<3x3xf32>
    %cst_107 = arith.constant dense<0xFF800000> : vector<3xf32>
    %143 = vector.multi_reduction <maximumf>, %142, %cst_107 [1] : vector<3x3xf32> to vector<3xf32>
    %144 = vector.shape_cast %143 : vector<3xf32> to vector<3x1xf32>
    %145 = vector.broadcast %144 : vector<3x1xf32> to vector<3x3xf32>
    %146 = arith.subf %142, %145 : vector<3x3xf32>
    %147 = math.exp %146 : vector<3x3xf32>
    %cst_108 = arith.constant dense<0.000000e+00> : vector<3xf32>
    %148 = vector.multi_reduction <add>, %147, %cst_108 [1] : vector<3x3xf32> to vector<3xf32>
    %149 = vector.shape_cast %148 : vector<3xf32> to vector<3x1xf32>
    %150 = tpu.reciprocal %149 {approx = true} : vector<3x1xf32> -> vector<3x1xf32>
    %151 = vector.broadcast %150 : vector<3x1xf32> to vector<3x3xf32>
    %152 = arith.mulf %147, %151 : vector<3x3xf32>
    %cst_109 = arith.constant dense<0.000000e+00> : vector<3x32xf32>
    %153 = tpu.matmul %152, %141, %cst_109 {dimension_numbers = #tpu.dot_dimension_numbers<[1], [0], [0], [1], [0, 0, 1, 1], [], []>} : vector<3x3xf32>, vector<3x32xf32>, vector<3x32xf32> -> vector<3x32xf32>
    %154 = arith.addf %118, %153 : vector<3x32xf32>
    %c3 = arith.constant 3 : index
    %c0_110 = arith.constant 0 : index
    %c0_111 = arith.constant 0 : index
    %155 = vector.load %arg10[%c3, %c0_110, %c0_111] : memref<8x32x8xf32, #tpu.memory_space<vmem>>, vector<1x32x8xf32>
    %156 = vector.shape_cast %155 : vector<1x32x8xf32> to vector<32x8xf32>
    %cst_112 = arith.constant dense<0.000000e+00> : vector<3x8xf32>
    %157 = tpu.matmul %45, %156, %cst_112 {dimension_numbers = #tpu.dot_dimension_numbers<[1], [0], [0], [1], [0, 0, 1, 1], [], []>} : vector<3x32xf32>, vector<32x8xf32>, vector<3x8xf32> -> vector<3x8xf32>
    %c3_113 = arith.constant 3 : index
    %c0_114 = arith.constant 0 : index
    %c0_115 = arith.constant 0 : index
    %158 = vector.load %arg11[%c3_113, %c0_114, %c0_115] : memref<8x1x8xf32, #tpu.memory_space<vmem>>, vector<1x1x8xf32>
    %159 = vector.shape_cast %158 : vector<1x1x8xf32> to vector<1x8xf32>
    %160 = vector.broadcast %159 : vector<1x8xf32> to vector<3x8xf32>
    %161 = arith.addf %157, %160 : vector<3x8xf32>
    %cst_116 = arith.constant 0.353553385 : f32
    %162 = vector.broadcast %cst_116 : f32 to vector<3x8xf32>
    %163 = arith.mulf %161, %162 : vector<3x8xf32>
    %c3_117 = arith.constant 3 : index
    %c0_118 = arith.constant 0 : index
    %c0_119 = arith.constant 0 : index
    %164 = vector.load %arg12[%c3_117, %c0_118, %c0_119] : memref<8x32x8xf32, #tpu.memory_space<vmem>>, vector<1x32x8xf32>
    %165 = vector.shape_cast %164 : vector<1x32x8xf32> to vector<32x8xf32>
    %cst_120 = arith.constant dense<0.000000e+00> : vector<3x8xf32>
    %166 = tpu.matmul %45, %165, %cst_120 {dimension_numbers = #tpu.dot_dimension_numbers<[1], [0], [0], [1], [0, 0, 1, 1], [], []>} : vector<3x32xf32>, vector<32x8xf32>, vector<3x8xf32> -> vector<3x8xf32>
    %c3_121 = arith.constant 3 : index
    %c0_122 = arith.constant 0 : index
    %c0_123 = arith.constant 0 : index
    %167 = vector.load %arg13[%c3_121, %c0_122, %c0_123] : memref<8x1x8xf32, #tpu.memory_space<vmem>>, vector<1x1x8xf32>
    %168 = vector.shape_cast %167 : vector<1x1x8xf32> to vector<1x8xf32>
    %169 = vector.broadcast %168 : vector<1x8xf32> to vector<3x8xf32>
    %170 = arith.addf %166, %169 : vector<3x8xf32>
    %c3_124 = arith.constant 3 : index
    %c0_125 = arith.constant 0 : index
    %c0_126 = arith.constant 0 : index
    %171 = vector.load %arg14[%c3_124, %c0_125, %c0_126] : memref<8x32x32xf32, #tpu.memory_space<vmem>>, vector<1x32x32xf32>
    %172 = vector.shape_cast %171 : vector<1x32x32xf32> to vector<32x32xf32>
    %cst_127 = arith.constant dense<0.000000e+00> : vector<3x32xf32>
    %173 = tpu.matmul %45, %172, %cst_127 {dimension_numbers = #tpu.dot_dimension_numbers<[1], [0], [0], [1], [0, 0, 1, 1], [], []>} : vector<3x32xf32>, vector<32x32xf32>, vector<3x32xf32> -> vector<3x32xf32>
    %c3_128 = arith.constant 3 : index
    %c0_129 = arith.constant 0 : index
    %c0_130 = arith.constant 0 : index
    %174 = vector.load %arg15[%c3_128, %c0_129, %c0_130] : memref<8x1x32xf32, #tpu.memory_space<vmem>>, vector<1x1x32xf32>
    %175 = vector.shape_cast %174 : vector<1x1x32xf32> to vector<1x32xf32>
    %176 = vector.broadcast %175 : vector<1x32xf32> to vector<3x32xf32>
    %177 = arith.addf %173, %176 : vector<3x32xf32>
    %cst_131 = arith.constant dense<0.000000e+00> : vector<3x3xf32>
    %178 = tpu.matmul %163, %170, %cst_131 {dimension_numbers = #tpu.dot_dimension_numbers<[1], [1], [0], [0], [0, 0, 1, 0], [], []>} : vector<3x8xf32>, vector<3x8xf32>, vector<3x3xf32> -> vector<3x3xf32>
    %cst_132 = arith.constant dense<0xFF800000> : vector<3xf32>
    %179 = vector.multi_reduction <maximumf>, %178, %cst_132 [1] : vector<3x3xf32> to vector<3xf32>
    %180 = vector.shape_cast %179 : vector<3xf32> to vector<3x1xf32>
    %181 = vector.broadcast %180 : vector<3x1xf32> to vector<3x3xf32>
    %182 = arith.subf %178, %181 : vector<3x3xf32>
    %183 = math.exp %182 : vector<3x3xf32>
    %cst_133 = arith.constant dense<0.000000e+00> : vector<3xf32>
    %184 = vector.multi_reduction <add>, %183, %cst_133 [1] : vector<3x3xf32> to vector<3xf32>
    %185 = vector.shape_cast %184 : vector<3xf32> to vector<3x1xf32>
    %186 = tpu.reciprocal %185 {approx = true} : vector<3x1xf32> -> vector<3x1xf32>
    %187 = vector.broadcast %186 : vector<3x1xf32> to vector<3x3xf32>
    %188 = arith.mulf %183, %187 : vector<3x3xf32>
    %cst_134 = arith.constant dense<0.000000e+00> : vector<3x32xf32>
    %189 = tpu.matmul %188, %177, %cst_134 {dimension_numbers = #tpu.dot_dimension_numbers<[1], [0], [0], [1], [0, 0, 1, 1], [], []>} : vector<3x3xf32>, vector<3x32xf32>, vector<3x32xf32> -> vector<3x32xf32>
    %190 = arith.addf %154, %189 : vector<3x32xf32>
    %c0_135 = arith.constant 0 : index
    %c0_136 = arith.constant 0 : index
    %c0_137 = arith.constant 0 : index
    %191 = vector.load %arg16[%c0_135, %c0_136, %c0_137] : memref<2x32x32xf32, #tpu.memory_space<vmem>>, vector<1x32x32xf32>
    %192 = vector.shape_cast %191 : vector<1x32x32xf32> to vector<32x32xf32>
    %cst_138 = arith.constant dense<0.000000e+00> : vector<3x32xf32>
    %193 = tpu.matmul %190, %192, %cst_138 {dimension_numbers = #tpu.dot_dimension_numbers<[1], [0], [0], [1], [0, 0, 1, 1], [], []>} : vector<3x32xf32>, vector<32x32xf32>, vector<3x32xf32> -> vector<3x32xf32>
    %194 = arith.addf %19, %193 : vector<3x32xf32>
    %c0_139 = arith.constant 0 : index
    %c0_140 = arith.constant 0 : index
    %c0_141 = arith.constant 0 : index
    %195 = vector.load %arg17[%c0_139, %c0_140, %c0_141] : memref<2x1x32xf32, #tpu.memory_space<vmem>>, vector<1x1x32xf32>
    %196 = vector.shape_cast %195 : vector<1x1x32xf32> to vector<1x32xf32>
    %197 = vector.broadcast %196 : vector<1x32xf32> to vector<3x32xf32>
    %198 = arith.addf %194, %197 : vector<3x32xf32>
    %c0_142 = arith.constant 0 : index
    %c0_143 = arith.constant 0 : index
    %c0_144 = arith.constant 0 : index
    %199 = vector.load %arg18[%c0_142, %c0_143, %c0_144] : memref<2x1x32xf32, #tpu.memory_space<vmem>>, vector<1x1x32xf32>
    %200 = vector.shape_cast %199 : vector<1x1x32xf32> to vector<1x32xf32>
    %c0_145 = arith.constant 0 : index
    %c0_146 = arith.constant 0 : index
    %c0_147 = arith.constant 0 : index
    %201 = vector.load %arg19[%c0_145, %c0_146, %c0_147] : memref<2x1x32xf32, #tpu.memory_space<vmem>>, vector<1x1x32xf32>
    %202 = vector.shape_cast %201 : vector<1x1x32xf32> to vector<1x32xf32>
    %cst_148 = arith.constant dense<0.000000e+00> : vector<3xf32>
    %203 = vector.multi_reduction <add>, %198, %cst_148 [1] : vector<3x32xf32> to vector<3xf32>
    %204 = vector.shape_cast %203 : vector<3xf32> to vector<3x1xf32>
    %cst_149 = arith.constant 3.200000e+01 : f32
    %205 = vector.broadcast %cst_149 : f32 to vector<3x1xf32>
    %206 = arith.divf %204, %205 : vector<3x1xf32>
    %207 = vector.broadcast %206 : vector<3x1xf32> to vector<3x32xf32>
    %208 = arith.subf %198, %207 : vector<3x32xf32>
    %209 = arith.mulf %208, %208 : vector<3x32xf32>
    %cst_150 = arith.constant dense<0.000000e+00> : vector<3xf32>
    %210 = vector.multi_reduction <add>, %209, %cst_150 [1] : vector<3x32xf32> to vector<3xf32>
    %211 = vector.shape_cast %210 : vector<3xf32> to vector<3x1xf32>
    %cst_151 = arith.constant 3.200000e+01 : f32
    %212 = vector.broadcast %cst_151 : f32 to vector<3x1xf32>
    %213 = arith.divf %211, %212 : vector<3x1xf32>
    %214 = vector.broadcast %206 : vector<3x1xf32> to vector<3x32xf32>
    %215 = arith.subf %198, %214 : vector<3x32xf32>
    %cst_152 = arith.constant 9.99999974E-6 : f32
    %216 = vector.broadcast %cst_152 : f32 to vector<3x1xf32>
    %217 = arith.addf %213, %216 : vector<3x1xf32>
    %218 = math.rsqrt %217 : vector<3x1xf32>
    %219 = vector.broadcast %218 : vector<3x1xf32> to vector<3x32xf32>
    %220 = arith.mulf %215, %219 : vector<3x32xf32>
    %221 = vector.broadcast %200 : vector<1x32xf32> to vector<3x32xf32>
    %222 = arith.mulf %220, %221 : vector<3x32xf32>
    %223 = vector.broadcast %202 : vector<1x32xf32> to vector<3x32xf32>
    %224 = arith.addf %222, %223 : vector<3x32xf32>
    %c0_153 = arith.constant 0 : index
    %c0_154 = arith.constant 0 : index
    %c0_155 = arith.constant 0 : index
    %225 = vector.load %arg20[%c0_153, %c0_154, %c0_155] : memref<2x32x128xf32, #tpu.memory_space<vmem>>, vector<1x32x128xf32>
    %226 = vector.shape_cast %225 : vector<1x32x128xf32> to vector<32x128xf32>
    %cst_156 = arith.constant dense<0.000000e+00> : vector<3x128xf32>
    %227 = tpu.matmul %224, %226, %cst_156 {dimension_numbers = #tpu.dot_dimension_numbers<[1], [0], [0], [1], [0, 0, 1, 1], [], []>} : vector<3x32xf32>, vector<32x128xf32>, vector<3x128xf32> -> vector<3x128xf32>
    %c0_157 = arith.constant 0 : index
    %c0_158 = arith.constant 0 : index
    %c0_159 = arith.constant 0 : index
    %228 = vector.load %arg21[%c0_157, %c0_158, %c0_159] : memref<2x1x128xf32, #tpu.memory_space<vmem>>, vector<1x1x128xf32>
    %229 = vector.shape_cast %228 : vector<1x1x128xf32> to vector<1x128xf32>
    %230 = vector.broadcast %229 : vector<1x128xf32> to vector<3x128xf32>
    %231 = arith.addf %227, %230 : vector<3x128xf32>
    %cst_160 = arith.constant 5.000000e-01 : f32
    %232 = vector.broadcast %cst_160 : f32 to vector<3x128xf32>
    %233 = arith.mulf %232, %231 : vector<3x128xf32>
    %cst_161 = arith.constant 4.471500e-02 : f32
    %234 = vector.broadcast %cst_161 : f32 to vector<3x128xf32>
    %235 = arith.mulf %234, %231 : vector<3x128xf32>
    %236 = arith.mulf %235, %231 : vector<3x128xf32>
    %237 = arith.mulf %236, %231 : vector<3x128xf32>
    %238 = arith.addf %231, %237 : vector<3x128xf32>
    %cst_162 = arith.constant 0.797884583 : f32
    %239 = vector.broadcast %cst_162 : f32 to vector<3x128xf32>
    %240 = arith.mulf %239, %238 : vector<3x128xf32>
    %241 = math.tanh %240 : vector<3x128xf32>
    %cst_163 = arith.constant 1.000000e+00 : f32
    %242 = vector.broadcast %cst_163 : f32 to vector<3x128xf32>
    %243 = arith.addf %242, %241 : vector<3x128xf32>
    %244 = arith.mulf %233, %243 : vector<3x128xf32>
    %c0_164 = arith.constant 0 : index
    %c0_165 = arith.constant 0 : index
    %c0_166 = arith.constant 0 : index
    %245 = vector.load %arg22[%c0_164, %c0_165, %c0_166] : memref<2x128x32xf32, #tpu.memory_space<vmem>>, vector<1x128x32xf32>
    %246 = vector.shape_cast %245 : vector<1x128x32xf32> to vector<128x32xf32>
    %cst_167 = arith.constant dense<0.000000e+00> : vector<3x32xf32>
    %247 = tpu.matmul %244, %246, %cst_167 {dimension_numbers = #tpu.dot_dimension_numbers<[1], [0], [0], [1], [0, 0, 1, 1], [], []>} : vector<3x128xf32>, vector<128x32xf32>, vector<3x32xf32> -> vector<3x32xf32>
    %c0_168 = arith.constant 0 : index
    %c0_169 = arith.constant 0 : index
    %c0_170 = arith.constant 0 : index
    %248 = vector.load %arg23[%c0_168, %c0_169, %c0_170] : memref<2x1x32xf32, #tpu.memory_space<vmem>>, vector<1x1x32xf32>
    %249 = vector.shape_cast %248 : vector<1x1x32xf32> to vector<1x32xf32>
    %250 = vector.broadcast %249 : vector<1x32xf32> to vector<3x32xf32>
    %251 = arith.addf %247, %250 : vector<3x32xf32>
    %252 = arith.addf %198, %251 : vector<3x32xf32>
    %c1_171 = arith.constant 1 : index
    %c0_172 = arith.constant 0 : index
    %c0_173 = arith.constant 0 : index
    %253 = vector.load %arg8[%c1_171, %c0_172, %c0_173] : memref<2x1x32xf32, #tpu.memory_space<vmem>>, vector<1x1x32xf32>
    %254 = vector.shape_cast %253 : vector<1x1x32xf32> to vector<1x32xf32>
    %c1_174 = arith.constant 1 : index
    %c0_175 = arith.constant 0 : index
    %c0_176 = arith.constant 0 : index
    %255 = vector.load %arg9[%c1_174, %c0_175, %c0_176] : memref<2x1x32xf32, #tpu.memory_space<vmem>>, vector<1x1x32xf32>
    %256 = vector.shape_cast %255 : vector<1x1x32xf32> to vector<1x32xf32>
    %cst_177 = arith.constant dense<0.000000e+00> : vector<3xf32>
    %257 = vector.multi_reduction <add>, %252, %cst_177 [1] : vector<3x32xf32> to vector<3xf32>
    %258 = vector.shape_cast %257 : vector<3xf32> to vector<3x1xf32>
    %cst_178 = arith.constant 3.200000e+01 : f32
    %259 = vector.broadcast %cst_178 : f32 to vector<3x1xf32>
    %260 = arith.divf %258, %259 : vector<3x1xf32>
    %261 = vector.broadcast %260 : vector<3x1xf32> to vector<3x32xf32>
    %262 = arith.subf %252, %261 : vector<3x32xf32>
    %263 = arith.mulf %262, %262 : vector<3x32xf32>
    %cst_179 = arith.constant dense<0.000000e+00> : vector<3xf32>
    %264 = vector.multi_reduction <add>, %263, %cst_179 [1] : vector<3x32xf32> to vector<3xf32>
    %265 = vector.shape_cast %264 : vector<3xf32> to vector<3x1xf32>
    %cst_180 = arith.constant 3.200000e+01 : f32
    %266 = vector.broadcast %cst_180 : f32 to vector<3x1xf32>
    %267 = arith.divf %265, %266 : vector<3x1xf32>
    %268 = vector.broadcast %260 : vector<3x1xf32> to vector<3x32xf32>
    %269 = arith.subf %252, %268 : vector<3x32xf32>
    %cst_181 = arith.constant 9.99999974E-6 : f32
    %270 = vector.broadcast %cst_181 : f32 to vector<3x1xf32>
    %271 = arith.addf %267, %270 : vector<3x1xf32>
    %272 = math.rsqrt %271 : vector<3x1xf32>
    %273 = vector.broadcast %272 : vector<3x1xf32> to vector<3x32xf32>
    %274 = arith.mulf %269, %273 : vector<3x32xf32>
    %275 = vector.broadcast %254 : vector<1x32xf32> to vector<3x32xf32>
    %276 = arith.mulf %274, %275 : vector<3x32xf32>
    %277 = vector.broadcast %256 : vector<1x32xf32> to vector<3x32xf32>
    %278 = arith.addf %276, %277 : vector<3x32xf32>
    %cst_182 = arith.constant 0.000000e+00 : f32
    %279 = vector.broadcast %cst_182 : f32 to vector<3x32xf32>
    %c4 = arith.constant 4 : index
    %c0_183 = arith.constant 0 : index
    %c0_184 = arith.constant 0 : index
    %280 = vector.load %arg10[%c4, %c0_183, %c0_184] : memref<8x32x8xf32, #tpu.memory_space<vmem>>, vector<1x32x8xf32>
    %281 = vector.shape_cast %280 : vector<1x32x8xf32> to vector<32x8xf32>
    %cst_185 = arith.constant dense<0.000000e+00> : vector<3x8xf32>
    %282 = tpu.matmul %278, %281, %cst_185 {dimension_numbers = #tpu.dot_dimension_numbers<[1], [0], [0], [1], [0, 0, 1, 1], [], []>} : vector<3x32xf32>, vector<32x8xf32>, vector<3x8xf32> -> vector<3x8xf32>
    %c4_186 = arith.constant 4 : index
    %c0_187 = arith.constant 0 : index
    %c0_188 = arith.constant 0 : index
    %283 = vector.load %arg11[%c4_186, %c0_187, %c0_188] : memref<8x1x8xf32, #tpu.memory_space<vmem>>, vector<1x1x8xf32>
    %284 = vector.shape_cast %283 : vector<1x1x8xf32> to vector<1x8xf32>
    %285 = vector.broadcast %284 : vector<1x8xf32> to vector<3x8xf32>
    %286 = arith.addf %282, %285 : vector<3x8xf32>
    %cst_189 = arith.constant 0.353553385 : f32
    %287 = vector.broadcast %cst_189 : f32 to vector<3x8xf32>
    %288 = arith.mulf %286, %287 : vector<3x8xf32>
    %c4_190 = arith.constant 4 : index
    %c0_191 = arith.constant 0 : index
    %c0_192 = arith.constant 0 : index
    %289 = vector.load %arg12[%c4_190, %c0_191, %c0_192] : memref<8x32x8xf32, #tpu.memory_space<vmem>>, vector<1x32x8xf32>
    %290 = vector.shape_cast %289 : vector<1x32x8xf32> to vector<32x8xf32>
    %cst_193 = arith.constant dense<0.000000e+00> : vector<3x8xf32>
    %291 = tpu.matmul %278, %290, %cst_193 {dimension_numbers = #tpu.dot_dimension_numbers<[1], [0], [0], [1], [0, 0, 1, 1], [], []>} : vector<3x32xf32>, vector<32x8xf32>, vector<3x8xf32> -> vector<3x8xf32>
    %c4_194 = arith.constant 4 : index
    %c0_195 = arith.constant 0 : index
    %c0_196 = arith.constant 0 : index
    %292 = vector.load %arg13[%c4_194, %c0_195, %c0_196] : memref<8x1x8xf32, #tpu.memory_space<vmem>>, vector<1x1x8xf32>
    %293 = vector.shape_cast %292 : vector<1x1x8xf32> to vector<1x8xf32>
    %294 = vector.broadcast %293 : vector<1x8xf32> to vector<3x8xf32>
    %295 = arith.addf %291, %294 : vector<3x8xf32>
    %c4_197 = arith.constant 4 : index
    %c0_198 = arith.constant 0 : index
    %c0_199 = arith.constant 0 : index
    %296 = vector.load %arg14[%c4_197, %c0_198, %c0_199] : memref<8x32x32xf32, #tpu.memory_space<vmem>>, vector<1x32x32xf32>
    %297 = vector.shape_cast %296 : vector<1x32x32xf32> to vector<32x32xf32>
    %cst_200 = arith.constant dense<0.000000e+00> : vector<3x32xf32>
    %298 = tpu.matmul %278, %297, %cst_200 {dimension_numbers = #tpu.dot_dimension_numbers<[1], [0], [0], [1], [0, 0, 1, 1], [], []>} : vector<3x32xf32>, vector<32x32xf32>, vector<3x32xf32> -> vector<3x32xf32>
    %c4_201 = arith.constant 4 : index
    %c0_202 = arith.constant 0 : index
    %c0_203 = arith.constant 0 : index
    %299 = vector.load %arg15[%c4_201, %c0_202, %c0_203] : memref<8x1x32xf32, #tpu.memory_space<vmem>>, vector<1x1x32xf32>
    %300 = vector.shape_cast %299 : vector<1x1x32xf32> to vector<1x32xf32>
    %301 = vector.broadcast %300 : vector<1x32xf32> to vector<3x32xf32>
    %302 = arith.addf %298, %301 : vector<3x32xf32>
    %cst_204 = arith.constant dense<0.000000e+00> : vector<3x3xf32>
    %303 = tpu.matmul %288, %295, %cst_204 {dimension_numbers = #tpu.dot_dimension_numbers<[1], [1], [0], [0], [0, 0, 1, 0], [], []>} : vector<3x8xf32>, vector<3x8xf32>, vector<3x3xf32> -> vector<3x3xf32>
    %cst_205 = arith.constant dense<0xFF800000> : vector<3xf32>
    %304 = vector.multi_reduction <maximumf>, %303, %cst_205 [1] : vector<3x3xf32> to vector<3xf32>
    %305 = vector.shape_cast %304 : vector<3xf32> to vector<3x1xf32>
    %306 = vector.broadcast %305 : vector<3x1xf32> to vector<3x3xf32>
    %307 = arith.subf %303, %306 : vector<3x3xf32>
    %308 = math.exp %307 : vector<3x3xf32>
    %cst_206 = arith.constant dense<0.000000e+00> : vector<3xf32>
    %309 = vector.multi_reduction <add>, %308, %cst_206 [1] : vector<3x3xf32> to vector<3xf32>
    %310 = vector.shape_cast %309 : vector<3xf32> to vector<3x1xf32>
    %311 = tpu.reciprocal %310 {approx = true} : vector<3x1xf32> -> vector<3x1xf32>
    %312 = vector.broadcast %311 : vector<3x1xf32> to vector<3x3xf32>
    %313 = arith.mulf %308, %312 : vector<3x3xf32>
    %cst_207 = arith.constant dense<0.000000e+00> : vector<3x32xf32>
    %314 = tpu.matmul %313, %302, %cst_207 {dimension_numbers = #tpu.dot_dimension_numbers<[1], [0], [0], [1], [0, 0, 1, 1], [], []>} : vector<3x3xf32>, vector<3x32xf32>, vector<3x32xf32> -> vector<3x32xf32>
    %315 = arith.addf %279, %314 : vector<3x32xf32>
    %c5 = arith.constant 5 : index
    %c0_208 = arith.constant 0 : index
    %c0_209 = arith.constant 0 : index
    %316 = vector.load %arg10[%c5, %c0_208, %c0_209] : memref<8x32x8xf32, #tpu.memory_space<vmem>>, vector<1x32x8xf32>
    %317 = vector.shape_cast %316 : vector<1x32x8xf32> to vector<32x8xf32>
    %cst_210 = arith.constant dense<0.000000e+00> : vector<3x8xf32>
    %318 = tpu.matmul %278, %317, %cst_210 {dimension_numbers = #tpu.dot_dimension_numbers<[1], [0], [0], [1], [0, 0, 1, 1], [], []>} : vector<3x32xf32>, vector<32x8xf32>, vector<3x8xf32> -> vector<3x8xf32>
    %c5_211 = arith.constant 5 : index
    %c0_212 = arith.constant 0 : index
    %c0_213 = arith.constant 0 : index
    %319 = vector.load %arg11[%c5_211, %c0_212, %c0_213] : memref<8x1x8xf32, #tpu.memory_space<vmem>>, vector<1x1x8xf32>
    %320 = vector.shape_cast %319 : vector<1x1x8xf32> to vector<1x8xf32>
    %321 = vector.broadcast %320 : vector<1x8xf32> to vector<3x8xf32>
    %322 = arith.addf %318, %321 : vector<3x8xf32>
    %cst_214 = arith.constant 0.353553385 : f32
    %323 = vector.broadcast %cst_214 : f32 to vector<3x8xf32>
    %324 = arith.mulf %322, %323 : vector<3x8xf32>
    %c5_215 = arith.constant 5 : index
    %c0_216 = arith.constant 0 : index
    %c0_217 = arith.constant 0 : index
    %325 = vector.load %arg12[%c5_215, %c0_216, %c0_217] : memref<8x32x8xf32, #tpu.memory_space<vmem>>, vector<1x32x8xf32>
    %326 = vector.shape_cast %325 : vector<1x32x8xf32> to vector<32x8xf32>
    %cst_218 = arith.constant dense<0.000000e+00> : vector<3x8xf32>
    %327 = tpu.matmul %278, %326, %cst_218 {dimension_numbers = #tpu.dot_dimension_numbers<[1], [0], [0], [1], [0, 0, 1, 1], [], []>} : vector<3x32xf32>, vector<32x8xf32>, vector<3x8xf32> -> vector<3x8xf32>
    %c5_219 = arith.constant 5 : index
    %c0_220 = arith.constant 0 : index
    %c0_221 = arith.constant 0 : index
    %328 = vector.load %arg13[%c5_219, %c0_220, %c0_221] : memref<8x1x8xf32, #tpu.memory_space<vmem>>, vector<1x1x8xf32>
    %329 = vector.shape_cast %328 : vector<1x1x8xf32> to vector<1x8xf32>
    %330 = vector.broadcast %329 : vector<1x8xf32> to vector<3x8xf32>
    %331 = arith.addf %327, %330 : vector<3x8xf32>
    %c5_222 = arith.constant 5 : index
    %c0_223 = arith.constant 0 : index
    %c0_224 = arith.constant 0 : index
    %332 = vector.load %arg14[%c5_222, %c0_223, %c0_224] : memref<8x32x32xf32, #tpu.memory_space<vmem>>, vector<1x32x32xf32>
    %333 = vector.shape_cast %332 : vector<1x32x32xf32> to vector<32x32xf32>
    %cst_225 = arith.constant dense<0.000000e+00> : vector<3x32xf32>
    %334 = tpu.matmul %278, %333, %cst_225 {dimension_numbers = #tpu.dot_dimension_numbers<[1], [0], [0], [1], [0, 0, 1, 1], [], []>} : vector<3x32xf32>, vector<32x32xf32>, vector<3x32xf32> -> vector<3x32xf32>
    %c5_226 = arith.constant 5 : index
    %c0_227 = arith.constant 0 : index
    %c0_228 = arith.constant 0 : index
    %335 = vector.load %arg15[%c5_226, %c0_227, %c0_228] : memref<8x1x32xf32, #tpu.memory_space<vmem>>, vector<1x1x32xf32>
    %336 = vector.shape_cast %335 : vector<1x1x32xf32> to vector<1x32xf32>
    %337 = vector.broadcast %336 : vector<1x32xf32> to vector<3x32xf32>
    %338 = arith.addf %334, %337 : vector<3x32xf32>
    %cst_229 = arith.constant dense<0.000000e+00> : vector<3x3xf32>
    %339 = tpu.matmul %324, %331, %cst_229 {dimension_numbers = #tpu.dot_dimension_numbers<[1], [1], [0], [0], [0, 0, 1, 0], [], []>} : vector<3x8xf32>, vector<3x8xf32>, vector<3x3xf32> -> vector<3x3xf32>
    %cst_230 = arith.constant dense<0xFF800000> : vector<3xf32>
    %340 = vector.multi_reduction <maximumf>, %339, %cst_230 [1] : vector<3x3xf32> to vector<3xf32>
    %341 = vector.shape_cast %340 : vector<3xf32> to vector<3x1xf32>
    %342 = vector.broadcast %341 : vector<3x1xf32> to vector<3x3xf32>
    %343 = arith.subf %339, %342 : vector<3x3xf32>
    %344 = math.exp %343 : vector<3x3xf32>
    %cst_231 = arith.constant dense<0.000000e+00> : vector<3xf32>
    %345 = vector.multi_reduction <add>, %344, %cst_231 [1] : vector<3x3xf32> to vector<3xf32>
    %346 = vector.shape_cast %345 : vector<3xf32> to vector<3x1xf32>
    %347 = tpu.reciprocal %346 {approx = true} : vector<3x1xf32> -> vector<3x1xf32>
    %348 = vector.broadcast %347 : vector<3x1xf32> to vector<3x3xf32>
    %349 = arith.mulf %344, %348 : vector<3x3xf32>
    %cst_232 = arith.constant dense<0.000000e+00> : vector<3x32xf32>
    %350 = tpu.matmul %349, %338, %cst_232 {dimension_numbers = #tpu.dot_dimension_numbers<[1], [0], [0], [1], [0, 0, 1, 1], [], []>} : vector<3x3xf32>, vector<3x32xf32>, vector<3x32xf32> -> vector<3x32xf32>
    %351 = arith.addf %315, %350 : vector<3x32xf32>
    %c6 = arith.constant 6 : index
    %c0_233 = arith.constant 0 : index
    %c0_234 = arith.constant 0 : index
    %352 = vector.load %arg10[%c6, %c0_233, %c0_234] : memref<8x32x8xf32, #tpu.memory_space<vmem>>, vector<1x32x8xf32>
    %353 = vector.shape_cast %352 : vector<1x32x8xf32> to vector<32x8xf32>
    %cst_235 = arith.constant dense<0.000000e+00> : vector<3x8xf32>
    %354 = tpu.matmul %278, %353, %cst_235 {dimension_numbers = #tpu.dot_dimension_numbers<[1], [0], [0], [1], [0, 0, 1, 1], [], []>} : vector<3x32xf32>, vector<32x8xf32>, vector<3x8xf32> -> vector<3x8xf32>
    %c6_236 = arith.constant 6 : index
    %c0_237 = arith.constant 0 : index
    %c0_238 = arith.constant 0 : index
    %355 = vector.load %arg11[%c6_236, %c0_237, %c0_238] : memref<8x1x8xf32, #tpu.memory_space<vmem>>, vector<1x1x8xf32>
    %356 = vector.shape_cast %355 : vector<1x1x8xf32> to vector<1x8xf32>
    %357 = vector.broadcast %356 : vector<1x8xf32> to vector<3x8xf32>
    %358 = arith.addf %354, %357 : vector<3x8xf32>
    %cst_239 = arith.constant 0.353553385 : f32
    %359 = vector.broadcast %cst_239 : f32 to vector<3x8xf32>
    %360 = arith.mulf %358, %359 : vector<3x8xf32>
    %c6_240 = arith.constant 6 : index
    %c0_241 = arith.constant 0 : index
    %c0_242 = arith.constant 0 : index
    %361 = vector.load %arg12[%c6_240, %c0_241, %c0_242] : memref<8x32x8xf32, #tpu.memory_space<vmem>>, vector<1x32x8xf32>
    %362 = vector.shape_cast %361 : vector<1x32x8xf32> to vector<32x8xf32>
    %cst_243 = arith.constant dense<0.000000e+00> : vector<3x8xf32>
    %363 = tpu.matmul %278, %362, %cst_243 {dimension_numbers = #tpu.dot_dimension_numbers<[1], [0], [0], [1], [0, 0, 1, 1], [], []>} : vector<3x32xf32>, vector<32x8xf32>, vector<3x8xf32> -> vector<3x8xf32>
    %c6_244 = arith.constant 6 : index
    %c0_245 = arith.constant 0 : index
    %c0_246 = arith.constant 0 : index
    %364 = vector.load %arg13[%c6_244, %c0_245, %c0_246] : memref<8x1x8xf32, #tpu.memory_space<vmem>>, vector<1x1x8xf32>
    %365 = vector.shape_cast %364 : vector<1x1x8xf32> to vector<1x8xf32>
    %366 = vector.broadcast %365 : vector<1x8xf32> to vector<3x8xf32>
    %367 = arith.addf %363, %366 : vector<3x8xf32>
    %c6_247 = arith.constant 6 : index
    %c0_248 = arith.constant 0 : index
    %c0_249 = arith.constant 0 : index
    %368 = vector.load %arg14[%c6_247, %c0_248, %c0_249] : memref<8x32x32xf32, #tpu.memory_space<vmem>>, vector<1x32x32xf32>
    %369 = vector.shape_cast %368 : vector<1x32x32xf32> to vector<32x32xf32>
    %cst_250 = arith.constant dense<0.000000e+00> : vector<3x32xf32>
    %370 = tpu.matmul %278, %369, %cst_250 {dimension_numbers = #tpu.dot_dimension_numbers<[1], [0], [0], [1], [0, 0, 1, 1], [], []>} : vector<3x32xf32>, vector<32x32xf32>, vector<3x32xf32> -> vector<3x32xf32>
    %c6_251 = arith.constant 6 : index
    %c0_252 = arith.constant 0 : index
    %c0_253 = arith.constant 0 : index
    %371 = vector.load %arg15[%c6_251, %c0_252, %c0_253] : memref<8x1x32xf32, #tpu.memory_space<vmem>>, vector<1x1x32xf32>
    %372 = vector.shape_cast %371 : vector<1x1x32xf32> to vector<1x32xf32>
    %373 = vector.broadcast %372 : vector<1x32xf32> to vector<3x32xf32>
    %374 = arith.addf %370, %373 : vector<3x32xf32>
    %cst_254 = arith.constant dense<0.000000e+00> : vector<3x3xf32>
    %375 = tpu.matmul %360, %367, %cst_254 {dimension_numbers = #tpu.dot_dimension_numbers<[1], [1], [0], [0], [0, 0, 1, 0], [], []>} : vector<3x8xf32>, vector<3x8xf32>, vector<3x3xf32> -> vector<3x3xf32>
    %cst_255 = arith.constant dense<0xFF800000> : vector<3xf32>
    %376 = vector.multi_reduction <maximumf>, %375, %cst_255 [1] : vector<3x3xf32> to vector<3xf32>
    %377 = vector.shape_cast %376 : vector<3xf32> to vector<3x1xf32>
    %378 = vector.broadcast %377 : vector<3x1xf32> to vector<3x3xf32>
    %379 = arith.subf %375, %378 : vector<3x3xf32>
    %380 = math.exp %379 : vector<3x3xf32>
    %cst_256 = arith.constant dense<0.000000e+00> : vector<3xf32>
    %381 = vector.multi_reduction <add>, %380, %cst_256 [1] : vector<3x3xf32> to vector<3xf32>
    %382 = vector.shape_cast %381 : vector<3xf32> to vector<3x1xf32>
    %383 = tpu.reciprocal %382 {approx = true} : vector<3x1xf32> -> vector<3x1xf32>
    %384 = vector.broadcast %383 : vector<3x1xf32> to vector<3x3xf32>
    %385 = arith.mulf %380, %384 : vector<3x3xf32>
    %cst_257 = arith.constant dense<0.000000e+00> : vector<3x32xf32>
    %386 = tpu.matmul %385, %374, %cst_257 {dimension_numbers = #tpu.dot_dimension_numbers<[1], [0], [0], [1], [0, 0, 1, 1], [], []>} : vector<3x3xf32>, vector<3x32xf32>, vector<3x32xf32> -> vector<3x32xf32>
    %387 = arith.addf %351, %386 : vector<3x32xf32>
    %c7 = arith.constant 7 : index
    %c0_258 = arith.constant 0 : index
    %c0_259 = arith.constant 0 : index
    %388 = vector.load %arg10[%c7, %c0_258, %c0_259] : memref<8x32x8xf32, #tpu.memory_space<vmem>>, vector<1x32x8xf32>
    %389 = vector.shape_cast %388 : vector<1x32x8xf32> to vector<32x8xf32>
    %cst_260 = arith.constant dense<0.000000e+00> : vector<3x8xf32>
    %390 = tpu.matmul %278, %389, %cst_260 {dimension_numbers = #tpu.dot_dimension_numbers<[1], [0], [0], [1], [0, 0, 1, 1], [], []>} : vector<3x32xf32>, vector<32x8xf32>, vector<3x8xf32> -> vector<3x8xf32>
    %c7_261 = arith.constant 7 : index
    %c0_262 = arith.constant 0 : index
    %c0_263 = arith.constant 0 : index
    %391 = vector.load %arg11[%c7_261, %c0_262, %c0_263] : memref<8x1x8xf32, #tpu.memory_space<vmem>>, vector<1x1x8xf32>
    %392 = vector.shape_cast %391 : vector<1x1x8xf32> to vector<1x8xf32>
    %393 = vector.broadcast %392 : vector<1x8xf32> to vector<3x8xf32>
    %394 = arith.addf %390, %393 : vector<3x8xf32>
    %cst_264 = arith.constant 0.353553385 : f32
    %395 = vector.broadcast %cst_264 : f32 to vector<3x8xf32>
    %396 = arith.mulf %394, %395 : vector<3x8xf32>
    %c7_265 = arith.constant 7 : index
    %c0_266 = arith.constant 0 : index
    %c0_267 = arith.constant 0 : index
    %397 = vector.load %arg12[%c7_265, %c0_266, %c0_267] : memref<8x32x8xf32, #tpu.memory_space<vmem>>, vector<1x32x8xf32>
    %398 = vector.shape_cast %397 : vector<1x32x8xf32> to vector<32x8xf32>
    %cst_268 = arith.constant dense<0.000000e+00> : vector<3x8xf32>
    %399 = tpu.matmul %278, %398, %cst_268 {dimension_numbers = #tpu.dot_dimension_numbers<[1], [0], [0], [1], [0, 0, 1, 1], [], []>} : vector<3x32xf32>, vector<32x8xf32>, vector<3x8xf32> -> vector<3x8xf32>
    %c7_269 = arith.constant 7 : index
    %c0_270 = arith.constant 0 : index
    %c0_271 = arith.constant 0 : index
    %400 = vector.load %arg13[%c7_269, %c0_270, %c0_271] : memref<8x1x8xf32, #tpu.memory_space<vmem>>, vector<1x1x8xf32>
    %401 = vector.shape_cast %400 : vector<1x1x8xf32> to vector<1x8xf32>
    %402 = vector.broadcast %401 : vector<1x8xf32> to vector<3x8xf32>
    %403 = arith.addf %399, %402 : vector<3x8xf32>
    %c7_272 = arith.constant 7 : index
    %c0_273 = arith.constant 0 : index
    %c0_274 = arith.constant 0 : index
    %404 = vector.load %arg14[%c7_272, %c0_273, %c0_274] : memref<8x32x32xf32, #tpu.memory_space<vmem>>, vector<1x32x32xf32>
    %405 = vector.shape_cast %404 : vector<1x32x32xf32> to vector<32x32xf32>
    %cst_275 = arith.constant dense<0.000000e+00> : vector<3x32xf32>
    %406 = tpu.matmul %278, %405, %cst_275 {dimension_numbers = #tpu.dot_dimension_numbers<[1], [0], [0], [1], [0, 0, 1, 1], [], []>} : vector<3x32xf32>, vector<32x32xf32>, vector<3x32xf32> -> vector<3x32xf32>
    %c7_276 = arith.constant 7 : index
    %c0_277 = arith.constant 0 : index
    %c0_278 = arith.constant 0 : index
    %407 = vector.load %arg15[%c7_276, %c0_277, %c0_278] : memref<8x1x32xf32, #tpu.memory_space<vmem>>, vector<1x1x32xf32>
    %408 = vector.shape_cast %407 : vector<1x1x32xf32> to vector<1x32xf32>
    %409 = vector.broadcast %408 : vector<1x32xf32> to vector<3x32xf32>
    %410 = arith.addf %406, %409 : vector<3x32xf32>
    %cst_279 = arith.constant dense<0.000000e+00> : vector<3x3xf32>
    %411 = tpu.matmul %396, %403, %cst_279 {dimension_numbers = #tpu.dot_dimension_numbers<[1], [1], [0], [0], [0, 0, 1, 0], [], []>} : vector<3x8xf32>, vector<3x8xf32>, vector<3x3xf32> -> vector<3x3xf32>
    %cst_280 = arith.constant dense<0xFF800000> : vector<3xf32>
    %412 = vector.multi_reduction <maximumf>, %411, %cst_280 [1] : vector<3x3xf32> to vector<3xf32>
    %413 = vector.shape_cast %412 : vector<3xf32> to vector<3x1xf32>
    %414 = vector.broadcast %413 : vector<3x1xf32> to vector<3x3xf32>
    %415 = arith.subf %411, %414 : vector<3x3xf32>
    %416 = math.exp %415 : vector<3x3xf32>
    %cst_281 = arith.constant dense<0.000000e+00> : vector<3xf32>
    %417 = vector.multi_reduction <add>, %416, %cst_281 [1] : vector<3x3xf32> to vector<3xf32>
    %418 = vector.shape_cast %417 : vector<3xf32> to vector<3x1xf32>
    %419 = tpu.reciprocal %418 {approx = true} : vector<3x1xf32> -> vector<3x1xf32>
    %420 = vector.broadcast %419 : vector<3x1xf32> to vector<3x3xf32>
    %421 = arith.mulf %416, %420 : vector<3x3xf32>
    %cst_282 = arith.constant dense<0.000000e+00> : vector<3x32xf32>
    %422 = tpu.matmul %421, %410, %cst_282 {dimension_numbers = #tpu.dot_dimension_numbers<[1], [0], [0], [1], [0, 0, 1, 1], [], []>} : vector<3x3xf32>, vector<3x32xf32>, vector<3x32xf32> -> vector<3x32xf32>
    %423 = arith.addf %387, %422 : vector<3x32xf32>
    %c1_283 = arith.constant 1 : index
    %c0_284 = arith.constant 0 : index
    %c0_285 = arith.constant 0 : index
    %424 = vector.load %arg16[%c1_283, %c0_284, %c0_285] : memref<2x32x32xf32, #tpu.memory_space<vmem>>, vector<1x32x32xf32>
    %425 = vector.shape_cast %424 : vector<1x32x32xf32> to vector<32x32xf32>
    %cst_286 = arith.constant dense<0.000000e+00> : vector<3x32xf32>
    %426 = tpu.matmul %423, %425, %cst_286 {dimension_numbers = #tpu.dot_dimension_numbers<[1], [0], [0], [1], [0, 0, 1, 1], [], []>} : vector<3x32xf32>, vector<32x32xf32>, vector<3x32xf32> -> vector<3x32xf32>
    %427 = arith.addf %252, %426 : vector<3x32xf32>
    %c1_287 = arith.constant 1 : index
    %c0_288 = arith.constant 0 : index
    %c0_289 = arith.constant 0 : index
    %428 = vector.load %arg17[%c1_287, %c0_288, %c0_289] : memref<2x1x32xf32, #tpu.memory_space<vmem>>, vector<1x1x32xf32>
    %429 = vector.shape_cast %428 : vector<1x1x32xf32> to vector<1x32xf32>
    %430 = vector.broadcast %429 : vector<1x32xf32> to vector<3x32xf32>
    %431 = arith.addf %427, %430 : vector<3x32xf32>
    %c1_290 = arith.constant 1 : index
    %c0_291 = arith.constant 0 : index
    %c0_292 = arith.constant 0 : index
    %432 = vector.load %arg18[%c1_290, %c0_291, %c0_292] : memref<2x1x32xf32, #tpu.memory_space<vmem>>, vector<1x1x32xf32>
    %433 = vector.shape_cast %432 : vector<1x1x32xf32> to vector<1x32xf32>
    %c1_293 = arith.constant 1 : index
    %c0_294 = arith.constant 0 : index
    %c0_295 = arith.constant 0 : index
    %434 = vector.load %arg19[%c1_293, %c0_294, %c0_295] : memref<2x1x32xf32, #tpu.memory_space<vmem>>, vector<1x1x32xf32>
    %435 = vector.shape_cast %434 : vector<1x1x32xf32> to vector<1x32xf32>
    %cst_296 = arith.constant dense<0.000000e+00> : vector<3xf32>
    %436 = vector.multi_reduction <add>, %431, %cst_296 [1] : vector<3x32xf32> to vector<3xf32>
    %437 = vector.shape_cast %436 : vector<3xf32> to vector<3x1xf32>
    %cst_297 = arith.constant 3.200000e+01 : f32
    %438 = vector.broadcast %cst_297 : f32 to vector<3x1xf32>
    %439 = arith.divf %437, %438 : vector<3x1xf32>
    %440 = vector.broadcast %439 : vector<3x1xf32> to vector<3x32xf32>
    %441 = arith.subf %431, %440 : vector<3x32xf32>
    %442 = arith.mulf %441, %441 : vector<3x32xf32>
    %cst_298 = arith.constant dense<0.000000e+00> : vector<3xf32>
    %443 = vector.multi_reduction <add>, %442, %cst_298 [1] : vector<3x32xf32> to vector<3xf32>
    %444 = vector.shape_cast %443 : vector<3xf32> to vector<3x1xf32>
    %cst_299 = arith.constant 3.200000e+01 : f32
    %445 = vector.broadcast %cst_299 : f32 to vector<3x1xf32>
    %446 = arith.divf %444, %445 : vector<3x1xf32>
    %447 = vector.broadcast %439 : vector<3x1xf32> to vector<3x32xf32>
    %448 = arith.subf %431, %447 : vector<3x32xf32>
    %cst_300 = arith.constant 9.99999974E-6 : f32
    %449 = vector.broadcast %cst_300 : f32 to vector<3x1xf32>
    %450 = arith.addf %446, %449 : vector<3x1xf32>
    %451 = math.rsqrt %450 : vector<3x1xf32>
    %452 = vector.broadcast %451 : vector<3x1xf32> to vector<3x32xf32>
    %453 = arith.mulf %448, %452 : vector<3x32xf32>
    %454 = vector.broadcast %433 : vector<1x32xf32> to vector<3x32xf32>
    %455 = arith.mulf %453, %454 : vector<3x32xf32>
    %456 = vector.broadcast %435 : vector<1x32xf32> to vector<3x32xf32>
    %457 = arith.addf %455, %456 : vector<3x32xf32>
    %c1_301 = arith.constant 1 : index
    %c0_302 = arith.constant 0 : index
    %c0_303 = arith.constant 0 : index
    %458 = vector.load %arg20[%c1_301, %c0_302, %c0_303] : memref<2x32x128xf32, #tpu.memory_space<vmem>>, vector<1x32x128xf32>
    %459 = vector.shape_cast %458 : vector<1x32x128xf32> to vector<32x128xf32>
    %cst_304 = arith.constant dense<0.000000e+00> : vector<3x128xf32>
    %460 = tpu.matmul %457, %459, %cst_304 {dimension_numbers = #tpu.dot_dimension_numbers<[1], [0], [0], [1], [0, 0, 1, 1], [], []>} : vector<3x32xf32>, vector<32x128xf32>, vector<3x128xf32> -> vector<3x128xf32>
    %c1_305 = arith.constant 1 : index
    %c0_306 = arith.constant 0 : index
    %c0_307 = arith.constant 0 : index
    %461 = vector.load %arg21[%c1_305, %c0_306, %c0_307] : memref<2x1x128xf32, #tpu.memory_space<vmem>>, vector<1x1x128xf32>
    %462 = vector.shape_cast %461 : vector<1x1x128xf32> to vector<1x128xf32>
    %463 = vector.broadcast %462 : vector<1x128xf32> to vector<3x128xf32>
    %464 = arith.addf %460, %463 : vector<3x128xf32>
    %cst_308 = arith.constant 5.000000e-01 : f32
    %465 = vector.broadcast %cst_308 : f32 to vector<3x128xf32>
    %466 = arith.mulf %465, %464 : vector<3x128xf32>
    %cst_309 = arith.constant 4.471500e-02 : f32
    %467 = vector.broadcast %cst_309 : f32 to vector<3x128xf32>
    %468 = arith.mulf %467, %464 : vector<3x128xf32>
    %469 = arith.mulf %468, %464 : vector<3x128xf32>
    %470 = arith.mulf %469, %464 : vector<3x128xf32>
    %471 = arith.addf %464, %470 : vector<3x128xf32>
    %cst_310 = arith.constant 0.797884583 : f32
    %472 = vector.broadcast %cst_310 : f32 to vector<3x128xf32>
    %473 = arith.mulf %472, %471 : vector<3x128xf32>
    %474 = math.tanh %473 : vector<3x128xf32>
    %cst_311 = arith.constant 1.000000e+00 : f32
    %475 = vector.broadcast %cst_311 : f32 to vector<3x128xf32>
    %476 = arith.addf %475, %474 : vector<3x128xf32>
    %477 = arith.mulf %466, %476 : vector<3x128xf32>
    %c1_312 = arith.constant 1 : index
    %c0_313 = arith.constant 0 : index
    %c0_314 = arith.constant 0 : index
    %478 = vector.load %arg22[%c1_312, %c0_313, %c0_314] : memref<2x128x32xf32, #tpu.memory_space<vmem>>, vector<1x128x32xf32>
    %479 = vector.shape_cast %478 : vector<1x128x32xf32> to vector<128x32xf32>
    %cst_315 = arith.constant dense<0.000000e+00> : vector<3x32xf32>
    %480 = tpu.matmul %477, %479, %cst_315 {dimension_numbers = #tpu.dot_dimension_numbers<[1], [0], [0], [1], [0, 0, 1, 1], [], []>} : vector<3x128xf32>, vector<128x32xf32>, vector<3x32xf32> -> vector<3x32xf32>
    %c1_316 = arith.constant 1 : index
    %c0_317 = arith.constant 0 : index
    %c0_318 = arith.constant 0 : index
    %481 = vector.load %arg23[%c1_316, %c0_317, %c0_318] : memref<2x1x32xf32, #tpu.memory_space<vmem>>, vector<1x1x32xf32>
    %482 = vector.shape_cast %481 : vector<1x1x32xf32> to vector<1x32xf32>
    %483 = vector.broadcast %482 : vector<1x32xf32> to vector<3x32xf32>
    %484 = arith.addf %480, %483 : vector<3x32xf32>
    %485 = arith.addf %431, %484 : vector<3x32xf32>
    %c0_319 = arith.constant 0 : index
    %c0_320 = arith.constant 0 : index
    %486 = vector.load %arg24[%c0_319, %c0_320] : memref<1x32xf32, #tpu.memory_space<vmem>>, vector<1x32xf32>
    %c0_321 = arith.constant 0 : index
    %c0_322 = arith.constant 0 : index
    %487 = vector.load %arg25[%c0_321, %c0_322] : memref<1x32xf32, #tpu.memory_space<vmem>>, vector<1x32xf32>
    %cst_323 = arith.constant dense<0.000000e+00> : vector<3xf32>
    %488 = vector.multi_reduction <add>, %485, %cst_323 [1] : vector<3x32xf32> to vector<3xf32>
    %489 = vector.shape_cast %488 : vector<3xf32> to vector<3x1xf32>
    %cst_324 = arith.constant 3.200000e+01 : f32
    %490 = vector.broadcast %cst_324 : f32 to vector<3x1xf32>
    %491 = arith.divf %489, %490 : vector<3x1xf32>
    %492 = vector.broadcast %491 : vector<3x1xf32> to vector<3x32xf32>
    %493 = arith.subf %485, %492 : vector<3x32xf32>
    %494 = arith.mulf %493, %493 : vector<3x32xf32>
    %cst_325 = arith.constant dense<0.000000e+00> : vector<3xf32>
    %495 = vector.multi_reduction <add>, %494, %cst_325 [1] : vector<3x32xf32> to vector<3xf32>
    %496 = vector.shape_cast %495 : vector<3xf32> to vector<3x1xf32>
    %cst_326 = arith.constant 3.200000e+01 : f32
    %497 = vector.broadcast %cst_326 : f32 to vector<3x1xf32>
    %498 = arith.divf %496, %497 : vector<3x1xf32>
    %499 = vector.broadcast %491 : vector<3x1xf32> to vector<3x32xf32>
    %500 = arith.subf %485, %499 : vector<3x32xf32>
    %cst_327 = arith.constant 9.99999974E-6 : f32
    %501 = vector.broadcast %cst_327 : f32 to vector<3x1xf32>
    %502 = arith.addf %498, %501 : vector<3x1xf32>
    %503 = math.rsqrt %502 : vector<3x1xf32>
    %504 = vector.broadcast %503 : vector<3x1xf32> to vector<3x32xf32>
    %505 = arith.mulf %500, %504 : vector<3x32xf32>
    %506 = vector.broadcast %486 : vector<1x32xf32> to vector<3x32xf32>
    %507 = arith.mulf %505, %506 : vector<3x32xf32>
    %508 = vector.broadcast %487 : vector<1x32xf32> to vector<3x32xf32>
    %509 = arith.addf %507, %508 : vector<3x32xf32>
    %c0_328 = arith.constant 0 : index
    %c0_329 = arith.constant 0 : index
    %510 = vector.load %arg26[%c0_328, %c0_329] : memref<32x32xf32, #tpu.memory_space<vmem>>, vector<32x32xf32>
    %cst_330 = arith.constant dense<0.000000e+00> : vector<3x32xf32>
    %511 = tpu.matmul %509, %510, %cst_330 {dimension_numbers = #tpu.dot_dimension_numbers<[1], [0], [0], [1], [0, 0, 1, 1], [], []>} : vector<3x32xf32>, vector<32x32xf32>, vector<3x32xf32> -> vector<3x32xf32>
    %c0_331 = arith.constant 0 : index
    %c0_332 = arith.constant 0 : index
    %512 = vector.load %arg27[%c0_331, %c0_332] : memref<1x32xf32, #tpu.memory_space<vmem>>, vector<1x32xf32>
    %513 = vector.broadcast %512 : vector<1x32xf32> to vector<3x32xf32>
    %514 = arith.addf %511, %513 : vector<3x32xf32>
    %c0_333 = arith.constant 0 : index
    %c0_334 = arith.constant 0 : index
    %515 = vector.load %arg54[%c0_333, %c0_334] : memref<3x32xf32, #tpu.memory_space<vmem>>, vector<3x32xf32>
    tpu.vector_store %arg54[%c0_333, %c0_334], %514 {strides = array<i32>} : memref<3x32xf32, #tpu.memory_space<vmem>>, vector<3x32xf32>,
    %516 = arith.index_cast %arg0 : i32 to index
    %c0_335 = arith.constant 0 : index
    %517 = memref.load %arg2[%516, %c0_335] : memref<2x8xi32, #tpu.memory_space<smem>>
    %c2_i32 = arith.constant 2 : i32
    %518 = arith.cmpi slt, %517, %c2_i32 : i32
    %519 = arith.extui %518 : i1 to i32
    %520 = arith.sitofp %519 : i32 to f32
    %c1_i32 = arith.constant 1 : i32
    %521 = arith.minsi %517, %c1_i32 : i32
    %c1_i32_336 = arith.constant 1 : i32
    %522 = arith.addi %521, %c1_i32_336 : i32
    %523 = arith.index_cast %522 : i32 to index
    %c0_337 = arith.constant 0 : index
    %524 = vector.load %arg54[%523, %c0_337] : memref<3x32xf32, #tpu.memory_space<vmem>>, vector<1x32xf32>
    %525 = vector.broadcast %520 : f32 to vector<1x32xf32>
    %526 = arith.mulf %524, %525 : vector<1x32xf32>
    %c0_338 = arith.constant 0 : index
    %c0_339 = arith.constant 0 : index
    %527 = vector.load %arg28[%c0_338, %c0_339] : memref<1x32xf32, #tpu.memory_space<vmem>>, vector<1x32xf32>
    %cst_340 = arith.constant 1.000000e+00 : f32
    %528 = arith.subf %cst_340, %520 : f32
    %529 = vector.broadcast %528 : f32 to vector<1x32xf32>
    %530 = arith.mulf %527, %529 : vector<1x32xf32>
    %531 = arith.addf %526, %530 : vector<1x32xf32>
    %c0_341 = arith.constant 0 : index
    %c0_342 = arith.constant 0 : index
    %532 = vector.load %arg55[%c0_341, %c0_342] : memref<9x32xf32, #tpu.memory_space<vmem>>, vector<1x32xf32>
    tpu.vector_store %arg55[%c0_341, %c0_342], %531 {strides = array<i32>} : memref<9x32xf32, #tpu.memory_space<vmem>>, vector<1x32xf32>,
    %533 = arith.index_cast %arg0 : i32 to index
    %c1_343 = arith.constant 1 : index
    %534 = memref.load %arg2[%533, %c1_343] : memref<2x8xi32, #tpu.memory_space<smem>>
    %c2_i32_344 = arith.constant 2 : i32
    %535 = arith.cmpi slt, %534, %c2_i32_344 : i32
    %536 = arith.extui %535 : i1 to i32
    %537 = arith.sitofp %536 : i32 to f32
    %c1_i32_345 = arith.constant 1 : i32
    %538 = arith.minsi %534, %c1_i32_345 : i32
    %c1_i32_346 = arith.constant 1 : i32
    %539 = arith.addi %538, %c1_i32_346 : i32
    %540 = arith.index_cast %539 : i32 to index
    %c0_347 = arith.constant 0 : index
    %541 = vector.load %arg54[%540, %c0_347] : memref<3x32xf32, #tpu.memory_space<vmem>>, vector<1x32xf32>
    %542 = vector.broadcast %537 : f32 to vector<1x32xf32>
    %543 = arith.mulf %541, %542 : vector<1x32xf32>
    %c0_348 = arith.constant 0 : index
    %c0_349 = arith.constant 0 : index
    %544 = vector.load %arg28[%c0_348, %c0_349] : memref<1x32xf32, #tpu.memory_space<vmem>>, vector<1x32xf32>
    %cst_350 = arith.constant 1.000000e+00 : f32
    %545 = arith.subf %cst_350, %537 : f32
    %546 = vector.broadcast %545 : f32 to vector<1x32xf32>
    %547 = arith.mulf %544, %546 : vector<1x32xf32>
    %548 = arith.addf %543, %547 : vector<1x32xf32>
    %c1_351 = arith.constant 1 : index
    %c0_352 = arith.constant 0 : index
    %549 = vector.load %arg55[%c1_351, %c0_352] : memref<9x32xf32, #tpu.memory_space<vmem>>, vector<1x32xf32>
    tpu.vector_store %arg55[%c1_351, %c0_352], %548 {strides = array<i32>} : memref<9x32xf32, #tpu.memory_space<vmem>>, vector<1x32xf32>,
    %550 = arith.index_cast %arg0 : i32 to index
    %c2_353 = arith.constant 2 : index
    %551 = memref.load %arg2[%550, %c2_353] : memref<2x8xi32, #tpu.memory_space<smem>>
    %c2_i32_354 = arith.constant 2 : i32
    %552 = arith.cmpi slt, %551, %c2_i32_354 : i32
    %553 = arith.extui %552 : i1 to i32
    %554 = arith.sitofp %553 : i32 to f32
    %c1_i32_355 = arith.constant 1 : i32
    %555 = arith.minsi %551, %c1_i32_355 : i32
    %c1_i32_356 = arith.constant 1 : i32
    %556 = arith.addi %555, %c1_i32_356 : i32
    %557 = arith.index_cast %556 : i32 to index
    %c0_357 = arith.constant 0 : index
    %558 = vector.load %arg54[%557, %c0_357] : memref<3x32xf32, #tpu.memory_space<vmem>>, vector<1x32xf32>
    %559 = vector.broadcast %554 : f32 to vector<1x32xf32>
    %560 = arith.mulf %558, %559 : vector<1x32xf32>
    %c0_358 = arith.constant 0 : index
    %c0_359 = arith.constant 0 : index
    %561 = vector.load %arg28[%c0_358, %c0_359] : memref<1x32xf32, #tpu.memory_space<vmem>>, vector<1x32xf32>
    %cst_360 = arith.constant 1.000000e+00 : f32
    %562 = arith.subf %cst_360, %554 : f32
    %563 = vector.broadcast %562 : f32 to vector<1x32xf32>
    %564 = arith.mulf %561, %563 : vector<1x32xf32>
    %565 = arith.addf %560, %564 : vector<1x32xf32>
    %c2_361 = arith.constant 2 : index
    %c0_362 = arith.constant 0 : index
    %566 = vector.load %arg55[%c2_361, %c0_362] : memref<9x32xf32, #tpu.memory_space<vmem>>, vector<1x32xf32>
    tpu.vector_store %arg55[%c2_361, %c0_362], %565 {strides = array<i32>} : memref<9x32xf32, #tpu.memory_space<vmem>>, vector<1x32xf32>,
    %567 = arith.index_cast %arg0 : i32 to index
    %c3_363 = arith.constant 3 : index
    %568 = memref.load %arg2[%567, %c3_363] : memref<2x8xi32, #tpu.memory_space<smem>>
    %c2_i32_364 = arith.constant 2 : i32
    %569 = arith.cmpi slt, %568, %c2_i32_364 : i32
    %570 = arith.extui %569 : i1 to i32
    %571 = arith.sitofp %570 : i32 to f32
    %c1_i32_365 = arith.constant 1 : i32
    %572 = arith.minsi %568, %c1_i32_365 : i32
    %c1_i32_366 = arith.constant 1 : i32
    %573 = arith.addi %572, %c1_i32_366 : i32
    %574 = arith.index_cast %573 : i32 to index
    %c0_367 = arith.constant 0 : index
    %575 = vector.load %arg54[%574, %c0_367] : memref<3x32xf32, #tpu.memory_space<vmem>>, vector<1x32xf32>
    %576 = vector.broadcast %571 : f32 to vector<1x32xf32>
    %577 = arith.mulf %575, %576 : vector<1x32xf32>
    %c0_368 = arith.constant 0 : index
    %c0_369 = arith.constant 0 : index
    %578 = vector.load %arg28[%c0_368, %c0_369] : memref<1x32xf32, #tpu.memory_space<vmem>>, vector<1x32xf32>
    %cst_370 = arith.constant 1.000000e+00 : f32
    %579 = arith.subf %cst_370, %571 : f32
    %580 = vector.broadcast %579 : f32 to vector<1x32xf32>
    %581 = arith.mulf %578, %580 : vector<1x32xf32>
    %582 = arith.addf %577, %581 : vector<1x32xf32>
    %c3_371 = arith.constant 3 : index
    %c0_372 = arith.constant 0 : index
    %583 = vector.load %arg55[%c3_371, %c0_372] : memref<9x32xf32, #tpu.memory_space<vmem>>, vector<1x32xf32>
    tpu.vector_store %arg55[%c3_371, %c0_372], %582 {strides = array<i32>} : memref<9x32xf32, #tpu.memory_space<vmem>>, vector<1x32xf32>,
    %584 = arith.index_cast %arg0 : i32 to index
    %c4_373 = arith.constant 4 : index
    %585 = memref.load %arg2[%584, %c4_373] : memref<2x8xi32, #tpu.memory_space<smem>>
    %c2_i32_374 = arith.constant 2 : i32
    %586 = arith.cmpi slt, %585, %c2_i32_374 : i32
    %587 = arith.extui %586 : i1 to i32
    %588 = arith.sitofp %587 : i32 to f32
    %c1_i32_375 = arith.constant 1 : i32
    %589 = arith.minsi %585, %c1_i32_375 : i32
    %c1_i32_376 = arith.constant 1 : i32
    %590 = arith.addi %589, %c1_i32_376 : i32
    %591 = arith.index_cast %590 : i32 to index
    %c0_377 = arith.constant 0 : index
    %592 = vector.load %arg54[%591, %c0_377] : memref<3x32xf32, #tpu.memory_space<vmem>>, vector<1x32xf32>
    %593 = vector.broadcast %588 : f32 to vector<1x32xf32>
    %594 = arith.mulf %592, %593 : vector<1x32xf32>
    %c0_378 = arith.constant 0 : index
    %c0_379 = arith.constant 0 : index
    %595 = vector.load %arg28[%c0_378, %c0_379] : memref<1x32xf32, #tpu.memory_space<vmem>>, vector<1x32xf32>
    %cst_380 = arith.constant 1.000000e+00 : f32
    %596 = arith.subf %cst_380, %588 : f32
    %597 = vector.broadcast %596 : f32 to vector<1x32xf32>
    %598 = arith.mulf %595, %597 : vector<1x32xf32>
    %599 = arith.addf %594, %598 : vector<1x32xf32>
    %c4_381 = arith.constant 4 : index
    %c0_382 = arith.constant 0 : index
    %600 = vector.load %arg55[%c4_381, %c0_382] : memref<9x32xf32, #tpu.memory_space<vmem>>, vector<1x32xf32>
    tpu.vector_store %arg55[%c4_381, %c0_382], %599 {strides = array<i32>} : memref<9x32xf32, #tpu.memory_space<vmem>>, vector<1x32xf32>,
    %601 = arith.index_cast %arg0 : i32 to index
    %c5_383 = arith.constant 5 : index
    %602 = memref.load %arg2[%601, %c5_383] : memref<2x8xi32, #tpu.memory_space<smem>>
    %c2_i32_384 = arith.constant 2 : i32
    %603 = arith.cmpi slt, %602, %c2_i32_384 : i32
    %604 = arith.extui %603 : i1 to i32
    %605 = arith.sitofp %604 : i32 to f32
    %c1_i32_385 = arith.constant 1 : i32
    %606 = arith.minsi %602, %c1_i32_385 : i32
    %c1_i32_386 = arith.constant 1 : i32
    %607 = arith.addi %606, %c1_i32_386 : i32
    %608 = arith.index_cast %607 : i32 to index
    %c0_387 = arith.constant 0 : index
    %609 = vector.load %arg54[%608, %c0_387] : memref<3x32xf32, #tpu.memory_space<vmem>>, vector<1x32xf32>
    %610 = vector.broadcast %605 : f32 to vector<1x32xf32>
    %611 = arith.mulf %609, %610 : vector<1x32xf32>
    %c0_388 = arith.constant 0 : index
    %c0_389 = arith.constant 0 : index
    %612 = vector.load %arg28[%c0_388, %c0_389] : memref<1x32xf32, #tpu.memory_space<vmem>>, vector<1x32xf32>
    %cst_390 = arith.constant 1.000000e+00 : f32
    %613 = arith.subf %cst_390, %605 : f32
    %614 = vector.broadcast %613 : f32 to vector<1x32xf32>
    %615 = arith.mulf %612, %614 : vector<1x32xf32>
    %616 = arith.addf %611, %615 : vector<1x32xf32>
    %c5_391 = arith.constant 5 : index
    %c0_392 = arith.constant 0 : index
    %617 = vector.load %arg55[%c5_391, %c0_392] : memref<9x32xf32, #tpu.memory_space<vmem>>, vector<1x32xf32>
    tpu.vector_store %arg55[%c5_391, %c0_392], %616 {strides = array<i32>} : memref<9x32xf32, #tpu.memory_space<vmem>>, vector<1x32xf32>,
    %618 = arith.index_cast %arg0 : i32 to index
    %c6_393 = arith.constant 6 : index
    %619 = memref.load %arg2[%618, %c6_393] : memref<2x8xi32, #tpu.memory_space<smem>>
    %c2_i32_394 = arith.constant 2 : i32
    %620 = arith.cmpi slt, %619, %c2_i32_394 : i32
    %621 = arith.extui %620 : i1 to i32
    %622 = arith.sitofp %621 : i32 to f32
    %c1_i32_395 = arith.constant 1 : i32
    %623 = arith.minsi %619, %c1_i32_395 : i32
    %c1_i32_396 = arith.constant 1 : i32
    %624 = arith.addi %623, %c1_i32_396 : i32
    %625 = arith.index_cast %624 : i32 to index
    %c0_397 = arith.constant 0 : index
    %626 = vector.load %arg54[%625, %c0_397] : memref<3x32xf32, #tpu.memory_space<vmem>>, vector<1x32xf32>
    %627 = vector.broadcast %622 : f32 to vector<1x32xf32>
    %628 = arith.mulf %626, %627 : vector<1x32xf32>
    %c0_398 = arith.constant 0 : index
    %c0_399 = arith.constant 0 : index
    %629 = vector.load %arg28[%c0_398, %c0_399] : memref<1x32xf32, #tpu.memory_space<vmem>>, vector<1x32xf32>
    %cst_400 = arith.constant 1.000000e+00 : f32
    %630 = arith.subf %cst_400, %622 : f32
    %631 = vector.broadcast %630 : f32 to vector<1x32xf32>
    %632 = arith.mulf %629, %631 : vector<1x32xf32>
    %633 = arith.addf %628, %632 : vector<1x32xf32>
    %c6_401 = arith.constant 6 : index
    %c0_402 = arith.constant 0 : index
    %634 = vector.load %arg55[%c6_401, %c0_402] : memref<9x32xf32, #tpu.memory_space<vmem>>, vector<1x32xf32>
    tpu.vector_store %arg55[%c6_401, %c0_402], %633 {strides = array<i32>} : memref<9x32xf32, #tpu.memory_space<vmem>>, vector<1x32xf32>,
    %635 = arith.index_cast %arg0 : i32 to index
    %c7_403 = arith.constant 7 : index
    %636 = memref.load %arg2[%635, %c7_403] : memref<2x8xi32, #tpu.memory_space<smem>>
    %c2_i32_404 = arith.constant 2 : i32
    %637 = arith.cmpi slt, %636, %c2_i32_404 : i32
    %638 = arith.extui %637 : i1 to i32
    %639 = arith.sitofp %638 : i32 to f32
    %c1_i32_405 = arith.constant 1 : i32
    %640 = arith.minsi %636, %c1_i32_405 : i32
    %c1_i32_406 = arith.constant 1 : i32
    %641 = arith.addi %640, %c1_i32_406 : i32
    %642 = arith.index_cast %641 : i32 to index
    %c0_407 = arith.constant 0 : index
    %643 = vector.load %arg54[%642, %c0_407] : memref<3x32xf32, #tpu.memory_space<vmem>>, vector<1x32xf32>
    %644 = vector.broadcast %639 : f32 to vector<1x32xf32>
    %645 = arith.mulf %643, %644 : vector<1x32xf32>
    %c0_408 = arith.constant 0 : index
    %c0_409 = arith.constant 0 : index
    %646 = vector.load %arg28[%c0_408, %c0_409] : memref<1x32xf32, #tpu.memory_space<vmem>>, vector<1x32xf32>
    %cst_410 = arith.constant 1.000000e+00 : f32
    %647 = arith.subf %cst_410, %639 : f32
    %648 = vector.broadcast %647 : f32 to vector<1x32xf32>
    %649 = arith.mulf %646, %648 : vector<1x32xf32>
    %650 = arith.addf %645, %649 : vector<1x32xf32>
    %c7_411 = arith.constant 7 : index
    %c0_412 = arith.constant 0 : index
    %651 = vector.load %arg55[%c7_411, %c0_412] : memref<9x32xf32, #tpu.memory_space<vmem>>, vector<1x32xf32>
    tpu.vector_store %arg55[%c7_411, %c0_412], %650 {strides = array<i32>} : memref<9x32xf32, #tpu.memory_space<vmem>>, vector<1x32xf32>,
    %c0_413 = arith.constant 0 : index
    %c0_414 = arith.constant 0 : index
    %652 = vector.load %arg54[%c0_413, %c0_414] : memref<3x32xf32, #tpu.memory_space<vmem>>, vector<1x32xf32>
    %c8 = arith.constant 8 : index
    %c0_415 = arith.constant 0 : index
    %653 = vector.load %arg55[%c8, %c0_415] : memref<9x32xf32, #tpu.memory_space<vmem>>, vector<1x32xf32>
    tpu.vector_store %arg55[%c8, %c0_415], %652 {strides = array<i32>} : memref<9x32xf32, #tpu.memory_space<vmem>>, vector<1x32xf32>,
    %c0_416 = arith.constant 0 : index
    %c0_417 = arith.constant 0 : index
    %654 = vector.load %arg55[%c0_416, %c0_417] : memref<9x32xf32, #tpu.memory_space<vmem>>, vector<9x32xf32>
    %c0_418 = arith.constant 0 : index
    %c0_419 = arith.constant 0 : index
    %655 = vector.load %arg29[%c0_418, %c0_419] : memref<9x32xf32, #tpu.memory_space<vmem>>, vector<9x32xf32>
    %656 = arith.addf %654, %655 : vector<9x32xf32>
    %c0_420 = arith.constant 0 : index
    %c0_421 = arith.constant 0 : index
    %c0_422 = arith.constant 0 : index
    %657 = vector.load %arg30[%c0_420, %c0_421, %c0_422] : memref<1x1x32xf32, #tpu.memory_space<vmem>>, vector<1x1x32xf32>
    %658 = vector.shape_cast %657 : vector<1x1x32xf32> to vector<1x32xf32>
    %c0_423 = arith.constant 0 : index
    %c0_424 = arith.constant 0 : index
    %c0_425 = arith.constant 0 : index
    %659 = vector.load %arg31[%c0_423, %c0_424, %c0_425] : memref<1x1x32xf32, #tpu.memory_space<vmem>>, vector<1x1x32xf32>
    %660 = vector.shape_cast %659 : vector<1x1x32xf32> to vector<1x32xf32>
    %cst_426 = arith.constant dense<0.000000e+00> : vector<9xf32>
    %661 = vector.multi_reduction <add>, %656, %cst_426 [1] : vector<9x32xf32> to vector<9xf32>
    %662 = vector.shape_cast %661 : vector<9xf32> to vector<9x1xf32>
    %cst_427 = arith.constant 3.200000e+01 : f32
    %663 = vector.broadcast %cst_427 : f32 to vector<9x1xf32>
    %664 = arith.divf %662, %663 : vector<9x1xf32>
    %665 = vector.broadcast %664 : vector<9x1xf32> to vector<9x32xf32>
    %666 = arith.subf %656, %665 : vector<9x32xf32>
    %667 = arith.mulf %666, %666 : vector<9x32xf32>
    %cst_428 = arith.constant dense<0.000000e+00> : vector<9xf32>
    %668 = vector.multi_reduction <add>, %667, %cst_428 [1] : vector<9x32xf32> to vector<9xf32>
    %669 = vector.shape_cast %668 : vector<9xf32> to vector<9x1xf32>
    %cst_429 = arith.constant 3.200000e+01 : f32
    %670 = vector.broadcast %cst_429 : f32 to vector<9x1xf32>
    %671 = arith.divf %669, %670 : vector<9x1xf32>
    %672 = vector.broadcast %664 : vector<9x1xf32> to vector<9x32xf32>
    %673 = arith.subf %656, %672 : vector<9x32xf32>
    %cst_430 = arith.constant 9.99999974E-6 : f32
    %674 = vector.broadcast %cst_430 : f32 to vector<9x1xf32>
    %675 = arith.addf %671, %674 : vector<9x1xf32>
    %676 = math.rsqrt %675 : vector<9x1xf32>
    %677 = vector.broadcast %676 : vector<9x1xf32> to vector<9x32xf32>
    %678 = arith.mulf %673, %677 : vector<9x32xf32>
    %679 = vector.broadcast %658 : vector<1x32xf32> to vector<9x32xf32>
    %680 = arith.mulf %678, %679 : vector<9x32xf32>
    %681 = vector.broadcast %660 : vector<1x32xf32> to vector<9x32xf32>
    %682 = arith.addf %680, %681 : vector<9x32xf32>
    %cst_431 = arith.constant 0.000000e+00 : f32
    %683 = vector.broadcast %cst_431 : f32 to vector<9x32xf32>
    %c0_432 = arith.constant 0 : index
    %c0_433 = arith.constant 0 : index
    %c0_434 = arith.constant 0 : index
    %684 = vector.load %arg32[%c0_432, %c0_433, %c0_434] : memref<4x32x8xf32, #tpu.memory_space<vmem>>, vector<1x32x8xf32>
    %685 = vector.shape_cast %684 : vector<1x32x8xf32> to vector<32x8xf32>
    %cst_435 = arith.constant dense<0.000000e+00> : vector<9x8xf32>
    %686 = tpu.matmul %682, %685, %cst_435 {dimension_numbers = #tpu.dot_dimension_numbers<[1], [0], [0], [1], [0, 0, 1, 1], [], []>} : vector<9x32xf32>, vector<32x8xf32>, vector<9x8xf32> -> vector<9x8xf32>
    %c0_436 = arith.constant 0 : index
    %c0_437 = arith.constant 0 : index
    %c0_438 = arith.constant 0 : index
    %687 = vector.load %arg33[%c0_436, %c0_437, %c0_438] : memref<4x1x8xf32, #tpu.memory_space<vmem>>, vector<1x1x8xf32>
    %688 = vector.shape_cast %687 : vector<1x1x8xf32> to vector<1x8xf32>
    %689 = vector.broadcast %688 : vector<1x8xf32> to vector<9x8xf32>
    %690 = arith.addf %686, %689 : vector<9x8xf32>
    %cst_439 = arith.constant 0.353553385 : f32
    %691 = vector.broadcast %cst_439 : f32 to vector<9x8xf32>
    %692 = arith.mulf %690, %691 : vector<9x8xf32>
    %c0_440 = arith.constant 0 : index
    %c0_441 = arith.constant 0 : index
    %c0_442 = arith.constant 0 : index
    %693 = vector.load %arg34[%c0_440, %c0_441, %c0_442] : memref<4x32x8xf32, #tpu.memory_space<vmem>>, vector<1x32x8xf32>
    %694 = vector.shape_cast %693 : vector<1x32x8xf32> to vector<32x8xf32>
    %cst_443 = arith.constant dense<0.000000e+00> : vector<9x8xf32>
    %695 = tpu.matmul %682, %694, %cst_443 {dimension_numbers = #tpu.dot_dimension_numbers<[1], [0], [0], [1], [0, 0, 1, 1], [], []>} : vector<9x32xf32>, vector<32x8xf32>, vector<9x8xf32> -> vector<9x8xf32>
    %c0_444 = arith.constant 0 : index
    %c0_445 = arith.constant 0 : index
    %c0_446 = arith.constant 0 : index
    %696 = vector.load %arg35[%c0_444, %c0_445, %c0_446] : memref<4x1x8xf32, #tpu.memory_space<vmem>>, vector<1x1x8xf32>
    %697 = vector.shape_cast %696 : vector<1x1x8xf32> to vector<1x8xf32>
    %698 = vector.broadcast %697 : vector<1x8xf32> to vector<9x8xf32>
    %699 = arith.addf %695, %698 : vector<9x8xf32>
    %c0_447 = arith.constant 0 : index
    %c0_448 = arith.constant 0 : index
    %c0_449 = arith.constant 0 : index
    %700 = vector.load %arg36[%c0_447, %c0_448, %c0_449] : memref<4x32x32xf32, #tpu.memory_space<vmem>>, vector<1x32x32xf32>
    %701 = vector.shape_cast %700 : vector<1x32x32xf32> to vector<32x32xf32>
    %cst_450 = arith.constant dense<0.000000e+00> : vector<9x32xf32>
    %702 = tpu.matmul %682, %701, %cst_450 {dimension_numbers = #tpu.dot_dimension_numbers<[1], [0], [0], [1], [0, 0, 1, 1], [], []>} : vector<9x32xf32>, vector<32x32xf32>, vector<9x32xf32> -> vector<9x32xf32>
    %c0_451 = arith.constant 0 : index
    %c0_452 = arith.constant 0 : index
    %c0_453 = arith.constant 0 : index
    %703 = vector.load %arg37[%c0_451, %c0_452, %c0_453] : memref<4x1x32xf32, #tpu.memory_space<vmem>>, vector<1x1x32xf32>
    %704 = vector.shape_cast %703 : vector<1x1x32xf32> to vector<1x32xf32>
    %705 = vector.broadcast %704 : vector<1x32xf32> to vector<9x32xf32>
    %706 = arith.addf %702, %705 : vector<9x32xf32>
    %cst_454 = arith.constant dense<0.000000e+00> : vector<9x9xf32>
    %707 = tpu.matmul %692, %699, %cst_454 {dimension_numbers = #tpu.dot_dimension_numbers<[1], [1], [0], [0], [0, 0, 1, 0], [], []>} : vector<9x8xf32>, vector<9x8xf32>, vector<9x9xf32> -> vector<9x9xf32>
    %cst_455 = arith.constant dense<0xFF800000> : vector<9xf32>
    %708 = vector.multi_reduction <maximumf>, %707, %cst_455 [1] : vector<9x9xf32> to vector<9xf32>
    %709 = vector.shape_cast %708 : vector<9xf32> to vector<9x1xf32>
    %710 = vector.broadcast %709 : vector<9x1xf32> to vector<9x9xf32>
    %711 = arith.subf %707, %710 : vector<9x9xf32>
    %712 = math.exp %711 : vector<9x9xf32>
    %cst_456 = arith.constant dense<0.000000e+00> : vector<9xf32>
    %713 = vector.multi_reduction <add>, %712, %cst_456 [1] : vector<9x9xf32> to vector<9xf32>
    %714 = vector.shape_cast %713 : vector<9xf32> to vector<9x1xf32>
    %715 = tpu.reciprocal %714 {approx = true} : vector<9x1xf32> -> vector<9x1xf32>
    %716 = vector.broadcast %715 : vector<9x1xf32> to vector<9x9xf32>
    %717 = arith.mulf %712, %716 : vector<9x9xf32>
    %cst_457 = arith.constant dense<0.000000e+00> : vector<9x32xf32>
    %718 = tpu.matmul %717, %706, %cst_457 {dimension_numbers = #tpu.dot_dimension_numbers<[1], [0], [0], [1], [0, 0, 1, 1], [], []>} : vector<9x9xf32>, vector<9x32xf32>, vector<9x32xf32> -> vector<9x32xf32>
    %719 = arith.addf %683, %718 : vector<9x32xf32>
    %c1_458 = arith.constant 1 : index
    %c0_459 = arith.constant 0 : index
    %c0_460 = arith.constant 0 : index
    %720 = vector.load %arg32[%c1_458, %c0_459, %c0_460] : memref<4x32x8xf32, #tpu.memory_space<vmem>>, vector<1x32x8xf32>
    %721 = vector.shape_cast %720 : vector<1x32x8xf32> to vector<32x8xf32>
    %cst_461 = arith.constant dense<0.000000e+00> : vector<9x8xf32>
    %722 = tpu.matmul %682, %721, %cst_461 {dimension_numbers = #tpu.dot_dimension_numbers<[1], [0], [0], [1], [0, 0, 1, 1], [], []>} : vector<9x32xf32>, vector<32x8xf32>, vector<9x8xf32> -> vector<9x8xf32>
    %c1_462 = arith.constant 1 : index
    %c0_463 = arith.constant 0 : index
    %c0_464 = arith.constant 0 : index
    %723 = vector.load %arg33[%c1_462, %c0_463, %c0_464] : memref<4x1x8xf32, #tpu.memory_space<vmem>>, vector<1x1x8xf32>
    %724 = vector.shape_cast %723 : vector<1x1x8xf32> to vector<1x8xf32>
    %725 = vector.broadcast %724 : vector<1x8xf32> to vector<9x8xf32>
    %726 = arith.addf %722, %725 : vector<9x8xf32>
    %cst_465 = arith.constant 0.353553385 : f32
    %727 = vector.broadcast %cst_465 : f32 to vector<9x8xf32>
    %728 = arith.mulf %726, %727 : vector<9x8xf32>
    %c1_466 = arith.constant 1 : index
    %c0_467 = arith.constant 0 : index
    %c0_468 = arith.constant 0 : index
    %729 = vector.load %arg34[%c1_466, %c0_467, %c0_468] : memref<4x32x8xf32, #tpu.memory_space<vmem>>, vector<1x32x8xf32>
    %730 = vector.shape_cast %729 : vector<1x32x8xf32> to vector<32x8xf32>
    %cst_469 = arith.constant dense<0.000000e+00> : vector<9x8xf32>
    %731 = tpu.matmul %682, %730, %cst_469 {dimension_numbers = #tpu.dot_dimension_numbers<[1], [0], [0], [1], [0, 0, 1, 1], [], []>} : vector<9x32xf32>, vector<32x8xf32>, vector<9x8xf32> -> vector<9x8xf32>
    %c1_470 = arith.constant 1 : index
    %c0_471 = arith.constant 0 : index
    %c0_472 = arith.constant 0 : index
    %732 = vector.load %arg35[%c1_470, %c0_471, %c0_472] : memref<4x1x8xf32, #tpu.memory_space<vmem>>, vector<1x1x8xf32>
    %733 = vector.shape_cast %732 : vector<1x1x8xf32> to vector<1x8xf32>
    %734 = vector.broadcast %733 : vector<1x8xf32> to vector<9x8xf32>
    %735 = arith.addf %731, %734 : vector<9x8xf32>
    %c1_473 = arith.constant 1 : index
    %c0_474 = arith.constant 0 : index
    %c0_475 = arith.constant 0 : index
    %736 = vector.load %arg36[%c1_473, %c0_474, %c0_475] : memref<4x32x32xf32, #tpu.memory_space<vmem>>, vector<1x32x32xf32>
    %737 = vector.shape_cast %736 : vector<1x32x32xf32> to vector<32x32xf32>
    %cst_476 = arith.constant dense<0.000000e+00> : vector<9x32xf32>
    %738 = tpu.matmul %682, %737, %cst_476 {dimension_numbers = #tpu.dot_dimension_numbers<[1], [0], [0], [1], [0, 0, 1, 1], [], []>} : vector<9x32xf32>, vector<32x32xf32>, vector<9x32xf32> -> vector<9x32xf32>
    %c1_477 = arith.constant 1 : index
    %c0_478 = arith.constant 0 : index
    %c0_479 = arith.constant 0 : index
    %739 = vector.load %arg37[%c1_477, %c0_478, %c0_479] : memref<4x1x32xf32, #tpu.memory_space<vmem>>, vector<1x1x32xf32>
    %740 = vector.shape_cast %739 : vector<1x1x32xf32> to vector<1x32xf32>
    %741 = vector.broadcast %740 : vector<1x32xf32> to vector<9x32xf32>
    %742 = arith.addf %738, %741 : vector<9x32xf32>
    %cst_480 = arith.constant dense<0.000000e+00> : vector<9x9xf32>
    %743 = tpu.matmul %728, %735, %cst_480 {dimension_numbers = #tpu.dot_dimension_numbers<[1], [1], [0], [0], [0, 0, 1, 0], [], []>} : vector<9x8xf32>, vector<9x8xf32>, vector<9x9xf32> -> vector<9x9xf32>
    %cst_481 = arith.constant dense<0xFF800000> : vector<9xf32>
    %744 = vector.multi_reduction <maximumf>, %743, %cst_481 [1] : vector<9x9xf32> to vector<9xf32>
    %745 = vector.shape_cast %744 : vector<9xf32> to vector<9x1xf32>
    %746 = vector.broadcast %745 : vector<9x1xf32> to vector<9x9xf32>
    %747 = arith.subf %743, %746 : vector<9x9xf32>
    %748 = math.exp %747 : vector<9x9xf32>
    %cst_482 = arith.constant dense<0.000000e+00> : vector<9xf32>
    %749 = vector.multi_reduction <add>, %748, %cst_482 [1] : vector<9x9xf32> to vector<9xf32>
    %750 = vector.shape_cast %749 : vector<9xf32> to vector<9x1xf32>
    %751 = tpu.reciprocal %750 {approx = true} : vector<9x1xf32> -> vector<9x1xf32>
    %752 = vector.broadcast %751 : vector<9x1xf32> to vector<9x9xf32>
    %753 = arith.mulf %748, %752 : vector<9x9xf32>
    %cst_483 = arith.constant dense<0.000000e+00> : vector<9x32xf32>
    %754 = tpu.matmul %753, %742, %cst_483 {dimension_numbers = #tpu.dot_dimension_numbers<[1], [0], [0], [1], [0, 0, 1, 1], [], []>} : vector<9x9xf32>, vector<9x32xf32>, vector<9x32xf32> -> vector<9x32xf32>
    %755 = arith.addf %719, %754 : vector<9x32xf32>
    %c2_484 = arith.constant 2 : index
    %c0_485 = arith.constant 0 : index
    %c0_486 = arith.constant 0 : index
    %756 = vector.load %arg32[%c2_484, %c0_485, %c0_486] : memref<4x32x8xf32, #tpu.memory_space<vmem>>, vector<1x32x8xf32>
    %757 = vector.shape_cast %756 : vector<1x32x8xf32> to vector<32x8xf32>
    %cst_487 = arith.constant dense<0.000000e+00> : vector<9x8xf32>
    %758 = tpu.matmul %682, %757, %cst_487 {dimension_numbers = #tpu.dot_dimension_numbers<[1], [0], [0], [1], [0, 0, 1, 1], [], []>} : vector<9x32xf32>, vector<32x8xf32>, vector<9x8xf32> -> vector<9x8xf32>
    %c2_488 = arith.constant 2 : index
    %c0_489 = arith.constant 0 : index
    %c0_490 = arith.constant 0 : index
    %759 = vector.load %arg33[%c2_488, %c0_489, %c0_490] : memref<4x1x8xf32, #tpu.memory_space<vmem>>, vector<1x1x8xf32>
    %760 = vector.shape_cast %759 : vector<1x1x8xf32> to vector<1x8xf32>
    %761 = vector.broadcast %760 : vector<1x8xf32> to vector<9x8xf32>
    %762 = arith.addf %758, %761 : vector<9x8xf32>
    %cst_491 = arith.constant 0.353553385 : f32
    %763 = vector.broadcast %cst_491 : f32 to vector<9x8xf32>
    %764 = arith.mulf %762, %763 : vector<9x8xf32>
    %c2_492 = arith.constant 2 : index
    %c0_493 = arith.constant 0 : index
    %c0_494 = arith.constant 0 : index
    %765 = vector.load %arg34[%c2_492, %c0_493, %c0_494] : memref<4x32x8xf32, #tpu.memory_space<vmem>>, vector<1x32x8xf32>
    %766 = vector.shape_cast %765 : vector<1x32x8xf32> to vector<32x8xf32>
    %cst_495 = arith.constant dense<0.000000e+00> : vector<9x8xf32>
    %767 = tpu.matmul %682, %766, %cst_495 {dimension_numbers = #tpu.dot_dimension_numbers<[1], [0], [0], [1], [0, 0, 1, 1], [], []>} : vector<9x32xf32>, vector<32x8xf32>, vector<9x8xf32> -> vector<9x8xf32>
    %c2_496 = arith.constant 2 : index
    %c0_497 = arith.constant 0 : index
    %c0_498 = arith.constant 0 : index
    %768 = vector.load %arg35[%c2_496, %c0_497, %c0_498] : memref<4x1x8xf32, #tpu.memory_space<vmem>>, vector<1x1x8xf32>
    %769 = vector.shape_cast %768 : vector<1x1x8xf32> to vector<1x8xf32>
    %770 = vector.broadcast %769 : vector<1x8xf32> to vector<9x8xf32>
    %771 = arith.addf %767, %770 : vector<9x8xf32>
    %c2_499 = arith.constant 2 : index
    %c0_500 = arith.constant 0 : index
    %c0_501 = arith.constant 0 : index
    %772 = vector.load %arg36[%c2_499, %c0_500, %c0_501] : memref<4x32x32xf32, #tpu.memory_space<vmem>>, vector<1x32x32xf32>
    %773 = vector.shape_cast %772 : vector<1x32x32xf32> to vector<32x32xf32>
    %cst_502 = arith.constant dense<0.000000e+00> : vector<9x32xf32>
    %774 = tpu.matmul %682, %773, %cst_502 {dimension_numbers = #tpu.dot_dimension_numbers<[1], [0], [0], [1], [0, 0, 1, 1], [], []>} : vector<9x32xf32>, vector<32x32xf32>, vector<9x32xf32> -> vector<9x32xf32>
    %c2_503 = arith.constant 2 : index
    %c0_504 = arith.constant 0 : index
    %c0_505 = arith.constant 0 : index
    %775 = vector.load %arg37[%c2_503, %c0_504, %c0_505] : memref<4x1x32xf32, #tpu.memory_space<vmem>>, vector<1x1x32xf32>
    %776 = vector.shape_cast %775 : vector<1x1x32xf32> to vector<1x32xf32>
    %777 = vector.broadcast %776 : vector<1x32xf32> to vector<9x32xf32>
    %778 = arith.addf %774, %777 : vector<9x32xf32>
    %cst_506 = arith.constant dense<0.000000e+00> : vector<9x9xf32>
    %779 = tpu.matmul %764, %771, %cst_506 {dimension_numbers = #tpu.dot_dimension_numbers<[1], [1], [0], [0], [0, 0, 1, 0], [], []>} : vector<9x8xf32>, vector<9x8xf32>, vector<9x9xf32> -> vector<9x9xf32>
    %cst_507 = arith.constant dense<0xFF800000> : vector<9xf32>
    %780 = vector.multi_reduction <maximumf>, %779, %cst_507 [1] : vector<9x9xf32> to vector<9xf32>
    %781 = vector.shape_cast %780 : vector<9xf32> to vector<9x1xf32>
    %782 = vector.broadcast %781 : vector<9x1xf32> to vector<9x9xf32>
    %783 = arith.subf %779, %782 : vector<9x9xf32>
    %784 = math.exp %783 : vector<9x9xf32>
    %cst_508 = arith.constant dense<0.000000e+00> : vector<9xf32>
    %785 = vector.multi_reduction <add>, %784, %cst_508 [1] : vector<9x9xf32> to vector<9xf32>
    %786 = vector.shape_cast %785 : vector<9xf32> to vector<9x1xf32>
    %787 = tpu.reciprocal %786 {approx = true} : vector<9x1xf32> -> vector<9x1xf32>
    %788 = vector.broadcast %787 : vector<9x1xf32> to vector<9x9xf32>
    %789 = arith.mulf %784, %788 : vector<9x9xf32>
    %cst_509 = arith.constant dense<0.000000e+00> : vector<9x32xf32>
    %790 = tpu.matmul %789, %778, %cst_509 {dimension_numbers = #tpu.dot_dimension_numbers<[1], [0], [0], [1], [0, 0, 1, 1], [], []>} : vector<9x9xf32>, vector<9x32xf32>, vector<9x32xf32> -> vector<9x32xf32>
    %791 = arith.addf %755, %790 : vector<9x32xf32>
    %c3_510 = arith.constant 3 : index
    %c0_511 = arith.constant 0 : index
    %c0_512 = arith.constant 0 : index
    %792 = vector.load %arg32[%c3_510, %c0_511, %c0_512] : memref<4x32x8xf32, #tpu.memory_space<vmem>>, vector<1x32x8xf32>
    %793 = vector.shape_cast %792 : vector<1x32x8xf32> to vector<32x8xf32>
    %cst_513 = arith.constant dense<0.000000e+00> : vector<9x8xf32>
    %794 = tpu.matmul %682, %793, %cst_513 {dimension_numbers = #tpu.dot_dimension_numbers<[1], [0], [0], [1], [0, 0, 1, 1], [], []>} : vector<9x32xf32>, vector<32x8xf32>, vector<9x8xf32> -> vector<9x8xf32>
    %c3_514 = arith.constant 3 : index
    %c0_515 = arith.constant 0 : index
    %c0_516 = arith.constant 0 : index
    %795 = vector.load %arg33[%c3_514, %c0_515, %c0_516] : memref<4x1x8xf32, #tpu.memory_space<vmem>>, vector<1x1x8xf32>
    %796 = vector.shape_cast %795 : vector<1x1x8xf32> to vector<1x8xf32>
    %797 = vector.broadcast %796 : vector<1x8xf32> to vector<9x8xf32>
    %798 = arith.addf %794, %797 : vector<9x8xf32>
    %cst_517 = arith.constant 0.353553385 : f32
    %799 = vector.broadcast %cst_517 : f32 to vector<9x8xf32>
    %800 = arith.mulf %798, %799 : vector<9x8xf32>
    %c3_518 = arith.constant 3 : index
    %c0_519 = arith.constant 0 : index
    %c0_520 = arith.constant 0 : index
    %801 = vector.load %arg34[%c3_518, %c0_519, %c0_520] : memref<4x32x8xf32, #tpu.memory_space<vmem>>, vector<1x32x8xf32>
    %802 = vector.shape_cast %801 : vector<1x32x8xf32> to vector<32x8xf32>
    %cst_521 = arith.constant dense<0.000000e+00> : vector<9x8xf32>
    %803 = tpu.matmul %682, %802, %cst_521 {dimension_numbers = #tpu.dot_dimension_numbers<[1], [0], [0], [1], [0, 0, 1, 1], [], []>} : vector<9x32xf32>, vector<32x8xf32>, vector<9x8xf32> -> vector<9x8xf32>
    %c3_522 = arith.constant 3 : index
    %c0_523 = arith.constant 0 : index
    %c0_524 = arith.constant 0 : index
    %804 = vector.load %arg35[%c3_522, %c0_523, %c0_524] : memref<4x1x8xf32, #tpu.memory_space<vmem>>, vector<1x1x8xf32>
    %805 = vector.shape_cast %804 : vector<1x1x8xf32> to vector<1x8xf32>
    %806 = vector.broadcast %805 : vector<1x8xf32> to vector<9x8xf32>
    %807 = arith.addf %803, %806 : vector<9x8xf32>
    %c3_525 = arith.constant 3 : index
    %c0_526 = arith.constant 0 : index
    %c0_527 = arith.constant 0 : index
    %808 = vector.load %arg36[%c3_525, %c0_526, %c0_527] : memref<4x32x32xf32, #tpu.memory_space<vmem>>, vector<1x32x32xf32>
    %809 = vector.shape_cast %808 : vector<1x32x32xf32> to vector<32x32xf32>
    %cst_528 = arith.constant dense<0.000000e+00> : vector<9x32xf32>
    %810 = tpu.matmul %682, %809, %cst_528 {dimension_numbers = #tpu.dot_dimension_numbers<[1], [0], [0], [1], [0, 0, 1, 1], [], []>} : vector<9x32xf32>, vector<32x32xf32>, vector<9x32xf32> -> vector<9x32xf32>
    %c3_529 = arith.constant 3 : index
    %c0_530 = arith.constant 0 : index
    %c0_531 = arith.constant 0 : index
    %811 = vector.load %arg37[%c3_529, %c0_530, %c0_531] : memref<4x1x32xf32, #tpu.memory_space<vmem>>, vector<1x1x32xf32>
    %812 = vector.shape_cast %811 : vector<1x1x32xf32> to vector<1x32xf32>
    %813 = vector.broadcast %812 : vector<1x32xf32> to vector<9x32xf32>
    %814 = arith.addf %810, %813 : vector<9x32xf32>
    %cst_532 = arith.constant dense<0.000000e+00> : vector<9x9xf32>
    %815 = tpu.matmul %800, %807, %cst_532 {dimension_numbers = #tpu.dot_dimension_numbers<[1], [1], [0], [0], [0, 0, 1, 0], [], []>} : vector<9x8xf32>, vector<9x8xf32>, vector<9x9xf32> -> vector<9x9xf32>
    %cst_533 = arith.constant dense<0xFF800000> : vector<9xf32>
    %816 = vector.multi_reduction <maximumf>, %815, %cst_533 [1] : vector<9x9xf32> to vector<9xf32>
    %817 = vector.shape_cast %816 : vector<9xf32> to vector<9x1xf32>
    %818 = vector.broadcast %817 : vector<9x1xf32> to vector<9x9xf32>
    %819 = arith.subf %815, %818 : vector<9x9xf32>
    %820 = math.exp %819 : vector<9x9xf32>
    %cst_534 = arith.constant dense<0.000000e+00> : vector<9xf32>
    %821 = vector.multi_reduction <add>, %820, %cst_534 [1] : vector<9x9xf32> to vector<9xf32>
    %822 = vector.shape_cast %821 : vector<9xf32> to vector<9x1xf32>
    %823 = tpu.reciprocal %822 {approx = true} : vector<9x1xf32> -> vector<9x1xf32>
    %824 = vector.broadcast %823 : vector<9x1xf32> to vector<9x9xf32>
    %825 = arith.mulf %820, %824 : vector<9x9xf32>
    %cst_535 = arith.constant dense<0.000000e+00> : vector<9x32xf32>
    %826 = tpu.matmul %825, %814, %cst_535 {dimension_numbers = #tpu.dot_dimension_numbers<[1], [0], [0], [1], [0, 0, 1, 1], [], []>} : vector<9x9xf32>, vector<9x32xf32>, vector<9x32xf32> -> vector<9x32xf32>
    %827 = arith.addf %791, %826 : vector<9x32xf32>
    %c0_536 = arith.constant 0 : index
    %c0_537 = arith.constant 0 : index
    %c0_538 = arith.constant 0 : index
    %828 = vector.load %arg38[%c0_536, %c0_537, %c0_538] : memref<1x32x32xf32, #tpu.memory_space<vmem>>, vector<1x32x32xf32>
    %829 = vector.shape_cast %828 : vector<1x32x32xf32> to vector<32x32xf32>
    %cst_539 = arith.constant dense<0.000000e+00> : vector<9x32xf32>
    %830 = tpu.matmul %827, %829, %cst_539 {dimension_numbers = #tpu.dot_dimension_numbers<[1], [0], [0], [1], [0, 0, 1, 1], [], []>} : vector<9x32xf32>, vector<32x32xf32>, vector<9x32xf32> -> vector<9x32xf32>
    %831 = arith.addf %656, %830 : vector<9x32xf32>
    %c0_540 = arith.constant 0 : index
    %c0_541 = arith.constant 0 : index
    %c0_542 = arith.constant 0 : index
    %832 = vector.load %arg39[%c0_540, %c0_541, %c0_542] : memref<1x1x32xf32, #tpu.memory_space<vmem>>, vector<1x1x32xf32>
    %833 = vector.shape_cast %832 : vector<1x1x32xf32> to vector<1x32xf32>
    %834 = vector.broadcast %833 : vector<1x32xf32> to vector<9x32xf32>
    %835 = arith.addf %831, %834 : vector<9x32xf32>
    %c0_543 = arith.constant 0 : index
    %c0_544 = arith.constant 0 : index
    %c0_545 = arith.constant 0 : index
    %836 = vector.load %arg40[%c0_543, %c0_544, %c0_545] : memref<1x1x32xf32, #tpu.memory_space<vmem>>, vector<1x1x32xf32>
    %837 = vector.shape_cast %836 : vector<1x1x32xf32> to vector<1x32xf32>
    %c0_546 = arith.constant 0 : index
    %c0_547 = arith.constant 0 : index
    %c0_548 = arith.constant 0 : index
    %838 = vector.load %arg41[%c0_546, %c0_547, %c0_548] : memref<1x1x32xf32, #tpu.memory_space<vmem>>, vector<1x1x32xf32>
    %839 = vector.shape_cast %838 : vector<1x1x32xf32> to vector<1x32xf32>
    %cst_549 = arith.constant dense<0.000000e+00> : vector<9xf32>
    %840 = vector.multi_reduction <add>, %835, %cst_549 [1] : vector<9x32xf32> to vector<9xf32>
    %841 = vector.shape_cast %840 : vector<9xf32> to vector<9x1xf32>
    %cst_550 = arith.constant 3.200000e+01 : f32
    %842 = vector.broadcast %cst_550 : f32 to vector<9x1xf32>
    %843 = arith.divf %841, %842 : vector<9x1xf32>
    %844 = vector.broadcast %843 : vector<9x1xf32> to vector<9x32xf32>
    %845 = arith.subf %835, %844 : vector<9x32xf32>
    %846 = arith.mulf %845, %845 : vector<9x32xf32>
    %cst_551 = arith.constant dense<0.000000e+00> : vector<9xf32>
    %847 = vector.multi_reduction <add>, %846, %cst_551 [1] : vector<9x32xf32> to vector<9xf32>
    %848 = vector.shape_cast %847 : vector<9xf32> to vector<9x1xf32>
    %cst_552 = arith.constant 3.200000e+01 : f32
    %849 = vector.broadcast %cst_552 : f32 to vector<9x1xf32>
    %850 = arith.divf %848, %849 : vector<9x1xf32>
    %851 = vector.broadcast %843 : vector<9x1xf32> to vector<9x32xf32>
    %852 = arith.subf %835, %851 : vector<9x32xf32>
    %cst_553 = arith.constant 9.99999974E-6 : f32
    %853 = vector.broadcast %cst_553 : f32 to vector<9x1xf32>
    %854 = arith.addf %850, %853 : vector<9x1xf32>
    %855 = math.rsqrt %854 : vector<9x1xf32>
    %856 = vector.broadcast %855 : vector<9x1xf32> to vector<9x32xf32>
    %857 = arith.mulf %852, %856 : vector<9x32xf32>
    %858 = vector.broadcast %837 : vector<1x32xf32> to vector<9x32xf32>
    %859 = arith.mulf %857, %858 : vector<9x32xf32>
    %860 = vector.broadcast %839 : vector<1x32xf32> to vector<9x32xf32>
    %861 = arith.addf %859, %860 : vector<9x32xf32>
    %c0_554 = arith.constant 0 : index
    %c0_555 = arith.constant 0 : index
    %c0_556 = arith.constant 0 : index
    %862 = vector.load %arg42[%c0_554, %c0_555, %c0_556] : memref<1x32x128xf32, #tpu.memory_space<vmem>>, vector<1x32x128xf32>
    %863 = vector.shape_cast %862 : vector<1x32x128xf32> to vector<32x128xf32>
    %cst_557 = arith.constant dense<0.000000e+00> : vector<9x128xf32>
    %864 = tpu.matmul %861, %863, %cst_557 {dimension_numbers = #tpu.dot_dimension_numbers<[1], [0], [0], [1], [0, 0, 1, 1], [], []>} : vector<9x32xf32>, vector<32x128xf32>, vector<9x128xf32> -> vector<9x128xf32>
    %c0_558 = arith.constant 0 : index
    %c0_559 = arith.constant 0 : index
    %c0_560 = arith.constant 0 : index
    %865 = vector.load %arg43[%c0_558, %c0_559, %c0_560] : memref<1x1x128xf32, #tpu.memory_space<vmem>>, vector<1x1x128xf32>
    %866 = vector.shape_cast %865 : vector<1x1x128xf32> to vector<1x128xf32>
    %867 = vector.broadcast %866 : vector<1x128xf32> to vector<9x128xf32>
    %868 = arith.addf %864, %867 : vector<9x128xf32>
    %cst_561 = arith.constant 5.000000e-01 : f32
    %869 = vector.broadcast %cst_561 : f32 to vector<9x128xf32>
    %870 = arith.mulf %869, %868 : vector<9x128xf32>
    %cst_562 = arith.constant 4.471500e-02 : f32
    %871 = vector.broadcast %cst_562 : f32 to vector<9x128xf32>
    %872 = arith.mulf %871, %868 : vector<9x128xf32>
    %873 = arith.mulf %872, %868 : vector<9x128xf32>
    %874 = arith.mulf %873, %868 : vector<9x128xf32>
    %875 = arith.addf %868, %874 : vector<9x128xf32>
    %cst_563 = arith.constant 0.797884583 : f32
    %876 = vector.broadcast %cst_563 : f32 to vector<9x128xf32>
    %877 = arith.mulf %876, %875 : vector<9x128xf32>
    %878 = math.tanh %877 : vector<9x128xf32>
    %cst_564 = arith.constant 1.000000e+00 : f32
    %879 = vector.broadcast %cst_564 : f32 to vector<9x128xf32>
    %880 = arith.addf %879, %878 : vector<9x128xf32>
    %881 = arith.mulf %870, %880 : vector<9x128xf32>
    %c0_565 = arith.constant 0 : index
    %c0_566 = arith.constant 0 : index
    %c0_567 = arith.constant 0 : index
    %882 = vector.load %arg44[%c0_565, %c0_566, %c0_567] : memref<1x128x32xf32, #tpu.memory_space<vmem>>, vector<1x128x32xf32>
    %883 = vector.shape_cast %882 : vector<1x128x32xf32> to vector<128x32xf32>
    %cst_568 = arith.constant dense<0.000000e+00> : vector<9x32xf32>
    %884 = tpu.matmul %881, %883, %cst_568 {dimension_numbers = #tpu.dot_dimension_numbers<[1], [0], [0], [1], [0, 0, 1, 1], [], []>} : vector<9x128xf32>, vector<128x32xf32>, vector<9x32xf32> -> vector<9x32xf32>
    %c0_569 = arith.constant 0 : index
    %c0_570 = arith.constant 0 : index
    %c0_571 = arith.constant 0 : index
    %885 = vector.load %arg45[%c0_569, %c0_570, %c0_571] : memref<1x1x32xf32, #tpu.memory_space<vmem>>, vector<1x1x32xf32>
    %886 = vector.shape_cast %885 : vector<1x1x32xf32> to vector<1x32xf32>
    %887 = vector.broadcast %886 : vector<1x32xf32> to vector<9x32xf32>
    %888 = arith.addf %884, %887 : vector<9x32xf32>
    %889 = arith.addf %835, %888 : vector<9x32xf32>
    %c0_572 = arith.constant 0 : index
    %c0_573 = arith.constant 0 : index
    %890 = vector.load %arg46[%c0_572, %c0_573] : memref<1x32xf32, #tpu.memory_space<vmem>>, vector<1x32xf32>
    %c0_574 = arith.constant 0 : index
    %c0_575 = arith.constant 0 : index
    %891 = vector.load %arg47[%c0_574, %c0_575] : memref<1x32xf32, #tpu.memory_space<vmem>>, vector<1x32xf32>
    %cst_576 = arith.constant dense<0.000000e+00> : vector<9xf32>
    %892 = vector.multi_reduction <add>, %889, %cst_576 [1] : vector<9x32xf32> to vector<9xf32>
    %893 = vector.shape_cast %892 : vector<9xf32> to vector<9x1xf32>
    %cst_577 = arith.constant 3.200000e+01 : f32
    %894 = vector.broadcast %cst_577 : f32 to vector<9x1xf32>
    %895 = arith.divf %893, %894 : vector<9x1xf32>
    %896 = vector.broadcast %895 : vector<9x1xf32> to vector<9x32xf32>
    %897 = arith.subf %889, %896 : vector<9x32xf32>
    %898 = arith.mulf %897, %897 : vector<9x32xf32>
    %cst_578 = arith.constant dense<0.000000e+00> : vector<9xf32>
    %899 = vector.multi_reduction <add>, %898, %cst_578 [1] : vector<9x32xf32> to vector<9xf32>
    %900 = vector.shape_cast %899 : vector<9xf32> to vector<9x1xf32>
    %cst_579 = arith.constant 3.200000e+01 : f32
    %901 = vector.broadcast %cst_579 : f32 to vector<9x1xf32>
    %902 = arith.divf %900, %901 : vector<9x1xf32>
    %903 = vector.broadcast %895 : vector<9x1xf32> to vector<9x32xf32>
    %904 = arith.subf %889, %903 : vector<9x32xf32>
    %cst_580 = arith.constant 9.99999974E-6 : f32
    %905 = vector.broadcast %cst_580 : f32 to vector<9x1xf32>
    %906 = arith.addf %902, %905 : vector<9x1xf32>
    %907 = math.rsqrt %906 : vector<9x1xf32>
    %908 = vector.broadcast %907 : vector<9x1xf32> to vector<9x32xf32>
    %909 = arith.mulf %904, %908 : vector<9x32xf32>
    %910 = vector.broadcast %890 : vector<1x32xf32> to vector<9x32xf32>
    %911 = arith.mulf %909, %910 : vector<9x32xf32>
    %912 = vector.broadcast %891 : vector<1x32xf32> to vector<9x32xf32>
    %913 = arith.addf %911, %912 : vector<9x32xf32>
    %914 = vector.extract_strided_slice %913 {offsets = [0, 0], sizes = [8, 32], strides = [1, 1]} : vector<9x32xf32> to vector<8x32xf32>
    %c0_581 = arith.constant 0 : index
    %c0_582 = arith.constant 0 : index
    %915 = vector.load %arg48[%c0_581, %c0_582] : memref<32x192xf32, #tpu.memory_space<vmem>>, vector<32x192xf32>
    %cst_583 = arith.constant dense<0.000000e+00> : vector<8x192xf32>
    %916 = tpu.matmul %914, %915, %cst_583 {dimension_numbers = #tpu.dot_dimension_numbers<[1], [0], [0], [1], [0, 0, 1, 1], [], []>} : vector<8x32xf32>, vector<32x192xf32>, vector<8x192xf32> -> vector<8x192xf32>
    %c0_584 = arith.constant 0 : index
    %c0_585 = arith.constant 0 : index
    %917 = vector.load %arg49[%c0_584, %c0_585] : memref<1x192xf32, #tpu.memory_space<vmem>>, vector<1x192xf32>
    %918 = vector.broadcast %917 : vector<1x192xf32> to vector<8x192xf32>
    %919 = arith.addf %916, %918 : vector<8x192xf32>
    %c0_586 = arith.constant 0 : index
    %c0_587 = arith.constant 0 : index
    %c0_588 = arith.constant 0 : index
    %920 = vector.load %arg50[%c0_586, %c0_587, %c0_588] : memref<1x8x192xf32, #tpu.memory_space<vmem>>, vector<1x8x192xf32>
    %921 = vector.shape_cast %920 : vector<1x8x192xf32> to vector<8x192xf32>
    %922 = vector.shape_cast %919 : vector<8x192xf32> to vector<1x8x192xf32>
    tpu.vector_store %arg50[%c0_586, %c0_587, %c0_588], %922 {strides = array<i32>} : memref<1x8x192xf32, #tpu.memory_space<vmem>>, vector<1x8x192xf32>,
    %c0_589 = arith.constant 0 : index
    %c0_590 = arith.constant 0 : index
    %c0_591 = arith.constant 0 : index
    %923 = vector.load %arg3[%c0_589, %c0_590, %c0_591] : memref<1x8x192xf32, #tpu.memory_space<vmem>>, vector<1x8x192xf32>
    %924 = vector.shape_cast %923 : vector<1x8x192xf32> to vector<8x192xf32>
    %925 = arith.subf %919, %924 : vector<8x192xf32>
    %926 = arith.mulf %925, %925 : vector<8x192xf32>
    %cst_592 = arith.constant dense<0.000000e+00> : vector<8xf32>
    %927 = vector.multi_reduction <add>, %926, %cst_592 [1] : vector<8x192xf32> to vector<8xf32>
    %928 = vector.shape_cast %927 : vector<8xf32> to vector<8x1xf32>
    %cst_593 = arith.constant 1.920000e+02 : f32
    %929 = vector.broadcast %cst_593 : f32 to vector<8x1xf32>
    %930 = arith.divf %928, %929 : vector<8x1xf32>
    %c0_594 = arith.constant 0 : index
    %c0_595 = arith.constant 0 : index
    %c0_596 = arith.constant 0 : index
    %931 = vector.load %arg4[%c0_594, %c0_595, %c0_596] : memref<1x8x1xf32, #tpu.memory_space<vmem>>, vector<1x8x1xf32>
    %932 = vector.shape_cast %931 : vector<1x8x1xf32> to vector<8x1xf32>
    %933 = arith.mulf %930, %932 : vector<8x1xf32>
    %cst_597 = arith.constant dense<0.000000e+00> : vector<1xf32>
    %934 = vector.multi_reduction <add>, %933, %cst_597 [0] : vector<8x1xf32> to vector<1xf32>
    %935 = vector.shape_cast %934 : vector<1xf32> to vector<1x1xf32>
    %c0_598 = arith.constant 0 : index
    %c0_599 = arith.constant 0 : index
    %c0_600 = arith.constant 0 : index
    %936 = vector.load %arg51[%c0_598, %c0_599, %c0_600] : memref<1x1x1xf32, #tpu.memory_space<vmem>>, vector<1x1x1xf32>
    %937 = vector.shape_cast %936 : vector<1x1x1xf32> to vector<1x1xf32>
    %938 = vector.shape_cast %935 : vector<1x1xf32> to vector<1x1x1xf32>
    tpu.vector_store %arg51[%c0_598, %c0_599, %c0_600], %938 {strides = array<i32>} : memref<1x1x1xf32, #tpu.memory_space<vmem>>, vector<1x1x1xf32>,
    return
  }
  func.func @transform_0(%arg0: i32, %arg1: memref<2x2xi32, #tpu.memory_space<smem>>, %arg2: memref<2x8xi32, #tpu.memory_space<smem>>) -> (i32, i32, i32) {
    %c0_i32 = arith.constant 0 : i32
    %c0_i32_0 = arith.constant 0 : i32
    %c0_i32_1 = arith.constant 0 : i32
    return %arg0, %c0_i32, %c0_i32_0 : i32, i32, i32
  }
  func.func @transform_1(%arg0: i32, %arg1: memref<2x2xi32, #tpu.memory_space<smem>>, %arg2: memref<2x8xi32, #tpu.memory_space<smem>>) -> (i32, i32, i32) {
    %c0_i32 = arith.constant 0 : i32
    %c0_i32_0 = arith.constant 0 : i32
    %c0_i32_1 = arith.constant 0 : i32
    return %arg0, %c0_i32, %c0_i32_0 : i32, i32, i32
  }
  func.func @transform_2(%arg0: i32, %arg1: memref<2x2xi32, #tpu.memory_space<smem>>, %arg2: memref<2x8xi32, #tpu.memory_space<smem>>) -> (i32, i32) {
    %c0_i32 = arith.constant 0 : i32
    %c0_i32_0 = arith.constant 0 : i32
    %c0_i32_1 = arith.constant 0 : i32
    return %c0_i32, %c0_i32_0 : i32, i32
  }
  func.func @transform_3(%arg0: i32, %arg1: memref<2x2xi32, #tpu.memory_space<smem>>, %arg2: memref<2x8xi32, #tpu.memory_space<smem>>) -> (i32, i32) {
    %c0_i32 = arith.constant 0 : i32
    %c0_i32_0 = arith.constant 0 : i32
    %c0_i32_1 = arith.constant 0 : i32
    return %c0_i32, %c0_i32_0 : i32, i32
  }
  func.func @transform_4(%arg0: i32, %arg1: memref<2x2xi32, #tpu.memory_space<smem>>, %arg2: memref<2x8xi32, #tpu.memory_space<smem>>) -> (i32, i32) {
    %c0_i32 = arith.constant 0 : i32
    %c0_i32_0 = arith.constant 0 : i32
    %c0_i32_1 = arith.constant 0 : i32
    return %c0_i32, %c0_i32_0 : i32, i32
  }
  func.func @transform_5(%arg0: i32, %arg1: memref<2x2xi32, #tpu.memory_space<smem>>, %arg2: memref<2x8xi32, #tpu.memory_space<smem>>) -> (i32, i32, i32) {
    %c0_i32 = arith.constant 0 : i32
    %c0_i32_0 = arith.constant 0 : i32
    %c0_i32_1 = arith.constant 0 : i32
    %c0_i32_2 = arith.constant 0 : i32
    return %c0_i32, %c0_i32_0, %c0_i32_1 : i32, i32, i32
  }
  func.func @transform_6(%arg0: i32, %arg1: memref<2x2xi32, #tpu.memory_space<smem>>, %arg2: memref<2x8xi32, #tpu.memory_space<smem>>) -> (i32, i32, i32) {
    %c0_i32 = arith.constant 0 : i32
    %c0_i32_0 = arith.constant 0 : i32
    %c0_i32_1 = arith.constant 0 : i32
    %c0_i32_2 = arith.constant 0 : i32
    return %c0_i32, %c0_i32_0, %c0_i32_1 : i32, i32, i32
  }
  func.func @transform_7(%arg0: i32, %arg1: memref<2x2xi32, #tpu.memory_space<smem>>, %arg2: memref<2x8xi32, #tpu.memory_space<smem>>) -> (i32, i32, i32) {
    %c0_i32 = arith.constant 0 : i32
    %c0_i32_0 = arith.constant 0 : i32
    %c0_i32_1 = arith.constant 0 : i32
    %c0_i32_2 = arith.constant 0 : i32
    return %c0_i32, %c0_i32_0, %c0_i32_1 : i32, i32, i32
  }
  func.func @transform_8(%arg0: i32, %arg1: memref<2x2xi32, #tpu.memory_space<smem>>, %arg2: memref<2x8xi32, #tpu.memory_space<smem>>) -> (i32, i32, i32) {
    %c0_i32 = arith.constant 0 : i32
    %c0_i32_0 = arith.constant 0 : i32
    %c0_i32_1 = arith.constant 0 : i32
    %c0_i32_2 = arith.constant 0 : i32
    return %c0_i32, %c0_i32_0, %c0_i32_1 : i32, i32, i32
  }
  func.func @transform_9(%arg0: i32, %arg1: memref<2x2xi32, #tpu.memory_space<smem>>, %arg2: memref<2x8xi32, #tpu.memory_space<smem>>) -> (i32, i32, i32) {
    %c0_i32 = arith.constant 0 : i32
    %c0_i32_0 = arith.constant 0 : i32
    %c0_i32_1 = arith.constant 0 : i32
    %c0_i32_2 = arith.constant 0 : i32
    return %c0_i32, %c0_i32_0, %c0_i32_1 : i32, i32, i32
  }
  func.func @transform_10(%arg0: i32, %arg1: memref<2x2xi32, #tpu.memory_space<smem>>, %arg2: memref<2x8xi32, #tpu.memory_space<smem>>) -> (i32, i32, i32) {
    %c0_i32 = arith.constant 0 : i32
    %c0_i32_0 = arith.constant 0 : i32
    %c0_i32_1 = arith.constant 0 : i32
    %c0_i32_2 = arith.constant 0 : i32
    return %c0_i32, %c0_i32_0, %c0_i32_1 : i32, i32, i32
  }
  func.func @transform_11(%arg0: i32, %arg1: memref<2x2xi32, #tpu.memory_space<smem>>, %arg2: memref<2x8xi32, #tpu.memory_space<smem>>) -> (i32, i32, i32) {
    %c0_i32 = arith.constant 0 : i32
    %c0_i32_0 = arith.constant 0 : i32
    %c0_i32_1 = arith.constant 0 : i32
    %c0_i32_2 = arith.constant 0 : i32
    return %c0_i32, %c0_i32_0, %c0_i32_1 : i32, i32, i32
  }
  func.func @transform_12(%arg0: i32, %arg1: memref<2x2xi32, #tpu.memory_space<smem>>, %arg2: memref<2x8xi32, #tpu.memory_space<smem>>) -> (i32, i32, i32) {
    %c0_i32 = arith.constant 0 : i32
    %c0_i32_0 = arith.constant 0 : i32
    %c0_i32_1 = arith.constant 0 : i32
    %c0_i32_2 = arith.constant 0 : i32
    return %c0_i32, %c0_i32_0, %c0_i32_1 : i32, i32, i32
  }
  func.func @transform_13(%arg0: i32, %arg1: memref<2x2xi32, #tpu.memory_space<smem>>, %arg2: memref<2x8xi32, #tpu.memory_space<smem>>) -> (i32, i32, i32) {
    %c0_i32 = arith.constant 0 : i32
    %c0_i32_0 = arith.constant 0 : i32
    %c0_i32_1 = arith.constant 0 : i32
    %c0_i32_2 = arith.constant 0 : i32
    return %c0_i32, %c0_i32_0, %c0_i32_1 : i32, i32, i32
  }
  func.func @transform_14(%arg0: i32, %arg1: memref<2x2xi32, #tpu.memory_space<smem>>, %arg2: memref<2x8xi32, #tpu.memory_space<smem>>) -> (i32, i32, i32) {
    %c0_i32 = arith.constant 0 : i32
    %c0_i32_0 = arith.constant 0 : i32
    %c0_i32_1 = arith.constant 0 : i32
    %c0_i32_2 = arith.constant 0 : i32
    return %c0_i32, %c0_i32_0, %c0_i32_1 : i32, i32, i32
  }
  func.func @transform_15(%arg0: i32, %arg1: memref<2x2xi32, #tpu.memory_space<smem>>, %arg2: memref<2x8xi32, #tpu.memory_space<smem>>) -> (i32, i32, i32) {
    %c0_i32 = arith.constant 0 : i32
    %c0_i32_0 = arith.constant 0 : i32
    %c0_i32_1 = arith.constant 0 : i32
    %c0_i32_2 = arith.constant 0 : i32
    return %c0_i32, %c0_i32_0, %c0_i32_1 : i32, i32, i32
  }
  func.func @transform_16(%arg0: i32, %arg1: memref<2x2xi32, #tpu.memory_space<smem>>, %arg2: memref<2x8xi32, #tpu.memory_space<smem>>) -> (i32, i32, i32) {
    %c0_i32 = arith.constant 0 : i32
    %c0_i32_0 = arith.constant 0 : i32
    %c0_i32_1 = arith.constant 0 : i32
    %c0_i32_2 = arith.constant 0 : i32
    return %c0_i32, %c0_i32_0, %c0_i32_1 : i32, i32, i32
  }
  func.func @transform_17(%arg0: i32, %arg1: memref<2x2xi32, #tpu.memory_space<smem>>, %arg2: memref<2x8xi32, #tpu.memory_space<smem>>) -> (i32, i32, i32) {
    %c0_i32 = arith.constant 0 : i32
    %c0_i32_0 = arith.constant 0 : i32
    %c0_i32_1 = arith.constant 0 : i32
    %c0_i32_2 = arith.constant 0 : i32
    return %c0_i32, %c0_i32_0, %c0_i32_1 : i32, i32, i32
  }
  func.func @transform_18(%arg0: i32, %arg1: memref<2x2xi32, #tpu.memory_space<smem>>, %arg2: memref<2x8xi32, #tpu.memory_space<smem>>) -> (i32, i32, i32) {
    %c0_i32 = arith.constant 0 : i32
    %c0_i32_0 = arith.constant 0 : i32
    %c0_i32_1 = arith.constant 0 : i32
    %c0_i32_2 = arith.constant 0 : i32
    return %c0_i32, %c0_i32_0, %c0_i32_1 : i32, i32, i32
  }
  func.func @transform_19(%arg0: i32, %arg1: memref<2x2xi32, #tpu.memory_space<smem>>, %arg2: memref<2x8xi32, #tpu.memory_space<smem>>) -> (i32, i32, i32) {
    %c0_i32 = arith.constant 0 : i32
    %c0_i32_0 = arith.constant 0 : i32
    %c0_i32_1 = arith.constant 0 : i32
    %c0_i32_2 = arith.constant 0 : i32
    return %c0_i32, %c0_i32_0, %c0_i32_1 : i32, i32, i32
  }
  func.func @transform_20(%arg0: i32, %arg1: memref<2x2xi32, #tpu.memory_space<smem>>, %arg2: memref<2x8xi32, #tpu.memory_space<smem>>) -> (i32, i32, i32) {
    %c0_i32 = arith.constant 0 : i32
    %c0_i32_0 = arith.constant 0 : i32
    %c0_i32_1 = arith.constant 0 : i32
    %c0_i32_2 = arith.constant 0 : i32
    return %c0_i32, %c0_i32_0, %c0_i32_1 : i32, i32, i32
  }
  func.func @transform_21(%arg0: i32, %arg1: memref<2x2xi32, #tpu.memory_space<smem>>, %arg2: memref<2x8xi32, #tpu.memory_space<smem>>) -> (i32, i32) {
    %c0_i32 = arith.constant 0 : i32
    %c0_i32_0 = arith.constant 0 : i32
    %c0_i32_1 = arith.constant 0 : i32
    return %c0_i32, %c0_i32_0 : i32, i32
  }
  func.func @transform_22(%arg0: i32, %arg1: memref<2x2xi32, #tpu.memory_space<smem>>, %arg2: memref<2x8xi32, #tpu.memory_space<smem>>) -> (i32, i32) {
    %c0_i32 = arith.constant 0 : i32
    %c0_i32_0 = arith.constant 0 : i32
    %c0_i32_1 = arith.constant 0 : i32
    return %c0_i32, %c0_i32_0 : i32, i32
  }
  func.func @transform_23(%arg0: i32, %arg1: memref<2x2xi32, #tpu.memory_space<smem>>, %arg2: memref<2x8xi32, #tpu.memory_space<smem>>) -> (i32, i32) {
    %c0_i32 = arith.constant 0 : i32
    %c0_i32_0 = arith.constant 0 : i32
    %c0_i32_1 = arith.constant 0 : i32
    return %c0_i32, %c0_i32_0 : i32, i32
  }
  func.func @transform_24(%arg0: i32, %arg1: memref<2x2xi32, #tpu.memory_space<smem>>, %arg2: memref<2x8xi32, #tpu.memory_space<smem>>) -> (i32, i32) {
    %c0_i32 = arith.constant 0 : i32
    %c0_i32_0 = arith.constant 0 : i32
    %c0_i32_1 = arith.constant 0 : i32
    return %c0_i32, %c0_i32_0 : i32, i32
  }
  func.func @transform_25(%arg0: i32, %arg1: memref<2x2xi32, #tpu.memory_space<smem>>, %arg2: memref<2x8xi32, #tpu.memory_space<smem>>) -> (i32, i32) {
    %c0_i32 = arith.constant 0 : i32
    %c0_i32_0 = arith.constant 0 : i32
    %c0_i32_1 = arith.constant 0 : i32
    return %c0_i32, %c0_i32_0 : i32, i32
  }
  func.func @transform_26(%arg0: i32, %arg1: memref<2x2xi32, #tpu.memory_space<smem>>, %arg2: memref<2x8xi32, #tpu.memory_space<smem>>) -> (i32, i32) {
    %c0_i32 = arith.constant 0 : i32
    %c0_i32_0 = arith.constant 0 : i32
    %c0_i32_1 = arith.constant 0 : i32
    return %c0_i32, %c0_i32_0 : i32, i32
  }
  func.func @transform_27(%arg0: i32, %arg1: memref<2x2xi32, #tpu.memory_space<smem>>, %arg2: memref<2x8xi32, #tpu.memory_space<smem>>) -> (i32, i32, i32) {
    %c0_i32 = arith.constant 0 : i32
    %c0_i32_0 = arith.constant 0 : i32
    %c0_i32_1 = arith.constant 0 : i32
    %c0_i32_2 = arith.constant 0 : i32
    return %c0_i32, %c0_i32_0, %c0_i32_1 : i32, i32, i32
  }
  func.func @transform_28(%arg0: i32, %arg1: memref<2x2xi32, #tpu.memory_space<smem>>, %arg2: memref<2x8xi32, #tpu.memory_space<smem>>) -> (i32, i32, i32) {
    %c0_i32 = arith.constant 0 : i32
    %c0_i32_0 = arith.constant 0 : i32
    %c0_i32_1 = arith.constant 0 : i32
    %c0_i32_2 = arith.constant 0 : i32
    return %c0_i32, %c0_i32_0, %c0_i32_1 : i32, i32, i32
  }
  func.func @transform_29(%arg0: i32, %arg1: memref<2x2xi32, #tpu.memory_space<smem>>, %arg2: memref<2x8xi32, #tpu.memory_space<smem>>) -> (i32, i32, i32) {
    %c0_i32 = arith.constant 0 : i32
    %c0_i32_0 = arith.constant 0 : i32
    %c0_i32_1 = arith.constant 0 : i32
    %c0_i32_2 = arith.constant 0 : i32
    return %c0_i32, %c0_i32_0, %c0_i32_1 : i32, i32, i32
  }
  func.func @transform_30(%arg0: i32, %arg1: memref<2x2xi32, #tpu.memory_space<smem>>, %arg2: memref<2x8xi32, #tpu.memory_space<smem>>) -> (i32, i32, i32) {
    %c0_i32 = arith.constant 0 : i32
    %c0_i32_0 = arith.constant 0 : i32
    %c0_i32_1 = arith.constant 0 : i32
    %c0_i32_2 = arith.constant 0 : i32
    return %c0_i32, %c0_i32_0, %c0_i32_1 : i32, i32, i32
  }
  func.func @transform_31(%arg0: i32, %arg1: memref<2x2xi32, #tpu.memory_space<smem>>, %arg2: memref<2x8xi32, #tpu.memory_space<smem>>) -> (i32, i32, i32) {
    %c0_i32 = arith.constant 0 : i32
    %c0_i32_0 = arith.constant 0 : i32
    %c0_i32_1 = arith.constant 0 : i32
    %c0_i32_2 = arith.constant 0 : i32
    return %c0_i32, %c0_i32_0, %c0_i32_1 : i32, i32, i32
  }
  func.func @transform_32(%arg0: i32, %arg1: memref<2x2xi32, #tpu.memory_space<smem>>, %arg2: memref<2x8xi32, #tpu.memory_space<smem>>) -> (i32, i32, i32) {
    %c0_i32 = arith.constant 0 : i32
    %c0_i32_0 = arith.constant 0 : i32
    %c0_i32_1 = arith.constant 0 : i32
    %c0_i32_2 = arith.constant 0 : i32
    return %c0_i32, %c0_i32_0, %c0_i32_1 : i32, i32, i32
  }
  func.func @transform_33(%arg0: i32, %arg1: memref<2x2xi32, #tpu.memory_space<smem>>, %arg2: memref<2x8xi32, #tpu.memory_space<smem>>) -> (i32, i32, i32) {
    %c0_i32 = arith.constant 0 : i32
    %c0_i32_0 = arith.constant 0 : i32
    %c0_i32_1 = arith.constant 0 : i32
    %c0_i32_2 = arith.constant 0 : i32
    return %c0_i32, %c0_i32_0, %c0_i32_1 : i32, i32, i32
  }
  func.func @transform_34(%arg0: i32, %arg1: memref<2x2xi32, #tpu.memory_space<smem>>, %arg2: memref<2x8xi32, #tpu.memory_space<smem>>) -> (i32, i32, i32) {
    %c0_i32 = arith.constant 0 : i32
    %c0_i32_0 = arith.constant 0 : i32
    %c0_i32_1 = arith.constant 0 : i32
    %c0_i32_2 = arith.constant 0 : i32
    return %c0_i32, %c0_i32_0, %c0_i32_1 : i32, i32, i32
  }
  func.func @transform_35(%arg0: i32, %arg1: memref<2x2xi32, #tpu.memory_space<smem>>, %arg2: memref<2x8xi32, #tpu.memory_space<smem>>) -> (i32, i32, i32) {
    %c0_i32 = arith.constant 0 : i32
    %c0_i32_0 = arith.constant 0 : i32
    %c0_i32_1 = arith.constant 0 : i32
    %c0_i32_2 = arith.constant 0 : i32
    return %c0_i32, %c0_i32_0, %c0_i32_1 : i32, i32, i32
  }
  func.func @transform_36(%arg0: i32, %arg1: memref<2x2xi32, #tpu.memory_space<smem>>, %arg2: memref<2x8xi32, #tpu.memory_space<smem>>) -> (i32, i32, i32) {
    %c0_i32 = arith.constant 0 : i32
    %c0_i32_0 = arith.constant 0 : i32
    %c0_i32_1 = arith.constant 0 : i32
    %c0_i32_2 = arith.constant 0 : i32
    return %c0_i32, %c0_i32_0, %c0_i32_1 : i32, i32, i32
  }
  func.func @transform_37(%arg0: i32, %arg1: memref<2x2xi32, #tpu.memory_space<smem>>, %arg2: memref<2x8xi32, #tpu.memory_space<smem>>) -> (i32, i32, i32) {
    %c0_i32 = arith.constant 0 : i32
    %c0_i32_0 = arith.constant 0 : i32
    %c0_i32_1 = arith.constant 0 : i32
    %c0_i32_2 = arith.constant 0 : i32
    return %c0_i32, %c0_i32_0, %c0_i32_1 : i32, i32, i32
  }
  func.func @transform_38(%arg0: i32, %arg1: memref<2x2xi32, #tpu.memory_space<smem>>, %arg2: memref<2x8xi32, #tpu.memory_space<smem>>) -> (i32, i32, i32) {
    %c0_i32 = arith.constant 0 : i32
    %c0_i32_0 = arith.constant 0 : i32
    %c0_i32_1 = arith.constant 0 : i32
    %c0_i32_2 = arith.constant 0 : i32
    return %c0_i32, %c0_i32_0, %c0_i32_1 : i32, i32, i32
  }
  func.func @transform_39(%arg0: i32, %arg1: memref<2x2xi32, #tpu.memory_space<smem>>, %arg2: memref<2x8xi32, #tpu.memory_space<smem>>) -> (i32, i32, i32) {
    %c0_i32 = arith.constant 0 : i32
    %c0_i32_0 = arith.constant 0 : i32
    %c0_i32_1 = arith.constant 0 : i32
    %c0_i32_2 = arith.constant 0 : i32
    return %c0_i32, %c0_i32_0, %c0_i32_1 : i32, i32, i32
  }
  func.func @transform_40(%arg0: i32, %arg1: memref<2x2xi32, #tpu.memory_space<smem>>, %arg2: memref<2x8xi32, #tpu.memory_space<smem>>) -> (i32, i32, i32) {
    %c0_i32 = arith.constant 0 : i32
    %c0_i32_0 = arith.constant 0 : i32
    %c0_i32_1 = arith.constant 0 : i32
    %c0_i32_2 = arith.constant 0 : i32
    return %c0_i32, %c0_i32_0, %c0_i32_1 : i32, i32, i32
  }
  func.func @transform_41(%arg0: i32, %arg1: memref<2x2xi32, #tpu.memory_space<smem>>, %arg2: memref<2x8xi32, #tpu.memory_space<smem>>) -> (i32, i32, i32) {
    %c0_i32 = arith.constant 0 : i32
    %c0_i32_0 = arith.constant 0 : i32
    %c0_i32_1 = arith.constant 0 : i32
    %c0_i32_2 = arith.constant 0 : i32
    return %c0_i32, %c0_i32_0, %c0_i32_1 : i32, i32, i32
  }
  func.func @transform_42(%arg0: i32, %arg1: memref<2x2xi32, #tpu.memory_space<smem>>, %arg2: memref<2x8xi32, #tpu.memory_space<smem>>) -> (i32, i32, i32) {
    %c0_i32 = arith.constant 0 : i32
    %c0_i32_0 = arith.constant 0 : i32
    %c0_i32_1 = arith.constant 0 : i32
    %c0_i32_2 = arith.constant 0 : i32
    return %c0_i32, %c0_i32_0, %c0_i32_1 : i32, i32, i32
  }
  func.func @transform_43(%arg0: i32, %arg1: memref<2x2xi32, #tpu.memory_space<smem>>, %arg2: memref<2x8xi32, #tpu.memory_space<smem>>) -> (i32, i32) {
    %c0_i32 = arith.constant 0 : i32
    %c0_i32_0 = arith.constant 0 : i32
    %c0_i32_1 = arith.constant 0 : i32
    return %c0_i32, %c0_i32_0 : i32, i32
  }
  func.func @transform_44(%arg0: i32, %arg1: memref<2x2xi32, #tpu.memory_space<smem>>, %arg2: memref<2x8xi32, #tpu.memory_space<smem>>) -> (i32, i32) {
    %c0_i32 = arith.constant 0 : i32
    %c0_i32_0 = arith.constant 0 : i32
    %c0_i32_1 = arith.constant 0 : i32
    return %c0_i32, %c0_i32_0 : i32, i32
  }
  func.func @transform_45(%arg0: i32, %arg1: memref<2x2xi32, #tpu.memory_space<smem>>, %arg2: memref<2x8xi32, #tpu.memory_space<smem>>) -> (i32, i32) {
    %c0_i32 = arith.constant 0 : i32
    %c0_i32_0 = arith.constant 0 : i32
    %c0_i32_1 = arith.constant 0 : i32
    return %c0_i32, %c0_i32_0 : i32, i32
  }
  func.func @transform_46(%arg0: i32, %arg1: memref<2x2xi32, #tpu.memory_space<smem>>, %arg2: memref<2x8xi32, #tpu.memory_space<smem>>) -> (i32, i32) {
    %c0_i32 = arith.constant 0 : i32
    %c0_i32_0 = arith.constant 0 : i32
    %c0_i32_1 = arith.constant 0 : i32
    return %c0_i32, %c0_i32_0 : i32, i32
  }
  func.func @transform_47(%arg0: i32, %arg1: memref<2x2xi32, #tpu.memory_space<smem>>, %arg2: memref<2x8xi32, #tpu.memory_space<smem>>) -> (i32, i32, i32) {
    %c0_i32 = arith.constant 0 : i32
    %c0_i32_0 = arith.constant 0 : i32
    %c0_i32_1 = arith.constant 0 : i32
    return %arg0, %c0_i32, %c0_i32_0 : i32, i32, i32
  }
  func.func @transform_48(%arg0: i32, %arg1: memref<2x2xi32, #tpu.memory_space<smem>>, %arg2: memref<2x8xi32, #tpu.memory_space<smem>>) -> (i32, i32, i32) {
    %c0_i32 = arith.constant 0 : i32
    %c0_i32_0 = arith.constant 0 : i32
    %c0_i32_1 = arith.constant 0 : i32
    return %arg0, %c0_i32, %c0_i32_0 : i32, i32, i32
  }
}

</mosaic_0001>

<llo_original>
// kernel: forward.1
$region0: #{forward.1}
  #allocation0 [shape = 'u32[]', space=smem, size = 0x4, offset = 0x4, fixed_abs, tag = 'smem constant byte address 0x4 - core index']
  #allocation1 [shape = 'u32[144,128]{1,0:T(1,128)}', space=vmem, size = 0x12000, scoped, tag = 'internal scratch']
  #allocation2 [shape = 'f32[8,32]{1,0:T(8,128)}', space=vmem, size = 0x1000, scoped, tag = 'scratch operand']
  #allocation3 [shape = 'f32[3,32]{1,0:T(4,128)}', space=vmem, size = 0x800, scoped, tag = 'scratch operand']
  #allocation4 [shape = 'f32[3,32]{1,0:T(4,128)}', space=vmem, size = 0x800, scoped, tag = 'scratch operand']
  #allocation5 [shape = 'f32[9,32]{1,0:T(8,128)}', space=vmem, size = 0x2000, scoped, tag = 'scratch operand']
  #allocation6 [shape = 's32[1]{0}', space=sflag, size = 0x4, scoped, tag = 'scoped memory for forward.1']
  #allocation7 [shape = 'u8[1024]{0}', space=smem, size = 0x400, scoped, tag = 'prefetched SMEM operand 0']
  #allocation8 [shape = 'u8[1024]{0}', space=smem, size = 0x400, scoped, tag = 'prefetched SMEM operand 1']
  %s0 = inlined_call_operand.smem [shape: u32[51], index: -1, kind: input, shape index: {}]
  %s1 = sld [smem:[%s0]]
  %s2 = scalar_lea.smem %s0, 1
  %s3 = sld [smem:[%s2]]
  %s4 = scalar_lea.smem %s0, 2
  %s5 = sld [smem:[%s4]]
  %s6 = scalar_lea.smem %s0, 3
  %s7 = sld [smem:[%s6]]
  %s8 = scalar_lea.smem %s0, 4
  %s9 = sld [smem:[%s8]]
  %s10 = scalar_lea.smem %s0, 5
  %s11 = sld [smem:[%s10]]
  %s12 = scalar_lea.smem %s0, 6
  %s13 = sld [smem:[%s12]]
  %s14 = scalar_lea.smem %s0, 7
  %s15 = sld [smem:[%s14]]
  %s16 = scalar_lea.smem %s0, 8
  %s17 = sld [smem:[%s16]]
  %s18 = scalar_lea.smem %s0, 9
  %s19 = sld [smem:[%s18]]
  %s20 = scalar_lea.smem %s0, 10
  %s21 = sld [smem:[%s20]]
  %s22 = scalar_lea.smem %s0, 11
  %s23 = sld [smem:[%s22]]
  %s24 = scalar_lea.smem %s0, 12
  %s25 = sld [smem:[%s24]]
  %s26 = scalar_lea.smem %s0, 13
  %s27 = sld [smem:[%s26]]
  %s28 = scalar_lea.smem %s0, 14
  %s29 = sld [smem:[%s28]]
  %s30 = scalar_lea.smem %s0, 15
  %s31 = sld [smem:[%s30]]
  %s32 = scalar_lea.smem %s0, 16
  %s33 = sld [smem:[%s32]]
  %s34 = scalar_lea.smem %s0, 17
  %s35 = sld [smem:[%s34]]
  %s36 = scalar_lea.smem %s0, 18
  %s37 = sld [smem:[%s36]]
  %s38 = scalar_lea.smem %s0, 19
  %s39 = sld [smem:[%s38]]
  %s40 = scalar_lea.smem %s0, 20
  %s41 = sld [smem:[%s40]]
  %s42 = scalar_lea.smem %s0, 21
  %s43 = sld [smem:[%s42]]
  %s44 = scalar_lea.smem %s0, 22
  %s45 = sld [smem:[%s44]]
  %s46 = scalar_lea.smem %s0, 23
  %s47 = sld [smem:[%s46]]
  %s48 = scalar_lea.smem %s0, 24
  %s49 = sld [smem:[%s48]]
  %s50 = scalar_lea.smem %s0, 25
  %s51 = sld [smem:[%s50]]
  %s52 = scalar_lea.smem %s0, 26
  %s53 = sld [smem:[%s52]]
  %s54 = scalar_lea.smem %s0, 27
  %s55 = sld [smem:[%s54]]
  %s56 = scalar_lea.smem %s0, 28
  %s57 = sld [smem:[%s56]]
  %s58 = scalar_lea.smem %s0, 29
  %s59 = sld [smem:[%s58]]
  %s60 = scalar_lea.smem %s0, 30
  %s61 = sld [smem:[%s60]]
  %s62 = scalar_lea.smem %s0, 31
  %s63 = sld [smem:[%s62]]
  %s64 = scalar_lea.smem %s0, 32
  %s65 = sld [smem:[%s64]]
  %s66 = scalar_lea.smem %s0, 33
  %s67 = sld [smem:[%s66]]
  %s68 = scalar_lea.smem %s0, 34
  %s69 = sld [smem:[%s68]]
  %s70 = scalar_lea.smem %s0, 35
  %s71 = sld [smem:[%s70]]
  %s72 = scalar_lea.smem %s0, 36
  %s73 = sld [smem:[%s72]]
  %s74 = scalar_lea.smem %s0, 37
  %s75 = sld [smem:[%s74]]
  %s76 = scalar_lea.smem %s0, 38
  %s77 = sld [smem:[%s76]]
  %s78 = scalar_lea.smem %s0, 39
  %s79 = sld [smem:[%s78]]
  %s80 = scalar_lea.smem %s0, 40
  %s81 = sld [smem:[%s80]]
  %s82 = scalar_lea.smem %s0, 41
  %s83 = sld [smem:[%s82]]
  %s84 = scalar_lea.smem %s0, 42
  %s85 = sld [smem:[%s84]]
  %s86 = scalar_lea.smem %s0, 43
  %s87 = sld [smem:[%s86]]
  %s88 = scalar_lea.smem %s0, 44
  %s89 = sld [smem:[%s88]]
  %s90 = scalar_lea.smem %s0, 45
  %s91 = sld [smem:[%s90]]
  %s92 = scalar_lea.smem %s0, 46
  %s93 = sld [smem:[%s92]]
  %s94 = scalar_lea.smem %s0, 47
  %s95 = sld [smem:[%s94]]
  %s96 = scalar_lea.smem %s0, 48
  %s97 = sld [smem:[%s96]]
  %s98 = scalar_lea.smem %s0, 49
  %s99 = sld [smem:[%s98]]
  %s100 = scalar_lea.smem %s0, 50
  %s101 = sld [smem:[%s100]]
  %102 = xla_tuple %s99, %s101
  %s103 = sld [smem:[#allocation0]]
  $region245: #{forward.1} parent=0
    _
  %s105 = ssub.s32 1, %s103
  %s106 = scalar_select 0, %s105, %s103
  %s107 = sshll.u32 %s1, 4
  %s108 = int_to_ptr.vmem [resolvable:$true] %s107
  %110 = dma.vmem_to_smem %s108, 32, [#allocation7], [#allocation6]
  %s111 = sshll.u32 %s3, 4
  %s112 = int_to_ptr.vmem [resolvable:$true] %s111
  %114 = dma.vmem_to_smem %s112, 32, [#allocation8], [#allocation6]
  %115 = dma.done [#allocation6], 64
  %116 = sfence
  $region1: #{forward.1} parent=0
    #allocation9 [shape = 'u8[512]{0}', space=vmem, size = 0x400, scoped, tag = 'input window, operand 42, single buffered']
    #allocation10 [shape = 's32[2]{0}', space=sflag, size = 0x8, scoped, tag = 'scoped memory for forward.1']
    #allocation11 [shape = 's32[2]{0}', space=sflag, size = 0x8, scoped, tag = 'scoped memory for forward.1']
    #allocation12 [shape = 'u8[512]{0}', space=vmem, size = 0x400, scoped, tag = 'input window, operand 44, single buffered']
    #allocation13 [shape = 's32[1]{0}', space=sflag, size = 0x4, scoped, tag = 'scoped memory for forward.1']
    #allocation14 [shape = 'u8[512]{0}', space=vmem, size = 0x400, scoped, tag = 'input window, operand 45, single buffered']
    #allocation15 [shape = 'u8[512]{0}', space=vmem, size = 0x400, scoped, tag = 'input window, operand 46, single buffered']
    #allocation16 [shape = 's32[1]{0}', space=sflag, size = 0x4, scoped, tag = 'scoped memory for forward.1']
    #allocation17 [shape = 'u8[16384]{0}', space=vmem, size = 0x4000, scoped, tag = 'output window, operand 0']
    %117 = vsyncpa [#allocation10], 0
    %118 = vsyncpa [#allocation13], 0
    %119 = vsyncpa [#allocation16], 0
    %120 = vsyncpa [#allocation11], 0
    %s121 = scalar_lea.sflag [#allocation11], 1
    %122 = vsyncpa %s121, 0
    loop: start=0, step=1, limit=4
    $region2: #{forward.1} parent=1 // loop_pre_header
      _
    $region3: #{forward.1} parent=1 // loop_header
      %s124 = sphi 0, %s128
      %p125 = scmp.ge.s32.totalorder %s124, 4
      %s134 = sphi 0, %s136
      %s137 = sphi 0, %s134
      %s138 = sphi 0, %s137
      %s154 = sphi 0, %s138
      %s160 = sphi 0, %s162
      %s163 = sphi 0, %s160
      %s164 = sphi 0, %s163
      %s180 = sphi 0, %s164
      %s184 = sphi 0, %s184
      %s186 = sphi 0, %s184
      %s187 = sphi 0, %s186
      %s201 = sphi 0, %s187
      %s205 = sphi 0, %s205
      %s207 = sphi 0, %s205
      %s208 = sphi 0, %s207
      %s222 = sphi 0, %s208
      %s226 = sphi 0, %s226
      %s228 = sphi 0, %s226
      %s229 = sphi 0, %s228
      %s243 = sphi 0, %s229
      %s247 = sphi 0, %s247
      %s249 = sphi 0, %s247
      %s250 = sphi 0, %s249
      %s264 = sphi 0, %s250
      %s268 = sphi 0, %s268
      %s270 = sphi 0, %s268
      %s271 = sphi 0, %s270
      %s285 = sphi 0, %s271
      %s289 = sphi 0, %s289
      %s291 = sphi 0, %s289
      %s292 = sphi 0, %s291
      %s306 = sphi 0, %s292
      %s310 = sphi 0, %s310
      %s312 = sphi 0, %s310
      %s313 = sphi 0, %s312
      %s327 = sphi 0, %s313
      %s331 = sphi 0, %s331
      %s333 = sphi 0, %s331
      %s334 = sphi 0, %s333
      %s348 = sphi 0, %s334
      %s352 = sphi 0, %s352
      %s354 = sphi 0, %s352
      %s355 = sphi 0, %s354
      %s369 = sphi 0, %s355
      %s373 = sphi 0, %s373
      %s375 = sphi 0, %s373
      %s376 = sphi 0, %s375
      %s390 = sphi 0, %s376
      %s394 = sphi 0, %s394
      %s396 = sphi 0, %s394
      %s397 = sphi 0, %s396
      %s411 = sphi 0, %s397
      %s415 = sphi 0, %s415
      %s417 = sphi 0, %s415
      %s418 = sphi 0, %s417
      %s432 = sphi 0, %s418
      %s436 = sphi 0, %s436
      %s438 = sphi 0, %s436
      %s439 = sphi 0, %s438
      %s453 = sphi 0, %s439
      %s457 = sphi 0, %s457
      %s459 = sphi 0, %s457
      %s460 = sphi 0, %s459
      %s474 = sphi 0, %s460
      %s478 = sphi 0, %s478
      %s480 = sphi 0, %s478
      %s481 = sphi 0, %s480
      %s495 = sphi 0, %s481
      %s499 = sphi 0, %s499
      %s501 = sphi 0, %s499
      %s502 = sphi 0, %s501
      %s516 = sphi 0, %s502
      %s520 = sphi 0, %s520
      %s522 = sphi 0, %s520
      %s523 = sphi 0, %s522
      %s537 = sphi 0, %s523
      %s541 = sphi 0, %s541
      %s543 = sphi 0, %s541
      %s544 = sphi 0, %s543
      %s558 = sphi 0, %s544
      %s562 = sphi 0, %s562
      %s564 = sphi 0, %s562
      %s565 = sphi 0, %s564
      %s579 = sphi 0, %s565
      %s583 = sphi 0, %s583
      %s585 = sphi 0, %s583
      %s586 = sphi 0, %s585
      %s600 = sphi 0, %s586
      %s604 = sphi 0, %s604
      %s606 = sphi 0, %s604
      %s607 = sphi 0, %s606
      %s621 = sphi 0, %s607
      %s625 = sphi 0, %s625
      %s627 = sphi 0, %s625
      %s628 = sphi 0, %s627
      %s642 = sphi 0, %s628
      %s646 = sphi 0, %s646
      %s648 = sphi 0, %s646
      %s649 = sphi 0, %s648
      %s663 = sphi 0, %s649
      %s667 = sphi 0, %s667
      %s669 = sphi 0, %s667
      %s670 = sphi 0, %s669
      %s684 = sphi 0, %s670
      %s688 = sphi 0, %s688
      %s690 = sphi 0, %s688
      %s691 = sphi 0, %s690
      %s705 = sphi 0, %s691
      %s709 = sphi 0, %s709
      %s711 = sphi 0, %s709
      %s712 = sphi 0, %s711
      %s726 = sphi 0, %s712
      %s730 = sphi 0, %s730
      %s732 = sphi 0, %s730
      %s733 = sphi 0, %s732
      %s747 = sphi 0, %s733
      %s751 = sphi 0, %s751
      %s753 = sphi 0, %s751
      %s754 = sphi 0, %s753
      %s768 = sphi 0, %s754
      %s772 = sphi 0, %s772
      %s774 = sphi 0, %s772
      %s775 = sphi 0, %s774
      %s789 = sphi 0, %s775
      %s793 = sphi 0, %s793
      %s795 = sphi 0, %s793
      %s796 = sphi 0, %s795
      %s810 = sphi 0, %s796
      %s814 = sphi 0, %s814
      %s816 = sphi 0, %s814
      %s817 = sphi 0, %s816
      %s831 = sphi 0, %s817
      %s835 = sphi 0, %s835
      %s837 = sphi 0, %s835
      %s838 = sphi 0, %s837
      %s852 = sphi 0, %s838
      %s856 = sphi 0, %s856
      %s858 = sphi 0, %s856
      %s859 = sphi 0, %s858
      %s873 = sphi 0, %s859
      %s877 = sphi 0, %s877
      %s879 = sphi 0, %s877
      %s880 = sphi 0, %s879
      %s894 = sphi 0, %s880
      %s898 = sphi 0, %s898
      %s900 = sphi 0, %s898
      %s901 = sphi 0, %s900
      %s915 = sphi 0, %s901
      %s919 = sphi 0, %s919
      %s921 = sphi 0, %s919
      %s922 = sphi 0, %s921
      %s936 = sphi 0, %s922
      %s940 = sphi 0, %s940
      %s942 = sphi 0, %s940
      %s943 = sphi 0, %s942
      %s957 = sphi 0, %s943
      %s961 = sphi 0, %s961
      %s963 = sphi 0, %s961
      %s964 = sphi 0, %s963
      %s978 = sphi 0, %s964
      %s982 = sphi 0, %s982
      %s984 = sphi 0, %s982
      %s985 = sphi 0, %s984
      %s999 = sphi 0, %s985
      %s1003 = sphi 0, %s1003
      %s1005 = sphi 0, %s1003
      %s1006 = sphi 0, %s1005
      %s1020 = sphi 0, %s1006
      %s1024 = sphi 0, %s1024
      %s1026 = sphi 0, %s1024
      %s1027 = sphi 0, %s1026
      %s1041 = sphi 0, %s1027
      %s1045 = sphi 0, %s1045
      %s1047 = sphi 0, %s1045
      %s1048 = sphi 0, %s1047
      %s1062 = sphi 0, %s1048
      %s1066 = sphi 0, %s1066
      %s1068 = sphi 0, %s1066
      %s1069 = sphi 0, %s1068
      %s1083 = sphi 0, %s1069
      %s1087 = sphi 0, %s1087
      %s1089 = sphi 0, %s1087
      %s1090 = sphi 0, %s1089
      %s1104 = sphi 0, %s1090
      %s1108 = sphi 0, %s1108
      %s1110 = sphi 0, %s1108
      %s1111 = sphi 0, %s1110
      %s1125 = sphi 0, %s1111
      %s1131 = sphi 0, %s1133
      %s1134 = sphi 0, %s1131
      %s1135 = sphi 0, %s1134
      %s1151 = sphi 0, %s1135
      %s1157 = sphi 0, %s1159
      %s1160 = sphi 0, %s1157
      %s1161 = sphi 0, %s1160
      %s1177 = sphi 0, %s1161
    $region4: #{forward.1} parent=1 // loop_header_branch
      %127 = sbr.rel (%p125) target = $region8
    $region5: #{forward.1} parent=1 // loop_body
      %s129 = ssub.s32 %s124, 1
      %s130 = ssub.s32 %s124, 2
      %s131 = sadd.s32 %s124, 1
      %s132 = ssub.s32 %s124, %s131
      %p133 = scmp.eq.s32.totalorder %s132, 0
      %s135 = sadd.s32 %s134, 1
      %s136 = scalar_select %p133, %s134, %s135
      %p139 = pneg %p133
      %p140 = scmp.eq.s32.totalorder %s124, 1
      %p141 = por %p139, %p140
      %p142 = scmp.ne.s32.totalorder %s134, %s137
      %p143 = scmp.eq.s32.totalorder %s124, 0
      %p144 = por %p142, %p143
      %p145 = scmp.ne.s32.totalorder %s134, %s137
      %p146 = scmp.eq.s32.totalorder %s129, 1
      %p147 = por %p145, %p146
      %p148 = scmp.ne.s32.totalorder %s137, %s138
      %p149 = scmp.eq.s32.totalorder %s129, 0
      %p150 = por %p148, %p149
      %p151 = scmp.ne.s32.totalorder %s137, %s138
      %p152 = scmp.eq.s32.totalorder %s130, 1
      %p153 = por %p151, %p152
      %p155 = scmp.ne.s32.totalorder %s138, %s154
      %p156 = scmp.eq.s32.totalorder %s130, 0
      %p157 = por %p155, %p156
      %s158 = ssub.s32 %s124, %s131
      %p159 = scmp.eq.s32.totalorder %s158, 0
      %s161 = sadd.s32 %s160, 1
      %s162 = scalar_select %p159, %s160, %s161
      %p165 = pneg %p159
      %p166 = scmp.eq.s32.totalorder %s124, 1
      %p167 = por %p165, %p166
      %p168 = scmp.ne.s32.totalorder %s160, %s163
      %p169 = scmp.eq.s32.totalorder %s124, 0
      %p170 = por %p168, %p169
      %p171 = scmp.ne.s32.totalorder %s160, %s163
      %p172 = scmp.eq.s32.totalorder %s129, 1
      %p173 = por %p171, %p172
      %p174 = scmp.ne.s32.totalorder %s163, %s164
      %p175 = scmp.eq.s32.totalorder %s129, 0
      %p176 = por %p174, %p175
      %p177 = scmp.ne.s32.totalorder %s163, %s164
      %p178 = scmp.eq.s32.totalorder %s130, 1
      %p179 = por %p177, %p178
      %p181 = scmp.ne.s32.totalorder %s164, %s180
      %p182 = scmp.eq.s32.totalorder %s130, 0
      %p183 = por %p181, %p182
      %s185 = sadd.s32 %s184, 1
      %p188 = scmp.eq.s32.totalorder %s124, 1
      %p189 = scmp.ne.s32.totalorder %s184, %s186
      %p190 = scmp.eq.s32.totalorder %s124, 0
      %p191 = por %p189, %p190
      %p192 = scmp.ne.s32.totalorder %s184, %s186
      %p193 = scmp.eq.s32.totalorder %s129, 1
      %p194 = por %p192, %p193
      %p195 = scmp.ne.s32.totalorder %s186, %s187
      %p196 = scmp.eq.s32.totalorder %s129, 0
      %p197 = por %p195, %p196
      %p198 = scmp.ne.s32.totalorder %s186, %s187
      %p199 = scmp.eq.s32.totalorder %s130, 1
      %p200 = por %p198, %p199
      %p202 = scmp.ne.s32.totalorder %s187, %s201
      %p203 = scmp.eq.s32.totalorder %s130, 0
      %p204 = por %p202, %p203
      %s206 = sadd.s32 %s205, 1
      %p209 = scmp.eq.s32.totalorder %s124, 1
      %p210 = scmp.ne.s32.totalorder %s205, %s207
      %p211 = scmp.eq.s32.totalorder %s124, 0
      %p212 = por %p210, %p211
      %p213 = scmp.ne.s32.totalorder %s205, %s207
      %p214 = scmp.eq.s32.totalorder %s129, 1
      %p215 = por %p213, %p214
      %p216 = scmp.ne.s32.totalorder %s207, %s208
      %p217 = scmp.eq.s32.totalorder %s129, 0
      %p218 = por %p216, %p217
      %p219 = scmp.ne.s32.totalorder %s207, %s208
      %p220 = scmp.eq.s32.totalorder %s130, 1
      %p221 = por %p219, %p220
      %p223 = scmp.ne.s32.totalorder %s208, %s222
      %p224 = scmp.eq.s32.totalorder %s130, 0
      %p225 = por %p223, %p224
      %s227 = sadd.s32 %s226, 1
      %p230 = scmp.eq.s32.totalorder %s124, 1
      %p231 = scmp.ne.s32.totalorder %s226, %s228
      %p232 = scmp.eq.s32.totalorder %s124, 0
      %p233 = por %p231, %p232
      %p234 = scmp.ne.s32.totalorder %s226, %s228
      %p235 = scmp.eq.s32.totalorder %s129, 1
      %p236 = por %p234, %p235
      %p237 = scmp.ne.s32.totalorder %s228, %s229
      %p238 = scmp.eq.s32.totalorder %s129, 0
      %p239 = por %p237, %p238
      %p240 = scmp.ne.s32.totalorder %s228, %s229
      %p241 = scmp.eq.s32.totalorder %s130, 1
      %p242 = por %p240, %p241
      %p244 = scmp.ne.s32.totalorder %s229, %s243
      %p245 = scmp.eq.s32.totalorder %s130, 0
      %p246 = por %p244, %p245
      %s248 = sadd.s32 %s247, 1
      %p251 = scmp.eq.s32.totalorder %s124, 1
      %p252 = scmp.ne.s32.totalorder %s247, %s249
      %p253 = scmp.eq.s32.totalorder %s124, 0
      %p254 = por %p252, %p253
      %p255 = scmp.ne.s32.totalorder %s247, %s249
      %p256 = scmp.eq.s32.totalorder %s129, 1
      %p257 = por %p255, %p256
      %p258 = scmp.ne.s32.totalorder %s249, %s250
      %p259 = scmp.eq.s32.totalorder %s129, 0
      %p260 = por %p258, %p259
      %p261 = scmp.ne.s32.totalorder %s249, %s250
      %p262 = scmp.eq.s32.totalorder %s130, 1
      %p263 = por %p261, %p262
      %p265 = scmp.ne.s32.totalorder %s250, %s264
      %p266 = scmp.eq.s32.totalorder %s130, 0
      %p267 = por %p265, %p266
      %s269 = sadd.s32 %s268, 1
      %p272 = scmp.eq.s32.totalorder %s124, 1
      %p273 = scmp.ne.s32.totalorder %s268, %s270
      %p274 = scmp.eq.s32.totalorder %s124, 0
      %p275 = por %p273, %p274
      %p276 = scmp.ne.s32.totalorder %s268, %s270
      %p277 = scmp.eq.s32.totalorder %s129, 1
      %p278 = por %p276, %p277
      %p279 = scmp.ne.s32.totalorder %s270, %s271
      %p280 = scmp.eq.s32.totalorder %s129, 0
      %p281 = por %p279, %p280
      %p282 = scmp.ne.s32.totalorder %s270, %s271
      %p283 = scmp.eq.s32.totalorder %s130, 1
      %p284 = por %p282, %p283
      %p286 = scmp.ne.s32.totalorder %s271, %s285
      %p287 = scmp.eq.s32.totalorder %s130, 0
      %p288 = por %p286, %p287
      %s290 = sadd.s32 %s289, 1
      %p293 = scmp.eq.s32.totalorder %s124, 1
      %p294 = scmp.ne.s32.totalorder %s289, %s291
      %p295 = scmp.eq.s32.totalorder %s124, 0
      %p296 = por %p294, %p295
      %p297 = scmp.ne.s32.totalorder %s289, %s291
      %p298 = scmp.eq.s32.totalorder %s129, 1
      %p299 = por %p297, %p298
      %p300 = scmp.ne.s32.totalorder %s291, %s292
      %p301 = scmp.eq.s32.totalorder %s129, 0
      %p302 = por %p300, %p301
      %p303 = scmp.ne.s32.totalorder %s291, %s292
      %p304 = scmp.eq.s32.totalorder %s130, 1
      %p305 = por %p303, %p304
      %p307 = scmp.ne.s32.totalorder %s292, %s306
      %p308 = scmp.eq.s32.totalorder %s130, 0
      %p309 = por %p307, %p308
      %s311 = sadd.s32 %s310, 1
      %p314 = scmp.eq.s32.totalorder %s124, 1
      %p315 = scmp.ne.s32.totalorder %s310, %s312
      %p316 = scmp.eq.s32.totalorder %s124, 0
      %p317 = por %p315, %p316
      %p318 = scmp.ne.s32.totalorder %s310, %s312
      %p319 = scmp.eq.s32.totalorder %s129, 1
      %p320 = por %p318, %p319
      %p321 = scmp.ne.s32.totalorder %s312, %s313
      %p322 = scmp.eq.s32.totalorder %s129, 0
      %p323 = por %p321, %p322
      %p324 = scmp.ne.s32.totalorder %s312, %s313
      %p325 = scmp.eq.s32.totalorder %s130, 1
      %p326 = por %p324, %p325
      %p328 = scmp.ne.s32.totalorder %s313, %s327
      %p329 = scmp.eq.s32.totalorder %s130, 0
      %p330 = por %p328, %p329
      %s332 = sadd.s32 %s331, 1
      %p335 = scmp.eq.s32.totalorder %s124, 1
      %p336 = scmp.ne.s32.totalorder %s331, %s333
      %p337 = scmp.eq.s32.totalorder %s124, 0
      %p338 = por %p336, %p337
      %p339 = scmp.ne.s32.totalorder %s331, %s333
      %p340 = scmp.eq.s32.totalorder %s129, 1
      %p341 = por %p339, %p340
      %p342 = scmp.ne.s32.totalorder %s333, %s334
      %p343 = scmp.eq.s32.totalorder %s129, 0
      %p344 = por %p342, %p343
      %p345 = scmp.ne.s32.totalorder %s333, %s334
      %p346 = scmp.eq.s32.totalorder %s130, 1
      %p347 = por %p345, %p346
      %p349 = scmp.ne.s32.totalorder %s334, %s348
      %p350 = scmp.eq.s32.totalorder %s130, 0
      %p351 = por %p349, %p350
      %s353 = sadd.s32 %s352, 1
      %p356 = scmp.eq.s32.totalorder %s124, 1
      %p357 = scmp.ne.s32.totalorder %s352, %s354
      %p358 = scmp.eq.s32.totalorder %s124, 0
      %p359 = por %p357, %p358
      %p360 = scmp.ne.s32.totalorder %s352, %s354
      %p361 = scmp.eq.s32.totalorder %s129, 1
      %p362 = por %p360, %p361
      %p363 = scmp.ne.s32.totalorder %s354, %s355
      %p364 = scmp.eq.s32.totalorder %s129, 0
      %p365 = por %p363, %p364
      %p366 = scmp.ne.s32.totalorder %s354, %s355
      %p367 = scmp.eq.s32.totalorder %s130, 1
      %p368 = por %p366, %p367
      %p370 = scmp.ne.s32.totalorder %s355, %s369
      %p371 = scmp.eq.s32.totalorder %s130, 0
      %p372 = por %p370, %p371
      %s374 = sadd.s32 %s373, 1
      %p377 = scmp.eq.s32.totalorder %s124, 1
      %p378 = scmp.ne.s32.totalorder %s373, %s375
      %p379 = scmp.eq.s32.totalorder %s124, 0
      %p380 = por %p378, %p379
      %p381 = scmp.ne.s32.totalorder %s373, %s375
      %p382 = scmp.eq.s32.totalorder %s129, 1
      %p383 = por %p381, %p382
      %p384 = scmp.ne.s32.totalorder %s375, %s376
      %p385 = scmp.eq.s32.totalorder %s129, 0
      %p386 = por %p384, %p385
      %p387 = scmp.ne.s32.totalorder %s375, %s376
      %p388 = scmp.eq.s32.totalorder %s130, 1
      %p389 = por %p387, %p388
      %p391 = scmp.ne.s32.totalorder %s376, %s390
      %p392 = scmp.eq.s32.totalorder %s130, 0
      %p393 = por %p391, %p392
      %s395 = sadd.s32 %s394, 1
      %p398 = scmp.eq.s32.totalorder %s124, 1
      %p399 = scmp.ne.s32.totalorder %s394, %s396
      %p400 = scmp.eq.s32.totalorder %s124, 0
      %p401 = por %p399, %p400
      %p402 = scmp.ne.s32.totalorder %s394, %s396
      %p403 = scmp.eq.s32.totalorder %s129, 1
      %p404 = por %p402, %p403
      %p405 = scmp.ne.s32.totalorder %s396, %s397
      %p406 = scmp.eq.s32.totalorder %s129, 0
      %p407 = por %p405, %p406
      %p408 = scmp.ne.s32.totalorder %s396, %s397
      %p409 = scmp.eq.s32.totalorder %s130, 1
      %p410 = por %p408, %p409
      %p412 = scmp.ne.s32.totalorder %s397, %s411
      %p413 = scmp.eq.s32.totalorder %s130, 0
      %p414 = por %p412, %p413
      %s416 = sadd.s32 %s415, 1
      %p419 = scmp.eq.s32.totalorder %s124, 1
      %p420 = scmp.ne.s32.totalorder %s415, %s417
      %p421 = scmp.eq.s32.totalorder %s124, 0
      %p422 = por %p420, %p421
      %p423 = scmp.ne.s32.totalorder %s415, %s417
      %p424 = scmp.eq.s32.totalorder %s129, 1
      %p425 = por %p423, %p424
      %p426 = scmp.ne.s32.totalorder %s417, %s418
      %p427 = scmp.eq.s32.totalorder %s129, 0
      %p428 = por %p426, %p427
      %p429 = scmp.ne.s32.totalorder %s417, %s418
      %p430 = scmp.eq.s32.totalorder %s130, 1
      %p431 = por %p429, %p430
      %p433 = scmp.ne.s32.totalorder %s418, %s432
      %p434 = scmp.eq.s32.totalorder %s130, 0
      %p435 = por %p433, %p434
      %s437 = sadd.s32 %s436, 1
      %p440 = scmp.eq.s32.totalorder %s124, 1
      %p441 = scmp.ne.s32.totalorder %s436, %s438
      %p442 = scmp.eq.s32.totalorder %s124, 0
      %p443 = por %p441, %p442
      %p444 = scmp.ne.s32.totalorder %s436, %s438
      %p445 = scmp.eq.s32.totalorder %s129, 1
      %p446 = por %p444, %p445
      %p447 = scmp.ne.s32.totalorder %s438, %s439
      %p448 = scmp.eq.s32.totalorder %s129, 0
      %p449 = por %p447, %p448
      %p450 = scmp.ne.s32.totalorder %s438, %s439
      %p451 = scmp.eq.s32.totalorder %s130, 1
      %p452 = por %p450, %p451
      %p454 = scmp.ne.s32.totalorder %s439, %s453
      %p455 = scmp.eq.s32.totalorder %s130, 0
      %p456 = por %p454, %p455
      %s458 = sadd.s32 %s457, 1
      %p461 = scmp.eq.s32.totalorder %s124, 1
      %p462 = scmp.ne.s32.totalorder %s457, %s459
      %p463 = scmp.eq.s32.totalorder %s124, 0
      %p464 = por %p462, %p463
      %p465 = scmp.ne.s32.totalorder %s457, %s459
      %p466 = scmp.eq.s32.totalorder %s129, 1
      %p467 = por %p465, %p466
      %p468 = scmp.ne.s32.totalorder %s459, %s460
      %p469 = scmp.eq.s32.totalorder %s129, 0
      %p470 = por %p468, %p469
      %p471 = scmp.ne.s32.totalorder %s459, %s460
      %p472 = scmp.eq.s32.totalorder %s130, 1
      %p473 = por %p471, %p472
      %p475 = scmp.ne.s32.totalorder %s460, %s474
      %p476 = scmp.eq.s32.totalorder %s130, 0
      %p477 = por %p475, %p476
      %s479 = sadd.s32 %s478, 1
      %p482 = scmp.eq.s32.totalorder %s124, 1
      %p483 = scmp.ne.s32.totalorder %s478, %s480
      %p484 = scmp.eq.s32.totalorder %s124, 0
      %p485 = por %p483, %p484
      %p486 = scmp.ne.s32.totalorder %s478, %s480
      %p487 = scmp.eq.s32.totalorder %s129, 1
      %p488 = por %p486, %p487
      %p489 = scmp.ne.s32.totalorder %s480, %s481
      %p490 = scmp.eq.s32.totalorder %s129, 0
      %p491 = por %p489, %p490
      %p492 = scmp.ne.s32.totalorder %s480, %s481
      %p493 = scmp.eq.s32.totalorder %s130, 1
      %p494 = por %p492, %p493
      %p496 = scmp.ne.s32.totalorder %s481, %s495
      %p497 = scmp.eq.s32.totalorder %s130, 0
      %p498 = por %p496, %p497
      %s500 = sadd.s32 %s499, 1
      %p503 = scmp.eq.s32.totalorder %s124, 1
      %p504 = scmp.ne.s32.totalorder %s499, %s501
      %p505 = scmp.eq.s32.totalorder %s124, 0
      %p506 = por %p504, %p505
      %p507 = scmp.ne.s32.totalorder %s499, %s501
      %p508 = scmp.eq.s32.totalorder %s129, 1
      %p509 = por %p507, %p508
      %p510 = scmp.ne.s32.totalorder %s501, %s502
      %p511 = scmp.eq.s32.totalorder %s129, 0
      %p512 = por %p510, %p511
      %p513 = scmp.ne.s32.totalorder %s501, %s502
      %p514 = scmp.eq.s32.totalorder %s130, 1
      %p515 = por %p513, %p514
      %p517 = scmp.ne.s32.totalorder %s502, %s516
      %p518 = scmp.eq.s32.totalorder %s130, 0
      %p519 = por %p517, %p518
      %s521 = sadd.s32 %s520, 1
      %p524 = scmp.eq.s32.totalorder %s124, 1
      %p525 = scmp.ne.s32.totalorder %s520, %s522
      %p526 = scmp.eq.s32.totalorder %s124, 0
      %p527 = por %p525, %p526
      %p528 = scmp.ne.s32.totalorder %s520, %s522
      %p529 = scmp.eq.s32.totalorder %s129, 1
      %p530 = por %p528, %p529
      %p531 = scmp.ne.s32.totalorder %s522, %s523
      %p532 = scmp.eq.s32.totalorder %s129, 0
      %p533 = por %p531, %p532
      %p534 = scmp.ne.s32.totalorder %s522, %s523
      %p535 = scmp.eq.s32.totalorder %s130, 1
      %p536 = por %p534, %p535
      %p538 = scmp.ne.s32.totalorder %s523, %s537
      %p539 = scmp.eq.s32.totalorder %s130, 0
      %p540 = por %p538, %p539
      %s542 = sadd.s32 %s541, 1
      %p545 = scmp.eq.s32.totalorder %s124, 1
      %p546 = scmp.ne.s32.totalorder %s541, %s543
      %p547 = scmp.eq.s32.totalorder %s124, 0
      %p548 = por %p546, %p547
      %p549 = scmp.ne.s32.totalorder %s541, %s543
      %p550 = scmp.eq.s32.totalorder %s129, 1
      %p551 = por %p549, %p550
      %p552 = scmp.ne.s32.totalorder %s543, %s544
      %p553 = scmp.eq.s32.totalorder %s129, 0
      %p554 = por %p552, %p553
      %p555 = scmp.ne.s32.totalorder %s543, %s544
      %p556 = scmp.eq.s32.totalorder %s130, 1
      %p557 = por %p555, %p556
      %p559 = scmp.ne.s32.totalorder %s544, %s558
      %p560 = scmp.eq.s32.totalorder %s130, 0
      %p561 = por %p559, %p560
      %s563 = sadd.s32 %s562, 1
      %p566 = scmp.eq.s32.totalorder %s124, 1
      %p567 = scmp.ne.s32.totalorder %s562, %s564
      %p568 = scmp.eq.s32.totalorder %s124, 0
      %p569 = por %p567, %p568
      %p570 = scmp.ne.s32.totalorder %s562, %s564
      %p571 = scmp.eq.s32.totalorder %s129, 1
      %p572 = por %p570, %p571
      %p573 = scmp.ne.s32.totalorder %s564, %s565
      %p574 = scmp.eq.s32.totalorder %s129, 0
      %p575 = por %p573, %p574
      %p576 = scmp.ne.s32.totalorder %s564, %s565
      %p577 = scmp.eq.s32.totalorder %s130, 1
      %p578 = por %p576, %p577
      %p580 = scmp.ne.s32.totalorder %s565, %s579
      %p581 = scmp.eq.s32.totalorder %s130, 0
      %p582 = por %p580, %p581
      %s584 = sadd.s32 %s583, 1
      %p587 = scmp.eq.s32.totalorder %s124, 1
      %p588 = scmp.ne.s32.totalorder %s583, %s585
      %p589 = scmp.eq.s32.totalorder %s124, 0
      %p590 = por %p588, %p589
      %p591 = scmp.ne.s32.totalorder %s583, %s585
      %p592 = scmp.eq.s32.totalorder %s129, 1
      %p593 = por %p591, %p592
      %p594 = scmp.ne.s32.totalorder %s585, %s586
      %p595 = scmp.eq.s32.totalorder %s129, 0
      %p596 = por %p594, %p595
      %p597 = scmp.ne.s32.totalorder %s585, %s586
      %p598 = scmp.eq.s32.totalorder %s130, 1
      %p599 = por %p597, %p598
      %p601 = scmp.ne.s32.totalorder %s586, %s600
      %p602 = scmp.eq.s32.totalorder %s130, 0
      %p603 = por %p601, %p602
      %s605 = sadd.s32 %s604, 1
      %p608 = scmp.eq.s32.totalorder %s124, 1
      %p609 = scmp.ne.s32.totalorder %s604, %s606
      %p610 = scmp.eq.s32.totalorder %s124, 0
      %p611 = por %p609, %p610
      %p612 = scmp.ne.s32.totalorder %s604, %s606
      %p613 = scmp.eq.s32.totalorder %s129, 1
      %p614 = por %p612, %p613
      %p615 = scmp.ne.s32.totalorder %s606, %s607
      %p616 = scmp.eq.s32.totalorder %s129, 0
      %p617 = por %p615, %p616
      %p618 = scmp.ne.s32.totalorder %s606, %s607
      %p619 = scmp.eq.s32.totalorder %s130, 1
      %p620 = por %p618, %p619
      %p622 = scmp.ne.s32.totalorder %s607, %s621
      %p623 = scmp.eq.s32.totalorder %s130, 0
      %p624 = por %p622, %p623
      %s626 = sadd.s32 %s625, 1
      %p629 = scmp.eq.s32.totalorder %s124, 1
      %p630 = scmp.ne.s32.totalorder %s625, %s627
      %p631 = scmp.eq.s32.totalorder %s124, 0
      %p632 = por %p630, %p631
      %p633 = scmp.ne.s32.totalorder %s625, %s627
      %p634 = scmp.eq.s32.totalorder %s129, 1
      %p635 = por %p633, %p634
      %p636 = scmp.ne.s32.totalorder %s627, %s628
      %p637 = scmp.eq.s32.totalorder %s129, 0
      %p638 = por %p636, %p637
      %p639 = scmp.ne.s32.totalorder %s627, %s628
      %p640 = scmp.eq.s32.totalorder %s130, 1
      %p641 = por %p639, %p640
      %p643 = scmp.ne.s32.totalorder %s628, %s642
      %p644 = scmp.eq.s32.totalorder %s130, 0
      %p645 = por %p643, %p644
      %s647 = sadd.s32 %s646, 1
      %p650 = scmp.eq.s32.totalorder %s124, 1
      %p651 = scmp.ne.s32.totalorder %s646, %s648
      %p652 = scmp.eq.s32.totalorder %s124, 0
      %p653 = por %p651, %p652
      %p654 = scmp.ne.s32.totalorder %s646, %s648
      %p655 = scmp.eq.s32.totalorder %s129, 1
      %p656 = por %p654, %p655
      %p657 = scmp.ne.s32.totalorder %s648, %s649
      %p658 = scmp.eq.s32.totalorder %s129, 0
      %p659 = por %p657, %p658
      %p660 = scmp.ne.s32.totalorder %s648, %s649
      %p661 = scmp.eq.s32.totalorder %s130, 1
      %p662 = por %p660, %p661
      %p664 = scmp.ne.s32.totalorder %s649, %s663
      %p665 = scmp.eq.s32.totalorder %s130, 0
      %p666 = por %p664, %p665
      %s668 = sadd.s32 %s667, 1
      %p671 = scmp.eq.s32.totalorder %s124, 1
      %p672 = scmp.ne.s32.totalorder %s667, %s669
      %p673 = scmp.eq.s32.totalorder %s124, 0
      %p674 = por %p672, %p673
      %p675 = scmp.ne.s32.totalorder %s667, %s669
      %p676 = scmp.eq.s32.totalorder %s129, 1
      %p677 = por %p675, %p676
      %p678 = scmp.ne.s32.totalorder %s669, %s670
      %p679 = scmp.eq.s32.totalorder %s129, 0
      %p680 = por %p678, %p679
      %p681 = scmp.ne.s32.totalorder %s669, %s670
      %p682 = scmp.eq.s32.totalorder %s130, 1
      %p683 = por %p681, %p682
      %p685 = scmp.ne.s32.totalorder %s670, %s684
      %p686 = scmp.eq.s32.totalorder %s130, 0
      %p687 = por %p685, %p686
      %s689 = sadd.s32 %s688, 1
      %p692 = scmp.eq.s32.totalorder %s124, 1
      %p693 = scmp.ne.s32.totalorder %s688, %s690
      %p694 = scmp.eq.s32.totalorder %s124, 0
      %p695 = por %p693, %p694
      %p696 = scmp.ne.s32.totalorder %s688, %s690
      %p697 = scmp.eq.s32.totalorder %s129, 1
      %p698 = por %p696, %p697
      %p699 = scmp.ne.s32.totalorder %s690, %s691
      %p700 = scmp.eq.s32.totalorder %s129, 0
      %p701 = por %p699, %p700
      %p702 = scmp.ne.s32.totalorder %s690, %s691
      %p703 = scmp.eq.s32.totalorder %s130, 1
      %p704 = por %p702, %p703
      %p706 = scmp.ne.s32.totalorder %s691, %s705
      %p707 = scmp.eq.s32.totalorder %s130, 0
      %p708 = por %p706, %p707
      %s710 = sadd.s32 %s709, 1
      %p713 = scmp.eq.s32.totalorder %s124, 1
      %p714 = scmp.ne.s32.totalorder %s709, %s711
      %p715 = scmp.eq.s32.totalorder %s124, 0
      %p716 = por %p714, %p715
      %p717 = scmp.ne.s32.totalorder %s709, %s711
      %p718 = scmp.eq.s32.totalorder %s129, 1
      %p719 = por %p717, %p718
      %p720 = scmp.ne.s32.totalorder %s711, %s712
      %p721 = scmp.eq.s32.totalorder %s129, 0
      %p722 = por %p720, %p721
      %p723 = scmp.ne.s32.totalorder %s711, %s712
      %p724 = scmp.eq.s32.totalorder %s130, 1
      %p725 = por %p723, %p724
      %p727 = scmp.ne.s32.totalorder %s712, %s726
      %p728 = scmp.eq.s32.totalorder %s130, 0
      %p729 = por %p727, %p728
      %s731 = sadd.s32 %s730, 1
      %p734 = scmp.eq.s32.totalorder %s124, 1
      %p735 = scmp.ne.s32.totalorder %s730, %s732
      %p736 = scmp.eq.s32.totalorder %s124, 0
      %p737 = por %p735, %p736
      %p738 = scmp.ne.s32.totalorder %s730, %s732
      %p739 = scmp.eq.s32.totalorder %s129, 1
      %p740 = por %p738, %p739
      %p741 = scmp.ne.s32.totalorder %s732, %s733
      %p742 = scmp.eq.s32.totalorder %s129, 0
      %p743 = por %p741, %p742
      %p744 = scmp.ne.s32.totalorder %s732, %s733
      %p745 = scmp.eq.s32.totalorder %s130, 1
      %p746 = por %p744, %p745
      %p748 = scmp.ne.s32.totalorder %s733, %s747
      %p749 = scmp.eq.s32.totalorder %s130, 0
      %p750 = por %p748, %p749
      %s752 = sadd.s32 %s751, 1
      %p755 = scmp.eq.s32.totalorder %s124, 1
      %p756 = scmp.ne.s32.totalorder %s751, %s753
      %p757 = scmp.eq.s32.totalorder %s124, 0
      %p758 = por %p756, %p757
      %p759 = scmp.ne.s32.totalorder %s751, %s753
      %p760 = scmp.eq.s32.totalorder %s129, 1
      %p761 = por %p759, %p760
      %p762 = scmp.ne.s32.totalorder %s753, %s754
      %p763 = scmp.eq.s32.totalorder %s129, 0
      %p764 = por %p762, %p763
      %p765 = scmp.ne.s32.totalorder %s753, %s754
      %p766 = scmp.eq.s32.totalorder %s130, 1
      %p767 = por %p765, %p766
      %p769 = scmp.ne.s32.totalorder %s754, %s768
      %p770 = scmp.eq.s32.totalorder %s130, 0
      %p771 = por %p769, %p770
      %s773 = sadd.s32 %s772, 1
      %p776 = scmp.eq.s32.totalorder %s124, 1
      %p777 = scmp.ne.s32.totalorder %s772, %s774
      %p778 = scmp.eq.s32.totalorder %s124, 0
      %p779 = por %p777, %p778
      %p780 = scmp.ne.s32.totalorder %s772, %s774
      %p781 = scmp.eq.s32.totalorder %s129, 1
      %p782 = por %p780, %p781
      %p783 = scmp.ne.s32.totalorder %s774, %s775
      %p784 = scmp.eq.s32.totalorder %s129, 0
      %p785 = por %p783, %p784
      %p786 = scmp.ne.s32.totalorder %s774, %s775
      %p787 = scmp.eq.s32.totalorder %s130, 1
      %p788 = por %p786, %p787
      %p790 = scmp.ne.s32.totalorder %s775, %s789
      %p791 = scmp.eq.s32.totalorder %s130, 0
      %p792 = por %p790, %p791
      %s794 = sadd.s32 %s793, 1
      %p797 = scmp.eq.s32.totalorder %s124, 1
      %p798 = scmp.ne.s32.totalorder %s793, %s795
      %p799 = scmp.eq.s32.totalorder %s124, 0
      %p800 = por %p798, %p799
      %p801 = scmp.ne.s32.totalorder %s793, %s795
      %p802 = scmp.eq.s32.totalorder %s129, 1
      %p803 = por %p801, %p802
      %p804 = scmp.ne.s32.totalorder %s795, %s796
      %p805 = scmp.eq.s32.totalorder %s129, 0
      %p806 = por %p804, %p805
      %p807 = scmp.ne.s32.totalorder %s795, %s796
      %p808 = scmp.eq.s32.totalorder %s130, 1
      %p809 = por %p807, %p808
      %p811 = scmp.ne.s32.totalorder %s796, %s810
      %p812 = scmp.eq.s32.totalorder %s130, 0
      %p813 = por %p811, %p812
      %s815 = sadd.s32 %s814, 1
      %p818 = scmp.eq.s32.totalorder %s124, 1
      %p819 = scmp.ne.s32.totalorder %s814, %s816
      %p820 = scmp.eq.s32.totalorder %s124, 0
      %p821 = por %p819, %p820
      %p822 = scmp.ne.s32.totalorder %s814, %s816
      %p823 = scmp.eq.s32.totalorder %s129, 1
      %p824 = por %p822, %p823
      %p825 = scmp.ne.s32.totalorder %s816, %s817
      %p826 = scmp.eq.s32.totalorder %s129, 0
      %p827 = por %p825, %p826
      %p828 = scmp.ne.s32.totalorder %s816, %s817
      %p829 = scmp.eq.s32.totalorder %s130, 1
      %p830 = por %p828, %p829
      %p832 = scmp.ne.s32.totalorder %s817, %s831
      %p833 = scmp.eq.s32.totalorder %s130, 0
      %p834 = por %p832, %p833
      %s836 = sadd.s32 %s835, 1
      %p839 = scmp.eq.s32.totalorder %s124, 1
      %p840 = scmp.ne.s32.totalorder %s835, %s837
      %p841 = scmp.eq.s32.totalorder %s124, 0
      %p842 = por %p840, %p841
      %p843 = scmp.ne.s32.totalorder %s835, %s837
      %p844 = scmp.eq.s32.totalorder %s129, 1
      %p845 = por %p843, %p844
      %p846 = scmp.ne.s32.totalorder %s837, %s838
      %p847 = scmp.eq.s32.totalorder %s129, 0
      %p848 = por %p846, %p847
      %p849 = scmp.ne.s32.totalorder %s837, %s838
      %p850 = scmp.eq.s32.totalorder %s130, 1
      %p851 = por %p849, %p850
      %p853 = scmp.ne.s32.totalorder %s838, %s852
      %p854 = scmp.eq.s32.totalorder %s130, 0
      %p855 = por %p853, %p854
      %s857 = sadd.s32 %s856, 1
      %p860 = scmp.eq.s32.totalorder %s124, 1
      %p861 = scmp.ne.s32.totalorder %s856, %s858
      %p862 = scmp.eq.s32.totalorder %s124, 0
      %p863 = por %p861, %p862
      %p864 = scmp.ne.s32.totalorder %s856, %s858
      %p865 = scmp.eq.s32.totalorder %s129, 1
      %p866 = por %p864, %p865
      %p867 = scmp.ne.s32.totalorder %s858, %s859
      %p868 = scmp.eq.s32.totalorder %s129, 0
      %p869 = por %p867, %p868
      %p870 = scmp.ne.s32.totalorder %s858, %s859
      %p871 = scmp.eq.s32.totalorder %s130, 1
      %p872 = por %p870, %p871
      %p874 = scmp.ne.s32.totalorder %s859, %s873
      %p875 = scmp.eq.s32.totalorder %s130, 0
      %p876 = por %p874, %p875
      %s878 = sadd.s32 %s877, 1
      %p881 = scmp.eq.s32.totalorder %s124, 1
      %p882 = scmp.ne.s32.totalorder %s877, %s879
      %p883 = scmp.eq.s32.totalorder %s124, 0
      %p884 = por %p882, %p883
      %p885 = scmp.ne.s32.totalorder %s877, %s879
      %p886 = scmp.eq.s32.totalorder %s129, 1
      %p887 = por %p885, %p886
      %p888 = scmp.ne.s32.totalorder %s879, %s880
      %p889 = scmp.eq.s32.totalorder %s129, 0
      %p890 = por %p888, %p889
      %p891 = scmp.ne.s32.totalorder %s879, %s880
      %p892 = scmp.eq.s32.totalorder %s130, 1
      %p893 = por %p891, %p892
      %p895 = scmp.ne.s32.totalorder %s880, %s894
      %p896 = scmp.eq.s32.totalorder %s130, 0
      %p897 = por %p895, %p896
      %s899 = sadd.s32 %s898, 1
      %p902 = scmp.eq.s32.totalorder %s124, 1
      %p903 = scmp.ne.s32.totalorder %s898, %s900
      %p904 = scmp.eq.s32.totalorder %s124, 0
      %p905 = por %p903, %p904
      %p906 = scmp.ne.s32.totalorder %s898, %s900
      %p907 = scmp.eq.s32.totalorder %s129, 1
      %p908 = por %p906, %p907
      %p909 = scmp.ne.s32.totalorder %s900, %s901
      %p910 = scmp.eq.s32.totalorder %s129, 0
      %p911 = por %p909, %p910
      %p912 = scmp.ne.s32.totalorder %s900, %s901
      %p913 = scmp.eq.s32.totalorder %s130, 1
      %p914 = por %p912, %p913
      %p916 = scmp.ne.s32.totalorder %s901, %s915
      %p917 = scmp.eq.s32.totalorder %s130, 0
      %p918 = por %p916, %p917
      %s920 = sadd.s32 %s919, 1
      %p923 = scmp.eq.s32.totalorder %s124, 1
      %p924 = scmp.ne.s32.totalorder %s919, %s921
      %p925 = scmp.eq.s32.totalorder %s124, 0
      %p926 = por %p924, %p925
      %p927 = scmp.ne.s32.totalorder %s919, %s921
      %p928 = scmp.eq.s32.totalorder %s129, 1
      %p929 = por %p927, %p928
      %p930 = scmp.ne.s32.totalorder %s921, %s922
      %p931 = scmp.eq.s32.totalorder %s129, 0
      %p932 = por %p930, %p931
      %p933 = scmp.ne.s32.totalorder %s921, %s922
      %p934 = scmp.eq.s32.totalorder %s130, 1
      %p935 = por %p933, %p934
      %p937 = scmp.ne.s32.totalorder %s922, %s936
      %p938 = scmp.eq.s32.totalorder %s130, 0
      %p939 = por %p937, %p938
      %s941 = sadd.s32 %s940, 1
      %p944 = scmp.eq.s32.totalorder %s124, 1
      %p945 = scmp.ne.s32.totalorder %s940, %s942
      %p946 = scmp.eq.s32.totalorder %s124, 0
      %p947 = por %p945, %p946
      %p948 = scmp.ne.s32.totalorder %s940, %s942
      %p949 = scmp.eq.s32.totalorder %s129, 1
      %p950 = por %p948, %p949
      %p951 = scmp.ne.s32.totalorder %s942, %s943
      %p952 = scmp.eq.s32.totalorder %s129, 0
      %p953 = por %p951, %p952
      %p954 = scmp.ne.s32.totalorder %s942, %s943
      %p955 = scmp.eq.s32.totalorder %s130, 1
      %p956 = por %p954, %p955
      %p958 = scmp.ne.s32.totalorder %s943, %s957
      %p959 = scmp.eq.s32.totalorder %s130, 0
      %p960 = por %p958, %p959
      %s962 = sadd.s32 %s961, 1
      %p965 = scmp.eq.s32.totalorder %s124, 1
      %p966 = scmp.ne.s32.totalorder %s961, %s963
      %p967 = scmp.eq.s32.totalorder %s124, 0
      %p968 = por %p966, %p967
      %p969 = scmp.ne.s32.totalorder %s961, %s963
      %p970 = scmp.eq.s32.totalorder %s129, 1
      %p971 = por %p969, %p970
      %p972 = scmp.ne.s32.totalorder %s963, %s964
      %p973 = scmp.eq.s32.totalorder %s129, 0
      %p974 = por %p972, %p973
      %p975 = scmp.ne.s32.totalorder %s963, %s964
      %p976 = scmp.eq.s32.totalorder %s130, 1
      %p977 = por %p975, %p976
      %p979 = scmp.ne.s32.totalorder %s964, %s978
      %p980 = scmp.eq.s32.totalorder %s130, 0
      %p981 = por %p979, %p980
      %s983 = sadd.s32 %s982, 1
      %p986 = scmp.eq.s32.totalorder %s124, 1
      %p987 = scmp.ne.s32.totalorder %s982, %s984
      %p988 = scmp.eq.s32.totalorder %s124, 0
      %p989 = por %p987, %p988
      %p990 = scmp.ne.s32.totalorder %s982, %s984
      %p991 = scmp.eq.s32.totalorder %s129, 1
      %p992 = por %p990, %p991
      %p993 = scmp.ne.s32.totalorder %s984, %s985
      %p994 = scmp.eq.s32.totalorder %s129, 0
      %p995 = por %p993, %p994
      %p996 = scmp.ne.s32.totalorder %s984, %s985
      %p997 = scmp.eq.s32.totalorder %s130, 1
      %p998 = por %p996, %p997
      %p1000 = scmp.ne.s32.totalorder %s985, %s999
      %p1001 = scmp.eq.s32.totalorder %s130, 0
      %p1002 = por %p1000, %p1001
      %s1004 = sadd.s32 %s1003, 1
      %p1007 = scmp.eq.s32.totalorder %s124, 1
      %p1008 = scmp.ne.s32.totalorder %s1003, %s1005
      %p1009 = scmp.eq.s32.totalorder %s124, 0
      %p1010 = por %p1008, %p1009
      %p1011 = scmp.ne.s32.totalorder %s1003, %s1005
      %p1012 = scmp.eq.s32.totalorder %s129, 1
      %p1013 = por %p1011, %p1012
      %p1014 = scmp.ne.s32.totalorder %s1005, %s1006
      %p1015 = scmp.eq.s32.totalorder %s129, 0
      %p1016 = por %p1014, %p1015
      %p1017 = scmp.ne.s32.totalorder %s1005, %s1006
      %p1018 = scmp.eq.s32.totalorder %s130, 1
      %p1019 = por %p1017, %p1018
      %p1021 = scmp.ne.s32.totalorder %s1006, %s1020
      %p1022 = scmp.eq.s32.totalorder %s130, 0
      %p1023 = por %p1021, %p1022
      %s1025 = sadd.s32 %s1024, 1
      %p1028 = scmp.eq.s32.totalorder %s124, 1
      %p1029 = scmp.ne.s32.totalorder %s1024, %s1026
      %p1030 = scmp.eq.s32.totalorder %s124, 0
      %p1031 = por %p1029, %p1030
      %p1032 = scmp.ne.s32.totalorder %s1024, %s1026
      %p1033 = scmp.eq.s32.totalorder %s129, 1
      %p1034 = por %p1032, %p1033
      %p1035 = scmp.ne.s32.totalorder %s1026, %s1027
      %p1036 = scmp.eq.s32.totalorder %s129, 0
      %p1037 = por %p1035, %p1036
      %p1038 = scmp.ne.s32.totalorder %s1026, %s1027
      %p1039 = scmp.eq.s32.totalorder %s130, 1
      %p1040 = por %p1038, %p1039
      %p1042 = scmp.ne.s32.totalorder %s1027, %s1041
      %p1043 = scmp.eq.s32.totalorder %s130, 0
      %p1044 = por %p1042, %p1043
      %s1046 = sadd.s32 %s1045, 1
      %p1049 = scmp.eq.s32.totalorder %s124, 1
      %p1050 = scmp.ne.s32.totalorder %s1045, %s1047
      %p1051 = scmp.eq.s32.totalorder %s124, 0
      %p1052 = por %p1050, %p1051
      %p1053 = scmp.ne.s32.totalorder %s1045, %s1047
      %p1054 = scmp.eq.s32.totalorder %s129, 1
      %p1055 = por %p1053, %p1054
      %p1056 = scmp.ne.s32.totalorder %s1047, %s1048
      %p1057 = scmp.eq.s32.totalorder %s129, 0
      %p1058 = por %p1056, %p1057
      %p1059 = scmp.ne.s32.totalorder %s1047, %s1048
      %p1060 = scmp.eq.s32.totalorder %s130, 1
      %p1061 = por %p1059, %p1060
      %p1063 = scmp.ne.s32.totalorder %s1048, %s1062
      %p1064 = scmp.eq.s32.totalorder %s130, 0
      %p1065 = por %p1063, %p1064
      %s1067 = sadd.s32 %s1066, 1
      %p1070 = scmp.eq.s32.totalorder %s124, 1
      %p1071 = scmp.ne.s32.totalorder %s1066, %s1068
      %p1072 = scmp.eq.s32.totalorder %s124, 0
      %p1073 = por %p1071, %p1072
      %p1074 = scmp.ne.s32.totalorder %s1066, %s1068
      %p1075 = scmp.eq.s32.totalorder %s129, 1
      %p1076 = por %p1074, %p1075
      %p1077 = scmp.ne.s32.totalorder %s1068, %s1069
      %p1078 = scmp.eq.s32.totalorder %s129, 0
      %p1079 = por %p1077, %p1078
      %p1080 = scmp.ne.s32.totalorder %s1068, %s1069
      %p1081 = scmp.eq.s32.totalorder %s130, 1
      %p1082 = por %p1080, %p1081
      %p1084 = scmp.ne.s32.totalorder %s1069, %s1083
      %p1085 = scmp.eq.s32.totalorder %s130, 0
      %p1086 = por %p1084, %p1085
      %s1088 = sadd.s32 %s1087, 1
      %p1091 = scmp.eq.s32.totalorder %s124, 1
      %p1092 = scmp.ne.s32.totalorder %s1087, %s1089
      %p1093 = scmp.eq.s32.totalorder %s124, 0
      %p1094 = por %p1092, %p1093
      %p1095 = scmp.ne.s32.totalorder %s1087, %s1089
      %p1096 = scmp.eq.s32.totalorder %s129, 1
      %p1097 = por %p1095, %p1096
      %p1098 = scmp.ne.s32.totalorder %s1089, %s1090
      %p1099 = scmp.eq.s32.totalorder %s129, 0
      %p1100 = por %p1098, %p1099
      %p1101 = scmp.ne.s32.totalorder %s1089, %s1090
      %p1102 = scmp.eq.s32.totalorder %s130, 1
      %p1103 = por %p1101, %p1102
      %p1105 = scmp.ne.s32.totalorder %s1090, %s1104
      %p1106 = scmp.eq.s32.totalorder %s130, 0
      %p1107 = por %p1105, %p1106
      %s1109 = sadd.s32 %s1108, 1
      %p1112 = scmp.eq.s32.totalorder %s124, 1
      %p1113 = scmp.ne.s32.totalorder %s1108, %s1110
      %p1114 = scmp.eq.s32.totalorder %s124, 0
      %p1115 = por %p1113, %p1114
      %p1116 = scmp.ne.s32.totalorder %s1108, %s1110
      %p1117 = scmp.eq.s32.totalorder %s129, 1
      %p1118 = por %p1116, %p1117
      %p1119 = scmp.ne.s32.totalorder %s1110, %s1111
      %p1120 = scmp.eq.s32.totalorder %s129, 0
      %p1121 = por %p1119, %p1120
      %p1122 = scmp.ne.s32.totalorder %s1110, %s1111
      %p1123 = scmp.eq.s32.totalorder %s130, 1
      %p1124 = por %p1122, %p1123
      %p1126 = scmp.ne.s32.totalorder %s1111, %s1125
      %p1127 = scmp.eq.s32.totalorder %s130, 0
      %p1128 = por %p1126, %p1127
      %s1129 = ssub.s32 %s124, %s131
      %p1130 = scmp.eq.s32.totalorder %s1129, 0
      %s1132 = sadd.s32 %s1131, 1
      %s1133 = scalar_select %p1130, %s1131, %s1132
      %p1136 = pneg %p1130
      %p1137 = scmp.eq.s32.totalorder %s124, 1
      %p1138 = por %p1136, %p1137
      %p1139 = scmp.ne.s32.totalorder %s1131, %s1134
      %p1140 = scmp.eq.s32.totalorder %s124, 0
      %p1141 = por %p1139, %p1140
      %p1142 = scmp.ne.s32.totalorder %s1131, %s1134
      %p1143 = scmp.eq.s32.totalorder %s129, 1
      %p1144 = por %p1142, %p1143
      %p1145 = scmp.ne.s32.totalorder %s1134, %s1135
      %p1146 = scmp.eq.s32.totalorder %s129, 0
      %p1147 = por %p1145, %p1146
      %p1148 = scmp.ne.s32.totalorder %s1134, %s1135
      %p1149 = scmp.eq.s32.totalorder %s130, 1
      %p1150 = por %p1148, %p1149
      %p1152 = scmp.ne.s32.totalorder %s1135, %s1151
      %p1153 = scmp.eq.s32.totalorder %s130, 0
      %p1154 = por %p1152, %p1153
      %s1155 = ssub.s32 %s124, %s131
      %p1156 = scmp.eq.s32.totalorder %s1155, 0
      %s1158 = sadd.s32 %s1157, 1
      %s1159 = scalar_select %p1156, %s1157, %s1158
      %p1162 = pneg %p1156
      %p1163 = scmp.eq.s32.totalorder %s124, 1
      %p1164 = por %p1162, %p1163
      %p1165 = scmp.ne.s32.totalorder %s1157, %s1160
      %p1166 = scmp.eq.s32.totalorder %s124, 0
      %p1167 = por %p1165, %p1166
      %p1168 = scmp.ne.s32.totalorder %s1157, %s1160
      %p1169 = scmp.eq.s32.totalorder %s129, 1
      %p1170 = por %p1168, %p1169
      %p1171 = scmp.ne.s32.totalorder %s1160, %s1161
      %p1172 = scmp.eq.s32.totalorder %s129, 0
      %p1173 = por %p1171, %p1172
      %p1174 = scmp.ne.s32.totalorder %s1160, %s1161
      %p1175 = scmp.eq.s32.totalorder %s130, 1
      %p1176 = por %p1174, %p1175
      %p1178 = scmp.ne.s32.totalorder %s1161, %s1177
      %p1179 = scmp.eq.s32.totalorder %s130, 0
      %p1180 = por %p1178, %p1179
      %p1181 = scmp.le.s32.totalorder 1, %s124
      %p1182 = scmp.lt.s32.totalorder %s124, 3
      %p1183 = pnand %p1181, %p1182
      %p1184 = pneg %p1183
      // Predicated region
      $region9: #{forward.1} parent=5 // pred_check
        _
      $region10: #{forward.1} parent=5 // pred_check_branch
        %1186 = sbr.rel (%p1183) target = $region12
      $region11: #{forward.1} parent=5 // pred_region
        %s1187 = ssub.s32 %s124, 1
        // Predicated region
        $region13: #{forward.1} parent=11 // pred_check
          %p1188 = pneg %p197
        $region14: #{forward.1} parent=11 // pred_check_branch
          %1190 = sbr.rel (%p1188) target = $region16
        $region15: #{forward.1} parent=11 // pred_region
          _
        $region16: #{forward.1} parent=11 // pred_fallthru
          _
        // Predicated region
        $region17: #{forward.1} parent=11 // pred_check
          %p1191 = pneg %p218
        $region18: #{forward.1} parent=11 // pred_check_branch
          %1193 = sbr.rel (%p1191) target = $region20
        $region19: #{forward.1} parent=11 // pred_region
          _
        $region20: #{forward.1} parent=11 // pred_fallthru
          _
        // Predicated region
        $region21: #{forward.1} parent=11 // pred_check
          %p1194 = pneg %p239
        $region22: #{forward.1} parent=11 // pred_check_branch
          %1196 = sbr.rel (%p1194) target = $region24
        $region23: #{forward.1} parent=11 // pred_region
          _
        $region24: #{forward.1} parent=11 // pred_fallthru
          _
        // Predicated region
        $region25: #{forward.1} parent=11 // pred_check
          %p1197 = pneg %p260
        $region26: #{forward.1} parent=11 // pred_check_branch
          %1199 = sbr.rel (%p1197) target = $region28
        $region27: #{forward.1} parent=11 // pred_region
          _
        $region28: #{forward.1} parent=11 // pred_fallthru
          _
        // Predicated region
        $region29: #{forward.1} parent=11 // pred_check
          %p1200 = pneg %p281
        $region30: #{forward.1} parent=11 // pred_check_branch
          %1202 = sbr.rel (%p1200) target = $region32
        $region31: #{forward.1} parent=11 // pred_region
          _
        $region32: #{forward.1} parent=11 // pred_fallthru
          _
        // Predicated region
        $region33: #{forward.1} parent=11 // pred_check
          %p1203 = pneg %p302
        $region34: #{forward.1} parent=11 // pred_check_branch
          %1205 = sbr.rel (%p1203) target = $region36
        $region35: #{forward.1} parent=11 // pred_region
          _
        $region36: #{forward.1} parent=11 // pred_fallthru
          _
        // Predicated region
        $region37: #{forward.1} parent=11 // pred_check
          %p1206 = pneg %p323
        $region38: #{forward.1} parent=11 // pred_check_branch
          %1208 = sbr.rel (%p1206) target = $region40
        $region39: #{forward.1} parent=11 // pred_region
          _
        $region40: #{forward.1} parent=11 // pred_fallthru
          _
        // Predicated region
        $region41: #{forward.1} parent=11 // pred_check
          %p1209 = pneg %p344
        $region42: #{forward.1} parent=11 // pred_check_branch
          %1211 = sbr.rel (%p1209) target = $region44
        $region43: #{forward.1} parent=11 // pred_region
          _
        $region44: #{forward.1} parent=11 // pred_fallthru
          _
        // Predicated region
        $region45: #{forward.1} parent=11 // pred_check
          %p1212 = pneg %p365
        $region46: #{forward.1} parent=11 // pred_check_branch
          %1214 = sbr.rel (%p1212) target = $region48
        $region47: #{forward.1} parent=11 // pred_region
          _
        $region48: #{forward.1} parent=11 // pred_fallthru
          _
        // Predicated region
        $region49: #{forward.1} parent=11 // pred_check
          %p1215 = pneg %p386
        $region50: #{forward.1} parent=11 // pred_check_branch
          %1217 = sbr.rel (%p1215) target = $region52
        $region51: #{forward.1} parent=11 // pred_region
          _
        $region52: #{forward.1} parent=11 // pred_fallthru
          _
        // Predicated region
        $region53: #{forward.1} parent=11 // pred_check
          %p1218 = pneg %p407
        $region54: #{forward.1} parent=11 // pred_check_branch
          %1220 = sbr.rel (%p1218) target = $region56
        $region55: #{forward.1} parent=11 // pred_region
          _
        $region56: #{forward.1} parent=11 // pred_fallthru
          _
        // Predicated region
        $region57: #{forward.1} parent=11 // pred_check
          %p1221 = pneg %p428
        $region58: #{forward.1} parent=11 // pred_check_branch
          %1223 = sbr.rel (%p1221) target = $region60
        $region59: #{forward.1} parent=11 // pred_region
          _
        $region60: #{forward.1} parent=11 // pred_fallthru
          _
        // Predicated region
        $region61: #{forward.1} parent=11 // pred_check
          %p1224 = pneg %p449
        $region62: #{forward.1} parent=11 // pred_check_branch
          %1226 = sbr.rel (%p1224) target = $region64
        $region63: #{forward.1} parent=11 // pred_region
          _
        $region64: #{forward.1} parent=11 // pred_fallthru
          _
        // Predicated region
        $region65: #{forward.1} parent=11 // pred_check
          %p1227 = pneg %p470
        $region66: #{forward.1} parent=11 // pred_check_branch
          %1229 = sbr.rel (%p1227) target = $region68
        $region67: #{forward.1} parent=11 // pred_region
          _
        $region68: #{forward.1} parent=11 // pred_fallthru
          _
        // Predicated region
        $region69: #{forward.1} parent=11 // pred_check
          %p1230 = pneg %p491
        $region70: #{forward.1} parent=11 // pred_check_branch
          %1232 = sbr.rel (%p1230) target = $region72
        $region71: #{forward.1} parent=11 // pred_region
          _
        $region72: #{forward.1} parent=11 // pred_fallthru
          _
        // Predicated region
        $region73: #{forward.1} parent=11 // pred_check
          %p1233 = pneg %p512
        $region74: #{forward.1} parent=11 // pred_check_branch
          %1235 = sbr.rel (%p1233) target = $region76
        $region75: #{forward.1} parent=11 // pred_region
          _
        $region76: #{forward.1} parent=11 // pred_fallthru
          _
        // Predicated region
        $region77: #{forward.1} parent=11 // pred_check
          %p1236 = pneg %p533
        $region78: #{forward.1} parent=11 // pred_check_branch
          %1238 = sbr.rel (%p1236) target = $region80
        $region79: #{forward.1} parent=11 // pred_region
          _
        $region80: #{forward.1} parent=11 // pred_fallthru
          _
        // Predicated region
        $region81: #{forward.1} parent=11 // pred_check
          %p1239 = pneg %p554
        $region82: #{forward.1} parent=11 // pred_check_branch
          %1241 = sbr.rel (%p1239) target = $region84
        $region83: #{forward.1} parent=11 // pred_region
          _
        $region84: #{forward.1} parent=11 // pred_fallthru
          _
        // Predicated region
        $region85: #{forward.1} parent=11 // pred_check
          %p1242 = pneg %p575
        $region86: #{forward.1} parent=11 // pred_check_branch
          %1244 = sbr.rel (%p1242) target = $region88
        $region87: #{forward.1} parent=11 // pred_region
          _
        $region88: #{forward.1} parent=11 // pred_fallthru
          _
        // Predicated region
        $region89: #{forward.1} parent=11 // pred_check
          %p1245 = pneg %p596
        $region90: #{forward.1} parent=11 // pred_check_branch
          %1247 = sbr.rel (%p1245) target = $region92
        $region91: #{forward.1} parent=11 // pred_region
          _
        $region92: #{forward.1} parent=11 // pred_fallthru
          _
        // Predicated region
        $region93: #{forward.1} parent=11 // pred_check
          %p1248 = pneg %p617
        $region94: #{forward.1} parent=11 // pred_check_branch
          %1250 = sbr.rel (%p1248) target = $region96
        $region95: #{forward.1} parent=11 // pred_region
          _
        $region96: #{forward.1} parent=11 // pred_fallthru
          _
        // Predicated region
        $region97: #{forward.1} parent=11 // pred_check
          %p1251 = pneg %p638
        $region98: #{forward.1} parent=11 // pred_check_branch
          %1253 = sbr.rel (%p1251) target = $region100
        $region99: #{forward.1} parent=11 // pred_region
          _
        $region100: #{forward.1} parent=11 // pred_fallthru
          _
        // Predicated region
        $region101: #{forward.1} parent=11 // pred_check
          %p1254 = pneg %p659
        $region102: #{forward.1} parent=11 // pred_check_branch
          %1256 = sbr.rel (%p1254) target = $region104
        $region103: #{forward.1} parent=11 // pred_region
          _
        $region104: #{forward.1} parent=11 // pred_fallthru
          _
        // Predicated region
        $region105: #{forward.1} parent=11 // pred_check
          %p1257 = pneg %p680
        $region106: #{forward.1} parent=11 // pred_check_branch
          %1259 = sbr.rel (%p1257) target = $region108
        $region107: #{forward.1} parent=11 // pred_region
          _
        $region108: #{forward.1} parent=11 // pred_fallthru
          _
        // Predicated region
        $region109: #{forward.1} parent=11 // pred_check
          %p1260 = pneg %p701
        $region110: #{forward.1} parent=11 // pred_check_branch
          %1262 = sbr.rel (%p1260) target = $region112
        $region111: #{forward.1} parent=11 // pred_region
          _
        $region112: #{forward.1} parent=11 // pred_fallthru
          _
        // Predicated region
        $region113: #{forward.1} parent=11 // pred_check
          %p1263 = pneg %p722
        $region114: #{forward.1} parent=11 // pred_check_branch
          %1265 = sbr.rel (%p1263) target = $region116
        $region115: #{forward.1} parent=11 // pred_region
          _
        $region116: #{forward.1} parent=11 // pred_fallthru
          _
        // Predicated region
        $region117: #{forward.1} parent=11 // pred_check
          %p1266 = pneg %p743
        $region118: #{forward.1} parent=11 // pred_check_branch
          %1268 = sbr.rel (%p1266) target = $region120
        $region119: #{forward.1} parent=11 // pred_region
          _
        $region120: #{forward.1} parent=11 // pred_fallthru
          _
        // Predicated region
        $region121: #{forward.1} parent=11 // pred_check
          %p1269 = pneg %p764
        $region122: #{forward.1} parent=11 // pred_check_branch
          %1271 = sbr.rel (%p1269) target = $region124
        $region123: #{forward.1} parent=11 // pred_region
          _
        $region124: #{forward.1} parent=11 // pred_fallthru
          _
        // Predicated region
        $region125: #{forward.1} parent=11 // pred_check
          %p1272 = pneg %p785
        $region126: #{forward.1} parent=11 // pred_check_branch
          %1274 = sbr.rel (%p1272) target = $region128
        $region127: #{forward.1} parent=11 // pred_region
          _
        $region128: #{forward.1} parent=11 // pred_fallthru
          _
        // Predicated region
        $region129: #{forward.1} parent=11 // pred_check
          %p1275 = pneg %p806
        $region130: #{forward.1} parent=11 // pred_check_branch
          %1277 = sbr.rel (%p1275) target = $region132
        $region131: #{forward.1} parent=11 // pred_region
          _
        $region132: #{forward.1} parent=11 // pred_fallthru
          _
        // Predicated region
        $region133: #{forward.1} parent=11 // pred_check
          %p1278 = pneg %p827
        $region134: #{forward.1} parent=11 // pred_check_branch
          %1280 = sbr.rel (%p1278) target = $region136
        $region135: #{forward.1} parent=11 // pred_region
          _
        $region136: #{forward.1} parent=11 // pred_fallthru
          _
        // Predicated region
        $region137: #{forward.1} parent=11 // pred_check
          %p1281 = pneg %p848
        $region138: #{forward.1} parent=11 // pred_check_branch
          %1283 = sbr.rel (%p1281) target = $region140
        $region139: #{forward.1} parent=11 // pred_region
          _
        $region140: #{forward.1} parent=11 // pred_fallthru
          _
        // Predicated region
        $region141: #{forward.1} parent=11 // pred_check
          %p1284 = pneg %p869
        $region142: #{forward.1} parent=11 // pred_check_branch
          %1286 = sbr.rel (%p1284) target = $region144
        $region143: #{forward.1} parent=11 // pred_region
          _
        $region144: #{forward.1} parent=11 // pred_fallthru
          _
        // Predicated region
        $region145: #{forward.1} parent=11 // pred_check
          %p1287 = pneg %p890
        $region146: #{forward.1} parent=11 // pred_check_branch
          %1289 = sbr.rel (%p1287) target = $region148
        $region147: #{forward.1} parent=11 // pred_region
          _
        $region148: #{forward.1} parent=11 // pred_fallthru
          _
        // Predicated region
        $region149: #{forward.1} parent=11 // pred_check
          %p1290 = pneg %p911
        $region150: #{forward.1} parent=11 // pred_check_branch
          %1292 = sbr.rel (%p1290) target = $region152
        $region151: #{forward.1} parent=11 // pred_region
          _
        $region152: #{forward.1} parent=11 // pred_fallthru
          _
        // Predicated region
        $region153: #{forward.1} parent=11 // pred_check
          %p1293 = pneg %p932
        $region154: #{forward.1} parent=11 // pred_check_branch
          %1295 = sbr.rel (%p1293) target = $region156
        $region155: #{forward.1} parent=11 // pred_region
          _
        $region156: #{forward.1} parent=11 // pred_fallthru
          _
        // Predicated region
        $region157: #{forward.1} parent=11 // pred_check
          %p1296 = pneg %p953
        $region158: #{forward.1} parent=11 // pred_check_branch
          %1298 = sbr.rel (%p1296) target = $region160
        $region159: #{forward.1} parent=11 // pred_region
          _
        $region160: #{forward.1} parent=11 // pred_fallthru
          _
        // Predicated region
        $region161: #{forward.1} parent=11 // pred_check
          %p1299 = pneg %p974
        $region162: #{forward.1} parent=11 // pred_check_branch
          %1301 = sbr.rel (%p1299) target = $region164
        $region163: #{forward.1} parent=11 // pred_region
          _
        $region164: #{forward.1} parent=11 // pred_fallthru
          _
        // Predicated region
        $region165: #{forward.1} parent=11 // pred_check
          %p1302 = pneg %p995
        $region166: #{forward.1} parent=11 // pred_check_branch
          %1304 = sbr.rel (%p1302) target = $region168
        $region167: #{forward.1} parent=11 // pred_region
          %s1306 = ssub.s32 16, 16
          %1307 = vsyncadd [#allocation10], %s1306
          %s1309 = sshll.u32 [#allocation9], 4
          %s1310 = int_to_ptr.vmem [resolvable:$true] %s1309
          %1312 = dma.hbm_to_vmem [thread:$0]  %s85, 16, %s1310, [#allocation10]
        $region168: #{forward.1} parent=11 // pred_fallthru
          _
        // Predicated region
        $region169: #{forward.1} parent=11 // pred_check
          %p1313 = pneg %p1016
        $region170: #{forward.1} parent=11 // pred_check_branch
          %1315 = sbr.rel (%p1313) target = $region172
        $region171: #{forward.1} parent=11 // pred_region
          _
        $region172: #{forward.1} parent=11 // pred_fallthru
          _
        // Predicated region
        $region173: #{forward.1} parent=11 // pred_check
          %p1316 = pneg %p1037
        $region174: #{forward.1} parent=11 // pred_check_branch
          %1318 = sbr.rel (%p1316) target = $region176
        $region175: #{forward.1} parent=11 // pred_region
          %s1320 = ssub.s32 16, 16
          %1321 = vsyncadd [#allocation13], %s1320
          %s1323 = sshll.u32 [#allocation12], 4
          %s1324 = int_to_ptr.vmem [resolvable:$true] %s1323
          %1326 = dma.hbm_to_vmem [thread:$0]  %s89, 16, %s1324, [#allocation13]
        $region176: #{forward.1} parent=11 // pred_fallthru
          _
        // Predicated region
        $region177: #{forward.1} parent=11 // pred_check
          %p1327 = pneg %p1058
        $region178: #{forward.1} parent=11 // pred_check_branch
          %1329 = sbr.rel (%p1327) target = $region180
        $region179: #{forward.1} parent=11 // pred_region
          %s1331 = ssub.s32 16, 16
          %1332 = vsyncadd [#allocation13], %s1331
          %s1334 = sshll.u32 [#allocation14], 4
          %s1335 = int_to_ptr.vmem [resolvable:$true] %s1334
          %1337 = dma.hbm_to_vmem [thread:$0]  %s91, 16, %s1335, [#allocation13]
        $region180: #{forward.1} parent=11 // pred_fallthru
          _
        // Predicated region
        $region181: #{forward.1} parent=11 // pred_check
          %p1338 = pneg %p1079
        $region182: #{forward.1} parent=11 // pred_check_branch
          %1340 = sbr.rel (%p1338) target = $region184
        $region183: #{forward.1} parent=11 // pred_region
          %s1342 = ssub.s32 16, 16
          %1343 = vsyncadd [#allocation16], %s1342
          %s1345 = sshll.u32 [#allocation15], 4
          %s1346 = int_to_ptr.vmem [resolvable:$true] %s1345
          %1348 = dma.hbm_to_vmem [thread:$0]  %s93, 16, %s1346, [#allocation16]
        $region184: #{forward.1} parent=11 // pred_fallthru
          _
        // Predicated region
        $region185: #{forward.1} parent=11 // pred_check
          %p1349 = pneg %p1100
        $region186: #{forward.1} parent=11 // pred_check_branch
          %1351 = sbr.rel (%p1349) target = $region188
        $region187: #{forward.1} parent=11 // pred_region
          _
        $region188: #{forward.1} parent=11 // pred_fallthru
          _
        // Predicated region
        $region189: #{forward.1} parent=11 // pred_check
          %p1352 = pneg %p1121
        $region190: #{forward.1} parent=11 // pred_check_branch
          %1354 = sbr.rel (%p1352) target = $region192
        $region191: #{forward.1} parent=11 // pred_region
          _
        $region192: #{forward.1} parent=11 // pred_fallthru
          _
      $region12: #{forward.1} parent=5 // pred_fallthru
        _
      %p1355 = scmp.lt.s32.totalorder %s124, 2
      // Predicated region
      $region193: #{forward.1} parent=5 // pred_check
        %p1356 = pneg %p1355
      $region194: #{forward.1} parent=5 // pred_check_branch
        %1358 = sbr.rel (%p1356) target = $region196
      $region195: #{forward.1} parent=5 // pred_region
        // Predicated region
        $region197: #{forward.1} parent=195 // pred_check
          %p1359 = pneg %p144
        $region198: #{forward.1} parent=195 // pred_check_branch
          %1361 = sbr.rel (%p1359) target = $region200
        $region199: #{forward.1} parent=195 // pred_region
          %p1362 = scmp.lt.s32.totalorder %s124, 1
          %s1363 = scalar_select %p1362, %s124, 1
          %s1364 = smul.addr %s1363, 2
          %s1365 = smul.addr %s1364, 8
          %s1366 = scalar_lea.vmem %s5, %s1365
        $region200: #{forward.1} parent=195 // pred_fallthru
          _
        // Predicated region
        $region201: #{forward.1} parent=195 // pred_check
          %p1367 = pneg %p170
        $region202: #{forward.1} parent=195 // pred_check_branch
          %1369 = sbr.rel (%p1367) target = $region204
        $region203: #{forward.1} parent=195 // pred_region
          %p1370 = scmp.lt.s32.totalorder %s124, 1
          %s1371 = scalar_select %p1370, %s124, 1
          %s1372 = smul.addr %s1371, 8
          %s1373 = scalar_lea.vmem %s7, %s1372
        $region204: #{forward.1} parent=195 // pred_fallthru
          _
      $region196: #{forward.1} parent=5 // pred_fallthru
        _
      %p1374 = scmp.le.s32.totalorder 1, %s124
      %p1375 = scmp.lt.s32.totalorder %s124, 3
      %p1376 = pnand %p1374, %p1375
      %p1377 = pneg %p1376
      // Predicated region
      $region205: #{forward.1} parent=5 // pred_check
        _
      $region206: #{forward.1} parent=5 // pred_check_branch
        %1379 = sbr.rel (%p1376) target = $region208
      $region207: #{forward.1} parent=5 // pred_region
        %s1380 = ssub.s32 %s124, 1
        // Predicated region
        $region209: #{forward.1} parent=207 // pred_check
          %p1381 = pneg %p995
        $region210: #{forward.1} parent=207 // pred_check_branch
          %1383 = sbr.rel (%p1381) target = $region212
        $region211: #{forward.1} parent=207 // pred_region
          %1384 = dma.done [#allocation10], 16
        $region212: #{forward.1} parent=207 // pred_fallthru
          _
        // Predicated region
        $region213: #{forward.1} parent=207 // pred_check
          %p1385 = pneg %p1037
        $region214: #{forward.1} parent=207 // pred_check_branch
          %1387 = sbr.rel (%p1385) target = $region216
        $region215: #{forward.1} parent=207 // pred_region
          %1388 = dma.done [#allocation13], 16
        $region216: #{forward.1} parent=207 // pred_fallthru
          _
        // Predicated region
        $region217: #{forward.1} parent=207 // pred_check
          %p1389 = pneg %p1058
        $region218: #{forward.1} parent=207 // pred_check_branch
          %1391 = sbr.rel (%p1389) target = $region220
        $region219: #{forward.1} parent=207 // pred_region
          %1392 = dma.done [#allocation13], 16
        $region220: #{forward.1} parent=207 // pred_fallthru
          _
        // Predicated region
        $region221: #{forward.1} parent=207 // pred_check
          %p1393 = pneg %p1079
        $region222: #{forward.1} parent=207 // pred_check_branch
          %1395 = sbr.rel (%p1393) target = $region224
        $region223: #{forward.1} parent=207 // pred_region
          %1396 = dma.done [#allocation16], 16
        $region224: #{forward.1} parent=207 // pred_fallthru
          _
        %p1397 = scmp.lt.s32.totalorder %s129, 1
        %s1398 = scalar_select %p1397, %s129, 1
        %s1399 = smul.addr %s1398, 2
        %s1400 = smul.addr %s1399, 8
        %s1401 = scalar_lea.vmem %s5, %s1400
        %p1402 = pneg %p150
        %p1403 = pneg %p147
        %p1404 = scmp.lt.s32.totalorder %s129, 1
        %s1405 = scalar_select %p1404, %s129, 1
        %s1406 = smul.addr %s1405, 8
        %s1407 = scalar_lea.vmem %s7, %s1406
        %p1408 = pneg %p176
        %p1409 = pneg %p173
        %p1410 = pneg %p197
        %p1411 = pneg %p194
        %p1412 = pneg %p218
        %p1413 = pneg %p215
        %p1414 = pneg %p239
        %p1415 = pneg %p236
        %p1416 = pneg %p260
        %p1417 = pneg %p257
        %p1418 = pneg %p281
        %p1419 = pneg %p278
        %p1420 = pneg %p302
        %p1421 = pneg %p299
        %p1422 = pneg %p323
        %p1423 = pneg %p320
        %p1424 = pneg %p344
        %p1425 = pneg %p341
        %p1426 = pneg %p365
        %p1427 = pneg %p362
        %p1428 = pneg %p386
        %p1429 = pneg %p383
        %p1430 = pneg %p407
        %p1431 = pneg %p404
        %p1432 = pneg %p428
        %p1433 = pneg %p425
        %p1434 = pneg %p449
        %p1435 = pneg %p446
        %p1436 = pneg %p470
        %p1437 = pneg %p467
        %p1438 = pneg %p491
        %p1439 = pneg %p488
        %p1440 = pneg %p512
        %p1441 = pneg %p509
        %p1442 = pneg %p533
        %p1443 = pneg %p530
        %p1444 = pneg %p554
        %p1445 = pneg %p551
        %p1446 = pneg %p575
        %p1447 = pneg %p572
        %p1448 = pneg %p596
        %p1449 = pneg %p593
        %p1450 = pneg %p617
        %p1451 = pneg %p614
        %p1452 = pneg %p638
        %p1453 = pneg %p635
        %p1454 = pneg %p659
        %p1455 = pneg %p656
        %p1456 = pneg %p680
        %p1457 = pneg %p677
        %p1458 = pneg %p701
        %p1459 = pneg %p698
        %p1460 = pneg %p722
        %p1461 = pneg %p719
        %p1462 = pneg %p743
        %p1463 = pneg %p740
        %p1464 = pneg %p764
        %p1465 = pneg %p761
        %p1466 = pneg %p785
        %p1467 = pneg %p782
        %p1468 = pneg %p806
        %p1469 = pneg %p803
        %p1470 = pneg %p827
        %p1471 = pneg %p824
        %p1472 = pneg %p848
        %p1473 = pneg %p845
        %p1474 = pneg %p869
        %p1475 = pneg %p866
        %p1476 = pneg %p890
        %p1477 = pneg %p887
        %p1478 = pneg %p911
        %p1479 = pneg %p908
        %p1480 = pneg %p932
        %p1481 = pneg %p929
        %p1482 = pneg %p953
        %p1483 = pneg %p950
        %p1484 = pneg %p974
        %p1485 = pneg %p971
        %p1486 = pneg %p995
        %p1487 = pneg %p992
        %p1488 = pneg %p1016
        %p1489 = pneg %p1013
        %p1490 = pneg %p1037
        %p1491 = pneg %p1034
        %p1492 = pneg %p1058
        %p1493 = pneg %p1055
        %p1494 = pneg %p1079
        %p1495 = pneg %p1076
        %p1496 = pneg %p1100
        %p1497 = pneg %p1097
        %p1498 = pneg %p1121
        %p1499 = pneg %p1118
        %p1500 = pneg %p1147
        %p1501 = pneg %p1144
        %s1502 = sand.u32 %s1134, 1
        %s1503 = scalar_lea.sflag [#allocation11], %s1502
        %s1504 = sand.u32 %s1134, 1
        %s1505 = smul.addr %s1504, 16
        %s1506 = scalar_lea.vmem [#allocation17], %s1505
        %p1507 = pneg %p1173
        %p1508 = pneg %p1170
        %p1509 = scmp.lt.s32.totalorder %s129, 1
        %s1510 = scalar_select %p1509, %s129, 1
        %s1511 = scalar_lea.vmem %s101, %s1510
        %p1512 = scmp.lt.s32.totalorder %s129, 1
        %s1513 = scalar_select %p1512, %s129, 1
        %s1514 = smul.addr %s1513, 2
        %s1515 = smul.addr %s1514, 8
        %s1516 = scalar_lea.vmem %s5, %s1515
        %p1517 = scmp.lt.s32.totalorder %s129, 1
        %s1518 = scalar_select %p1517, %s129, 1
        %s1519 = smul.addr %s1518, 8
        %s1520 = scalar_lea.vmem %s7, %s1519
        %p1521 = scmp.lt.s32.totalorder %s129, 1
        %s1522 = scalar_select %p1521, %s129, 1
        %s1523 = scalar_lea.vmem %s101, %s1522
        %v1524 = vld [vmem:[%s1516] sm:$0xff]
        %v1525 = vld [vmem:[%s1516 + $0x8] sm:$0xff]
        %v1526 = vld [vmem:[%s9] sm:$0xff]
        %v1527 = vld [vmem:[%s9 + $0x8] sm:$0xff]
        %v1528 = vld [vmem:[%s9 + $0x10] sm:$0xff]
        %v1529 = vld [vmem:[%s9 + $0x18] sm:$0xff]
        %v1530 = vld [vmem:[%s9 + $0x20] sm:$0xff]
        %v1531 = vld [vmem:[%s9 + $0x28] sm:$0xff]
        %v1532 = vld [vmem:[%s9 + $0x30] sm:$0xff]
        %v1533 = vld [vmem:[%s9 + $0x38] sm:$0xff]
        %v1534 = vld [vmem:[%s9 + $0x40] sm:$0xff]
        %v1535 = vld [vmem:[%s9 + $0x48] sm:$0xff]
        %v1536 = vld [vmem:[%s9 + $0x50] sm:$0xff]
        %v1537 = vld [vmem:[%s9 + $0x58] sm:$0xff]
        %v1538 = vld [vmem:[%s9 + $0x60] sm:$0xff]
        %v1539 = vld [vmem:[%s9 + $0x68] sm:$0xff]
        %v1540 = vld [vmem:[%s9 + $0x70] sm:$0xff]
        %v1541 = vld [vmem:[%s9 + $0x78] sm:$0xff]
        %v1542 = vld [vmem:[%s9 + $0x80] sm:$0xff]
        %v1543 = vld [vmem:[%s9 + $0x88] sm:$0xff]
        %v1544 = vld [vmem:[%s9 + $0x90] sm:$0xff]
        %v1545 = vld [vmem:[%s9 + $0x98] sm:$0xff]
        %v1546 = vld [vmem:[%s9 + $0xa0] sm:$0xff]
        %v1547 = vld [vmem:[%s9 + $0xa8] sm:$0xff]
        %v1548 = vld [vmem:[%s9 + $0xb0] sm:$0xff]
        %v1549 = vld [vmem:[%s9 + $0xb8] sm:$0xff]
        %v1550 = vld [vmem:[%s11] sm:$0xff]
        %vm1551 = vcmask 523264
        %v1553 = vsel %vm1551, %v1525, 0
        %1555 = vmatprep.subr.mxu0 0.0
        %1556 = vmatpush1.msra.mxu0 %v1526
        %1557 = vmatprep.subr.mxu0 0.0
        %1558 = vmatpush1.msra.mxu0 %v1527
        %1559 = vmatprep.subr.mxu0 0.0
        %1560 = vmatpush1.msra.mxu0 %v1528
        %1561 = vmatprep.subr.mxu0 0.0
        %1562 = vmatpush1.msra.mxu0 %v1529
        %1563 = vmatprep.subr.mxu0 0.0
        %1564 = vmatpush1.msra.mxu0 %v1530
        %1565 = vmatprep.subr.mxu0 0.0
        %1566 = vmatpush1.msra.mxu0 %v1531
        %1567 = vmatprep.subr.mxu0 0.0
        %1568 = vmatpush1.msra.mxu0 %v1532
        %1569 = vmatprep.subr.mxu0 0.0
        %1570 = vmatpush1.msra.mxu0 %v1533
        %1571 = vmatprep.subr.mxu0 0.0
        %1572 = vmatpush1.msra.mxu0 %v1534
        %1573 = vmatprep.subr.mxu0 0.0
        %1574 = vmatpush1.msra.mxu0 %v1535
        %1575 = vmatprep.subr.mxu0 0.0
        %1576 = vmatpush1.msra.mxu0 %v1536
        %1577 = vmatprep.subr.mxu0 0.0
        %1578 = vmatpush1.msra.mxu0 %v1537
        %1579 = vmatprep.subr.mxu0 0.0
        %1580 = vmatpush1.msra.mxu0 %v1538
        %1581 = vmatprep.subr.mxu0 0.0
        %1582 = vmatpush1.msra.mxu0 %v1539
        %1583 = vmatprep.subr.mxu0 0.0
        %1584 = vmatpush1.msra.mxu0 %v1540
        %1585 = vmatprep.subr.mxu0 0.0
        %1586 = vmatpush1.msra.mxu0 %v1541
        %1587 = vmatprep.subr.mxu0 0.0
        %1588 = vmatpush1.msra.mxu0 %v1542
        %1589 = vmatprep.subr.mxu0 0.0
        %1590 = vmatpush1.msra.mxu0 %v1543
        %1591 = vmatprep.subr.mxu0 0.0
        %1592 = vmatpush1.msra.mxu0 %v1544
        %1593 = vmatprep.subr.mxu0 0.0
        %1594 = vmatpush1.msra.mxu0 %v1545
        %1595 = vmatprep.subr.mxu0 0.0
        %1596 = vmatpush1.msra.mxu0 %v1546
        %1597 = vmatprep.subr.mxu0 0.0
        %1598 = vmatpush1.msra.mxu0 %v1547
        %1599 = vmatprep.subr.mxu0 0.0
        %1600 = vmatpush1.msra.mxu0 %v1548
        %1601 = vmatprep.subr.mxu0 0.0
        %1602 = vmatpush1.msra.mxu0 %v1549
        %1603 = vmatprep.subr.mxu0 0.0
        %1604 = vmatpush1.msra.mxu0 0.0
        %1605 = vmatprep.subr.mxu0 0.0
        %1606 = vmatpush1.msra.mxu0 0.0
        %1607 = vmatprep.subr.mxu0 0.0
        %1608 = vmatpush1.msra.mxu0 0.0
        %1609 = vmatprep.subr.mxu0 0.0
        %1610 = vmatpush1.msra.mxu0 0.0
        %1611 = vmatprep.subr.mxu0 0.0
        %1612 = vmatpush1.msra.mxu0 0.0
        %1613 = vmatprep.subr.mxu0 0.0
        %1614 = vmatpush1.msra.mxu0 0.0
        %1615 = vmatprep.subr.mxu0 0.0
        %1616 = vmatpush1.msra.mxu0 0.0
        %1617 = vmatprep.subr.mxu0 0.0
        %1618 = vmatpush1.msra.mxu0 0.0
        %1619 = vmatprep.mubr.f32.mxu0 %v1553
        %1620 = vmatmul.mubr.f32.gmra.mrb[0].mxu0 %v1524
        %v1621 = vpop.f32.mrb[0].mxu0
        %v1622 = vadd.f32 %v1550, %v1621
        %v1623 = vpop.f32.mrb[0].mxu0
        %1624 = vdwg.mxu0
        %vm1625 = vcmask 261120
        %1626 = vst.msk [vmem:[#allocation2] sm:$0xff] %vm1625, %v1622
        %v1627 = vld [vmem:[%s13] sm:$0x1]
        %vm1628 = vcmask 253952
        %1629 = vst.msk [vmem:[#allocation3] sm:$0x1] %vm1628, %v1627
        %s1630 = smul.u32 %s129, 128
        %s1631 = sld [smem:[#allocation7 + %s1630]]
        %s1632 = scalar_lea.vmem [#allocation2], %s1631
        %v1633 = vld [vmem:[%s1632] sm:$0x1]
        %1634 = vst.msk [vmem:[#allocation3 + $0x1] sm:$0x1] %vm1628, %v1633
        %s1635 = sadd.s32 %s1630, 1
        %s1636 = sld [smem:[#allocation7 + %s1635]]
        %s1637 = scalar_lea.vmem [#allocation2], %s1636
        %v1638 = vld [vmem:[%s1637] sm:$0x1]
        %1639 = vst.msk [vmem:[#allocation3 + $0x2] sm:$0x1] %vm1628, %v1638
        %v1640 = vld [vmem:[#allocation3] sm:$0x7]
        %v1641 = vld [vmem:[%s15] sm:$0x1]
        %v1642 = vld [vmem:[%s17] sm:$0x1]
        %vm1643 = vcmask 256000
        %v1644 = vsel %vm1643, %v1640, 0.0
        %1645 = vadd.xlane.f32.xlu0 %v1644
        %v1646 = vpop.xlane.xlu0 %1645
        %v1647 = vrcp.pop 32.0
        %v1648 = vmul.f32 %v1646, %v1647
        %v1649 = vsub.f32 %v1640, %v1648
        %v1650 = vmul.f32 %v1649, %v1649
        %v1651 = vsel %vm1643, %v1650, 0.0
        %1652 = vadd.xlane.f32.xlu0 %v1651
        %v1653 = vpop.xlane.xlu0 %1652
        %v1654 = vmul.f32 %v1653, %v1647
        %v1655 = vadd.f32 %v1654, 1e-05
        %v1656 = vrsqrt.pop %v1655
        %v1657 = vmul.f32 %v1649, %v1656
        %v1659 = vlaneseq
        %v1660 = vshrl.u32 %v1659, 7
        %v1661 = vsub.s32 0, %v1660
        %v1662 = vrot.slane %v1641, %v1661
        %v1664 = vmul.f32 %v1657, %v1662
        %v1666 = vlaneseq
        %v1667 = vshrl.u32 %v1666, 7
        %v1668 = vsub.s32 0, %v1667
        %v1669 = vrot.slane %v1642, %v1668
        %v1671 = vadd.f32 %v1664, %v1669
        %v1672 = vld [vmem:[%s19] sm:$0xff]
        %v1673 = vld [vmem:[%s19 + $0x8] sm:$0xff]
        %v1674 = vld [vmem:[%s19 + $0x10] sm:$0xff]
        %v1675 = vld [vmem:[%s19 + $0x18] sm:$0xff]
        %v1676 = vld [vmem:[%s21] sm:$0x1]
        %v1678 = vlaneseq
        %v1679 = vshrl.u32 %v1678, 7
        %v1680 = vsub.s32 0, %v1679
        %v1681 = vrot.slane %v1676, %v1680
        %v1684 = vsel %vm1625, %v1671, 0
        %1686 = vmatprep.subr.mxu0 0.0
        %1687 = vmatpush1.msra.mxu0 %v1672
        %1688 = vmatprep.subr.mxu0 0.0
        %1689 = vmatpush1.msra.mxu0 %v1673
        %1690 = vmatprep.subr.mxu0 0.0
        %1691 = vmatpush1.msra.mxu0 %v1674
        %1692 = vmatprep.subr.mxu0 0.0
        %1693 = vmatpush1.msra.mxu0 %v1675
        %1694 = vmatprep.subr.mxu0 0.0
        %1695 = vmatpush1.msra.mxu0 0.0
        %1696 = vmatprep.subr.mxu0 0.0
        %1697 = vmatpush1.msra.mxu0 0.0
        %1698 = vmatprep.subr.mxu0 0.0
        %1699 = vmatpush1.msra.mxu0 0.0
        %1700 = vmatprep.subr.mxu0 0.0
        %1701 = vmatpush1.msra.mxu0 0.0
        %1702 = vmatprep.subr.mxu0 0.0
        %1703 = vmatpush1.msra.mxu0 0.0
        %1704 = vmatprep.subr.mxu0 0.0
        %1705 = vmatpush1.msra.mxu0 0.0
        %1706 = vmatprep.subr.mxu0 0.0
        %1707 = vmatpush1.msra.mxu0 0.0
        %1708 = vmatprep.subr.mxu0 0.0
        %1709 = vmatpush1.msra.mxu0 0.0
        %1710 = vmatprep.subr.mxu0 0.0
        %1711 = vmatpush1.msra.mxu0 0.0
        %1712 = vmatprep.subr.mxu0 0.0
        %1713 = vmatpush1.msra.mxu0 0.0
        %1714 = vmatprep.subr.mxu0 0.0
        %1715 = vmatpush1.msra.mxu0 0.0
        %1716 = vmatprep.subr.mxu0 0.0
        %1717 = vmatpush1.msra.mxu0 0.0
        %1718 = vmatprep.subr.mxu0 0.0
        %1719 = vmatpush1.msra.mxu0 0.0
        %1720 = vmatprep.subr.mxu0 0.0
        %1721 = vmatpush1.msra.mxu0 0.0
        %1722 = vmatprep.subr.mxu0 0.0
        %1723 = vmatpush1.msra.mxu0 0.0
        %1724 = vmatprep.subr.mxu0 0.0
        %1725 = vmatpush1.msra.mxu0 0.0
        %1726 = vmatprep.subr.mxu0 0.0
        %1727 = vmatpush1.msra.mxu0 0.0
        %1728 = vmatprep.subr.mxu0 0.0
        %1729 = vmatpush1.msra.mxu0 0.0
        %1730 = vmatprep.subr.mxu0 0.0
        %1731 = vmatpush1.msra.mxu0 0.0
        %1732 = vmatprep.subr.mxu0 0.0
        %1733 = vmatpush1.msra.mxu0 0.0
        %1734 = vmatprep.subr.mxu0 0.0
        %1735 = vmatpush1.msra.mxu0 0.0
        %1736 = vmatprep.subr.mxu0 0.0
        %1737 = vmatpush1.msra.mxu0 0.0
        %1738 = vmatprep.subr.mxu0 0.0
        %1739 = vmatpush1.msra.mxu0 0.0
        %1740 = vmatprep.subr.mxu0 0.0
        %1741 = vmatpush1.msra.mxu0 0.0
        %1742 = vmatprep.subr.mxu0 0.0
        %1743 = vmatpush1.msra.mxu0 0.0
        %1744 = vmatprep.subr.mxu0 0.0
        %1745 = vmatpush1.msra.mxu0 0.0
        %1746 = vmatprep.subr.mxu0 0.0
        %1747 = vmatpush1.msra.mxu0 0.0
        %1748 = vmatprep.subr.mxu0 0.0
        %1749 = vmatpush1.msra.mxu0 0.0
        %1750 = vmatprep.mubr.f32.mxu0 0.0
        %1751 = vmatmul.mubr.f32.gmra.mrb[0].mxu0 %v1684
        %v1752 = vpop.f32.mrb[0].mxu0
        %v1753 = vadd.f32 %v1681, %v1752
        %v1754 = vpop.f32.mrb[0].mxu0
        %1755 = vdwg.mxu0
        %v1756 = vmul.f32 %v1753, 0.35355338
        %v1757 = vld [vmem:[%s23] sm:$0xff]
        %v1758 = vld [vmem:[%s23 + $0x8] sm:$0xff]
        %v1759 = vld [vmem:[%s23 + $0x10] sm:$0xff]
        %v1760 = vld [vmem:[%s23 + $0x18] sm:$0xff]
        %v1761 = vld [vmem:[%s25] sm:$0x1]
        %v1763 = vlaneseq
        %v1764 = vshrl.u32 %v1763, 7
        %v1765 = vsub.s32 0, %v1764
        %v1766 = vrot.slane %v1761, %v1765
        %1768 = vmatprep.subr.mxu0 0.0
        %1769 = vmatpush1.msra.mxu0 %v1757
        %1770 = vmatprep.subr.mxu0 0.0
        %1771 = vmatpush1.msra.mxu0 %v1758
        %1772 = vmatprep.subr.mxu0 0.0
        %1773 = vmatpush1.msra.mxu0 %v1759
        %1774 = vmatprep.subr.mxu0 0.0
        %1775 = vmatpush1.msra.mxu0 %v1760
        %1776 = vmatprep.subr.mxu0 0.0
        %1777 = vmatpush1.msra.mxu0 0.0
        %1778 = vmatprep.subr.mxu0 0.0
        %1779 = vmatpush1.msra.mxu0 0.0
        %1780 = vmatprep.subr.mxu0 0.0
        %1781 = vmatpush1.msra.mxu0 0.0
        %1782 = vmatprep.subr.mxu0 0.0
        %1783 = vmatpush1.msra.mxu0 0.0
        %1784 = vmatprep.subr.mxu0 0.0
        %1785 = vmatpush1.msra.mxu0 0.0
        %1786 = vmatprep.subr.mxu0 0.0
        %1787 = vmatpush1.msra.mxu0 0.0
        %1788 = vmatprep.subr.mxu0 0.0
        %1789 = vmatpush1.msra.mxu0 0.0
        %1790 = vmatprep.subr.mxu0 0.0
        %1791 = vmatpush1.msra.mxu0 0.0
        %1792 = vmatprep.subr.mxu0 0.0
        %1793 = vmatpush1.msra.mxu0 0.0
        %1794 = vmatprep.subr.mxu0 0.0
        %1795 = vmatpush1.msra.mxu0 0.0
        %1796 = vmatprep.subr.mxu0 0.0
        %1797 = vmatpush1.msra.mxu0 0.0
        %1798 = vmatprep.subr.mxu0 0.0
        %1799 = vmatpush1.msra.mxu0 0.0
        %1800 = vmatprep.subr.mxu0 0.0
        %1801 = vmatpush1.msra.mxu0 0.0
        %1802 = vmatprep.subr.mxu0 0.0
        %1803 = vmatpush1.msra.mxu0 0.0
        %1804 = vmatprep.subr.mxu0 0.0
        %1805 = vmatpush1.msra.mxu0 0.0
        %1806 = vmatprep.subr.mxu0 0.0
        %1807 = vmatpush1.msra.mxu0 0.0
        %1808 = vmatprep.subr.mxu0 0.0
        %1809 = vmatpush1.msra.mxu0 0.0
        %1810 = vmatprep.subr.mxu0 0.0
        %1811 = vmatpush1.msra.mxu0 0.0
        %1812 = vmatprep.subr.mxu0 0.0
        %1813 = vmatpush1.msra.mxu0 0.0
        %1814 = vmatprep.subr.mxu0 0.0
        %1815 = vmatpush1.msra.mxu0 0.0
        %1816 = vmatprep.subr.mxu0 0.0
        %1817 = vmatpush1.msra.mxu0 0.0
        %1818 = vmatprep.subr.mxu0 0.0
        %1819 = vmatpush1.msra.mxu0 0.0
        %1820 = vmatprep.subr.mxu0 0.0
        %1821 = vmatpush1.msra.mxu0 0.0
        %1822 = vmatprep.subr.mxu0 0.0
        %1823 = vmatpush1.msra.mxu0 0.0
        %1824 = vmatprep.subr.mxu0 0.0
        %1825 = vmatpush1.msra.mxu0 0.0
        %1826 = vmatprep.subr.mxu0 0.0
        %1827 = vmatpush1.msra.mxu0 0.0
        %1828 = vmatprep.subr.mxu0 0.0
        %1829 = vmatpush1.msra.mxu0 0.0
        %1830 = vmatprep.subr.mxu0 0.0
        %1831 = vmatpush1.msra.mxu0 0.0
        %1832 = vmatprep.mubr.f32.mxu0 0.0
        %1833 = vmatmul.mubr.f32.gmra.mrb[0].mxu0 %v1684
        %v1834 = vpop.f32.mrb[0].mxu0
        %v1835 = vadd.f32 %v1766, %v1834
        %v1836 = vpop.f32.mrb[0].mxu0
        %1837 = vdwg.mxu0
        %v1838 = vld [vmem:[%s27] sm:$0xff]
        %v1839 = vld [vmem:[%s27 + $0x8] sm:$0xff]
        %v1840 = vld [vmem:[%s27 + $0x10] sm:$0xff]
        %v1841 = vld [vmem:[%s27 + $0x18] sm:$0xff]
        %v1842 = vld [vmem:[%s29] sm:$0x1]
        %v1844 = vlaneseq
        %v1845 = vshrl.u32 %v1844, 7
        %v1846 = vsub.s32 0, %v1845
        %v1847 = vrot.slane %v1842, %v1846
        %1849 = vmatprep.subr.mxu0 0.0
        %1850 = vmatpush1.msra.mxu0 %v1838
        %1851 = vmatprep.subr.mxu0 0.0
        %1852 = vmatpush1.msra.mxu0 %v1839
        %1853 = vmatprep.subr.mxu0 0.0
        %1854 = vmatpush1.msra.mxu0 %v1840
        %1855 = vmatprep.subr.mxu0 0.0
        %1856 = vmatpush1.msra.mxu0 %v1841
        %1857 = vmatprep.subr.mxu0 0.0
        %1858 = vmatpush1.msra.mxu0 0.0
        %1859 = vmatprep.subr.mxu0 0.0
        %1860 = vmatpush1.msra.mxu0 0.0
        %1861 = vmatprep.subr.mxu0 0.0
        %1862 = vmatpush1.msra.mxu0 0.0
        %1863 = vmatprep.subr.mxu0 0.0
        %1864 = vmatpush1.msra.mxu0 0.0
        %1865 = vmatprep.subr.mxu0 0.0
        %1866 = vmatpush1.msra.mxu0 0.0
        %1867 = vmatprep.subr.mxu0 0.0
        %1868 = vmatpush1.msra.mxu0 0.0
        %1869 = vmatprep.subr.mxu0 0.0
        %1870 = vmatpush1.msra.mxu0 0.0
        %1871 = vmatprep.subr.mxu0 0.0
        %1872 = vmatpush1.msra.mxu0 0.0
        %1873 = vmatprep.subr.mxu0 0.0
        %1874 = vmatpush1.msra.mxu0 0.0
        %1875 = vmatprep.subr.mxu0 0.0
        %1876 = vmatpush1.msra.mxu0 0.0
        %1877 = vmatprep.subr.mxu0 0.0
        %1878 = vmatpush1.msra.mxu0 0.0
        %1879 = vmatprep.subr.mxu0 0.0
        %1880 = vmatpush1.msra.mxu0 0.0
        %1881 = vmatprep.subr.mxu0 0.0
        %1882 = vmatpush1.msra.mxu0 0.0
        %1883 = vmatprep.subr.mxu0 0.0
        %1884 = vmatpush1.msra.mxu0 0.0
        %1885 = vmatprep.subr.mxu0 0.0
        %1886 = vmatpush1.msra.mxu0 0.0
        %1887 = vmatprep.subr.mxu0 0.0
        %1888 = vmatpush1.msra.mxu0 0.0
        %1889 = vmatprep.subr.mxu0 0.0
        %1890 = vmatpush1.msra.mxu0 0.0
        %1891 = vmatprep.subr.mxu0 0.0
        %1892 = vmatpush1.msra.mxu0 0.0
        %1893 = vmatprep.subr.mxu0 0.0
        %1894 = vmatpush1.msra.mxu0 0.0
        %1895 = vmatprep.subr.mxu0 0.0
        %1896 = vmatpush1.msra.mxu0 0.0
        %1897 = vmatprep.subr.mxu0 0.0
        %1898 = vmatpush1.msra.mxu0 0.0
        %1899 = vmatprep.subr.mxu0 0.0
        %1900 = vmatpush1.msra.mxu0 0.0
        %1901 = vmatprep.subr.mxu0 0.0
        %1902 = vmatpush1.msra.mxu0 0.0
        %1903 = vmatprep.subr.mxu0 0.0
        %1904 = vmatpush1.msra.mxu0 0.0
        %1905 = vmatprep.subr.mxu0 0.0
        %1906 = vmatpush1.msra.mxu0 0.0
        %1907 = vmatprep.subr.mxu0 0.0
        %1908 = vmatpush1.msra.mxu0 0.0
        %1909 = vmatprep.subr.mxu0 0.0
        %1910 = vmatpush1.msra.mxu0 0.0
        %1911 = vmatprep.subr.mxu0 0.0
        %1912 = vmatpush1.msra.mxu0 0.0
        %1913 = vmatprep.mubr.f32.mxu0 0.0
        %1914 = vmatmul.mubr.f32.gmra.mrb[0].mxu0 %v1684
        %v1915 = vpop.f32.mrb[0].mxu0
        %v1916 = vadd.f32 %v1847, %v1915
        %v1917 = vpop.f32.mrb[0].mxu0
        %1918 = vdwg.mxu0
        %vm1919 = vcmask 64512
        %v1921 = vsel %vm1919, %v1756, 0
        %v1924 = vsel %vm1919, %v1835, 0
        %1926 = vmatprep.subr.mxu0 0.0
        %1927 = vmatpush1.xpose.msra.mxu0 %v1924
        %1928 = vmatprep.subr.mxu0 0.0
        %1929 = vmatpush1.xpose.msra.mxu0 0.0
        %1930 = vmatprep.subr.mxu0 0.0
        %1931 = vmatpush1.xpose.msra.mxu0 0.0
        %1932 = vmatprep.subr.mxu0 0.0
        %1933 = vmatpush1.xpose.msra.mxu0 0.0
        %1934 = vmatprep.subr.mxu0 0.0
        %1935 = vmatpush1.xpose.msra.mxu0 0.0
        %1936 = vmatprep.subr.mxu0 0.0
        %1937 = vmatpush1.xpose.msra.mxu0 0.0
        %1938 = vmatprep.subr.mxu0 0.0
        %1939 = vmatpush1.xpose.msra.mxu0 0.0
        %1940 = vmatprep.subr.mxu0 0.0
        %1941 = vmatpush1.xpose.msra.mxu0 0.0
        %1942 = vmatprep.subr.mxu0 0.0
        %1943 = vmatpush1.xpose.msra.mxu0 0.0
        %1944 = vmatprep.subr.mxu0 0.0
        %1945 = vmatpush1.xpose.msra.mxu0 0.0
        %1946 = vmatprep.subr.mxu0 0.0
        %1947 = vmatpush1.xpose.msra.mxu0 0.0
        %1948 = vmatprep.subr.mxu0 0.0
        %1949 = vmatpush1.xpose.msra.mxu0 0.0
        %1950 = vmatprep.subr.mxu0 0.0
        %1951 = vmatpush1.xpose.msra.mxu0 0.0
        %1952 = vmatprep.subr.mxu0 0.0
        %1953 = vmatpush1.xpose.msra.mxu0 0.0
        %1954 = vmatprep.subr.mxu0 0.0
        %1955 = vmatpush1.xpose.msra.mxu0 0.0
        %1956 = vmatprep.subr.mxu0 0.0
        %1957 = vmatpush1.xpose.msra.mxu0 0.0
        %1958 = vmatprep.subr.mxu0 0.0
        %1959 = vmatpush1.xpose.msra.mxu0 0.0
        %1960 = vmatprep.subr.mxu0 0.0
        %1961 = vmatpush1.xpose.msra.mxu0 0.0
        %1962 = vmatprep.subr.mxu0 0.0
        %1963 = vmatpush1.xpose.msra.mxu0 0.0
        %1964 = vmatprep.subr.mxu0 0.0
        %1965 = vmatpush1.xpose.msra.mxu0 0.0
        %1966 = vmatprep.subr.mxu0 0.0
        %1967 = vmatpush1.xpose.msra.mxu0 0.0
        %1968 = vmatprep.subr.mxu0 0.0
        %1969 = vmatpush1.xpose.msra.mxu0 0.0
        %1970 = vmatprep.subr.mxu0 0.0
        %1971 = vmatpush1.xpose.msra.mxu0 0.0
        %1972 = vmatprep.subr.mxu0 0.0
        %1973 = vmatpush1.xpose.msra.mxu0 0.0
        %1974 = vmatprep.subr.mxu0 0.0
        %1975 = vmatpush1.xpose.msra.mxu0 0.0
        %1976 = vmatprep.subr.mxu0 0.0
        %1977 = vmatpush1.xpose.msra.mxu0 0.0
        %1978 = vmatprep.subr.mxu0 0.0
        %1979 = vmatpush1.xpose.msra.mxu0 0.0
        %1980 = vmatprep.subr.mxu0 0.0
        %1981 = vmatpush1.xpose.msra.mxu0 0.0
        %1982 = vmatprep.subr.mxu0 0.0
        %1983 = vmatpush1.xpose.msra.mxu0 0.0
        %1984 = vmatprep.subr.mxu0 0.0
        %1985 = vmatpush1.xpose.msra.mxu0 0.0
        %1986 = vmatprep.subr.mxu0 0.0
        %1987 = vmatpush1.xpose.msra.mxu0 0.0
        %1988 = vmatprep.subr.mxu0 0.0
        %1989 = vmatpush1.xpose.msra.mxu0 0.0
        %1990 = vmatprep.mubr.f32.mxu0 0.0
        %1991 = vmatmul.mubr.f32.gmra.mrb[0].mxu0 %v1921
        %v1992 = vpop.f32.mrb[0].mxu0
        %v1993 = vadd.f32 0.0, %v1992
        %v1994 = vpop.f32.mrb[0].mxu0
        %1995 = vdwg.mxu0
        %vm1996 = vcmask 18432
        %v1997 = vsel %vm1996, %v1993, -inf
        %1998 = vmax.xlane.f32.xlu0 %v1997
        %v1999 = vpop.xlane.xlu0 %1998
        %v2000 = vsub.f32 %v1993, %v1999
        %v2001 = vmul.f32 %v2000, 1.442695
        %v2002 = vpow.pop %v2001
        %v2003 = vsel %vm1996, %v2002, 0.0
        %2004 = vadd.xlane.f32.xlu0 %v2003
        %v2005 = vpop.xlane.xlu0 %2004
        %v2006 = vrcp.pop %v2005
        %v2007 = vmul.f32 %v2002, %v2006
        %s2008 = scalar_lea.vmem %s19, 32
        %v2009 = vld [vmem:[%s2008] sm:$0xff]
        %v2010 = vld [vmem:[%s2008 + $0x8] sm:$0xff]
        %v2011 = vld [vmem:[%s2008 + $0x10] sm:$0xff]
        %v2012 = vld [vmem:[%s2008 + $0x18] sm:$0xff]
        %s2013 = scalar_lea.vmem %s21, 1
        %v2014 = vld [vmem:[%s2013] sm:$0x1]
        %v2016 = vlaneseq
        %v2017 = vshrl.u32 %v2016, 7
        %v2018 = vsub.s32 0, %v2017
        %v2019 = vrot.slane %v2014, %v2018
        %2021 = vmatprep.subr.mxu0 0.0
        %2022 = vmatpush1.msra.mxu0 %v2009
        %2023 = vmatprep.subr.mxu0 0.0
        %2024 = vmatpush1.msra.mxu0 %v2010
        %2025 = vmatprep.subr.mxu0 0.0
        %2026 = vmatpush1.msra.mxu0 %v2011
        %2027 = vmatprep.subr.mxu0 0.0
        %2028 = vmatpush1.msra.mxu0 %v2012
        %2029 = vmatprep.subr.mxu0 0.0
        %2030 = vmatpush1.msra.mxu0 0.0
        %2031 = vmatprep.subr.mxu0 0.0
        %2032 = vmatpush1.msra.mxu0 0.0
        %2033 = vmatprep.subr.mxu0 0.0
        %2034 = vmatpush1.msra.mxu0 0.0
        %2035 = vmatprep.subr.mxu0 0.0
        %2036 = vmatpush1.msra.mxu0 0.0
        %2037 = vmatprep.subr.mxu0 0.0
        %2038 = vmatpush1.msra.mxu0 0.0
        %2039 = vmatprep.subr.mxu0 0.0
        %2040 = vmatpush1.msra.mxu0 0.0
        %2041 = vmatprep.subr.mxu0 0.0
        %2042 = vmatpush1.msra.mxu0 0.0
        %2043 = vmatprep.subr.mxu0 0.0
        %2044 = vmatpush1.msra.mxu0 0.0
        %2045 = vmatprep.subr.mxu0 0.0
        %2046 = vmatpush1.msra.mxu0 0.0
        %2047 = vmatprep.subr.mxu0 0.0
        %2048 = vmatpush1.msra.mxu0 0.0
        %2049 = vmatprep.subr.mxu0 0.0
        %2050 = vmatpush1.msra.mxu0 0.0
        %2051 = vmatprep.subr.mxu0 0.0
        %2052 = vmatpush1.msra.mxu0 0.0
        %2053 = vmatprep.subr.mxu0 0.0
        %2054 = vmatpush1.msra.mxu0 0.0
        %2055 = vmatprep.subr.mxu0 0.0
        %2056 = vmatpush1.msra.mxu0 0.0
        %2057 = vmatprep.subr.mxu0 0.0
        %2058 = vmatpush1.msra.mxu0 0.0
        %2059 = vmatprep.subr.mxu0 0.0
        %2060 = vmatpush1.msra.mxu0 0.0
        %2061 = vmatprep.subr.mxu0 0.0
        %2062 = vmatpush1.msra.mxu0 0.0
        %2063 = vmatprep.subr.mxu0 0.0
        %2064 = vmatpush1.msra.mxu0 0.0
        %2065 = vmatprep.subr.mxu0 0.0
        %2066 = vmatpush1.msra.mxu0 0.0
        %2067 = vmatprep.subr.mxu0 0.0
        %2068 = vmatpush1.msra.mxu0 0.0
        %2069 = vmatprep.subr.mxu0 0.0
        %2070 = vmatpush1.msra.mxu0 0.0
        %2071 = vmatprep.subr.mxu0 0.0
        %2072 = vmatpush1.msra.mxu0 0.0
        %2073 = vmatprep.subr.mxu0 0.0
        %2074 = vmatpush1.msra.mxu0 0.0
        %2075 = vmatprep.subr.mxu0 0.0
        %2076 = vmatpush1.msra.mxu0 0.0
        %2077 = vmatprep.subr.mxu0 0.0
        %2078 = vmatpush1.msra.mxu0 0.0
        %2079 = vmatprep.subr.mxu0 0.0
        %2080 = vmatpush1.msra.mxu0 0.0
        %2081 = vmatprep.subr.mxu0 0.0
        %2082 = vmatpush1.msra.mxu0 0.0
        %2083 = vmatprep.subr.mxu0 0.0
        %2084 = vmatpush1.msra.mxu0 0.0
        %2085 = vmatprep.mubr.f32.mxu0 0.0
        %2086 = vmatmul.mubr.f32.gmra.mrb[0].mxu0 %v1684
        %v2087 = vpop.f32.mrb[0].mxu0
        %v2088 = vadd.f32 %v2019, %v2087
        %v2089 = vpop.f32.mrb[0].mxu0
        %2090 = vdwg.mxu0
        %v2091 = vmul.f32 %v2088, 0.35355338
        %s2092 = scalar_lea.vmem %s23, 32
        %v2093 = vld [vmem:[%s2092] sm:$0xff]
        %v2094 = vld [vmem:[%s2092 + $0x8] sm:$0xff]
        %v2095 = vld [vmem:[%s2092 + $0x10] sm:$0xff]
        %v2096 = vld [vmem:[%s2092 + $0x18] sm:$0xff]
        %s2097 = scalar_lea.vmem %s25, 1
        %v2098 = vld [vmem:[%s2097] sm:$0x1]
        %v2100 = vlaneseq
        %v2101 = vshrl.u32 %v2100, 7
        %v2102 = vsub.s32 0, %v2101
        %v2103 = vrot.slane %v2098, %v2102
        %2105 = vmatprep.subr.mxu0 0.0
        %2106 = vmatpush1.msra.mxu0 %v2093
        %2107 = vmatprep.subr.mxu0 0.0
        %2108 = vmatpush1.msra.mxu0 %v2094
        %2109 = vmatprep.subr.mxu0 0.0
        %2110 = vmatpush1.msra.mxu0 %v2095
        %2111 = vmatprep.subr.mxu0 0.0
        %2112 = vmatpush1.msra.mxu0 %v2096
        %2113 = vmatprep.subr.mxu0 0.0
        %2114 = vmatpush1.msra.mxu0 0.0
        %2115 = vmatprep.subr.mxu0 0.0
        %2116 = vmatpush1.msra.mxu0 0.0
        %2117 = vmatprep.subr.mxu0 0.0
        %2118 = vmatpush1.msra.mxu0 0.0
        %2119 = vmatprep.subr.mxu0 0.0
        %2120 = vmatpush1.msra.mxu0 0.0
        %2121 = vmatprep.subr.mxu0 0.0
        %2122 = vmatpush1.msra.mxu0 0.0
        %2123 = vmatprep.subr.mxu0 0.0
        %2124 = vmatpush1.msra.mxu0 0.0
        %2125 = vmatprep.subr.mxu0 0.0
        %2126 = vmatpush1.msra.mxu0 0.0
        %2127 = vmatprep.subr.mxu0 0.0
        %2128 = vmatpush1.msra.mxu0 0.0
        %2129 = vmatprep.subr.mxu0 0.0
        %2130 = vmatpush1.msra.mxu0 0.0
        %2131 = vmatprep.subr.mxu0 0.0
        %2132 = vmatpush1.msra.mxu0 0.0
        %2133 = vmatprep.subr.mxu0 0.0
        %2134 = vmatpush1.msra.mxu0 0.0
        %2135 = vmatprep.subr.mxu0 0.0
        %2136 = vmatpush1.msra.mxu0 0.0
        %2137 = vmatprep.subr.mxu0 0.0
        %2138 = vmatpush1.msra.mxu0 0.0
        %2139 = vmatprep.subr.mxu0 0.0
        %2140 = vmatpush1.msra.mxu0 0.0
        %2141 = vmatprep.subr.mxu0 0.0
        %2142 = vmatpush1.msra.mxu0 0.0
        %2143 = vmatprep.subr.mxu0 0.0
        %2144 = vmatpush1.msra.mxu0 0.0
        %2145 = vmatprep.subr.mxu0 0.0
        %2146 = vmatpush1.msra.mxu0 0.0
        %2147 = vmatprep.subr.mxu0 0.0
        %2148 = vmatpush1.msra.mxu0 0.0
        %2149 = vmatprep.subr.mxu0 0.0
        %2150 = vmatpush1.msra.mxu0 0.0
        %2151 = vmatprep.subr.mxu0 0.0
        %2152 = vmatpush1.msra.mxu0 0.0
        %2153 = vmatprep.subr.mxu0 0.0
        %2154 = vmatpush1.msra.mxu0 0.0
        %2155 = vmatprep.subr.mxu0 0.0
        %2156 = vmatpush1.msra.mxu0 0.0
        %2157 = vmatprep.subr.mxu0 0.0
        %2158 = vmatpush1.msra.mxu0 0.0
        %2159 = vmatprep.subr.mxu0 0.0
        %2160 = vmatpush1.msra.mxu0 0.0
        %2161 = vmatprep.subr.mxu0 0.0
        %2162 = vmatpush1.msra.mxu0 0.0
        %2163 = vmatprep.subr.mxu0 0.0
        %2164 = vmatpush1.msra.mxu0 0.0
        %2165 = vmatprep.subr.mxu0 0.0
        %2166 = vmatpush1.msra.mxu0 0.0
        %2167 = vmatprep.subr.mxu0 0.0
        %2168 = vmatpush1.msra.mxu0 0.0
        %2169 = vmatprep.mubr.f32.mxu0 0.0
        %2170 = vmatmul.mubr.f32.gmra.mrb[0].mxu0 %v1684
        %v2171 = vpop.f32.mrb[0].mxu0
        %v2172 = vadd.f32 %v2103, %v2171
        %v2173 = vpop.f32.mrb[0].mxu0
        %2174 = vdwg.mxu0
        %s2175 = scalar_lea.vmem %s27, 32
        %v2176 = vld [vmem:[%s2175] sm:$0xff]
        %v2177 = vld [vmem:[%s2175 + $0x8] sm:$0xff]
        %v2178 = vld [vmem:[%s2175 + $0x10] sm:$0xff]
        %v2179 = vld [vmem:[%s2175 + $0x18] sm:$0xff]
        %s2180 = scalar_lea.vmem %s29, 1
        %v2181 = vld [vmem:[%s2180] sm:$0x1]
        %v2183 = vlaneseq
        %v2184 = vshrl.u32 %v2183, 7
        %v2185 = vsub.s32 0, %v2184
        %v2186 = vrot.slane %v2181, %v2185
        %2188 = vmatprep.subr.mxu0 0.0
        %2189 = vmatpush1.msra.mxu0 %v2176
        %2190 = vmatprep.subr.mxu0 0.0
        %2191 = vmatpush1.msra.mxu0 %v2177
        %2192 = vmatprep.subr.mxu0 0.0
        %2193 = vmatpush1.msra.mxu0 %v2178
        %2194 = vmatprep.subr.mxu0 0.0
        %2195 = vmatpush1.msra.mxu0 %v2179
        %2196 = vmatprep.subr.mxu0 0.0
        %2197 = vmatpush1.msra.mxu0 0.0
        %2198 = vmatprep.subr.mxu0 0.0
        %2199 = vmatpush1.msra.mxu0 0.0
        %2200 = vmatprep.subr.mxu0 0.0
        %2201 = vmatpush1.msra.mxu0 0.0
        %2202 = vmatprep.subr.mxu0 0.0
        %2203 = vmatpush1.msra.mxu0 0.0
        %2204 = vmatprep.subr.mxu0 0.0
        %2205 = vmatpush1.msra.mxu0 0.0
        %2206 = vmatprep.subr.mxu0 0.0
        %2207 = vmatpush1.msra.mxu0 0.0
        %2208 = vmatprep.subr.mxu0 0.0
        %2209 = vmatpush1.msra.mxu0 0.0
        %2210 = vmatprep.subr.mxu0 0.0
        %2211 = vmatpush1.msra.mxu0 0.0
        %2212 = vmatprep.subr.mxu0 0.0
        %2213 = vmatpush1.msra.mxu0 0.0
        %2214 = vmatprep.subr.mxu0 0.0
        %2215 = vmatpush1.msra.mxu0 0.0
        %2216 = vmatprep.subr.mxu0 0.0
        %2217 = vmatpush1.msra.mxu0 0.0
        %2218 = vmatprep.subr.mxu0 0.0
        %2219 = vmatpush1.msra.mxu0 0.0
        %2220 = vmatprep.subr.mxu0 0.0
        %2221 = vmatpush1.msra.mxu0 0.0
        %2222 = vmatprep.subr.mxu0 0.0
        %2223 = vmatpush1.msra.mxu0 0.0
        %2224 = vmatprep.subr.mxu0 0.0
        %2225 = vmatpush1.msra.mxu0 0.0
        %2226 = vmatprep.subr.mxu0 0.0
        %2227 = vmatpush1.msra.mxu0 0.0
        %2228 = vmatprep.subr.mxu0 0.0
        %2229 = vmatpush1.msra.mxu0 0.0
        %2230 = vmatprep.subr.mxu0 0.0
        %2231 = vmatpush1.msra.mxu0 0.0
        %2232 = vmatprep.subr.mxu0 0.0
        %2233 = vmatpush1.msra.mxu0 0.0
        %2234 = vmatprep.subr.mxu0 0.0
        %2235 = vmatpush1.msra.mxu0 0.0
        %2236 = vmatprep.subr.mxu0 0.0
        %2237 = vmatpush1.msra.mxu0 0.0
        %2238 = vmatprep.subr.mxu0 0.0
        %2239 = vmatpush1.msra.mxu0 0.0
        %2240 = vmatprep.subr.mxu0 0.0
        %2241 = vmatpush1.msra.mxu0 0.0
        %2242 = vmatprep.subr.mxu0 0.0
        %2243 = vmatpush1.msra.mxu0 0.0
        %2244 = vmatprep.subr.mxu0 0.0
        %2245 = vmatpush1.msra.mxu0 0.0
        %2246 = vmatprep.subr.mxu0 0.0
        %2247 = vmatpush1.msra.mxu0 0.0
        %2248 = vmatprep.subr.mxu0 0.0
        %2249 = vmatpush1.msra.mxu0 0.0
        %2250 = vmatprep.subr.mxu0 0.0
        %2251 = vmatpush1.msra.mxu0 0.0
        %2252 = vmatprep.mubr.f32.mxu0 0.0
        %2253 = vmatmul.mubr.f32.gmra.mrb[0].mxu0 %v1684
        %v2254 = vpop.f32.mrb[0].mxu0
        %v2255 = vadd.f32 %v2186, %v2254
        %v2256 = vpop.f32.mrb[0].mxu0
        %2257 = vdwg.mxu0
        %v2259 = vsel %vm1919, %v2091, 0
        %v2262 = vsel %vm1919, %v2172, 0
        %2264 = vmatprep.subr.mxu0 0.0
        %2265 = vmatpush1.xpose.msra.mxu0 %v2262
        %2266 = vmatprep.subr.mxu0 0.0
        %2267 = vmatpush1.xpose.msra.mxu0 0.0
        %2268 = vmatprep.subr.mxu0 0.0
        %2269 = vmatpush1.xpose.msra.mxu0 0.0
        %2270 = vmatprep.subr.mxu0 0.0
        %2271 = vmatpush1.xpose.msra.mxu0 0.0
        %2272 = vmatprep.subr.mxu0 0.0
        %2273 = vmatpush1.xpose.msra.mxu0 0.0
        %2274 = vmatprep.subr.mxu0 0.0
        %2275 = vmatpush1.xpose.msra.mxu0 0.0
        %2276 = vmatprep.subr.mxu0 0.0
        %2277 = vmatpush1.xpose.msra.mxu0 0.0
        %2278 = vmatprep.subr.mxu0 0.0
        %2279 = vmatpush1.xpose.msra.mxu0 0.0
        %2280 = vmatprep.subr.mxu0 0.0
        %2281 = vmatpush1.xpose.msra.mxu0 0.0
        %2282 = vmatprep.subr.mxu0 0.0
        %2283 = vmatpush1.xpose.msra.mxu0 0.0
        %2284 = vmatprep.subr.mxu0 0.0
        %2285 = vmatpush1.xpose.msra.mxu0 0.0
        %2286 = vmatprep.subr.mxu0 0.0
        %2287 = vmatpush1.xpose.msra.mxu0 0.0
        %2288 = vmatprep.subr.mxu0 0.0
        %2289 = vmatpush1.xpose.msra.mxu0 0.0
        %2290 = vmatprep.subr.mxu0 0.0
        %2291 = vmatpush1.xpose.msra.mxu0 0.0
        %2292 = vmatprep.subr.mxu0 0.0
        %2293 = vmatpush1.xpose.msra.mxu0 0.0
        %2294 = vmatprep.subr.mxu0 0.0
        %2295 = vmatpush1.xpose.msra.mxu0 0.0
        %2296 = vmatprep.subr.mxu0 0.0
        %2297 = vmatpush1.xpose.msra.mxu0 0.0
        %2298 = vmatprep.subr.mxu0 0.0
        %2299 = vmatpush1.xpose.msra.mxu0 0.0
        %2300 = vmatprep.subr.mxu0 0.0
        %2301 = vmatpush1.xpose.msra.mxu0 0.0
        %2302 = vmatprep.subr.mxu0 0.0
        %2303 = vmatpush1.xpose.msra.mxu0 0.0
        %2304 = vmatprep.subr.mxu0 0.0
        %2305 = vmatpush1.xpose.msra.mxu0 0.0
        %2306 = vmatprep.subr.mxu0 0.0
        %2307 = vmatpush1.xpose.msra.mxu0 0.0
        %2308 = vmatprep.subr.mxu0 0.0
        %2309 = vmatpush1.xpose.msra.mxu0 0.0
        %2310 = vmatprep.subr.mxu0 0.0
        %2311 = vmatpush1.xpose.msra.mxu0 0.0
        %2312 = vmatprep.subr.mxu0 0.0
        %2313 = vmatpush1.xpose.msra.mxu0 0.0
        %2314 = vmatprep.subr.mxu0 0.0
        %2315 = vmatpush1.xpose.msra.mxu0 0.0
        %2316 = vmatprep.subr.mxu0 0.0
        %2317 = vmatpush1.xpose.msra.mxu0 0.0
        %2318 = vmatprep.subr.mxu0 0.0
        %2319 = vmatpush1.xpose.msra.mxu0 0.0
        %2320 = vmatprep.subr.mxu0 0.0
        %2321 = vmatpush1.xpose.msra.mxu0 0.0
        %2322 = vmatprep.subr.mxu0 0.0
        %2323 = vmatpush1.xpose.msra.mxu0 0.0
        %2324 = vmatprep.subr.mxu0 0.0
        %2325 = vmatpush1.xpose.msra.mxu0 0.0
        %2326 = vmatprep.subr.mxu0 0.0
        %2327 = vmatpush1.xpose.msra.mxu0 0.0
        %2328 = vmatprep.mubr.f32.mxu0 0.0
        %2329 = vmatmul.mubr.f32.gmra.mrb[0].mxu0 %v2259
        %v2330 = vpop.f32.mrb[0].mxu0
        %v2331 = vadd.f32 0.0, %v2330
        %v2332 = vpop.f32.mrb[0].mxu0
        %2333 = vdwg.mxu0
        %v2334 = vsel %vm1996, %v2331, -inf
        %2335 = vmax.xlane.f32.xlu0 %v2334
        %v2336 = vpop.xlane.xlu0 %2335
        %v2337 = vsub.f32 %v2331, %v2336
        %v2338 = vmul.f32 %v2337, 1.442695
        %v2339 = vpow.pop %v2338
        %v2340 = vsel %vm1996, %v2339, 0.0
        %2341 = vadd.xlane.f32.xlu0 %v2340
        %v2342 = vpop.xlane.xlu0 %2341
        %v2343 = vrcp.pop %v2342
        %v2344 = vmul.f32 %v2339, %v2343
        %vm2345 = vcmask 23552
        %v2347 = vsel %vm2345, %v2344, 0
        %vm2349 = vcmask 1042432
        %v2351 = vsel %vm2349, %v2255, 0
        %2353 = vmatprep.subr.mxu0 0.0
        %2354 = vmatpush1.msra.mxu0 %v2351
        %2355 = vmatprep.subr.mxu0 0.0
        %2356 = vmatpush1.msra.mxu0 0.0
        %2357 = vmatprep.subr.mxu0 0.0
        %2358 = vmatpush1.msra.mxu0 0.0
        %2359 = vmatprep.subr.mxu0 0.0
        %2360 = vmatpush1.msra.mxu0 0.0
        %2361 = vmatprep.subr.mxu0 0.0
        %2362 = vmatpush1.msra.mxu0 0.0
        %2363 = vmatprep.subr.mxu0 0.0
        %2364 = vmatpush1.msra.mxu0 0.0
        %2365 = vmatprep.subr.mxu0 0.0
        %2366 = vmatpush1.msra.mxu0 0.0
        %2367 = vmatprep.subr.mxu0 0.0
        %2368 = vmatpush1.msra.mxu0 0.0
        %2369 = vmatprep.subr.mxu0 0.0
        %2370 = vmatpush1.msra.mxu0 0.0
        %2371 = vmatprep.subr.mxu0 0.0
        %2372 = vmatpush1.msra.mxu0 0.0
        %2373 = vmatprep.subr.mxu0 0.0
        %2374 = vmatpush1.msra.mxu0 0.0
        %2375 = vmatprep.subr.mxu0 0.0
        %2376 = vmatpush1.msra.mxu0 0.0
        %2377 = vmatprep.subr.mxu0 0.0
        %2378 = vmatpush1.msra.mxu0 0.0
        %2379 = vmatprep.subr.mxu0 0.0
        %2380 = vmatpush1.msra.mxu0 0.0
        %2381 = vmatprep.subr.mxu0 0.0
        %2382 = vmatpush1.msra.mxu0 0.0
        %2383 = vmatprep.subr.mxu0 0.0
        %2384 = vmatpush1.msra.mxu0 0.0
        %2385 = vmatprep.subr.mxu0 0.0
        %2386 = vmatpush1.msra.mxu0 0.0
        %2387 = vmatprep.subr.mxu0 0.0
        %2388 = vmatpush1.msra.mxu0 0.0
        %2389 = vmatprep.subr.mxu0 0.0
        %2390 = vmatpush1.msra.mxu0 0.0
        %2391 = vmatprep.subr.mxu0 0.0
        %2392 = vmatpush1.msra.mxu0 0.0
        %2393 = vmatprep.subr.mxu0 0.0
        %2394 = vmatpush1.msra.mxu0 0.0
        %2395 = vmatprep.subr.mxu0 0.0
        %2396 = vmatpush1.msra.mxu0 0.0
        %2397 = vmatprep.subr.mxu0 0.0
        %2398 = vmatpush1.msra.mxu0 0.0
        %2399 = vmatprep.subr.mxu0 0.0
        %2400 = vmatpush1.msra.mxu0 0.0
        %2401 = vmatprep.subr.mxu0 0.0
        %2402 = vmatpush1.msra.mxu0 0.0
        %2403 = vmatprep.subr.mxu0 0.0
        %2404 = vmatpush1.msra.mxu0 0.0
        %2405 = vmatprep.subr.mxu0 0.0
        %2406 = vmatpush1.msra.mxu0 0.0
        %2407 = vmatprep.subr.mxu0 0.0
        %2408 = vmatpush1.msra.mxu0 0.0
        %2409 = vmatprep.subr.mxu0 0.0
        %2410 = vmatpush1.msra.mxu0 0.0
        %2411 = vmatprep.subr.mxu0 0.0
        %2412 = vmatpush1.msra.mxu0 0.0
        %2413 = vmatprep.subr.mxu0 0.0
        %2414 = vmatpush1.msra.mxu0 0.0
        %2415 = vmatprep.subr.mxu0 0.0
        %2416 = vmatpush1.msra.mxu0 0.0
        %2417 = vmatprep.mubr.f32.mxu0 0.0
        %2418 = vmatmul.mubr.f32.gmra.mrb[0].mxu0 %v2347
        %v2419 = vpop.f32.mrb[0].mxu0
        %v2420 = vadd.f32 0.0, %v2419
        %v2421 = vpop.f32.mrb[0].mxu0
        %2422 = vdwg.mxu0
        %v2424 = vsel %vm2345, %v2007, 0
        %v2427 = vsel %vm2349, %v1916, 0
        %2429 = vmatprep.subr.mxu0 0.0
        %2430 = vmatpush1.msra.mxu0 %v2427
        %2431 = vmatprep.subr.mxu0 0.0
        %2432 = vmatpush1.msra.mxu0 0.0
        %2433 = vmatprep.subr.mxu0 0.0
        %2434 = vmatpush1.msra.mxu0 0.0
        %2435 = vmatprep.subr.mxu0 0.0
        %2436 = vmatpush1.msra.mxu0 0.0
        %2437 = vmatprep.subr.mxu0 0.0
        %2438 = vmatpush1.msra.mxu0 0.0
        %2439 = vmatprep.subr.mxu0 0.0
        %2440 = vmatpush1.msra.mxu0 0.0
        %2441 = vmatprep.subr.mxu0 0.0
        %2442 = vmatpush1.msra.mxu0 0.0
        %2443 = vmatprep.subr.mxu0 0.0
        %2444 = vmatpush1.msra.mxu0 0.0
        %2445 = vmatprep.subr.mxu0 0.0
        %2446 = vmatpush1.msra.mxu0 0.0
        %2447 = vmatprep.subr.mxu0 0.0
        %2448 = vmatpush1.msra.mxu0 0.0
        %2449 = vmatprep.subr.mxu0 0.0
        %2450 = vmatpush1.msra.mxu0 0.0
        %2451 = vmatprep.subr.mxu0 0.0
        %2452 = vmatpush1.msra.mxu0 0.0
        %2453 = vmatprep.subr.mxu0 0.0
        %2454 = vmatpush1.msra.mxu0 0.0
        %2455 = vmatprep.subr.mxu0 0.0
        %2456 = vmatpush1.msra.mxu0 0.0
        %2457 = vmatprep.subr.mxu0 0.0
        %2458 = vmatpush1.msra.mxu0 0.0
        %2459 = vmatprep.subr.mxu0 0.0
        %2460 = vmatpush1.msra.mxu0 0.0
        %2461 = vmatprep.subr.mxu0 0.0
        %2462 = vmatpush1.msra.mxu0 0.0
        %2463 = vmatprep.subr.mxu0 0.0
        %2464 = vmatpush1.msra.mxu0 0.0
        %2465 = vmatprep.subr.mxu0 0.0
        %2466 = vmatpush1.msra.mxu0 0.0
        %2467 = vmatprep.subr.mxu0 0.0
        %2468 = vmatpush1.msra.mxu0 0.0
        %2469 = vmatprep.subr.mxu0 0.0
        %2470 = vmatpush1.msra.mxu0 0.0
        %2471 = vmatprep.subr.mxu0 0.0
        %2472 = vmatpush1.msra.mxu0 0.0
        %2473 = vmatprep.subr.mxu0 0.0
        %2474 = vmatpush1.msra.mxu0 0.0
        %2475 = vmatprep.subr.mxu0 0.0
        %2476 = vmatpush1.msra.mxu0 0.0
        %2477 = vmatprep.subr.mxu0 0.0
        %2478 = vmatpush1.msra.mxu0 0.0
        %2479 = vmatprep.subr.mxu0 0.0
        %2480 = vmatpush1.msra.mxu0 0.0
        %2481 = vmatprep.subr.mxu0 0.0
        %2482 = vmatpush1.msra.mxu0 0.0
        %2483 = vmatprep.subr.mxu0 0.0
        %2484 = vmatpush1.msra.mxu0 0.0
        %2485 = vmatprep.subr.mxu0 0.0
        %2486 = vmatpush1.msra.mxu0 0.0
        %2487 = vmatprep.subr.mxu0 0.0
        %2488 = vmatpush1.msra.mxu0 0.0
        %2489 = vmatprep.subr.mxu0 0.0
        %2490 = vmatpush1.msra.mxu0 0.0
        %2491 = vmatprep.subr.mxu0 0.0
        %2492 = vmatpush1.msra.mxu0 0.0
        %2493 = vmatprep.mubr.f32.mxu0 0.0
        %2494 = vmatmul.mubr.f32.gmra.mrb[0].mxu0 %v2424
        %v2495 = vpop.f32.mrb[0].mxu0
        %v2496 = vadd.f32 %v2420, %v2495
        %v2497 = vpop.f32.mrb[0].mxu0
        %2498 = vdwg.mxu0
        %s2499 = scalar_lea.vmem %s19, 64
        %v2500 = vld [vmem:[%s2499] sm:$0xff]
        %v2501 = vld [vmem:[%s2499 + $0x8] sm:$0xff]
        %v2502 = vld [vmem:[%s2499 + $0x10] sm:$0xff]
        %v2503 = vld [vmem:[%s2499 + $0x18] sm:$0xff]
        %s2504 = scalar_lea.vmem %s21, 2
        %v2505 = vld [vmem:[%s2504] sm:$0x1]
        %v2507 = vlaneseq
        %v2508 = vshrl.u32 %v2507, 7
        %v2509 = vsub.s32 0, %v2508
        %v2510 = vrot.slane %v2505, %v2509
        %2512 = vmatprep.subr.mxu0 0.0
        %2513 = vmatpush1.msra.mxu0 %v2500
        %2514 = vmatprep.subr.mxu0 0.0
        %2515 = vmatpush1.msra.mxu0 %v2501
        %2516 = vmatprep.subr.mxu0 0.0
        %2517 = vmatpush1.msra.mxu0 %v2502
        %2518 = vmatprep.subr.mxu0 0.0
        %2519 = vmatpush1.msra.mxu0 %v2503
        %2520 = vmatprep.subr.mxu0 0.0
        %2521 = vmatpush1.msra.mxu0 0.0
        %2522 = vmatprep.subr.mxu0 0.0
        %2523 = vmatpush1.msra.mxu0 0.0
        %2524 = vmatprep.subr.mxu0 0.0
        %2525 = vmatpush1.msra.mxu0 0.0
        %2526 = vmatprep.subr.mxu0 0.0
        %2527 = vmatpush1.msra.mxu0 0.0
        %2528 = vmatprep.subr.mxu0 0.0
        %2529 = vmatpush1.msra.mxu0 0.0
        %2530 = vmatprep.subr.mxu0 0.0
        %2531 = vmatpush1.msra.mxu0 0.0
        %2532 = vmatprep.subr.mxu0 0.0
        %2533 = vmatpush1.msra.mxu0 0.0
        %2534 = vmatprep.subr.mxu0 0.0
        %2535 = vmatpush1.msra.mxu0 0.0
        %2536 = vmatprep.subr.mxu0 0.0
        %2537 = vmatpush1.msra.mxu0 0.0
        %2538 = vmatprep.subr.mxu0 0.0
        %2539 = vmatpush1.msra.mxu0 0.0
        %2540 = vmatprep.subr.mxu0 0.0
        %2541 = vmatpush1.msra.mxu0 0.0
        %2542 = vmatprep.subr.mxu0 0.0
        %2543 = vmatpush1.msra.mxu0 0.0
        %2544 = vmatprep.subr.mxu0 0.0
        %2545 = vmatpush1.msra.mxu0 0.0
        %2546 = vmatprep.subr.mxu0 0.0
        %2547 = vmatpush1.msra.mxu0 0.0
        %2548 = vmatprep.subr.mxu0 0.0
        %2549 = vmatpush1.msra.mxu0 0.0
        %2550 = vmatprep.subr.mxu0 0.0
        %2551 = vmatpush1.msra.mxu0 0.0
        %2552 = vmatprep.subr.mxu0 0.0
        %2553 = vmatpush1.msra.mxu0 0.0
        %2554 = vmatprep.subr.mxu0 0.0
        %2555 = vmatpush1.msra.mxu0 0.0
        %2556 = vmatprep.subr.mxu0 0.0
        %2557 = vmatpush1.msra.mxu0 0.0
        %2558 = vmatprep.subr.mxu0 0.0
        %2559 = vmatpush1.msra.mxu0 0.0
        %2560 = vmatprep.subr.mxu0 0.0
        %2561 = vmatpush1.msra.mxu0 0.0
        %2562 = vmatprep.subr.mxu0 0.0
        %2563 = vmatpush1.msra.mxu0 0.0
        %2564 = vmatprep.subr.mxu0 0.0
        %2565 = vmatpush1.msra.mxu0 0.0
        %2566 = vmatprep.subr.mxu0 0.0
        %2567 = vmatpush1.msra.mxu0 0.0
        %2568 = vmatprep.subr.mxu0 0.0
        %2569 = vmatpush1.msra.mxu0 0.0
        %2570 = vmatprep.subr.mxu0 0.0
        %2571 = vmatpush1.msra.mxu0 0.0
        %2572 = vmatprep.subr.mxu0 0.0
        %2573 = vmatpush1.msra.mxu0 0.0
        %2574 = vmatprep.subr.mxu0 0.0
        %2575 = vmatpush1.msra.mxu0 0.0
        %2576 = vmatprep.mubr.f32.mxu0 0.0
        %2577 = vmatmul.mubr.f32.gmra.mrb[0].mxu0 %v1684
        %v2578 = vpop.f32.mrb[0].mxu0
        %v2579 = vadd.f32 %v2510, %v2578
        %v2580 = vpop.f32.mrb[0].mxu0
        %2581 = vdwg.mxu0
        %v2582 = vmul.f32 %v2579, 0.35355338
        %s2583 = scalar_lea.vmem %s23, 64
        %v2584 = vld [vmem:[%s2583] sm:$0xff]
        %v2585 = vld [vmem:[%s2583 + $0x8] sm:$0xff]
        %v2586 = vld [vmem:[%s2583 + $0x10] sm:$0xff]
        %v2587 = vld [vmem:[%s2583 + $0x18] sm:$0xff]
        %s2588 = scalar_lea.vmem %s25, 2
        %v2589 = vld [vmem:[%s2588] sm:$0x1]
        %v2591 = vlaneseq
        %v2592 = vshrl.u32 %v2591, 7
        %v2593 = vsub.s32 0, %v2592
        %v2594 = vrot.slane %v2589, %v2593
        %2596 = vmatprep.subr.mxu0 0.0
        %2597 = vmatpush1.msra.mxu0 %v2584
        %2598 = vmatprep.subr.mxu0 0.0
        %2599 = vmatpush1.msra.mxu0 %v2585
        %2600 = vmatprep.subr.mxu0 0.0
        %2601 = vmatpush1.msra.mxu0 %v2586
        %2602 = vmatprep.subr.mxu0 0.0
        %2603 = vmatpush1.msra.mxu0 %v2587
        %2604 = vmatprep.subr.mxu0 0.0
        %2605 = vmatpush1.msra.mxu0 0.0
        %2606 = vmatprep.subr.mxu0 0.0
        %2607 = vmatpush1.msra.mxu0 0.0
        %2608 = vmatprep.subr.mxu0 0.0
        %2609 = vmatpush1.msra.mxu0 0.0
        %2610 = vmatprep.subr.mxu0 0.0
        %2611 = vmatpush1.msra.mxu0 0.0
        %2612 = vmatprep.subr.mxu0 0.0
        %2613 = vmatpush1.msra.mxu0 0.0
        %2614 = vmatprep.subr.mxu0 0.0
        %2615 = vmatpush1.msra.mxu0 0.0
        %2616 = vmatprep.subr.mxu0 0.0
        %2617 = vmatpush1.msra.mxu0 0.0
        %2618 = vmatprep.subr.mxu0 0.0
        %2619 = vmatpush1.msra.mxu0 0.0
        %2620 = vmatprep.subr.mxu0 0.0
        %2621 = vmatpush1.msra.mxu0 0.0
        %2622 = vmatprep.subr.mxu0 0.0
        %2623 = vmatpush1.msra.mxu0 0.0
        %2624 = vmatprep.subr.mxu0 0.0
        %2625 = vmatpush1.msra.mxu0 0.0
        %2626 = vmatprep.subr.mxu0 0.0
        %2627 = vmatpush1.msra.mxu0 0.0
        %2628 = vmatprep.subr.mxu0 0.0
        %2629 = vmatpush1.msra.mxu0 0.0
        %2630 = vmatprep.subr.mxu0 0.0
        %2631 = vmatpush1.msra.mxu0 0.0
        %2632 = vmatprep.subr.mxu0 0.0
        %2633 = vmatpush1.msra.mxu0 0.0
        %2634 = vmatprep.subr.mxu0 0.0
        %2635 = vmatpush1.msra.mxu0 0.0
        %2636 = vmatprep.subr.mxu0 0.0
        %2637 = vmatpush1.msra.mxu0 0.0
        %2638 = vmatprep.subr.mxu0 0.0
        %2639 = vmatpush1.msra.mxu0 0.0
        %2640 = vmatprep.subr.mxu0 0.0
        %2641 = vmatpush1.msra.mxu0 0.0
        %2642 = vmatprep.subr.mxu0 0.0
        %2643 = vmatpush1.msra.mxu0 0.0
        %2644 = vmatprep.subr.mxu0 0.0
        %2645 = vmatpush1.msra.mxu0 0.0
        %2646 = vmatprep.subr.mxu0 0.0
        %2647 = vmatpush1.msra.mxu0 0.0
        %2648 = vmatprep.subr.mxu0 0.0
        %2649 = vmatpush1.msra.mxu0 0.0
        %2650 = vmatprep.subr.mxu0 0.0
        %2651 = vmatpush1.msra.mxu0 0.0
        %2652 = vmatprep.subr.mxu0 0.0
        %2653 = vmatpush1.msra.mxu0 0.0
        %2654 = vmatprep.subr.mxu0 0.0
        %2655 = vmatpush1.msra.mxu0 0.0
        %2656 = vmatprep.subr.mxu0 0.0
        %2657 = vmatpush1.msra.mxu0 0.0
        %2658 = vmatprep.subr.mxu0 0.0
        %2659 = vmatpush1.msra.mxu0 0.0
        %2660 = vmatprep.mubr.f32.mxu0 0.0
        %2661 = vmatmul.mubr.f32.gmra.mrb[0].mxu0 %v1684
        %v2662 = vpop.f32.mrb[0].mxu0
        %v2663 = vadd.f32 %v2594, %v2662
        %v2664 = vpop.f32.mrb[0].mxu0
        %2665 = vdwg.mxu0
        %s2666 = scalar_lea.vmem %s27, 64
        %v2667 = vld [vmem:[%s2666] sm:$0xff]
        %v2668 = vld [vmem:[%s2666 + $0x8] sm:$0xff]
        %v2669 = vld [vmem:[%s2666 + $0x10] sm:$0xff]
        %v2670 = vld [vmem:[%s2666 + $0x18] sm:$0xff]
        %s2671 = scalar_lea.vmem %s29, 2
        %v2672 = vld [vmem:[%s2671] sm:$0x1]
        %v2674 = vlaneseq
        %v2675 = vshrl.u32 %v2674, 7
        %v2676 = vsub.s32 0, %v2675
        %v2677 = vrot.slane %v2672, %v2676
        %2679 = vmatprep.subr.mxu0 0.0
        %2680 = vmatpush1.msra.mxu0 %v2667
        %2681 = vmatprep.subr.mxu0 0.0
        %2682 = vmatpush1.msra.mxu0 %v2668
        %2683 = vmatprep.subr.mxu0 0.0
        %2684 = vmatpush1.msra.mxu0 %v2669
        %2685 = vmatprep.subr.mxu0 0.0
        %2686 = vmatpush1.msra.mxu0 %v2670
        %2687 = vmatprep.subr.mxu0 0.0
        %2688 = vmatpush1.msra.mxu0 0.0
        %2689 = vmatprep.subr.mxu0 0.0
        %2690 = vmatpush1.msra.mxu0 0.0
        %2691 = vmatprep.subr.mxu0 0.0
        %2692 = vmatpush1.msra.mxu0 0.0
        %2693 = vmatprep.subr.mxu0 0.0
        %2694 = vmatpush1.msra.mxu0 0.0
        %2695 = vmatprep.subr.mxu0 0.0
        %2696 = vmatpush1.msra.mxu0 0.0
        %2697 = vmatprep.subr.mxu0 0.0
        %2698 = vmatpush1.msra.mxu0 0.0
        %2699 = vmatprep.subr.mxu0 0.0
        %2700 = vmatpush1.msra.mxu0 0.0
        %2701 = vmatprep.subr.mxu0 0.0
        %2702 = vmatpush1.msra.mxu0 0.0
        %2703 = vmatprep.subr.mxu0 0.0
        %2704 = vmatpush1.msra.mxu0 0.0
        %2705 = vmatprep.subr.mxu0 0.0
        %2706 = vmatpush1.msra.mxu0 0.0
        %2707 = vmatprep.subr.mxu0 0.0
        %2708 = vmatpush1.msra.mxu0 0.0
        %2709 = vmatprep.subr.mxu0 0.0
        %2710 = vmatpush1.msra.mxu0 0.0
        %2711 = vmatprep.subr.mxu0 0.0
        %2712 = vmatpush1.msra.mxu0 0.0
        %2713 = vmatprep.subr.mxu0 0.0
        %2714 = vmatpush1.msra.mxu0 0.0
        %2715 = vmatprep.subr.mxu0 0.0
        %2716 = vmatpush1.msra.mxu0 0.0
        %2717 = vmatprep.subr.mxu0 0.0
        %2718 = vmatpush1.msra.mxu0 0.0
        %2719 = vmatprep.subr.mxu0 0.0
        %2720 = vmatpush1.msra.mxu0 0.0
        %2721 = vmatprep.subr.mxu0 0.0
        %2722 = vmatpush1.msra.mxu0 0.0
        %2723 = vmatprep.subr.mxu0 0.0
        %2724 = vmatpush1.msra.mxu0 0.0
        %2725 = vmatprep.subr.mxu0 0.0
        %2726 = vmatpush1.msra.mxu0 0.0
        %2727 = vmatprep.subr.mxu0 0.0
        %2728 = vmatpush1.msra.mxu0 0.0
        %2729 = vmatprep.subr.mxu0 0.0
        %2730 = vmatpush1.msra.mxu0 0.0
        %2731 = vmatprep.subr.mxu0 0.0
        %2732 = vmatpush1.msra.mxu0 0.0
        %2733 = vmatprep.subr.mxu0 0.0
        %2734 = vmatpush1.msra.mxu0 0.0
        %2735 = vmatprep.subr.mxu0 0.0
        %2736 = vmatpush1.msra.mxu0 0.0
        %2737 = vmatprep.subr.mxu0 0.0
        %2738 = vmatpush1.msra.mxu0 0.0
        %2739 = vmatprep.subr.mxu0 0.0
        %2740 = vmatpush1.msra.mxu0 0.0
        %2741 = vmatprep.subr.mxu0 0.0
        %2742 = vmatpush1.msra.mxu0 0.0
        %2743 = vmatprep.mubr.f32.mxu0 0.0
        %2744 = vmatmul.mubr.f32.gmra.mrb[0].mxu0 %v1684
        %v2745 = vpop.f32.mrb[0].mxu0
        %v2746 = vadd.f32 %v2677, %v2745
        %v2747 = vpop.f32.mrb[0].mxu0
        %2748 = vdwg.mxu0
        %v2750 = vsel %vm1919, %v2582, 0
        %v2753 = vsel %vm1919, %v2663, 0
        %2755 = vmatprep.subr.mxu0 0.0
        %2756 = vmatpush1.xpose.msra.mxu0 %v2753
        %2757 = vmatprep.subr.mxu0 0.0
        %2758 = vmatpush1.xpose.msra.mxu0 0.0
        %2759 = vmatprep.subr.mxu0 0.0
        %2760 = vmatpush1.xpose.msra.mxu0 0.0
        %2761 = vmatprep.subr.mxu0 0.0
        %2762 = vmatpush1.xpose.msra.mxu0 0.0
        %2763 = vmatprep.subr.mxu0 0.0
        %2764 = vmatpush1.xpose.msra.mxu0 0.0
        %2765 = vmatprep.subr.mxu0 0.0
        %2766 = vmatpush1.xpose.msra.mxu0 0.0
        %2767 = vmatprep.subr.mxu0 0.0
        %2768 = vmatpush1.xpose.msra.mxu0 0.0
        %2769 = vmatprep.subr.mxu0 0.0
        %2770 = vmatpush1.xpose.msra.mxu0 0.0
        %2771 = vmatprep.subr.mxu0 0.0
        %2772 = vmatpush1.xpose.msra.mxu0 0.0
        %2773 = vmatprep.subr.mxu0 0.0
        %2774 = vmatpush1.xpose.msra.mxu0 0.0
        %2775 = vmatprep.subr.mxu0 0.0
        %2776 = vmatpush1.xpose.msra.mxu0 0.0
        %2777 = vmatprep.subr.mxu0 0.0
        %2778 = vmatpush1.xpose.msra.mxu0 0.0
        %2779 = vmatprep.subr.mxu0 0.0
        %2780 = vmatpush1.xpose.msra.mxu0 0.0
        %2781 = vmatprep.subr.mxu0 0.0
        %2782 = vmatpush1.xpose.msra.mxu0 0.0
        %2783 = vmatprep.subr.mxu0 0.0
        %2784 = vmatpush1.xpose.msra.mxu0 0.0
        %2785 = vmatprep.subr.mxu0 0.0
        %2786 = vmatpush1.xpose.msra.mxu0 0.0
        %2787 = vmatprep.subr.mxu0 0.0
        %2788 = vmatpush1.xpose.msra.mxu0 0.0
        %2789 = vmatprep.subr.mxu0 0.0
        %2790 = vmatpush1.xpose.msra.mxu0 0.0
        %2791 = vmatprep.subr.mxu0 0.0
        %2792 = vmatpush1.xpose.msra.mxu0 0.0
        %2793 = vmatprep.subr.mxu0 0.0
        %2794 = vmatpush1.xpose.msra.mxu0 0.0
        %2795 = vmatprep.subr.mxu0 0.0
        %2796 = vmatpush1.xpose.msra.mxu0 0.0
        %2797 = vmatprep.subr.mxu0 0.0
        %2798 = vmatpush1.xpose.msra.mxu0 0.0
        %2799 = vmatprep.subr.mxu0 0.0
        %2800 = vmatpush1.xpose.msra.mxu0 0.0
        %2801 = vmatprep.subr.mxu0 0.0
        %2802 = vmatpush1.xpose.msra.mxu0 0.0
        %2803 = vmatprep.subr.mxu0 0.0
        %2804 = vmatpush1.xpose.msra.mxu0 0.0
        %2805 = vmatprep.subr.mxu0 0.0
        %2806 = vmatpush1.xpose.msra.mxu0 0.0
        %2807 = vmatprep.subr.mxu0 0.0
        %2808 = vmatpush1.xpose.msra.mxu0 0.0
        %2809 = vmatprep.subr.mxu0 0.0
        %2810 = vmatpush1.xpose.msra.mxu0 0.0
        %2811 = vmatprep.subr.mxu0 0.0
        %2812 = vmatpush1.xpose.msra.mxu0 0.0
        %2813 = vmatprep.subr.mxu0 0.0
        %2814 = vmatpush1.xpose.msra.mxu0 0.0
        %2815 = vmatprep.subr.mxu0 0.0
        %2816 = vmatpush1.xpose.msra.mxu0 0.0
        %2817 = vmatprep.subr.mxu0 0.0
        %2818 = vmatpush1.xpose.msra.mxu0 0.0
        %2819 = vmatprep.mubr.f32.mxu0 0.0
        %2820 = vmatmul.mubr.f32.gmra.mrb[0].mxu0 %v2750
        %v2821 = vpop.f32.mrb[0].mxu0
        %v2822 = vadd.f32 0.0, %v2821
        %v2823 = vpop.f32.mrb[0].mxu0
        %2824 = vdwg.mxu0
        %v2825 = vsel %vm1996, %v2822, -inf
        %2826 = vmax.xlane.f32.xlu0 %v2825
        %v2827 = vpop.xlane.xlu0 %2826
        %v2828 = vsub.f32 %v2822, %v2827
        %v2829 = vmul.f32 %v2828, 1.442695
        %v2830 = vpow.pop %v2829
        %v2831 = vsel %vm1996, %v2830, 0.0
        %2832 = vadd.xlane.f32.xlu0 %v2831
        %v2833 = vpop.xlane.xlu0 %2832
        %v2834 = vrcp.pop %v2833
        %v2835 = vmul.f32 %v2830, %v2834
        %v2837 = vsel %vm2345, %v2835, 0
        %v2840 = vsel %vm2349, %v2746, 0
        %2842 = vmatprep.subr.mxu0 0.0
        %2843 = vmatpush1.msra.mxu0 %v2840
        %2844 = vmatprep.subr.mxu0 0.0
        %2845 = vmatpush1.msra.mxu0 0.0
        %2846 = vmatprep.subr.mxu0 0.0
        %2847 = vmatpush1.msra.mxu0 0.0
        %2848 = vmatprep.subr.mxu0 0.0
        %2849 = vmatpush1.msra.mxu0 0.0
        %2850 = vmatprep.subr.mxu0 0.0
        %2851 = vmatpush1.msra.mxu0 0.0
        %2852 = vmatprep.subr.mxu0 0.0
        %2853 = vmatpush1.msra.mxu0 0.0
        %2854 = vmatprep.subr.mxu0 0.0
        %2855 = vmatpush1.msra.mxu0 0.0
        %2856 = vmatprep.subr.mxu0 0.0
        %2857 = vmatpush1.msra.mxu0 0.0
        %2858 = vmatprep.subr.mxu0 0.0
        %2859 = vmatpush1.msra.mxu0 0.0
        %2860 = vmatprep.subr.mxu0 0.0
        %2861 = vmatpush1.msra.mxu0 0.0
        %2862 = vmatprep.subr.mxu0 0.0
        %2863 = vmatpush1.msra.mxu0 0.0
        %2864 = vmatprep.subr.mxu0 0.0
        %2865 = vmatpush1.msra.mxu0 0.0
        %2866 = vmatprep.subr.mxu0 0.0
        %2867 = vmatpush1.msra.mxu0 0.0
        %2868 = vmatprep.subr.mxu0 0.0
        %2869 = vmatpush1.msra.mxu0 0.0
        %2870 = vmatprep.subr.mxu0 0.0
        %2871 = vmatpush1.msra.mxu0 0.0
        %2872 = vmatprep.subr.mxu0 0.0
        %2873 = vmatpush1.msra.mxu0 0.0
        %2874 = vmatprep.subr.mxu0 0.0
        %2875 = vmatpush1.msra.mxu0 0.0
        %2876 = vmatprep.subr.mxu0 0.0
        %2877 = vmatpush1.msra.mxu0 0.0
        %2878 = vmatprep.subr.mxu0 0.0
        %2879 = vmatpush1.msra.mxu0 0.0
        %2880 = vmatprep.subr.mxu0 0.0
        %2881 = vmatpush1.msra.mxu0 0.0
        %2882 = vmatprep.subr.mxu0 0.0
        %2883 = vmatpush1.msra.mxu0 0.0
        %2884 = vmatprep.subr.mxu0 0.0
        %2885 = vmatpush1.msra.mxu0 0.0
        %2886 = vmatprep.subr.mxu0 0.0
        %2887 = vmatpush1.msra.mxu0 0.0
        %2888 = vmatprep.subr.mxu0 0.0
        %2889 = vmatpush1.msra.mxu0 0.0
        %2890 = vmatprep.subr.mxu0 0.0
        %2891 = vmatpush1.msra.mxu0 0.0
        %2892 = vmatprep.subr.mxu0 0.0
        %2893 = vmatpush1.msra.mxu0 0.0
        %2894 = vmatprep.subr.mxu0 0.0
        %2895 = vmatpush1.msra.mxu0 0.0
        %2896 = vmatprep.subr.mxu0 0.0
        %2897 = vmatpush1.msra.mxu0 0.0
        %2898 = vmatprep.subr.mxu0 0.0
        %2899 = vmatpush1.msra.mxu0 0.0
        %2900 = vmatprep.subr.mxu0 0.0
        %2901 = vmatpush1.msra.mxu0 0.0
        %2902 = vmatprep.subr.mxu0 0.0
        %2903 = vmatpush1.msra.mxu0 0.0
        %2904 = vmatprep.subr.mxu0 0.0
        %2905 = vmatpush1.msra.mxu0 0.0
        %2906 = vmatprep.mubr.f32.mxu0 0.0
        %2907 = vmatmul.mubr.f32.gmra.mrb[0].mxu0 %v2837
        %v2908 = vpop.f32.mrb[0].mxu0
        %v2909 = vadd.f32 0.0, %v2908
        %v2910 = vpop.f32.mrb[0].mxu0
        %2911 = vdwg.mxu0
        %v2912 = vadd.f32 %v2496, %v2909
        %s2913 = scalar_lea.vmem %s19, 96
        %v2914 = vld [vmem:[%s2913] sm:$0xff]
        %v2915 = vld [vmem:[%s2913 + $0x8] sm:$0xff]
        %v2916 = vld [vmem:[%s2913 + $0x10] sm:$0xff]
        %v2917 = vld [vmem:[%s2913 + $0x18] sm:$0xff]
        %s2918 = scalar_lea.vmem %s21, 3
        %v2919 = vld [vmem:[%s2918] sm:$0x1]
        %v2921 = vlaneseq
        %v2922 = vshrl.u32 %v2921, 7
        %v2923 = vsub.s32 0, %v2922
        %v2924 = vrot.slane %v2919, %v2923
        %2926 = vmatprep.subr.mxu0 0.0
        %2927 = vmatpush1.msra.mxu0 %v2914
        %2928 = vmatprep.subr.mxu0 0.0
        %2929 = vmatpush1.msra.mxu0 %v2915
        %2930 = vmatprep.subr.mxu0 0.0
        %2931 = vmatpush1.msra.mxu0 %v2916
        %2932 = vmatprep.subr.mxu0 0.0
        %2933 = vmatpush1.msra.mxu0 %v2917
        %2934 = vmatprep.subr.mxu0 0.0
        %2935 = vmatpush1.msra.mxu0 0.0
        %2936 = vmatprep.subr.mxu0 0.0
        %2937 = vmatpush1.msra.mxu0 0.0
        %2938 = vmatprep.subr.mxu0 0.0
        %2939 = vmatpush1.msra.mxu0 0.0
        %2940 = vmatprep.subr.mxu0 0.0
        %2941 = vmatpush1.msra.mxu0 0.0
        %2942 = vmatprep.subr.mxu0 0.0
        %2943 = vmatpush1.msra.mxu0 0.0
        %2944 = vmatprep.subr.mxu0 0.0
        %2945 = vmatpush1.msra.mxu0 0.0
        %2946 = vmatprep.subr.mxu0 0.0
        %2947 = vmatpush1.msra.mxu0 0.0
        %2948 = vmatprep.subr.mxu0 0.0
        %2949 = vmatpush1.msra.mxu0 0.0
        %2950 = vmatprep.subr.mxu0 0.0
        %2951 = vmatpush1.msra.mxu0 0.0
        %2952 = vmatprep.subr.mxu0 0.0
        %2953 = vmatpush1.msra.mxu0 0.0
        %2954 = vmatprep.subr.mxu0 0.0
        %2955 = vmatpush1.msra.mxu0 0.0
        %2956 = vmatprep.subr.mxu0 0.0
        %2957 = vmatpush1.msra.mxu0 0.0
        %2958 = vmatprep.subr.mxu0 0.0
        %2959 = vmatpush1.msra.mxu0 0.0
        %2960 = vmatprep.subr.mxu0 0.0
        %2961 = vmatpush1.msra.mxu0 0.0
        %2962 = vmatprep.subr.mxu0 0.0
        %2963 = vmatpush1.msra.mxu0 0.0
        %2964 = vmatprep.subr.mxu0 0.0
        %2965 = vmatpush1.msra.mxu0 0.0
        %2966 = vmatprep.subr.mxu0 0.0
        %2967 = vmatpush1.msra.mxu0 0.0
        %2968 = vmatprep.subr.mxu0 0.0
        %2969 = vmatpush1.msra.mxu0 0.0
        %2970 = vmatprep.subr.mxu0 0.0
        %2971 = vmatpush1.msra.mxu0 0.0
        %2972 = vmatprep.subr.mxu0 0.0
        %2973 = vmatpush1.msra.mxu0 0.0
        %2974 = vmatprep.subr.mxu0 0.0
        %2975 = vmatpush1.msra.mxu0 0.0
        %2976 = vmatprep.subr.mxu0 0.0
        %2977 = vmatpush1.msra.mxu0 0.0
        %2978 = vmatprep.subr.mxu0 0.0
        %2979 = vmatpush1.msra.mxu0 0.0
        %2980 = vmatprep.subr.mxu0 0.0
        %2981 = vmatpush1.msra.mxu0 0.0
        %2982 = vmatprep.subr.mxu0 0.0
        %2983 = vmatpush1.msra.mxu0 0.0
        %2984 = vmatprep.subr.mxu0 0.0
        %2985 = vmatpush1.msra.mxu0 0.0
        %2986 = vmatprep.subr.mxu0 0.0
        %2987 = vmatpush1.msra.mxu0 0.0
        %2988 = vmatprep.subr.mxu0 0.0
        %2989 = vmatpush1.msra.mxu0 0.0
        %2990 = vmatprep.mubr.f32.mxu0 0.0
        %2991 = vmatmul.mubr.f32.gmra.mrb[0].mxu0 %v1684
        %v2992 = vpop.f32.mrb[0].mxu0
        %v2993 = vadd.f32 %v2924, %v2992
        %v2994 = vpop.f32.mrb[0].mxu0
        %2995 = vdwg.mxu0
        %v2996 = vmul.f32 %v2993, 0.35355338
        %s2997 = scalar_lea.vmem %s23, 96
        %v2998 = vld [vmem:[%s2997] sm:$0xff]
        %v2999 = vld [vmem:[%s2997 + $0x8] sm:$0xff]
        %v3000 = vld [vmem:[%s2997 + $0x10] sm:$0xff]
        %v3001 = vld [vmem:[%s2997 + $0x18] sm:$0xff]
        %s3002 = scalar_lea.vmem %s25, 3
        %v3003 = vld [vmem:[%s3002] sm:$0x1]
        %v3005 = vlaneseq
        %v3006 = vshrl.u32 %v3005, 7
        %v3007 = vsub.s32 0, %v3006
        %v3008 = vrot.slane %v3003, %v3007
        %3010 = vmatprep.subr.mxu0 0.0
        %3011 = vmatpush1.msra.mxu0 %v2998
        %3012 = vmatprep.subr.mxu0 0.0
        %3013 = vmatpush1.msra.mxu0 %v2999
        %3014 = vmatprep.subr.mxu0 0.0
        %3015 = vmatpush1.msra.mxu0 %v3000
        %3016 = vmatprep.subr.mxu0 0.0
        %3017 = vmatpush1.msra.mxu0 %v3001
        %3018 = vmatprep.subr.mxu0 0.0
        %3019 = vmatpush1.msra.mxu0 0.0
        %3020 = vmatprep.subr.mxu0 0.0
        %3021 = vmatpush1.msra.mxu0 0.0
        %3022 = vmatprep.subr.mxu0 0.0
        %3023 = vmatpush1.msra.mxu0 0.0
        %3024 = vmatprep.subr.mxu0 0.0
        %3025 = vmatpush1.msra.mxu0 0.0
        %3026 = vmatprep.subr.mxu0 0.0
        %3027 = vmatpush1.msra.mxu0 0.0
        %3028 = vmatprep.subr.mxu0 0.0
        %3029 = vmatpush1.msra.mxu0 0.0
        %3030 = vmatprep.subr.mxu0 0.0
        %3031 = vmatpush1.msra.mxu0 0.0
        %3032 = vmatprep.subr.mxu0 0.0
        %3033 = vmatpush1.msra.mxu0 0.0
        %3034 = vmatprep.subr.mxu0 0.0
        %3035 = vmatpush1.msra.mxu0 0.0
        %3036 = vmatprep.subr.mxu0 0.0
        %3037 = vmatpush1.msra.mxu0 0.0
        %3038 = vmatprep.subr.mxu0 0.0
        %3039 = vmatpush1.msra.mxu0 0.0
        %3040 = vmatprep.subr.mxu0 0.0
        %3041 = vmatpush1.msra.mxu0 0.0
        %3042 = vmatprep.subr.mxu0 0.0
        %3043 = vmatpush1.msra.mxu0 0.0
        %3044 = vmatprep.subr.mxu0 0.0
        %3045 = vmatpush1.msra.mxu0 0.0
        %3046 = vmatprep.subr.mxu0 0.0
        %3047 = vmatpush1.msra.mxu0 0.0
        %3048 = vmatprep.subr.mxu0 0.0
        %3049 = vmatpush1.msra.mxu0 0.0
        %3050 = vmatprep.subr.mxu0 0.0
        %3051 = vmatpush1.msra.mxu0 0.0
        %3052 = vmatprep.subr.mxu0 0.0
        %3053 = vmatpush1.msra.mxu0 0.0
        %3054 = vmatprep.subr.mxu0 0.0
        %3055 = vmatpush1.msra.mxu0 0.0
        %3056 = vmatprep.subr.mxu0 0.0
        %3057 = vmatpush1.msra.mxu0 0.0
        %3058 = vmatprep.subr.mxu0 0.0
        %3059 = vmatpush1.msra.mxu0 0.0
        %3060 = vmatprep.subr.mxu0 0.0
        %3061 = vmatpush1.msra.mxu0 0.0
        %3062 = vmatprep.subr.mxu0 0.0
        %3063 = vmatpush1.msra.mxu0 0.0
        %3064 = vmatprep.subr.mxu0 0.0
        %3065 = vmatpush1.msra.mxu0 0.0
        %3066 = vmatprep.subr.mxu0 0.0
        %3067 = vmatpush1.msra.mxu0 0.0
        %3068 = vmatprep.subr.mxu0 0.0
        %3069 = vmatpush1.msra.mxu0 0.0
        %3070 = vmatprep.subr.mxu0 0.0
        %3071 = vmatpush1.msra.mxu0 0.0
        %3072 = vmatprep.subr.mxu0 0.0
        %3073 = vmatpush1.msra.mxu0 0.0
        %3074 = vmatprep.mubr.f32.mxu0 0.0
        %3075 = vmatmul.mubr.f32.gmra.mrb[0].mxu0 %v1684
        %v3076 = vpop.f32.mrb[0].mxu0
        %v3077 = vadd.f32 %v3008, %v3076
        %v3078 = vpop.f32.mrb[0].mxu0
        %3079 = vdwg.mxu0
        %s3080 = scalar_lea.vmem %s27, 96
        %v3081 = vld [vmem:[%s3080] sm:$0xff]
        %v3082 = vld [vmem:[%s3080 + $0x8] sm:$0xff]
        %v3083 = vld [vmem:[%s3080 + $0x10] sm:$0xff]
        %v3084 = vld [vmem:[%s3080 + $0x18] sm:$0xff]
        %s3085 = scalar_lea.vmem %s29, 3
        %v3086 = vld [vmem:[%s3085] sm:$0x1]
        %v3088 = vlaneseq
        %v3089 = vshrl.u32 %v3088, 7
        %v3090 = vsub.s32 0, %v3089
        %v3091 = vrot.slane %v3086, %v3090
        %3093 = vmatprep.subr.mxu0 0.0
        %3094 = vmatpush1.msra.mxu0 %v3081
        %3095 = vmatprep.subr.mxu0 0.0
        %3096 = vmatpush1.msra.mxu0 %v3082
        %3097 = vmatprep.subr.mxu0 0.0
        %3098 = vmatpush1.msra.mxu0 %v3083
        %3099 = vmatprep.subr.mxu0 0.0
        %3100 = vmatpush1.msra.mxu0 %v3084
        %3101 = vmatprep.subr.mxu0 0.0
        %3102 = vmatpush1.msra.mxu0 0.0
        %3103 = vmatprep.subr.mxu0 0.0
        %3104 = vmatpush1.msra.mxu0 0.0
        %3105 = vmatprep.subr.mxu0 0.0
        %3106 = vmatpush1.msra.mxu0 0.0
        %3107 = vmatprep.subr.mxu0 0.0
        %3108 = vmatpush1.msra.mxu0 0.0
        %3109 = vmatprep.subr.mxu0 0.0
        %3110 = vmatpush1.msra.mxu0 0.0
        %3111 = vmatprep.subr.mxu0 0.0
        %3112 = vmatpush1.msra.mxu0 0.0
        %3113 = vmatprep.subr.mxu0 0.0
        %3114 = vmatpush1.msra.mxu0 0.0
        %3115 = vmatprep.subr.mxu0 0.0
        %3116 = vmatpush1.msra.mxu0 0.0
        %3117 = vmatprep.subr.mxu0 0.0
        %3118 = vmatpush1.msra.mxu0 0.0
        %3119 = vmatprep.subr.mxu0 0.0
        %3120 = vmatpush1.msra.mxu0 0.0
        %3121 = vmatprep.subr.mxu0 0.0
        %3122 = vmatpush1.msra.mxu0 0.0
        %3123 = vmatprep.subr.mxu0 0.0
        %3124 = vmatpush1.msra.mxu0 0.0
        %3125 = vmatprep.subr.mxu0 0.0
        %3126 = vmatpush1.msra.mxu0 0.0
        %3127 = vmatprep.subr.mxu0 0.0
        %3128 = vmatpush1.msra.mxu0 0.0
        %3129 = vmatprep.subr.mxu0 0.0
        %3130 = vmatpush1.msra.mxu0 0.0
        %3131 = vmatprep.subr.mxu0 0.0
        %3132 = vmatpush1.msra.mxu0 0.0
        %3133 = vmatprep.subr.mxu0 0.0
        %3134 = vmatpush1.msra.mxu0 0.0
        %3135 = vmatprep.subr.mxu0 0.0
        %3136 = vmatpush1.msra.mxu0 0.0
        %3137 = vmatprep.subr.mxu0 0.0
        %3138 = vmatpush1.msra.mxu0 0.0
        %3139 = vmatprep.subr.mxu0 0.0
        %3140 = vmatpush1.msra.mxu0 0.0
        %3141 = vmatprep.subr.mxu0 0.0
        %3142 = vmatpush1.msra.mxu0 0.0
        %3143 = vmatprep.subr.mxu0 0.0
        %3144 = vmatpush1.msra.mxu0 0.0
        %3145 = vmatprep.subr.mxu0 0.0
        %3146 = vmatpush1.msra.mxu0 0.0
        %3147 = vmatprep.subr.mxu0 0.0
        %3148 = vmatpush1.msra.mxu0 0.0
        %3149 = vmatprep.subr.mxu0 0.0
        %3150 = vmatpush1.msra.mxu0 0.0
        %3151 = vmatprep.subr.mxu0 0.0
        %3152 = vmatpush1.msra.mxu0 0.0
        %3153 = vmatprep.subr.mxu0 0.0
        %3154 = vmatpush1.msra.mxu0 0.0
        %3155 = vmatprep.subr.mxu0 0.0
        %3156 = vmatpush1.msra.mxu0 0.0
        %3157 = vmatprep.mubr.f32.mxu0 0.0
        %3158 = vmatmul.mubr.f32.gmra.mrb[0].mxu0 %v1684
        %v3159 = vpop.f32.mrb[0].mxu0
        %v3160 = vadd.f32 %v3091, %v3159
        %v3161 = vpop.f32.mrb[0].mxu0
        %3162 = vdwg.mxu0
        %v3164 = vsel %vm1919, %v2996, 0
        %v3167 = vsel %vm1919, %v3077, 0
        %3169 = vmatprep.subr.mxu0 0.0
        %3170 = vmatpush1.xpose.msra.mxu0 %v3167
        %3171 = vmatprep.subr.mxu0 0.0
        %3172 = vmatpush1.xpose.msra.mxu0 0.0
        %3173 = vmatprep.subr.mxu0 0.0
        %3174 = vmatpush1.xpose.msra.mxu0 0.0
        %3175 = vmatprep.subr.mxu0 0.0
        %3176 = vmatpush1.xpose.msra.mxu0 0.0
        %3177 = vmatprep.subr.mxu0 0.0
        %3178 = vmatpush1.xpose.msra.mxu0 0.0
        %3179 = vmatprep.subr.mxu0 0.0
        %3180 = vmatpush1.xpose.msra.mxu0 0.0
        %3181 = vmatprep.subr.mxu0 0.0
        %3182 = vmatpush1.xpose.msra.mxu0 0.0
        %3183 = vmatprep.subr.mxu0 0.0
        %3184 = vmatpush1.xpose.msra.mxu0 0.0
        %3185 = vmatprep.subr.mxu0 0.0
        %3186 = vmatpush1.xpose.msra.mxu0 0.0
        %3187 = vmatprep.subr.mxu0 0.0
        %3188 = vmatpush1.xpose.msra.mxu0 0.0
        %3189 = vmatprep.subr.mxu0 0.0
        %3190 = vmatpush1.xpose.msra.mxu0 0.0
        %3191 = vmatprep.subr.mxu0 0.0
        %3192 = vmatpush1.xpose.msra.mxu0 0.0
        %3193 = vmatprep.subr.mxu0 0.0
        %3194 = vmatpush1.xpose.msra.mxu0 0.0
        %3195 = vmatprep.subr.mxu0 0.0
        %3196 = vmatpush1.xpose.msra.mxu0 0.0
        %3197 = vmatprep.subr.mxu0 0.0
        %3198 = vmatpush1.xpose.msra.mxu0 0.0
        %3199 = vmatprep.subr.mxu0 0.0
        %3200 = vmatpush1.xpose.msra.mxu0 0.0
        %3201 = vmatprep.subr.mxu0 0.0
        %3202 = vmatpush1.xpose.msra.mxu0 0.0
        %3203 = vmatprep.subr.mxu0 0.0
        %3204 = vmatpush1.xpose.msra.mxu0 0.0
        %3205 = vmatprep.subr.mxu0 0.0
        %3206 = vmatpush1.xpose.msra.mxu0 0.0
        %3207 = vmatprep.subr.mxu0 0.0
        %3208 = vmatpush1.xpose.msra.mxu0 0.0
        %3209 = vmatprep.subr.mxu0 0.0
        %3210 = vmatpush1.xpose.msra.mxu0 0.0
        %3211 = vmatprep.subr.mxu0 0.0
        %3212 = vmatpush1.xpose.msra.mxu0 0.0
        %3213 = vmatprep.subr.mxu0 0.0
        %3214 = vmatpush1.xpose.msra.mxu0 0.0
        %3215 = vmatprep.subr.mxu0 0.0
        %3216 = vmatpush1.xpose.msra.mxu0 0.0
        %3217 = vmatprep.subr.mxu0 0.0
        %3218 = vmatpush1.xpose.msra.mxu0 0.0
        %3219 = vmatprep.subr.mxu0 0.0
        %3220 = vmatpush1.xpose.msra.mxu0 0.0
        %3221 = vmatprep.subr.mxu0 0.0
        %3222 = vmatpush1.xpose.msra.mxu0 0.0
        %3223 = vmatprep.subr.mxu0 0.0
        %3224 = vmatpush1.xpose.msra.mxu0 0.0
        %3225 = vmatprep.subr.mxu0 0.0
        %3226 = vmatpush1.xpose.msra.mxu0 0.0
        %3227 = vmatprep.subr.mxu0 0.0
        %3228 = vmatpush1.xpose.msra.mxu0 0.0
        %3229 = vmatprep.subr.mxu0 0.0
        %3230 = vmatpush1.xpose.msra.mxu0 0.0
        %3231 = vmatprep.subr.mxu0 0.0
        %3232 = vmatpush1.xpose.msra.mxu0 0.0
        %3233 = vmatprep.mubr.f32.mxu0 0.0
        %3234 = vmatmul.mubr.f32.gmra.mrb[0].mxu0 %v3164
        %v3235 = vpop.f32.mrb[0].mxu0
        %v3236 = vadd.f32 0.0, %v3235
        %v3237 = vpop.f32.mrb[0].mxu0
        %3238 = vdwg.mxu0
        %v3239 = vsel %vm1996, %v3236, -inf
        %3240 = vmax.xlane.f32.xlu0 %v3239
        %v3241 = vpop.xlane.xlu0 %3240
        %v3242 = vsub.f32 %v3236, %v3241
        %v3243 = vmul.f32 %v3242, 1.442695
        %v3244 = vpow.pop %v3243
        %v3245 = vsel %vm1996, %v3244, 0.0
        %3246 = vadd.xlane.f32.xlu0 %v3245
        %v3247 = vpop.xlane.xlu0 %3246
        %v3248 = vrcp.pop %v3247
        %v3249 = vmul.f32 %v3244, %v3248
        %v3251 = vsel %vm2345, %v3249, 0
        %v3254 = vsel %vm2349, %v3160, 0
        %3256 = vmatprep.subr.mxu0 0.0
        %3257 = vmatpush1.msra.mxu0 %v3254
        %3258 = vmatprep.subr.mxu0 0.0
        %3259 = vmatpush1.msra.mxu0 0.0
        %3260 = vmatprep.subr.mxu0 0.0
        %3261 = vmatpush1.msra.mxu0 0.0
        %3262 = vmatprep.subr.mxu0 0.0
        %3263 = vmatpush1.msra.mxu0 0.0
        %3264 = vmatprep.subr.mxu0 0.0
        %3265 = vmatpush1.msra.mxu0 0.0
        %3266 = vmatprep.subr.mxu0 0.0
        %3267 = vmatpush1.msra.mxu0 0.0
        %3268 = vmatprep.subr.mxu0 0.0
        %3269 = vmatpush1.msra.mxu0 0.0
        %3270 = vmatprep.subr.mxu0 0.0
        %3271 = vmatpush1.msra.mxu0 0.0
        %3272 = vmatprep.subr.mxu0 0.0
        %3273 = vmatpush1.msra.mxu0 0.0
        %3274 = vmatprep.subr.mxu0 0.0
        %3275 = vmatpush1.msra.mxu0 0.0
        %3276 = vmatprep.subr.mxu0 0.0
        %3277 = vmatpush1.msra.mxu0 0.0
        %3278 = vmatprep.subr.mxu0 0.0
        %3279 = vmatpush1.msra.mxu0 0.0
        %3280 = vmatprep.subr.mxu0 0.0
        %3281 = vmatpush1.msra.mxu0 0.0
        %3282 = vmatprep.subr.mxu0 0.0
        %3283 = vmatpush1.msra.mxu0 0.0
        %3284 = vmatprep.subr.mxu0 0.0
        %3285 = vmatpush1.msra.mxu0 0.0
        %3286 = vmatprep.subr.mxu0 0.0
        %3287 = vmatpush1.msra.mxu0 0.0
        %3288 = vmatprep.subr.mxu0 0.0
        %3289 = vmatpush1.msra.mxu0 0.0
        %3290 = vmatprep.subr.mxu0 0.0
        %3291 = vmatpush1.msra.mxu0 0.0
        %3292 = vmatprep.subr.mxu0 0.0
        %3293 = vmatpush1.msra.mxu0 0.0
        %3294 = vmatprep.subr.mxu0 0.0
        %3295 = vmatpush1.msra.mxu0 0.0
        %3296 = vmatprep.subr.mxu0 0.0
        %3297 = vmatpush1.msra.mxu0 0.0
        %3298 = vmatprep.subr.mxu0 0.0
        %3299 = vmatpush1.msra.mxu0 0.0
        %3300 = vmatprep.subr.mxu0 0.0
        %3301 = vmatpush1.msra.mxu0 0.0
        %3302 = vmatprep.subr.mxu0 0.0
        %3303 = vmatpush1.msra.mxu0 0.0
        %3304 = vmatprep.subr.mxu0 0.0
        %3305 = vmatpush1.msra.mxu0 0.0
        %3306 = vmatprep.subr.mxu0 0.0
        %3307 = vmatpush1.msra.mxu0 0.0
        %3308 = vmatprep.subr.mxu0 0.0
        %3309 = vmatpush1.msra.mxu0 0.0
        %3310 = vmatprep.subr.mxu0 0.0
        %3311 = vmatpush1.msra.mxu0 0.0
        %3312 = vmatprep.subr.mxu0 0.0
        %3313 = vmatpush1.msra.mxu0 0.0
        %3314 = vmatprep.subr.mxu0 0.0
        %3315 = vmatpush1.msra.mxu0 0.0
        %3316 = vmatprep.subr.mxu0 0.0
        %3317 = vmatpush1.msra.mxu0 0.0
        %3318 = vmatprep.subr.mxu0 0.0
        %3319 = vmatpush1.msra.mxu0 0.0
        %3320 = vmatprep.mubr.f32.mxu0 0.0
        %3321 = vmatmul.mubr.f32.gmra.mrb[0].mxu0 %v3251
        %v3322 = vpop.f32.mrb[0].mxu0
        %v3323 = vadd.f32 0.0, %v3322
        %v3324 = vpop.f32.mrb[0].mxu0
        %3325 = vdwg.mxu0
        %v3326 = vadd.f32 %v2912, %v3323
        %v3327 = vld [vmem:[%s31] sm:$0xff]
        %v3328 = vld [vmem:[%s31 + $0x8] sm:$0xff]
        %v3329 = vld [vmem:[%s31 + $0x10] sm:$0xff]
        %v3330 = vld [vmem:[%s31 + $0x18] sm:$0xff]
        %v3332 = vsel %vm1625, %v3326, 0
        %3334 = vmatprep.subr.mxu0 0.0
        %3335 = vmatpush1.msra.mxu0 %v3327
        %3336 = vmatprep.subr.mxu0 0.0
        %3337 = vmatpush1.msra.mxu0 %v3328
        %3338 = vmatprep.subr.mxu0 0.0
        %3339 = vmatpush1.msra.mxu0 %v3329
        %3340 = vmatprep.subr.mxu0 0.0
        %3341 = vmatpush1.msra.mxu0 %v3330
        %3342 = vmatprep.subr.mxu0 0.0
        %3343 = vmatpush1.msra.mxu0 0.0
        %3344 = vmatprep.subr.mxu0 0.0
        %3345 = vmatpush1.msra.mxu0 0.0
        %3346 = vmatprep.subr.mxu0 0.0
        %3347 = vmatpush1.msra.mxu0 0.0
        %3348 = vmatprep.subr.mxu0 0.0
        %3349 = vmatpush1.msra.mxu0 0.0
        %3350 = vmatprep.subr.mxu0 0.0
        %3351 = vmatpush1.msra.mxu0 0.0
        %3352 = vmatprep.subr.mxu0 0.0
        %3353 = vmatpush1.msra.mxu0 0.0
        %3354 = vmatprep.subr.mxu0 0.0
        %3355 = vmatpush1.msra.mxu0 0.0
        %3356 = vmatprep.subr.mxu0 0.0
        %3357 = vmatpush1.msra.mxu0 0.0
        %3358 = vmatprep.subr.mxu0 0.0
        %3359 = vmatpush1.msra.mxu0 0.0
        %3360 = vmatprep.subr.mxu0 0.0
        %3361 = vmatpush1.msra.mxu0 0.0
        %3362 = vmatprep.subr.mxu0 0.0
        %3363 = vmatpush1.msra.mxu0 0.0
        %3364 = vmatprep.subr.mxu0 0.0
        %3365 = vmatpush1.msra.mxu0 0.0
        %3366 = vmatprep.subr.mxu0 0.0
        %3367 = vmatpush1.msra.mxu0 0.0
        %3368 = vmatprep.subr.mxu0 0.0
        %3369 = vmatpush1.msra.mxu0 0.0
        %3370 = vmatprep.subr.mxu0 0.0
        %3371 = vmatpush1.msra.mxu0 0.0
        %3372 = vmatprep.subr.mxu0 0.0
        %3373 = vmatpush1.msra.mxu0 0.0
        %3374 = vmatprep.subr.mxu0 0.0
        %3375 = vmatpush1.msra.mxu0 0.0
        %3376 = vmatprep.subr.mxu0 0.0
        %3377 = vmatpush1.msra.mxu0 0.0
        %3378 = vmatprep.subr.mxu0 0.0
        %3379 = vmatpush1.msra.mxu0 0.0
        %3380 = vmatprep.subr.mxu0 0.0
        %3381 = vmatpush1.msra.mxu0 0.0
        %3382 = vmatprep.subr.mxu0 0.0
        %3383 = vmatpush1.msra.mxu0 0.0
        %3384 = vmatprep.subr.mxu0 0.0
        %3385 = vmatpush1.msra.mxu0 0.0
        %3386 = vmatprep.subr.mxu0 0.0
        %3387 = vmatpush1.msra.mxu0 0.0
        %3388 = vmatprep.subr.mxu0 0.0
        %3389 = vmatpush1.msra.mxu0 0.0
        %3390 = vmatprep.subr.mxu0 0.0
        %3391 = vmatpush1.msra.mxu0 0.0
        %3392 = vmatprep.subr.mxu0 0.0
        %3393 = vmatpush1.msra.mxu0 0.0
        %3394 = vmatprep.subr.mxu0 0.0
        %3395 = vmatpush1.msra.mxu0 0.0
        %3396 = vmatprep.subr.mxu0 0.0
        %3397 = vmatpush1.msra.mxu0 0.0
        %3398 = vmatprep.mubr.f32.mxu0 0.0
        %3399 = vmatmul.mubr.f32.gmra.mrb[0].mxu0 %v3332
        %v3400 = vpop.f32.mrb[0].mxu0
        %v3401 = vadd.f32 0.0, %v3400
        %v3402 = vpop.f32.mrb[0].mxu0
        %3403 = vdwg.mxu0
        %v3404 = vadd.f32 %v1640, %v3401
        %v3405 = vld [vmem:[%s33] sm:$0x1]
        %v3407 = vlaneseq
        %v3408 = vshrl.u32 %v3407, 7
        %v3409 = vsub.s32 0, %v3408
        %v3410 = vrot.slane %v3405, %v3409
        %v3412 = vadd.f32 %v3404, %v3410
        %v3413 = vld [vmem:[%s35] sm:$0x1]
        %v3414 = vld [vmem:[%s37] sm:$0x1]
        %v3415 = vsel %vm1643, %v3412, 0.0
        %3416 = vadd.xlane.f32.xlu0 %v3415
        %v3417 = vpop.xlane.xlu0 %3416
        %v3418 = vmul.f32 %v3417, %v1647
        %v3419 = vsub.f32 %v3412, %v3418
        %v3420 = vmul.f32 %v3419, %v3419
        %v3421 = vsel %vm1643, %v3420, 0.0
        %3422 = vadd.xlane.f32.xlu0 %v3421
        %v3423 = vpop.xlane.xlu0 %3422
        %v3424 = vmul.f32 %v3423, %v1647
        %v3425 = vadd.f32 %v3424, 1e-05
        %v3426 = vrsqrt.pop %v3425
        %v3427 = vmul.f32 %v3419, %v3426
        %v3429 = vlaneseq
        %v3430 = vshrl.u32 %v3429, 7
        %v3431 = vsub.s32 0, %v3430
        %v3432 = vrot.slane %v3413, %v3431
        %v3434 = vmul.f32 %v3427, %v3432
        %v3436 = vlaneseq
        %v3437 = vshrl.u32 %v3436, 7
        %v3438 = vsub.s32 0, %v3437
        %v3439 = vrot.slane %v3414, %v3438
        %v3441 = vadd.f32 %v3434, %v3439
        %v3442 = vld [vmem:[%s39] sm:$0xff]
        %v3443 = vld [vmem:[%s39 + $0x8] sm:$0xff]
        %v3444 = vld [vmem:[%s39 + $0x10] sm:$0xff]
        %v3445 = vld [vmem:[%s39 + $0x18] sm:$0xff]
        %v3446 = vld [vmem:[%s41] sm:$0x1]
        %v3448 = vlaneseq
        %v3449 = vshrl.u32 %v3448, 7
        %v3450 = vsub.s32 0, %v3449
        %v3451 = vrot.slane %v3446, %v3450
        %v3454 = vsel %vm1625, %v3441, 0
        %3456 = vmatprep.subr.mxu0 0.0
        %3457 = vmatpush1.msra.mxu0 %v3442
        %3458 = vmatprep.subr.mxu0 0.0
        %3459 = vmatpush1.msra.mxu0 %v3443
        %3460 = vmatprep.subr.mxu0 0.0
        %3461 = vmatpush1.msra.mxu0 %v3444
        %3462 = vmatprep.subr.mxu0 0.0
        %3463 = vmatpush1.msra.mxu0 %v3445
        %3464 = vmatprep.subr.mxu0 0.0
        %3465 = vmatpush1.msra.mxu0 0.0
        %3466 = vmatprep.subr.mxu0 0.0
        %3467 = vmatpush1.msra.mxu0 0.0
        %3468 = vmatprep.subr.mxu0 0.0
        %3469 = vmatpush1.msra.mxu0 0.0
        %3470 = vmatprep.subr.mxu0 0.0
        %3471 = vmatpush1.msra.mxu0 0.0
        %3472 = vmatprep.subr.mxu0 0.0
        %3473 = vmatpush1.msra.mxu0 0.0
        %3474 = vmatprep.subr.mxu0 0.0
        %3475 = vmatpush1.msra.mxu0 0.0
        %3476 = vmatprep.subr.mxu0 0.0
        %3477 = vmatpush1.msra.mxu0 0.0
        %3478 = vmatprep.subr.mxu0 0.0
        %3479 = vmatpush1.msra.mxu0 0.0
        %3480 = vmatprep.subr.mxu0 0.0
        %3481 = vmatpush1.msra.mxu0 0.0
        %3482 = vmatprep.subr.mxu0 0.0
        %3483 = vmatpush1.msra.mxu0 0.0
        %3484 = vmatprep.subr.mxu0 0.0
        %3485 = vmatpush1.msra.mxu0 0.0
        %3486 = vmatprep.subr.mxu0 0.0
        %3487 = vmatpush1.msra.mxu0 0.0
        %3488 = vmatprep.subr.mxu0 0.0
        %3489 = vmatpush1.msra.mxu0 0.0
        %3490 = vmatprep.subr.mxu0 0.0
        %3491 = vmatpush1.msra.mxu0 0.0
        %3492 = vmatprep.subr.mxu0 0.0
        %3493 = vmatpush1.msra.mxu0 0.0
        %3494 = vmatprep.subr.mxu0 0.0
        %3495 = vmatpush1.msra.mxu0 0.0
        %3496 = vmatprep.subr.mxu0 0.0
        %3497 = vmatpush1.msra.mxu0 0.0
        %3498 = vmatprep.subr.mxu0 0.0
        %3499 = vmatpush1.msra.mxu0 0.0
        %3500 = vmatprep.subr.mxu0 0.0
        %3501 = vmatpush1.msra.mxu0 0.0
        %3502 = vmatprep.subr.mxu0 0.0
        %3503 = vmatpush1.msra.mxu0 0.0
        %3504 = vmatprep.subr.mxu0 0.0
        %3505 = vmatpush1.msra.mxu0 0.0
        %3506 = vmatprep.subr.mxu0 0.0
        %3507 = vmatpush1.msra.mxu0 0.0
        %3508 = vmatprep.subr.mxu0 0.0
        %3509 = vmatpush1.msra.mxu0 0.0
        %3510 = vmatprep.subr.mxu0 0.0
        %3511 = vmatpush1.msra.mxu0 0.0
        %3512 = vmatprep.subr.mxu0 0.0
        %3513 = vmatpush1.msra.mxu0 0.0
        %3514 = vmatprep.subr.mxu0 0.0
        %3515 = vmatpush1.msra.mxu0 0.0
        %3516 = vmatprep.subr.mxu0 0.0
        %3517 = vmatpush1.msra.mxu0 0.0
        %3518 = vmatprep.subr.mxu0 0.0
        %3519 = vmatpush1.msra.mxu0 0.0
        %3520 = vmatprep.mubr.f32.mxu0 0.0
        %3521 = vmatmul.mubr.f32.gmra.mrb[0].mxu0 %v3454
        %v3522 = vpop.f32.mrb[0].mxu0
        %v3523 = vadd.f32 %v3451, %v3522
        %v3524 = vpop.f32.mrb[0].mxu0
        %3525 = vdwg.mxu0
        %v3526 = vmul.f32 %v3523, 0.5
        %v3527 = vmul.f32 %v3523, 0.044715
        %v3528 = vmul.f32 %v3527, %v3523
        %v3529 = vmul.f32 %v3528, %v3523
        %v3530 = vadd.f32 %v3523, %v3529
        %v3531 = vmul.f32 %v3530, 0.7978846
        %v3532 = vtanh.pop %v3531
        %v3533 = vadd.f32 %v3532, 1.0
        %v3534 = vmul.f32 %v3526, %v3533
        %v3535 = vld [vmem:[%s43] sm:$0xff]
        %v3536 = vld [vmem:[%s43 + $0x8] sm:$0xff]
        %v3537 = vld [vmem:[%s43 + $0x10] sm:$0xff]
        %v3538 = vld [vmem:[%s43 + $0x18] sm:$0xff]
        %v3539 = vld [vmem:[%s43 + $0x20] sm:$0xff]
        %v3540 = vld [vmem:[%s43 + $0x28] sm:$0xff]
        %v3541 = vld [vmem:[%s43 + $0x30] sm:$0xff]
        %v3542 = vld [vmem:[%s43 + $0x38] sm:$0xff]
        %v3543 = vld [vmem:[%s43 + $0x40] sm:$0xff]
        %v3544 = vld [vmem:[%s43 + $0x48] sm:$0xff]
        %v3545 = vld [vmem:[%s43 + $0x50] sm:$0xff]
        %v3546 = vld [vmem:[%s43 + $0x58] sm:$0xff]
        %v3547 = vld [vmem:[%s43 + $0x60] sm:$0xff]
        %v3548 = vld [vmem:[%s43 + $0x68] sm:$0xff]
        %v3549 = vld [vmem:[%s43 + $0x70] sm:$0xff]
        %v3550 = vld [vmem:[%s43 + $0x78] sm:$0xff]
        %v3551 = vld [vmem:[%s45] sm:$0x1]
        %v3553 = vlaneseq
        %v3554 = vshrl.u32 %v3553, 7
        %v3555 = vsub.s32 0, %v3554
        %v3556 = vrot.slane %v3551, %v3555
        %3558 = vmatprep.subr.mxu0 0.0
        %3559 = vmatpush1.msra.mxu0 %v3535
        %3560 = vmatprep.subr.mxu0 0.0
        %3561 = vmatpush1.msra.mxu0 %v3536
        %3562 = vmatprep.subr.mxu0 0.0
        %3563 = vmatpush1.msra.mxu0 %v3537
        %3564 = vmatprep.subr.mxu0 0.0
        %3565 = vmatpush1.msra.mxu0 %v3538
        %3566 = vmatprep.subr.mxu0 0.0
        %3567 = vmatpush1.msra.mxu0 %v3539
        %3568 = vmatprep.subr.mxu0 0.0
        %3569 = vmatpush1.msra.mxu0 %v3540
        %3570 = vmatprep.subr.mxu0 0.0
        %3571 = vmatpush1.msra.mxu0 %v3541
        %3572 = vmatprep.subr.mxu0 0.0
        %3573 = vmatpush1.msra.mxu0 %v3542
        %3574 = vmatprep.subr.mxu0 0.0
        %3575 = vmatpush1.msra.mxu0 %v3543
        %3576 = vmatprep.subr.mxu0 0.0
        %3577 = vmatpush1.msra.mxu0 %v3544
        %3578 = vmatprep.subr.mxu0 0.0
        %3579 = vmatpush1.msra.mxu0 %v3545
        %3580 = vmatprep.subr.mxu0 0.0
        %3581 = vmatpush1.msra.mxu0 %v3546
        %3582 = vmatprep.subr.mxu0 0.0
        %3583 = vmatpush1.msra.mxu0 %v3547
        %3584 = vmatprep.subr.mxu0 0.0
        %3585 = vmatpush1.msra.mxu0 %v3548
        %3586 = vmatprep.subr.mxu0 0.0
        %3587 = vmatpush1.msra.mxu0 %v3549
        %3588 = vmatprep.subr.mxu0 0.0
        %3589 = vmatpush1.msra.mxu0 %v3550
        %3590 = vmatprep.subr.mxu0 0.0
        %3591 = vmatpush1.msra.mxu0 0.0
        %3592 = vmatprep.subr.mxu0 0.0
        %3593 = vmatpush1.msra.mxu0 0.0
        %3594 = vmatprep.subr.mxu0 0.0
        %3595 = vmatpush1.msra.mxu0 0.0
        %3596 = vmatprep.subr.mxu0 0.0
        %3597 = vmatpush1.msra.mxu0 0.0
        %3598 = vmatprep.subr.mxu0 0.0
        %3599 = vmatpush1.msra.mxu0 0.0
        %3600 = vmatprep.subr.mxu0 0.0
        %3601 = vmatpush1.msra.mxu0 0.0
        %3602 = vmatprep.subr.mxu0 0.0
        %3603 = vmatpush1.msra.mxu0 0.0
        %3604 = vmatprep.subr.mxu0 0.0
        %3605 = vmatpush1.msra.mxu0 0.0
        %3606 = vmatprep.subr.mxu0 0.0
        %3607 = vmatpush1.msra.mxu0 0.0
        %3608 = vmatprep.subr.mxu0 0.0
        %3609 = vmatpush1.msra.mxu0 0.0
        %3610 = vmatprep.subr.mxu0 0.0
        %3611 = vmatpush1.msra.mxu0 0.0
        %3612 = vmatprep.subr.mxu0 0.0
        %3613 = vmatpush1.msra.mxu0 0.0
        %3614 = vmatprep.subr.mxu0 0.0
        %3615 = vmatpush1.msra.mxu0 0.0
        %3616 = vmatprep.subr.mxu0 0.0
        %3617 = vmatpush1.msra.mxu0 0.0
        %3618 = vmatprep.subr.mxu0 0.0
        %3619 = vmatpush1.msra.mxu0 0.0
        %3620 = vmatprep.subr.mxu0 0.0
        %3621 = vmatpush1.msra.mxu0 0.0
        %3622 = vmatprep.mubr.f32.mxu0 0.0
        %3623 = vmatmul.mubr.f32.gmra.mrb[0].mxu0 %v3534
        %v3624 = vpop.f32.mrb[0].mxu0
        %v3625 = vadd.f32 %v3556, %v3624
        %v3626 = vpop.f32.mrb[0].mxu0
        %3627 = vdwg.mxu0
        %v3628 = vadd.f32 %v3412, %v3625
        %s3629 = scalar_lea.vmem %s15, 1
        %v3630 = vld [vmem:[%s3629] sm:$0x1]
        %s3631 = scalar_lea.vmem %s17, 1
        %v3632 = vld [vmem:[%s3631] sm:$0x1]
        %v3633 = vsel %vm1643, %v3628, 0.0
        %3634 = vadd.xlane.f32.xlu0 %v3633
        %v3635 = vpop.xlane.xlu0 %3634
        %v3636 = vmul.f32 %v3635, %v1647
        %v3637 = vsub.f32 %v3628, %v3636
        %v3638 = vmul.f32 %v3637, %v3637
        %v3639 = vsel %vm1643, %v3638, 0.0
        %3640 = vadd.xlane.f32.xlu0 %v3639
        %v3641 = vpop.xlane.xlu0 %3640
        %v3642 = vmul.f32 %v3641, %v1647
        %v3643 = vadd.f32 %v3642, 1e-05
        %v3644 = vrsqrt.pop %v3643
        %v3645 = vmul.f32 %v3637, %v3644
        %v3647 = vlaneseq
        %v3648 = vshrl.u32 %v3647, 7
        %v3649 = vsub.s32 0, %v3648
        %v3650 = vrot.slane %v3630, %v3649
        %v3652 = vmul.f32 %v3645, %v3650
        %v3654 = vlaneseq
        %v3655 = vshrl.u32 %v3654, 7
        %v3656 = vsub.s32 0, %v3655
        %v3657 = vrot.slane %v3632, %v3656
        %v3659 = vadd.f32 %v3652, %v3657
        %s3660 = scalar_lea.vmem %s19, 128
        %v3661 = vld [vmem:[%s3660] sm:$0xff]
        %v3662 = vld [vmem:[%s3660 + $0x8] sm:$0xff]
        %v3663 = vld [vmem:[%s3660 + $0x10] sm:$0xff]
        %v3664 = vld [vmem:[%s3660 + $0x18] sm:$0xff]
        %s3665 = scalar_lea.vmem %s21, 4
        %v3666 = vld [vmem:[%s3665] sm:$0x1]
        %v3668 = vlaneseq
        %v3669 = vshrl.u32 %v3668, 7
        %v3670 = vsub.s32 0, %v3669
        %v3671 = vrot.slane %v3666, %v3670
        %v3674 = vsel %vm1625, %v3659, 0
        %3676 = vmatprep.subr.mxu0 0.0
        %3677 = vmatpush1.msra.mxu0 %v3661
        %3678 = vmatprep.subr.mxu0 0.0
        %3679 = vmatpush1.msra.mxu0 %v3662
        %3680 = vmatprep.subr.mxu0 0.0
        %3681 = vmatpush1.msra.mxu0 %v3663
        %3682 = vmatprep.subr.mxu0 0.0
        %3683 = vmatpush1.msra.mxu0 %v3664
        %3684 = vmatprep.subr.mxu0 0.0
        %3685 = vmatpush1.msra.mxu0 0.0
        %3686 = vmatprep.subr.mxu0 0.0
        %3687 = vmatpush1.msra.mxu0 0.0
        %3688 = vmatprep.subr.mxu0 0.0
        %3689 = vmatpush1.msra.mxu0 0.0
        %3690 = vmatprep.subr.mxu0 0.0
        %3691 = vmatpush1.msra.mxu0 0.0
        %3692 = vmatprep.subr.mxu0 0.0
        %3693 = vmatpush1.msra.mxu0 0.0
        %3694 = vmatprep.subr.mxu0 0.0
        %3695 = vmatpush1.msra.mxu0 0.0
        %3696 = vmatprep.subr.mxu0 0.0
        %3697 = vmatpush1.msra.mxu0 0.0
        %3698 = vmatprep.subr.mxu0 0.0
        %3699 = vmatpush1.msra.mxu0 0.0
        %3700 = vmatprep.subr.mxu0 0.0
        %3701 = vmatpush1.msra.mxu0 0.0
        %3702 = vmatprep.subr.mxu0 0.0
        %3703 = vmatpush1.msra.mxu0 0.0
        %3704 = vmatprep.subr.mxu0 0.0
        %3705 = vmatpush1.msra.mxu0 0.0
        %3706 = vmatprep.subr.mxu0 0.0
        %3707 = vmatpush1.msra.mxu0 0.0
        %3708 = vmatprep.subr.mxu0 0.0
        %3709 = vmatpush1.msra.mxu0 0.0
        %3710 = vmatprep.subr.mxu0 0.0
        %3711 = vmatpush1.msra.mxu0 0.0
        %3712 = vmatprep.subr.mxu0 0.0
        %3713 = vmatpush1.msra.mxu0 0.0
        %3714 = vmatprep.subr.mxu0 0.0
        %3715 = vmatpush1.msra.mxu0 0.0
        %3716 = vmatprep.subr.mxu0 0.0
        %3717 = vmatpush1.msra.mxu0 0.0
        %3718 = vmatprep.subr.mxu0 0.0
        %3719 = vmatpush1.msra.mxu0 0.0
        %3720 = vmatprep.subr.mxu0 0.0
        %3721 = vmatpush1.msra.mxu0 0.0
        %3722 = vmatprep.subr.mxu0 0.0
        %3723 = vmatpush1.msra.mxu0 0.0
        %3724 = vmatprep.subr.mxu0 0.0
        %3725 = vmatpush1.msra.mxu0 0.0
        %3726 = vmatprep.subr.mxu0 0.0
        %3727 = vmatpush1.msra.mxu0 0.0
        %3728 = vmatprep.subr.mxu0 0.0
        %3729 = vmatpush1.msra.mxu0 0.0
        %3730 = vmatprep.subr.mxu0 0.0
        %3731 = vmatpush1.msra.mxu0 0.0
        %3732 = vmatprep.subr.mxu0 0.0
        %3733 = vmatpush1.msra.mxu0 0.0
        %3734 = vmatprep.subr.mxu0 0.0
        %3735 = vmatpush1.msra.mxu0 0.0
        %3736 = vmatprep.subr.mxu0 0.0
        %3737 = vmatpush1.msra.mxu0 0.0
        %3738 = vmatprep.subr.mxu0 0.0
        %3739 = vmatpush1.msra.mxu0 0.0
        %3740 = vmatprep.mubr.f32.mxu0 0.0
        %3741 = vmatmul.mubr.f32.gmra.mrb[0].mxu0 %v3674
        %v3742 = vpop.f32.mrb[0].mxu0
        %v3743 = vadd.f32 %v3671, %v3742
        %v3744 = vpop.f32.mrb[0].mxu0
        %3745 = vdwg.mxu0
        %v3746 = vmul.f32 %v3743, 0.35355338
        %s3747 = scalar_lea.vmem %s23, 128
        %v3748 = vld [vmem:[%s3747] sm:$0xff]
        %v3749 = vld [vmem:[%s3747 + $0x8] sm:$0xff]
        %v3750 = vld [vmem:[%s3747 + $0x10] sm:$0xff]
        %v3751 = vld [vmem:[%s3747 + $0x18] sm:$0xff]
        %s3752 = scalar_lea.vmem %s25, 4
        %v3753 = vld [vmem:[%s3752] sm:$0x1]
        %v3755 = vlaneseq
        %v3756 = vshrl.u32 %v3755, 7
        %v3757 = vsub.s32 0, %v3756
        %v3758 = vrot.slane %v3753, %v3757
        %3760 = vmatprep.subr.mxu0 0.0
        %3761 = vmatpush1.msra.mxu0 %v3748
        %3762 = vmatprep.subr.mxu0 0.0
        %3763 = vmatpush1.msra.mxu0 %v3749
        %3764 = vmatprep.subr.mxu0 0.0
        %3765 = vmatpush1.msra.mxu0 %v3750
        %3766 = vmatprep.subr.mxu0 0.0
        %3767 = vmatpush1.msra.mxu0 %v3751
        %3768 = vmatprep.subr.mxu0 0.0
        %3769 = vmatpush1.msra.mxu0 0.0
        %3770 = vmatprep.subr.mxu0 0.0
        %3771 = vmatpush1.msra.mxu0 0.0
        %3772 = vmatprep.subr.mxu0 0.0
        %3773 = vmatpush1.msra.mxu0 0.0
        %3774 = vmatprep.subr.mxu0 0.0
        %3775 = vmatpush1.msra.mxu0 0.0
        %3776 = vmatprep.subr.mxu0 0.0
        %3777 = vmatpush1.msra.mxu0 0.0
        %3778 = vmatprep.subr.mxu0 0.0
        %3779 = vmatpush1.msra.mxu0 0.0
        %3780 = vmatprep.subr.mxu0 0.0
        %3781 = vmatpush1.msra.mxu0 0.0
        %3782 = vmatprep.subr.mxu0 0.0
        %3783 = vmatpush1.msra.mxu0 0.0
        %3784 = vmatprep.subr.mxu0 0.0
        %3785 = vmatpush1.msra.mxu0 0.0
        %3786 = vmatprep.subr.mxu0 0.0
        %3787 = vmatpush1.msra.mxu0 0.0
        %3788 = vmatprep.subr.mxu0 0.0
        %3789 = vmatpush1.msra.mxu0 0.0
        %3790 = vmatprep.subr.mxu0 0.0
        %3791 = vmatpush1.msra.mxu0 0.0
        %3792 = vmatprep.subr.mxu0 0.0
        %3793 = vmatpush1.msra.mxu0 0.0
        %3794 = vmatprep.subr.mxu0 0.0
        %3795 = vmatpush1.msra.mxu0 0.0
        %3796 = vmatprep.subr.mxu0 0.0
        %3797 = vmatpush1.msra.mxu0 0.0
        %3798 = vmatprep.subr.mxu0 0.0
        %3799 = vmatpush1.msra.mxu0 0.0
        %3800 = vmatprep.subr.mxu0 0.0
        %3801 = vmatpush1.msra.mxu0 0.0
        %3802 = vmatprep.subr.mxu0 0.0
        %3803 = vmatpush1.msra.mxu0 0.0
        %3804 = vmatprep.subr.mxu0 0.0
        %3805 = vmatpush1.msra.mxu0 0.0
        %3806 = vmatprep.subr.mxu0 0.0
        %3807 = vmatpush1.msra.mxu0 0.0
        %3808 = vmatprep.subr.mxu0 0.0
        %3809 = vmatpush1.msra.mxu0 0.0
        %3810 = vmatprep.subr.mxu0 0.0
        %3811 = vmatpush1.msra.mxu0 0.0
        %3812 = vmatprep.subr.mxu0 0.0
        %3813 = vmatpush1.msra.mxu0 0.0
        %3814 = vmatprep.subr.mxu0 0.0
        %3815 = vmatpush1.msra.mxu0 0.0
        %3816 = vmatprep.subr.mxu0 0.0
        %3817 = vmatpush1.msra.mxu0 0.0
        %3818 = vmatprep.subr.mxu0 0.0
        %3819 = vmatpush1.msra.mxu0 0.0
        %3820 = vmatprep.subr.mxu0 0.0
        %3821 = vmatpush1.msra.mxu0 0.0
        %3822 = vmatprep.subr.mxu0 0.0
        %3823 = vmatpush1.msra.mxu0 0.0
        %3824 = vmatprep.mubr.f32.mxu0 0.0
        %3825 = vmatmul.mubr.f32.gmra.mrb[0].mxu0 %v3674
        %v3826 = vpop.f32.mrb[0].mxu0
        %v3827 = vadd.f32 %v3758, %v3826
        %v3828 = vpop.f32.mrb[0].mxu0
        %3829 = vdwg.mxu0
        %s3830 = scalar_lea.vmem %s27, 128
        %v3831 = vld [vmem:[%s3830] sm:$0xff]
        %v3832 = vld [vmem:[%s3830 + $0x8] sm:$0xff]
        %v3833 = vld [vmem:[%s3830 + $0x10] sm:$0xff]
        %v3834 = vld [vmem:[%s3830 + $0x18] sm:$0xff]
        %s3835 = scalar_lea.vmem %s29, 4
        %v3836 = vld [vmem:[%s3835] sm:$0x1]
        %v3838 = vlaneseq
        %v3839 = vshrl.u32 %v3838, 7
        %v3840 = vsub.s32 0, %v3839
        %v3841 = vrot.slane %v3836, %v3840
        %3843 = vmatprep.subr.mxu0 0.0
        %3844 = vmatpush1.msra.mxu0 %v3831
        %3845 = vmatprep.subr.mxu0 0.0
        %3846 = vmatpush1.msra.mxu0 %v3832
        %3847 = vmatprep.subr.mxu0 0.0
        %3848 = vmatpush1.msra.mxu0 %v3833
        %3849 = vmatprep.subr.mxu0 0.0
        %3850 = vmatpush1.msra.mxu0 %v3834
        %3851 = vmatprep.subr.mxu0 0.0
        %3852 = vmatpush1.msra.mxu0 0.0
        %3853 = vmatprep.subr.mxu0 0.0
        %3854 = vmatpush1.msra.mxu0 0.0
        %3855 = vmatprep.subr.mxu0 0.0
        %3856 = vmatpush1.msra.mxu0 0.0
        %3857 = vmatprep.subr.mxu0 0.0
        %3858 = vmatpush1.msra.mxu0 0.0
        %3859 = vmatprep.subr.mxu0 0.0
        %3860 = vmatpush1.msra.mxu0 0.0
        %3861 = vmatprep.subr.mxu0 0.0
        %3862 = vmatpush1.msra.mxu0 0.0
        %3863 = vmatprep.subr.mxu0 0.0
        %3864 = vmatpush1.msra.mxu0 0.0
        %3865 = vmatprep.subr.mxu0 0.0
        %3866 = vmatpush1.msra.mxu0 0.0
        %3867 = vmatprep.subr.mxu0 0.0
        %3868 = vmatpush1.msra.mxu0 0.0
        %3869 = vmatprep.subr.mxu0 0.0
        %3870 = vmatpush1.msra.mxu0 0.0
        %3871 = vmatprep.subr.mxu0 0.0
        %3872 = vmatpush1.msra.mxu0 0.0
        %3873 = vmatprep.subr.mxu0 0.0
        %3874 = vmatpush1.msra.mxu0 0.0
        %3875 = vmatprep.subr.mxu0 0.0
        %3876 = vmatpush1.msra.mxu0 0.0
        %3877 = vmatprep.subr.mxu0 0.0
        %3878 = vmatpush1.msra.mxu0 0.0
        %3879 = vmatprep.subr.mxu0 0.0
        %3880 = vmatpush1.msra.mxu0 0.0
        %3881 = vmatprep.subr.mxu0 0.0
        %3882 = vmatpush1.msra.mxu0 0.0
        %3883 = vmatprep.subr.mxu0 0.0
        %3884 = vmatpush1.msra.mxu0 0.0
        %3885 = vmatprep.subr.mxu0 0.0
        %3886 = vmatpush1.msra.mxu0 0.0
        %3887 = vmatprep.subr.mxu0 0.0
        %3888 = vmatpush1.msra.mxu0 0.0
        %3889 = vmatprep.subr.mxu0 0.0
        %3890 = vmatpush1.msra.mxu0 0.0
        %3891 = vmatprep.subr.mxu0 0.0
        %3892 = vmatpush1.msra.mxu0 0.0
        %3893 = vmatprep.subr.mxu0 0.0
        %3894 = vmatpush1.msra.mxu0 0.0
        %3895 = vmatprep.subr.mxu0 0.0
        %3896 = vmatpush1.msra.mxu0 0.0
        %3897 = vmatprep.subr.mxu0 0.0
        %3898 = vmatpush1.msra.mxu0 0.0
        %3899 = vmatprep.subr.mxu0 0.0
        %3900 = vmatpush1.msra.mxu0 0.0
        %3901 = vmatprep.subr.mxu0 0.0
        %3902 = vmatpush1.msra.mxu0 0.0
        %3903 = vmatprep.subr.mxu0 0.0
        %3904 = vmatpush1.msra.mxu0 0.0
        %3905 = vmatprep.subr.mxu0 0.0
        %3906 = vmatpush1.msra.mxu0 0.0
        %3907 = vmatprep.mubr.f32.mxu0 0.0
        %3908 = vmatmul.mubr.f32.gmra.mrb[0].mxu0 %v3674
        %v3909 = vpop.f32.mrb[0].mxu0
        %v3910 = vadd.f32 %v3841, %v3909
        %v3911 = vpop.f32.mrb[0].mxu0
        %3912 = vdwg.mxu0
        %v3914 = vsel %vm1919, %v3746, 0
        %v3917 = vsel %vm1919, %v3827, 0
        %3919 = vmatprep.subr.mxu0 0.0
        %3920 = vmatpush1.xpose.msra.mxu0 %v3917
        %3921 = vmatprep.subr.mxu0 0.0
        %3922 = vmatpush1.xpose.msra.mxu0 0.0
        %3923 = vmatprep.subr.mxu0 0.0
        %3924 = vmatpush1.xpose.msra.mxu0 0.0
        %3925 = vmatprep.subr.mxu0 0.0
        %3926 = vmatpush1.xpose.msra.mxu0 0.0
        %3927 = vmatprep.subr.mxu0 0.0
        %3928 = vmatpush1.xpose.msra.mxu0 0.0
        %3929 = vmatprep.subr.mxu0 0.0
        %3930 = vmatpush1.xpose.msra.mxu0 0.0
        %3931 = vmatprep.subr.mxu0 0.0
        %3932 = vmatpush1.xpose.msra.mxu0 0.0
        %3933 = vmatprep.subr.mxu0 0.0
        %3934 = vmatpush1.xpose.msra.mxu0 0.0
        %3935 = vmatprep.subr.mxu0 0.0
        %3936 = vmatpush1.xpose.msra.mxu0 0.0
        %3937 = vmatprep.subr.mxu0 0.0
        %3938 = vmatpush1.xpose.msra.mxu0 0.0
        %3939 = vmatprep.subr.mxu0 0.0
        %3940 = vmatpush1.xpose.msra.mxu0 0.0
        %3941 = vmatprep.subr.mxu0 0.0
        %3942 = vmatpush1.xpose.msra.mxu0 0.0
        %3943 = vmatprep.subr.mxu0 0.0
        %3944 = vmatpush1.xpose.msra.mxu0 0.0
        %3945 = vmatprep.subr.mxu0 0.0
        %3946 = vmatpush1.xpose.msra.mxu0 0.0
        %3947 = vmatprep.subr.mxu0 0.0
        %3948 = vmatpush1.xpose.msra.mxu0 0.0
        %3949 = vmatprep.subr.mxu0 0.0
        %3950 = vmatpush1.xpose.msra.mxu0 0.0
        %3951 = vmatprep.subr.mxu0 0.0
        %3952 = vmatpush1.xpose.msra.mxu0 0.0
        %3953 = vmatprep.subr.mxu0 0.0
        %3954 = vmatpush1.xpose.msra.mxu0 0.0
        %3955 = vmatprep.subr.mxu0 0.0
        %3956 = vmatpush1.xpose.msra.mxu0 0.0
        %3957 = vmatprep.subr.mxu0 0.0
        %3958 = vmatpush1.xpose.msra.mxu0 0.0
        %3959 = vmatprep.subr.mxu0 0.0
        %3960 = vmatpush1.xpose.msra.mxu0 0.0
        %3961 = vmatprep.subr.mxu0 0.0
        %3962 = vmatpush1.xpose.msra.mxu0 0.0
        %3963 = vmatprep.subr.mxu0 0.0
        %3964 = vmatpush1.xpose.msra.mxu0 0.0
        %3965 = vmatprep.subr.mxu0 0.0
        %3966 = vmatpush1.xpose.msra.mxu0 0.0
        %3967 = vmatprep.subr.mxu0 0.0
        %3968 = vmatpush1.xpose.msra.mxu0 0.0
        %3969 = vmatprep.subr.mxu0 0.0
        %3970 = vmatpush1.xpose.msra.mxu0 0.0
        %3971 = vmatprep.subr.mxu0 0.0
        %3972 = vmatpush1.xpose.msra.mxu0 0.0
        %3973 = vmatprep.subr.mxu0 0.0
        %3974 = vmatpush1.xpose.msra.mxu0 0.0
        %3975 = vmatprep.subr.mxu0 0.0
        %3976 = vmatpush1.xpose.msra.mxu0 0.0
        %3977 = vmatprep.subr.mxu0 0.0
        %3978 = vmatpush1.xpose.msra.mxu0 0.0
        %3979 = vmatprep.subr.mxu0 0.0
        %3980 = vmatpush1.xpose.msra.mxu0 0.0
        %3981 = vmatprep.subr.mxu0 0.0
        %3982 = vmatpush1.xpose.msra.mxu0 0.0
        %3983 = vmatprep.mubr.f32.mxu0 0.0
        %3984 = vmatmul.mubr.f32.gmra.mrb[0].mxu0 %v3914
        %v3985 = vpop.f32.mrb[0].mxu0
        %v3986 = vadd.f32 0.0, %v3985
        %v3987 = vpop.f32.mrb[0].mxu0
        %3988 = vdwg.mxu0
        %v3989 = vsel %vm1996, %v3986, -inf
        %3990 = vmax.xlane.f32.xlu0 %v3989
        %v3991 = vpop.xlane.xlu0 %3990
        %v3992 = vsub.f32 %v3986, %v3991
        %v3993 = vmul.f32 %v3992, 1.442695
        %v3994 = vpow.pop %v3993
        %v3995 = vsel %vm1996, %v3994, 0.0
        %3996 = vadd.xlane.f32.xlu0 %v3995
        %v3997 = vpop.xlane.xlu0 %3996
        %v3998 = vrcp.pop %v3997
        %v3999 = vmul.f32 %v3994, %v3998
        %s4000 = scalar_lea.vmem %s19, 160
        %v4001 = vld [vmem:[%s4000] sm:$0xff]
        %v4002 = vld [vmem:[%s4000 + $0x8] sm:$0xff]
        %v4003 = vld [vmem:[%s4000 + $0x10] sm:$0xff]
        %v4004 = vld [vmem:[%s4000 + $0x18] sm:$0xff]
        %s4005 = scalar_lea.vmem %s21, 5
        %v4006 = vld [vmem:[%s4005] sm:$0x1]
        %v4008 = vlaneseq
        %v4009 = vshrl.u32 %v4008, 7
        %v4010 = vsub.s32 0, %v4009
        %v4011 = vrot.slane %v4006, %v4010
        %4013 = vmatprep.subr.mxu0 0.0
        %4014 = vmatpush1.msra.mxu0 %v4001
        %4015 = vmatprep.subr.mxu0 0.0
        %4016 = vmatpush1.msra.mxu0 %v4002
        %4017 = vmatprep.subr.mxu0 0.0
        %4018 = vmatpush1.msra.mxu0 %v4003
        %4019 = vmatprep.subr.mxu0 0.0
        %4020 = vmatpush1.msra.mxu0 %v4004
        %4021 = vmatprep.subr.mxu0 0.0
        %4022 = vmatpush1.msra.mxu0 0.0
        %4023 = vmatprep.subr.mxu0 0.0
        %4024 = vmatpush1.msra.mxu0 0.0
        %4025 = vmatprep.subr.mxu0 0.0
        %4026 = vmatpush1.msra.mxu0 0.0
        %4027 = vmatprep.subr.mxu0 0.0
        %4028 = vmatpush1.msra.mxu0 0.0
        %4029 = vmatprep.subr.mxu0 0.0
        %4030 = vmatpush1.msra.mxu0 0.0
        %4031 = vmatprep.subr.mxu0 0.0
        %4032 = vmatpush1.msra.mxu0 0.0
        %4033 = vmatprep.subr.mxu0 0.0
        %4034 = vmatpush1.msra.mxu0 0.0
        %4035 = vmatprep.subr.mxu0 0.0
        %4036 = vmatpush1.msra.mxu0 0.0
        %4037 = vmatprep.subr.mxu0 0.0
        %4038 = vmatpush1.msra.mxu0 0.0
        %4039 = vmatprep.subr.mxu0 0.0
        %4040 = vmatpush1.msra.mxu0 0.0
        %4041 = vmatprep.subr.mxu0 0.0
        %4042 = vmatpush1.msra.mxu0 0.0
        %4043 = vmatprep.subr.mxu0 0.0
        %4044 = vmatpush1.msra.mxu0 0.0
        %4045 = vmatprep.subr.mxu0 0.0
        %4046 = vmatpush1.msra.mxu0 0.0
        %4047 = vmatprep.subr.mxu0 0.0
        %4048 = vmatpush1.msra.mxu0 0.0
        %4049 = vmatprep.subr.mxu0 0.0
        %4050 = vmatpush1.msra.mxu0 0.0
        %4051 = vmatprep.subr.mxu0 0.0
        %4052 = vmatpush1.msra.mxu0 0.0
        %4053 = vmatprep.subr.mxu0 0.0
        %4054 = vmatpush1.msra.mxu0 0.0
        %4055 = vmatprep.subr.mxu0 0.0
        %4056 = vmatpush1.msra.mxu0 0.0
        %4057 = vmatprep.subr.mxu0 0.0
        %4058 = vmatpush1.msra.mxu0 0.0
        %4059 = vmatprep.subr.mxu0 0.0
        %4060 = vmatpush1.msra.mxu0 0.0
        %4061 = vmatprep.subr.mxu0 0.0
        %4062 = vmatpush1.msra.mxu0 0.0
        %4063 = vmatprep.subr.mxu0 0.0
        %4064 = vmatpush1.msra.mxu0 0.0
        %4065 = vmatprep.subr.mxu0 0.0
        %4066 = vmatpush1.msra.mxu0 0.0
        %4067 = vmatprep.subr.mxu0 0.0
        %4068 = vmatpush1.msra.mxu0 0.0
        %4069 = vmatprep.subr.mxu0 0.0
        %4070 = vmatpush1.msra.mxu0 0.0
        %4071 = vmatprep.subr.mxu0 0.0
        %4072 = vmatpush1.msra.mxu0 0.0
        %4073 = vmatprep.subr.mxu0 0.0
        %4074 = vmatpush1.msra.mxu0 0.0
        %4075 = vmatprep.subr.mxu0 0.0
        %4076 = vmatpush1.msra.mxu0 0.0
        %4077 = vmatprep.mubr.f32.mxu0 0.0
        %4078 = vmatmul.mubr.f32.gmra.mrb[0].mxu0 %v3674
        %v4079 = vpop.f32.mrb[0].mxu0
        %v4080 = vadd.f32 %v4011, %v4079
        %v4081 = vpop.f32.mrb[0].mxu0
        %4082 = vdwg.mxu0
        %v4083 = vmul.f32 %v4080, 0.35355338
        %s4084 = scalar_lea.vmem %s23, 160
        %v4085 = vld [vmem:[%s4084] sm:$0xff]
        %v4086 = vld [vmem:[%s4084 + $0x8] sm:$0xff]
        %v4087 = vld [vmem:[%s4084 + $0x10] sm:$0xff]
        %v4088 = vld [vmem:[%s4084 + $0x18] sm:$0xff]
        %s4089 = scalar_lea.vmem %s25, 5
        %v4090 = vld [vmem:[%s4089] sm:$0x1]
        %v4092 = vlaneseq
        %v4093 = vshrl.u32 %v4092, 7
        %v4094 = vsub.s32 0, %v4093
        %v4095 = vrot.slane %v4090, %v4094
        %4097 = vmatprep.subr.mxu0 0.0
        %4098 = vmatpush1.msra.mxu0 %v4085
        %4099 = vmatprep.subr.mxu0 0.0
        %4100 = vmatpush1.msra.mxu0 %v4086
        %4101 = vmatprep.subr.mxu0 0.0
        %4102 = vmatpush1.msra.mxu0 %v4087
        %4103 = vmatprep.subr.mxu0 0.0
        %4104 = vmatpush1.msra.mxu0 %v4088
        %4105 = vmatprep.subr.mxu0 0.0
        %4106 = vmatpush1.msra.mxu0 0.0
        %4107 = vmatprep.subr.mxu0 0.0
        %4108 = vmatpush1.msra.mxu0 0.0
        %4109 = vmatprep.subr.mxu0 0.0
        %4110 = vmatpush1.msra.mxu0 0.0
        %4111 = vmatprep.subr.mxu0 0.0
        %4112 = vmatpush1.msra.mxu0 0.0
        %4113 = vmatprep.subr.mxu0 0.0
        %4114 = vmatpush1.msra.mxu0 0.0
        %4115 = vmatprep.subr.mxu0 0.0
        %4116 = vmatpush1.msra.mxu0 0.0
        %4117 = vmatprep.subr.mxu0 0.0
        %4118 = vmatpush1.msra.mxu0 0.0
        %4119 = vmatprep.subr.mxu0 0.0
        %4120 = vmatpush1.msra.mxu0 0.0
        %4121 = vmatprep.subr.mxu0 0.0
        %4122 = vmatpush1.msra.mxu0 0.0
        %4123 = vmatprep.subr.mxu0 0.0
        %4124 = vmatpush1.msra.mxu0 0.0
        %4125 = vmatprep.subr.mxu0 0.0
        %4126 = vmatpush1.msra.mxu0 0.0
        %4127 = vmatprep.subr.mxu0 0.0
        %4128 = vmatpush1.msra.mxu0 0.0
        %4129 = vmatprep.subr.mxu0 0.0
        %4130 = vmatpush1.msra.mxu0 0.0
        %4131 = vmatprep.subr.mxu0 0.0
        %4132 = vmatpush1.msra.mxu0 0.0
        %4133 = vmatprep.subr.mxu0 0.0
        %4134 = vmatpush1.msra.mxu0 0.0
        %4135 = vmatprep.subr.mxu0 0.0
        %4136 = vmatpush1.msra.mxu0 0.0
        %4137 = vmatprep.subr.mxu0 0.0
        %4138 = vmatpush1.msra.mxu0 0.0
        %4139 = vmatprep.subr.mxu0 0.0
        %4140 = vmatpush1.msra.mxu0 0.0
        %4141 = vmatprep.subr.mxu0 0.0
        %4142 = vmatpush1.msra.mxu0 0.0
        %4143 = vmatprep.subr.mxu0 0.0
        %4144 = vmatpush1.msra.mxu0 0.0
        %4145 = vmatprep.subr.mxu0 0.0
        %4146 = vmatpush1.msra.mxu0 0.0
        %4147 = vmatprep.subr.mxu0 0.0
        %4148 = vmatpush1.msra.mxu0 0.0
        %4149 = vmatprep.subr.mxu0 0.0
        %4150 = vmatpush1.msra.mxu0 0.0
        %4151 = vmatprep.subr.mxu0 0.0
        %4152 = vmatpush1.msra.mxu0 0.0
        %4153 = vmatprep.subr.mxu0 0.0
        %4154 = vmatpush1.msra.mxu0 0.0
        %4155 = vmatprep.subr.mxu0 0.0
        %4156 = vmatpush1.msra.mxu0 0.0
        %4157 = vmatprep.subr.mxu0 0.0
        %4158 = vmatpush1.msra.mxu0 0.0
        %4159 = vmatprep.subr.mxu0 0.0
        %4160 = vmatpush1.msra.mxu0 0.0
        %4161 = vmatprep.mubr.f32.mxu0 0.0
        %4162 = vmatmul.mubr.f32.gmra.mrb[0].mxu0 %v3674
        %v4163 = vpop.f32.mrb[0].mxu0
        %v4164 = vadd.f32 %v4095, %v4163
        %v4165 = vpop.f32.mrb[0].mxu0
        %4166 = vdwg.mxu0
        %s4167 = scalar_lea.vmem %s27, 160
        %v4168 = vld [vmem:[%s4167] sm:$0xff]
        %v4169 = vld [vmem:[%s4167 + $0x8] sm:$0xff]
        %v4170 = vld [vmem:[%s4167 + $0x10] sm:$0xff]
        %v4171 = vld [vmem:[%s4167 + $0x18] sm:$0xff]
        %s4172 = scalar_lea.vmem %s29, 5
        %v4173 = vld [vmem:[%s4172] sm:$0x1]
        %v4175 = vlaneseq
        %v4176 = vshrl.u32 %v4175, 7
        %v4177 = vsub.s32 0, %v4176
        %v4178 = vrot.slane %v4173, %v4177
        %4180 = vmatprep.subr.mxu0 0.0
        %4181 = vmatpush1.msra.mxu0 %v4168
        %4182 = vmatprep.subr.mxu0 0.0
        %4183 = vmatpush1.msra.mxu0 %v4169
        %4184 = vmatprep.subr.mxu0 0.0
        %4185 = vmatpush1.msra.mxu0 %v4170
        %4186 = vmatprep.subr.mxu0 0.0
        %4187 = vmatpush1.msra.mxu0 %v4171
        %4188 = vmatprep.subr.mxu0 0.0
        %4189 = vmatpush1.msra.mxu0 0.0
        %4190 = vmatprep.subr.mxu0 0.0
        %4191 = vmatpush1.msra.mxu0 0.0
        %4192 = vmatprep.subr.mxu0 0.0
        %4193 = vmatpush1.msra.mxu0 0.0
        %4194 = vmatprep.subr.mxu0 0.0
        %4195 = vmatpush1.msra.mxu0 0.0
        %4196 = vmatprep.subr.mxu0 0.0
        %4197 = vmatpush1.msra.mxu0 0.0
        %4198 = vmatprep.subr.mxu0 0.0
        %4199 = vmatpush1.msra.mxu0 0.0
        %4200 = vmatprep.subr.mxu0 0.0
        %4201 = vmatpush1.msra.mxu0 0.0
        %4202 = vmatprep.subr.mxu0 0.0
        %4203 = vmatpush1.msra.mxu0 0.0
        %4204 = vmatprep.subr.mxu0 0.0
        %4205 = vmatpush1.msra.mxu0 0.0
        %4206 = vmatprep.subr.mxu0 0.0
        %4207 = vmatpush1.msra.mxu0 0.0
        %4208 = vmatprep.subr.mxu0 0.0
        %4209 = vmatpush1.msra.mxu0 0.0
        %4210 = vmatprep.subr.mxu0 0.0
        %4211 = vmatpush1.msra.mxu0 0.0
        %4212 = vmatprep.subr.mxu0 0.0
        %4213 = vmatpush1.msra.mxu0 0.0
        %4214 = vmatprep.subr.mxu0 0.0
        %4215 = vmatpush1.msra.mxu0 0.0
        %4216 = vmatprep.subr.mxu0 0.0
        %4217 = vmatpush1.msra.mxu0 0.0
        %4218 = vmatprep.subr.mxu0 0.0
        %4219 = vmatpush1.msra.mxu0 0.0
        %4220 = vmatprep.subr.mxu0 0.0
        %4221 = vmatpush1.msra.mxu0 0.0
        %4222 = vmatprep.subr.mxu0 0.0
        %4223 = vmatpush1.msra.mxu0 0.0
        %4224 = vmatprep.subr.mxu0 0.0
        %4225 = vmatpush1.msra.mxu0 0.0
        %4226 = vmatprep.subr.mxu0 0.0
        %4227 = vmatpush1.msra.mxu0 0.0
        %4228 = vmatprep.subr.mxu0 0.0
        %4229 = vmatpush1.msra.mxu0 0.0
        %4230 = vmatprep.subr.mxu0 0.0
        %4231 = vmatpush1.msra.mxu0 0.0
        %4232 = vmatprep.subr.mxu0 0.0
        %4233 = vmatpush1.msra.mxu0 0.0
        %4234 = vmatprep.subr.mxu0 0.0
        %4235 = vmatpush1.msra.mxu0 0.0
        %4236 = vmatprep.subr.mxu0 0.0
        %4237 = vmatpush1.msra.mxu0 0.0
        %4238 = vmatprep.subr.mxu0 0.0
        %4239 = vmatpush1.msra.mxu0 0.0
        %4240 = vmatprep.subr.mxu0 0.0
        %4241 = vmatpush1.msra.mxu0 0.0
        %4242 = vmatprep.subr.mxu0 0.0
        %4243 = vmatpush1.msra.mxu0 0.0
        %4244 = vmatprep.mubr.f32.mxu0 0.0
        %4245 = vmatmul.mubr.f32.gmra.mrb[0].mxu0 %v3674
        %v4246 = vpop.f32.mrb[0].mxu0
        %v4247 = vadd.f32 %v4178, %v4246
        %v4248 = vpop.f32.mrb[0].mxu0
        %4249 = vdwg.mxu0
        %v4251 = vsel %vm1919, %v4083, 0
        %v4254 = vsel %vm1919, %v4164, 0
        %4256 = vmatprep.subr.mxu0 0.0
        %4257 = vmatpush1.xpose.msra.mxu0 %v4254
        %4258 = vmatprep.subr.mxu0 0.0
        %4259 = vmatpush1.xpose.msra.mxu0 0.0
        %4260 = vmatprep.subr.mxu0 0.0
        %4261 = vmatpush1.xpose.msra.mxu0 0.0
        %4262 = vmatprep.subr.mxu0 0.0
        %4263 = vmatpush1.xpose.msra.mxu0 0.0
        %4264 = vmatprep.subr.mxu0 0.0
        %4265 = vmatpush1.xpose.msra.mxu0 0.0
        %4266 = vmatprep.subr.mxu0 0.0
        %4267 = vmatpush1.xpose.msra.mxu0 0.0
        %4268 = vmatprep.subr.mxu0 0.0
        %4269 = vmatpush1.xpose.msra.mxu0 0.0
        %4270 = vmatprep.subr.mxu0 0.0
        %4271 = vmatpush1.xpose.msra.mxu0 0.0
        %4272 = vmatprep.subr.mxu0 0.0
        %4273 = vmatpush1.xpose.msra.mxu0 0.0
        %4274 = vmatprep.subr.mxu0 0.0
        %4275 = vmatpush1.xpose.msra.mxu0 0.0
        %4276 = vmatprep.subr.mxu0 0.0
        %4277 = vmatpush1.xpose.msra.mxu0 0.0
        %4278 = vmatprep.subr.mxu0 0.0
        %4279 = vmatpush1.xpose.msra.mxu0 0.0
        %4280 = vmatprep.subr.mxu0 0.0
        %4281 = vmatpush1.xpose.msra.mxu0 0.0
        %4282 = vmatprep.subr.mxu0 0.0
        %4283 = vmatpush1.xpose.msra.mxu0 0.0
        %4284 = vmatprep.subr.mxu0 0.0
        %4285 = vmatpush1.xpose.msra.mxu0 0.0
        %4286 = vmatprep.subr.mxu0 0.0
        %4287 = vmatpush1.xpose.msra.mxu0 0.0
        %4288 = vmatprep.subr.mxu0 0.0
        %4289 = vmatpush1.xpose.msra.mxu0 0.0
        %4290 = vmatprep.subr.mxu0 0.0
        %4291 = vmatpush1.xpose.msra.mxu0 0.0
        %4292 = vmatprep.subr.mxu0 0.0
        %4293 = vmatpush1.xpose.msra.mxu0 0.0
        %4294 = vmatprep.subr.mxu0 0.0
        %4295 = vmatpush1.xpose.msra.mxu0 0.0
        %4296 = vmatprep.subr.mxu0 0.0
        %4297 = vmatpush1.xpose.msra.mxu0 0.0
        %4298 = vmatprep.subr.mxu0 0.0
        %4299 = vmatpush1.xpose.msra.mxu0 0.0
        %4300 = vmatprep.subr.mxu0 0.0
        %4301 = vmatpush1.xpose.msra.mxu0 0.0
        %4302 = vmatprep.subr.mxu0 0.0
        %4303 = vmatpush1.xpose.msra.mxu0 0.0
        %4304 = vmatprep.subr.mxu0 0.0
        %4305 = vmatpush1.xpose.msra.mxu0 0.0
        %4306 = vmatprep.subr.mxu0 0.0
        %4307 = vmatpush1.xpose.msra.mxu0 0.0
        %4308 = vmatprep.subr.mxu0 0.0
        %4309 = vmatpush1.xpose.msra.mxu0 0.0
        %4310 = vmatprep.subr.mxu0 0.0
        %4311 = vmatpush1.xpose.msra.mxu0 0.0
        %4312 = vmatprep.subr.mxu0 0.0
        %4313 = vmatpush1.xpose.msra.mxu0 0.0
        %4314 = vmatprep.subr.mxu0 0.0
        %4315 = vmatpush1.xpose.msra.mxu0 0.0
        %4316 = vmatprep.subr.mxu0 0.0
        %4317 = vmatpush1.xpose.msra.mxu0 0.0
        %4318 = vmatprep.subr.mxu0 0.0
        %4319 = vmatpush1.xpose.msra.mxu0 0.0
        %4320 = vmatprep.mubr.f32.mxu0 0.0
        %4321 = vmatmul.mubr.f32.gmra.mrb[0].mxu0 %v4251
        %v4322 = vpop.f32.mrb[0].mxu0
        %v4323 = vadd.f32 0.0, %v4322
        %v4324 = vpop.f32.mrb[0].mxu0
        %4325 = vdwg.mxu0
        %v4326 = vsel %vm1996, %v4323, -inf
        %4327 = vmax.xlane.f32.xlu0 %v4326
        %v4328 = vpop.xlane.xlu0 %4327
        %v4329 = vsub.f32 %v4323, %v4328
        %v4330 = vmul.f32 %v4329, 1.442695
        %v4331 = vpow.pop %v4330
        %v4332 = vsel %vm1996, %v4331, 0.0
        %4333 = vadd.xlane.f32.xlu0 %v4332
        %v4334 = vpop.xlane.xlu0 %4333
        %v4335 = vrcp.pop %v4334
        %v4336 = vmul.f32 %v4331, %v4335
        %v4338 = vsel %vm2345, %v4336, 0
        %v4341 = vsel %vm2349, %v4247, 0
        %4343 = vmatprep.subr.mxu0 0.0
        %4344 = vmatpush1.msra.mxu0 %v4341
        %4345 = vmatprep.subr.mxu0 0.0
        %4346 = vmatpush1.msra.mxu0 0.0
        %4347 = vmatprep.subr.mxu0 0.0
        %4348 = vmatpush1.msra.mxu0 0.0
        %4349 = vmatprep.subr.mxu0 0.0
        %4350 = vmatpush1.msra.mxu0 0.0
        %4351 = vmatprep.subr.mxu0 0.0
        %4352 = vmatpush1.msra.mxu0 0.0
        %4353 = vmatprep.subr.mxu0 0.0
        %4354 = vmatpush1.msra.mxu0 0.0
        %4355 = vmatprep.subr.mxu0 0.0
        %4356 = vmatpush1.msra.mxu0 0.0
        %4357 = vmatprep.subr.mxu0 0.0
        %4358 = vmatpush1.msra.mxu0 0.0
        %4359 = vmatprep.subr.mxu0 0.0
        %4360 = vmatpush1.msra.mxu0 0.0
        %4361 = vmatprep.subr.mxu0 0.0
        %4362 = vmatpush1.msra.mxu0 0.0
        %4363 = vmatprep.subr.mxu0 0.0
        %4364 = vmatpush1.msra.mxu0 0.0
        %4365 = vmatprep.subr.mxu0 0.0
        %4366 = vmatpush1.msra.mxu0 0.0
        %4367 = vmatprep.subr.mxu0 0.0
        %4368 = vmatpush1.msra.mxu0 0.0
        %4369 = vmatprep.subr.mxu0 0.0
        %4370 = vmatpush1.msra.mxu0 0.0
        %4371 = vmatprep.subr.mxu0 0.0
        %4372 = vmatpush1.msra.mxu0 0.0
        %4373 = vmatprep.subr.mxu0 0.0
        %4374 = vmatpush1.msra.mxu0 0.0
        %4375 = vmatprep.subr.mxu0 0.0
        %4376 = vmatpush1.msra.mxu0 0.0
        %4377 = vmatprep.subr.mxu0 0.0
        %4378 = vmatpush1.msra.mxu0 0.0
        %4379 = vmatprep.subr.mxu0 0.0
        %4380 = vmatpush1.msra.mxu0 0.0
        %4381 = vmatprep.subr.mxu0 0.0
        %4382 = vmatpush1.msra.mxu0 0.0
        %4383 = vmatprep.subr.mxu0 0.0
        %4384 = vmatpush1.msra.mxu0 0.0
        %4385 = vmatprep.subr.mxu0 0.0
        %4386 = vmatpush1.msra.mxu0 0.0
        %4387 = vmatprep.subr.mxu0 0.0
        %4388 = vmatpush1.msra.mxu0 0.0
        %4389 = vmatprep.subr.mxu0 0.0
        %4390 = vmatpush1.msra.mxu0 0.0
        %4391 = vmatprep.subr.mxu0 0.0
        %4392 = vmatpush1.msra.mxu0 0.0
        %4393 = vmatprep.subr.mxu0 0.0
        %4394 = vmatpush1.msra.mxu0 0.0
        %4395 = vmatprep.subr.mxu0 0.0
        %4396 = vmatpush1.msra.mxu0 0.0
        %4397 = vmatprep.subr.mxu0 0.0
        %4398 = vmatpush1.msra.mxu0 0.0
        %4399 = vmatprep.subr.mxu0 0.0
        %4400 = vmatpush1.msra.mxu0 0.0
        %4401 = vmatprep.subr.mxu0 0.0
        %4402 = vmatpush1.msra.mxu0 0.0
        %4403 = vmatprep.subr.mxu0 0.0
        %4404 = vmatpush1.msra.mxu0 0.0
        %4405 = vmatprep.subr.mxu0 0.0
        %4406 = vmatpush1.msra.mxu0 0.0
        %4407 = vmatprep.mubr.f32.mxu0 0.0
        %4408 = vmatmul.mubr.f32.gmra.mrb[0].mxu0 %v4338
        %v4409 = vpop.f32.mrb[0].mxu0
        %v4410 = vadd.f32 0.0, %v4409
        %v4411 = vpop.f32.mrb[0].mxu0
        %4412 = vdwg.mxu0
        %v4414 = vsel %vm2345, %v3999, 0
        %v4417 = vsel %vm2349, %v3910, 0
        %4419 = vmatprep.subr.mxu0 0.0
        %4420 = vmatpush1.msra.mxu0 %v4417
        %4421 = vmatprep.subr.mxu0 0.0
        %4422 = vmatpush1.msra.mxu0 0.0
        %4423 = vmatprep.subr.mxu0 0.0
        %4424 = vmatpush1.msra.mxu0 0.0
        %4425 = vmatprep.subr.mxu0 0.0
        %4426 = vmatpush1.msra.mxu0 0.0
        %4427 = vmatprep.subr.mxu0 0.0
        %4428 = vmatpush1.msra.mxu0 0.0
        %4429 = vmatprep.subr.mxu0 0.0
        %4430 = vmatpush1.msra.mxu0 0.0
        %4431 = vmatprep.subr.mxu0 0.0
        %4432 = vmatpush1.msra.mxu0 0.0
        %4433 = vmatprep.subr.mxu0 0.0
        %4434 = vmatpush1.msra.mxu0 0.0
        %4435 = vmatprep.subr.mxu0 0.0
        %4436 = vmatpush1.msra.mxu0 0.0
        %4437 = vmatprep.subr.mxu0 0.0
        %4438 = vmatpush1.msra.mxu0 0.0
        %4439 = vmatprep.subr.mxu0 0.0
        %4440 = vmatpush1.msra.mxu0 0.0
        %4441 = vmatprep.subr.mxu0 0.0
        %4442 = vmatpush1.msra.mxu0 0.0
        %4443 = vmatprep.subr.mxu0 0.0
        %4444 = vmatpush1.msra.mxu0 0.0
        %4445 = vmatprep.subr.mxu0 0.0
        %4446 = vmatpush1.msra.mxu0 0.0
        %4447 = vmatprep.subr.mxu0 0.0
        %4448 = vmatpush1.msra.mxu0 0.0
        %4449 = vmatprep.subr.mxu0 0.0
        %4450 = vmatpush1.msra.mxu0 0.0
        %4451 = vmatprep.subr.mxu0 0.0
        %4452 = vmatpush1.msra.mxu0 0.0
        %4453 = vmatprep.subr.mxu0 0.0
        %4454 = vmatpush1.msra.mxu0 0.0
        %4455 = vmatprep.subr.mxu0 0.0
        %4456 = vmatpush1.msra.mxu0 0.0
        %4457 = vmatprep.subr.mxu0 0.0
        %4458 = vmatpush1.msra.mxu0 0.0
        %4459 = vmatprep.subr.mxu0 0.0
        %4460 = vmatpush1.msra.mxu0 0.0
        %4461 = vmatprep.subr.mxu0 0.0
        %4462 = vmatpush1.msra.mxu0 0.0
        %4463 = vmatprep.subr.mxu0 0.0
        %4464 = vmatpush1.msra.mxu0 0.0
        %4465 = vmatprep.subr.mxu0 0.0
        %4466 = vmatpush1.msra.mxu0 0.0
        %4467 = vmatprep.subr.mxu0 0.0
        %4468 = vmatpush1.msra.mxu0 0.0
        %4469 = vmatprep.subr.mxu0 0.0
        %4470 = vmatpush1.msra.mxu0 0.0
        %4471 = vmatprep.subr.mxu0 0.0
        %4472 = vmatpush1.msra.mxu0 0.0
        %4473 = vmatprep.subr.mxu0 0.0
        %4474 = vmatpush1.msra.mxu0 0.0
        %4475 = vmatprep.subr.mxu0 0.0
        %4476 = vmatpush1.msra.mxu0 0.0
        %4477 = vmatprep.subr.mxu0 0.0
        %4478 = vmatpush1.msra.mxu0 0.0
        %4479 = vmatprep.subr.mxu0 0.0
        %4480 = vmatpush1.msra.mxu0 0.0
        %4481 = vmatprep.subr.mxu0 0.0
        %4482 = vmatpush1.msra.mxu0 0.0
        %4483 = vmatprep.mubr.f32.mxu0 0.0
        %4484 = vmatmul.mubr.f32.gmra.mrb[0].mxu0 %v4414
        %v4485 = vpop.f32.mrb[0].mxu0
        %v4486 = vadd.f32 %v4410, %v4485
        %v4487 = vpop.f32.mrb[0].mxu0
        %4488 = vdwg.mxu0
        %s4489 = scalar_lea.vmem %s19, 192
        %v4490 = vld [vmem:[%s4489] sm:$0xff]
        %v4491 = vld [vmem:[%s4489 + $0x8] sm:$0xff]
        %v4492 = vld [vmem:[%s4489 + $0x10] sm:$0xff]
        %v4493 = vld [vmem:[%s4489 + $0x18] sm:$0xff]
        %s4494 = scalar_lea.vmem %s21, 6
        %v4495 = vld [vmem:[%s4494] sm:$0x1]
        %v4497 = vlaneseq
        %v4498 = vshrl.u32 %v4497, 7
        %v4499 = vsub.s32 0, %v4498
        %v4500 = vrot.slane %v4495, %v4499
        %4502 = vmatprep.subr.mxu0 0.0
        %4503 = vmatpush1.msra.mxu0 %v4490
        %4504 = vmatprep.subr.mxu0 0.0
        %4505 = vmatpush1.msra.mxu0 %v4491
        %4506 = vmatprep.subr.mxu0 0.0
        %4507 = vmatpush1.msra.mxu0 %v4492
        %4508 = vmatprep.subr.mxu0 0.0
        %4509 = vmatpush1.msra.mxu0 %v4493
        %4510 = vmatprep.subr.mxu0 0.0
        %4511 = vmatpush1.msra.mxu0 0.0
        %4512 = vmatprep.subr.mxu0 0.0
        %4513 = vmatpush1.msra.mxu0 0.0
        %4514 = vmatprep.subr.mxu0 0.0
        %4515 = vmatpush1.msra.mxu0 0.0
        %4516 = vmatprep.subr.mxu0 0.0
        %4517 = vmatpush1.msra.mxu0 0.0
        %4518 = vmatprep.subr.mxu0 0.0
        %4519 = vmatpush1.msra.mxu0 0.0
        %4520 = vmatprep.subr.mxu0 0.0
        %4521 = vmatpush1.msra.mxu0 0.0
        %4522 = vmatprep.subr.mxu0 0.0
        %4523 = vmatpush1.msra.mxu0 0.0
        %4524 = vmatprep.subr.mxu0 0.0
        %4525 = vmatpush1.msra.mxu0 0.0
        %4526 = vmatprep.subr.mxu0 0.0
        %4527 = vmatpush1.msra.mxu0 0.0
        %4528 = vmatprep.subr.mxu0 0.0
        %4529 = vmatpush1.msra.mxu0 0.0
        %4530 = vmatprep.subr.mxu0 0.0
        %4531 = vmatpush1.msra.mxu0 0.0
        %4532 = vmatprep.subr.mxu0 0.0
        %4533 = vmatpush1.msra.mxu0 0.0
        %4534 = vmatprep.subr.mxu0 0.0
        %4535 = vmatpush1.msra.mxu0 0.0
        %4536 = vmatprep.subr.mxu0 0.0
        %4537 = vmatpush1.msra.mxu0 0.0
        %4538 = vmatprep.subr.mxu0 0.0
        %4539 = vmatpush1.msra.mxu0 0.0
        %4540 = vmatprep.subr.mxu0 0.0
        %4541 = vmatpush1.msra.mxu0 0.0
        %4542 = vmatprep.subr.mxu0 0.0
        %4543 = vmatpush1.msra.mxu0 0.0
        %4544 = vmatprep.subr.mxu0 0.0
        %4545 = vmatpush1.msra.mxu0 0.0
        %4546 = vmatprep.subr.mxu0 0.0
        %4547 = vmatpush1.msra.mxu0 0.0
        %4548 = vmatprep.subr.mxu0 0.0
        %4549 = vmatpush1.msra.mxu0 0.0
        %4550 = vmatprep.subr.mxu0 0.0
        %4551 = vmatpush1.msra.mxu0 0.0
        %4552 = vmatprep.subr.mxu0 0.0
        %4553 = vmatpush1.msra.mxu0 0.0
        %4554 = vmatprep.subr.mxu0 0.0
        %4555 = vmatpush1.msra.mxu0 0.0
        %4556 = vmatprep.subr.mxu0 0.0
        %4557 = vmatpush1.msra.mxu0 0.0
        %4558 = vmatprep.subr.mxu0 0.0
        %4559 = vmatpush1.msra.mxu0 0.0
        %4560 = vmatprep.subr.mxu0 0.0
        %4561 = vmatpush1.msra.mxu0 0.0
        %4562 = vmatprep.subr.mxu0 0.0
        %4563 = vmatpush1.msra.mxu0 0.0
        %4564 = vmatprep.subr.mxu0 0.0
        %4565 = vmatpush1.msra.mxu0 0.0
        %4566 = vmatprep.mubr.f32.mxu0 0.0
        %4567 = vmatmul.mubr.f32.gmra.mrb[0].mxu0 %v3674
        %v4568 = vpop.f32.mrb[0].mxu0
        %v4569 = vadd.f32 %v4500, %v4568
        %v4570 = vpop.f32.mrb[0].mxu0
        %4571 = vdwg.mxu0
        %v4572 = vmul.f32 %v4569, 0.35355338
        %s4573 = scalar_lea.vmem %s23, 192
        %v4574 = vld [vmem:[%s4573] sm:$0xff]
        %v4575 = vld [vmem:[%s4573 + $0x8] sm:$0xff]
        %v4576 = vld [vmem:[%s4573 + $0x10] sm:$0xff]
        %v4577 = vld [vmem:[%s4573 + $0x18] sm:$0xff]
        %s4578 = scalar_lea.vmem %s25, 6
        %v4579 = vld [vmem:[%s4578] sm:$0x1]
        %v4581 = vlaneseq
        %v4582 = vshrl.u32 %v4581, 7
        %v4583 = vsub.s32 0, %v4582
        %v4584 = vrot.slane %v4579, %v4583
        %4586 = vmatprep.subr.mxu0 0.0
        %4587 = vmatpush1.msra.mxu0 %v4574
        %4588 = vmatprep.subr.mxu0 0.0
        %4589 = vmatpush1.msra.mxu0 %v4575
        %4590 = vmatprep.subr.mxu0 0.0
        %4591 = vmatpush1.msra.mxu0 %v4576
        %4592 = vmatprep.subr.mxu0 0.0
        %4593 = vmatpush1.msra.mxu0 %v4577
        %4594 = vmatprep.subr.mxu0 0.0
        %4595 = vmatpush1.msra.mxu0 0.0
        %4596 = vmatprep.subr.mxu0 0.0
        %4597 = vmatpush1.msra.mxu0 0.0
        %4598 = vmatprep.subr.mxu0 0.0
        %4599 = vmatpush1.msra.mxu0 0.0
        %4600 = vmatprep.subr.mxu0 0.0
        %4601 = vmatpush1.msra.mxu0 0.0
        %4602 = vmatprep.subr.mxu0 0.0
        %4603 = vmatpush1.msra.mxu0 0.0
        %4604 = vmatprep.subr.mxu0 0.0
        %4605 = vmatpush1.msra.mxu0 0.0
        %4606 = vmatprep.subr.mxu0 0.0
        %4607 = vmatpush1.msra.mxu0 0.0
        %4608 = vmatprep.subr.mxu0 0.0
        %4609 = vmatpush1.msra.mxu0 0.0
        %4610 = vmatprep.subr.mxu0 0.0
        %4611 = vmatpush1.msra.mxu0 0.0
        %4612 = vmatprep.subr.mxu0 0.0
        %4613 = vmatpush1.msra.mxu0 0.0
        %4614 = vmatprep.subr.mxu0 0.0
        %4615 = vmatpush1.msra.mxu0 0.0
        %4616 = vmatprep.subr.mxu0 0.0
        %4617 = vmatpush1.msra.mxu0 0.0
        %4618 = vmatprep.subr.mxu0 0.0
        %4619 = vmatpush1.msra.mxu0 0.0
        %4620 = vmatprep.subr.mxu0 0.0
        %4621 = vmatpush1.msra.mxu0 0.0
        %4622 = vmatprep.subr.mxu0 0.0
        %4623 = vmatpush1.msra.mxu0 0.0
        %4624 = vmatprep.subr.mxu0 0.0
        %4625 = vmatpush1.msra.mxu0 0.0
        %4626 = vmatprep.subr.mxu0 0.0
        %4627 = vmatpush1.msra.mxu0 0.0
        %4628 = vmatprep.subr.mxu0 0.0
        %4629 = vmatpush1.msra.mxu0 0.0
        %4630 = vmatprep.subr.mxu0 0.0
        %4631 = vmatpush1.msra.mxu0 0.0
        %4632 = vmatprep.subr.mxu0 0.0
        %4633 = vmatpush1.msra.mxu0 0.0
        %4634 = vmatprep.subr.mxu0 0.0
        %4635 = vmatpush1.msra.mxu0 0.0
        %4636 = vmatprep.subr.mxu0 0.0
        %4637 = vmatpush1.msra.mxu0 0.0
        %4638 = vmatprep.subr.mxu0 0.0
        %4639 = vmatpush1.msra.mxu0 0.0
        %4640 = vmatprep.subr.mxu0 0.0
        %4641 = vmatpush1.msra.mxu0 0.0
        %4642 = vmatprep.subr.mxu0 0.0
        %4643 = vmatpush1.msra.mxu0 0.0
        %4644 = vmatprep.subr.mxu0 0.0
        %4645 = vmatpush1.msra.mxu0 0.0
        %4646 = vmatprep.subr.mxu0 0.0
        %4647 = vmatpush1.msra.mxu0 0.0
        %4648 = vmatprep.subr.mxu0 0.0
        %4649 = vmatpush1.msra.mxu0 0.0
        %4650 = vmatprep.mubr.f32.mxu0 0.0
        %4651 = vmatmul.mubr.f32.gmra.mrb[0].mxu0 %v3674
        %v4652 = vpop.f32.mrb[0].mxu0
        %v4653 = vadd.f32 %v4584, %v4652
        %v4654 = vpop.f32.mrb[0].mxu0
        %4655 = vdwg.mxu0
        %s4656 = scalar_lea.vmem %s27, 192
        %v4657 = vld [vmem:[%s4656] sm:$0xff]
        %v4658 = vld [vmem:[%s4656 + $0x8] sm:$0xff]
        %v4659 = vld [vmem:[%s4656 + $0x10] sm:$0xff]
        %v4660 = vld [vmem:[%s4656 + $0x18] sm:$0xff]
        %s4661 = scalar_lea.vmem %s29, 6
        %v4662 = vld [vmem:[%s4661] sm:$0x1]
        %v4664 = vlaneseq
        %v4665 = vshrl.u32 %v4664, 7
        %v4666 = vsub.s32 0, %v4665
        %v4667 = vrot.slane %v4662, %v4666
        %4669 = vmatprep.subr.mxu0 0.0
        %4670 = vmatpush1.msra.mxu0 %v4657
        %4671 = vmatprep.subr.mxu0 0.0
        %4672 = vmatpush1.msra.mxu0 %v4658
        %4673 = vmatprep.subr.mxu0 0.0
        %4674 = vmatpush1.msra.mxu0 %v4659
        %4675 = vmatprep.subr.mxu0 0.0
        %4676 = vmatpush1.msra.mxu0 %v4660
        %4677 = vmatprep.subr.mxu0 0.0
        %4678 = vmatpush1.msra.mxu0 0.0
        %4679 = vmatprep.subr.mxu0 0.0
        %4680 = vmatpush1.msra.mxu0 0.0
        %4681 = vmatprep.subr.mxu0 0.0
        %4682 = vmatpush1.msra.mxu0 0.0
        %4683 = vmatprep.subr.mxu0 0.0
        %4684 = vmatpush1.msra.mxu0 0.0
        %4685 = vmatprep.subr.mxu0 0.0
        %4686 = vmatpush1.msra.mxu0 0.0
        %4687 = vmatprep.subr.mxu0 0.0
        %4688 = vmatpush1.msra.mxu0 0.0
        %4689 = vmatprep.subr.mxu0 0.0
        %4690 = vmatpush1.msra.mxu0 0.0
        %4691 = vmatprep.subr.mxu0 0.0
        %4692 = vmatpush1.msra.mxu0 0.0
        %4693 = vmatprep.subr.mxu0 0.0
        %4694 = vmatpush1.msra.mxu0 0.0
        %4695 = vmatprep.subr.mxu0 0.0
        %4696 = vmatpush1.msra.mxu0 0.0
        %4697 = vmatprep.subr.mxu0 0.0
        %4698 = vmatpush1.msra.mxu0 0.0
        %4699 = vmatprep.subr.mxu0 0.0
        %4700 = vmatpush1.msra.mxu0 0.0
        %4701 = vmatprep.subr.mxu0 0.0
        %4702 = vmatpush1.msra.mxu0 0.0
        %4703 = vmatprep.subr.mxu0 0.0
        %4704 = vmatpush1.msra.mxu0 0.0
        %4705 = vmatprep.subr.mxu0 0.0
        %4706 = vmatpush1.msra.mxu0 0.0
        %4707 = vmatprep.subr.mxu0 0.0
        %4708 = vmatpush1.msra.mxu0 0.0
        %4709 = vmatprep.subr.mxu0 0.0
        %4710 = vmatpush1.msra.mxu0 0.0
        %4711 = vmatprep.subr.mxu0 0.0
        %4712 = vmatpush1.msra.mxu0 0.0
        %4713 = vmatprep.subr.mxu0 0.0
        %4714 = vmatpush1.msra.mxu0 0.0
        %4715 = vmatprep.subr.mxu0 0.0
        %4716 = vmatpush1.msra.mxu0 0.0
        %4717 = vmatprep.subr.mxu0 0.0
        %4718 = vmatpush1.msra.mxu0 0.0
        %4719 = vmatprep.subr.mxu0 0.0
        %4720 = vmatpush1.msra.mxu0 0.0
        %4721 = vmatprep.subr.mxu0 0.0
        %4722 = vmatpush1.msra.mxu0 0.0
        %4723 = vmatprep.subr.mxu0 0.0
        %4724 = vmatpush1.msra.mxu0 0.0
        %4725 = vmatprep.subr.mxu0 0.0
        %4726 = vmatpush1.msra.mxu0 0.0
        %4727 = vmatprep.subr.mxu0 0.0
        %4728 = vmatpush1.msra.mxu0 0.0
        %4729 = vmatprep.subr.mxu0 0.0
        %4730 = vmatpush1.msra.mxu0 0.0
        %4731 = vmatprep.subr.mxu0 0.0
        %4732 = vmatpush1.msra.mxu0 0.0
        %4733 = vmatprep.mubr.f32.mxu0 0.0
        %4734 = vmatmul.mubr.f32.gmra.mrb[0].mxu0 %v3674
        %v4735 = vpop.f32.mrb[0].mxu0
        %v4736 = vadd.f32 %v4667, %v4735
        %v4737 = vpop.f32.mrb[0].mxu0
        %4738 = vdwg.mxu0
        %v4740 = vsel %vm1919, %v4572, 0
        %v4743 = vsel %vm1919, %v4653, 0
        %4745 = vmatprep.subr.mxu0 0.0
        %4746 = vmatpush1.xpose.msra.mxu0 %v4743
        %4747 = vmatprep.subr.mxu0 0.0
        %4748 = vmatpush1.xpose.msra.mxu0 0.0
        %4749 = vmatprep.subr.mxu0 0.0
        %4750 = vmatpush1.xpose.msra.mxu0 0.0
        %4751 = vmatprep.subr.mxu0 0.0
        %4752 = vmatpush1.xpose.msra.mxu0 0.0
        %4753 = vmatprep.subr.mxu0 0.0
        %4754 = vmatpush1.xpose.msra.mxu0 0.0
        %4755 = vmatprep.subr.mxu0 0.0
        %4756 = vmatpush1.xpose.msra.mxu0 0.0
        %4757 = vmatprep.subr.mxu0 0.0
        %4758 = vmatpush1.xpose.msra.mxu0 0.0
        %4759 = vmatprep.subr.mxu0 0.0
        %4760 = vmatpush1.xpose.msra.mxu0 0.0
        %4761 = vmatprep.subr.mxu0 0.0
        %4762 = vmatpush1.xpose.msra.mxu0 0.0
        %4763 = vmatprep.subr.mxu0 0.0
        %4764 = vmatpush1.xpose.msra.mxu0 0.0
        %4765 = vmatprep.subr.mxu0 0.0
        %4766 = vmatpush1.xpose.msra.mxu0 0.0
        %4767 = vmatprep.subr.mxu0 0.0
        %4768 = vmatpush1.xpose.msra.mxu0 0.0
        %4769 = vmatprep.subr.mxu0 0.0
        %4770 = vmatpush1.xpose.msra.mxu0 0.0
        %4771 = vmatprep.subr.mxu0 0.0
        %4772 = vmatpush1.xpose.msra.mxu0 0.0
        %4773 = vmatprep.subr.mxu0 0.0
        %4774 = vmatpush1.xpose.msra.mxu0 0.0
        %4775 = vmatprep.subr.mxu0 0.0
        %4776 = vmatpush1.xpose.msra.mxu0 0.0
        %4777 = vmatprep.subr.mxu0 0.0
        %4778 = vmatpush1.xpose.msra.mxu0 0.0
        %4779 = vmatprep.subr.mxu0 0.0
        %4780 = vmatpush1.xpose.msra.mxu0 0.0
        %4781 = vmatprep.subr.mxu0 0.0
        %4782 = vmatpush1.xpose.msra.mxu0 0.0
        %4783 = vmatprep.subr.mxu0 0.0
        %4784 = vmatpush1.xpose.msra.mxu0 0.0
        %4785 = vmatprep.subr.mxu0 0.0
        %4786 = vmatpush1.xpose.msra.mxu0 0.0
        %4787 = vmatprep.subr.mxu0 0.0
        %4788 = vmatpush1.xpose.msra.mxu0 0.0
        %4789 = vmatprep.subr.mxu0 0.0
        %4790 = vmatpush1.xpose.msra.mxu0 0.0
        %4791 = vmatprep.subr.mxu0 0.0
        %4792 = vmatpush1.xpose.msra.mxu0 0.0
        %4793 = vmatprep.subr.mxu0 0.0
        %4794 = vmatpush1.xpose.msra.mxu0 0.0
        %4795 = vmatprep.subr.mxu0 0.0
        %4796 = vmatpush1.xpose.msra.mxu0 0.0
        %4797 = vmatprep.subr.mxu0 0.0
        %4798 = vmatpush1.xpose.msra.mxu0 0.0
        %4799 = vmatprep.subr.mxu0 0.0
        %4800 = vmatpush1.xpose.msra.mxu0 0.0
        %4801 = vmatprep.subr.mxu0 0.0
        %4802 = vmatpush1.xpose.msra.mxu0 0.0
        %4803 = vmatprep.subr.mxu0 0.0
        %4804 = vmatpush1.xpose.msra.mxu0 0.0
        %4805 = vmatprep.subr.mxu0 0.0
        %4806 = vmatpush1.xpose.msra.mxu0 0.0
        %4807 = vmatprep.subr.mxu0 0.0
        %4808 = vmatpush1.xpose.msra.mxu0 0.0
        %4809 = vmatprep.mubr.f32.mxu0 0.0
        %4810 = vmatmul.mubr.f32.gmra.mrb[0].mxu0 %v4740
        %v4811 = vpop.f32.mrb[0].mxu0
        %v4812 = vadd.f32 0.0, %v4811
        %v4813 = vpop.f32.mrb[0].mxu0
        %4814 = vdwg.mxu0
        %v4815 = vsel %vm1996, %v4812, -inf
        %4816 = vmax.xlane.f32.xlu0 %v4815
        %v4817 = vpop.xlane.xlu0 %4816
        %v4818 = vsub.f32 %v4812, %v4817
        %v4819 = vmul.f32 %v4818, 1.442695
        %v4820 = vpow.pop %v4819
        %v4821 = vsel %vm1996, %v4820, 0.0
        %4822 = vadd.xlane.f32.xlu0 %v4821
        %v4823 = vpop.xlane.xlu0 %4822
        %v4824 = vrcp.pop %v4823
        %v4825 = vmul.f32 %v4820, %v4824
        %v4827 = vsel %vm2345, %v4825, 0
        %v4830 = vsel %vm2349, %v4736, 0
        %4832 = vmatprep.subr.mxu0 0.0
        %4833 = vmatpush1.msra.mxu0 %v4830
        %4834 = vmatprep.subr.mxu0 0.0
        %4835 = vmatpush1.msra.mxu0 0.0
        %4836 = vmatprep.subr.mxu0 0.0
        %4837 = vmatpush1.msra.mxu0 0.0
        %4838 = vmatprep.subr.mxu0 0.0
        %4839 = vmatpush1.msra.mxu0 0.0
        %4840 = vmatprep.subr.mxu0 0.0
        %4841 = vmatpush1.msra.mxu0 0.0
        %4842 = vmatprep.subr.mxu0 0.0
        %4843 = vmatpush1.msra.mxu0 0.0
        %4844 = vmatprep.subr.mxu0 0.0
        %4845 = vmatpush1.msra.mxu0 0.0
        %4846 = vmatprep.subr.mxu0 0.0
        %4847 = vmatpush1.msra.mxu0 0.0
        %4848 = vmatprep.subr.mxu0 0.0
        %4849 = vmatpush1.msra.mxu0 0.0
        %4850 = vmatprep.subr.mxu0 0.0
        %4851 = vmatpush1.msra.mxu0 0.0
        %4852 = vmatprep.subr.mxu0 0.0
        %4853 = vmatpush1.msra.mxu0 0.0
        %4854 = vmatprep.subr.mxu0 0.0
        %4855 = vmatpush1.msra.mxu0 0.0
        %4856 = vmatprep.subr.mxu0 0.0
        %4857 = vmatpush1.msra.mxu0 0.0
        %4858 = vmatprep.subr.mxu0 0.0
        %4859 = vmatpush1.msra.mxu0 0.0
        %4860 = vmatprep.subr.mxu0 0.0
        %4861 = vmatpush1.msra.mxu0 0.0
        %4862 = vmatprep.subr.mxu0 0.0
        %4863 = vmatpush1.msra.mxu0 0.0
        %4864 = vmatprep.subr.mxu0 0.0
        %4865 = vmatpush1.msra.mxu0 0.0
        %4866 = vmatprep.subr.mxu0 0.0
        %4867 = vmatpush1.msra.mxu0 0.0
        %4868 = vmatprep.subr.mxu0 0.0
        %4869 = vmatpush1.msra.mxu0 0.0
        %4870 = vmatprep.subr.mxu0 0.0
        %4871 = vmatpush1.msra.mxu0 0.0
        %4872 = vmatprep.subr.mxu0 0.0
        %4873 = vmatpush1.msra.mxu0 0.0
        %4874 = vmatprep.subr.mxu0 0.0
        %4875 = vmatpush1.msra.mxu0 0.0
        %4876 = vmatprep.subr.mxu0 0.0
        %4877 = vmatpush1.msra.mxu0 0.0
        %4878 = vmatprep.subr.mxu0 0.0
        %4879 = vmatpush1.msra.mxu0 0.0
        %4880 = vmatprep.subr.mxu0 0.0
        %4881 = vmatpush1.msra.mxu0 0.0
        %4882 = vmatprep.subr.mxu0 0.0
        %4883 = vmatpush1.msra.mxu0 0.0
        %4884 = vmatprep.subr.mxu0 0.0
        %4885 = vmatpush1.msra.mxu0 0.0
        %4886 = vmatprep.subr.mxu0 0.0
        %4887 = vmatpush1.msra.mxu0 0.0
        %4888 = vmatprep.subr.mxu0 0.0
        %4889 = vmatpush1.msra.mxu0 0.0
        %4890 = vmatprep.subr.mxu0 0.0
        %4891 = vmatpush1.msra.mxu0 0.0
        %4892 = vmatprep.subr.mxu0 0.0
        %4893 = vmatpush1.msra.mxu0 0.0
        %4894 = vmatprep.subr.mxu0 0.0
        %4895 = vmatpush1.msra.mxu0 0.0
        %4896 = vmatprep.mubr.f32.mxu0 0.0
        %4897 = vmatmul.mubr.f32.gmra.mrb[0].mxu0 %v4827
        %v4898 = vpop.f32.mrb[0].mxu0
        %v4899 = vadd.f32 0.0, %v4898
        %v4900 = vpop.f32.mrb[0].mxu0
        %4901 = vdwg.mxu0
        %v4902 = vadd.f32 %v4486, %v4899
        %s4903 = scalar_lea.vmem %s19, 224
        %v4904 = vld [vmem:[%s4903] sm:$0xff]
        %v4905 = vld [vmem:[%s4903 + $0x8] sm:$0xff]
        %v4906 = vld [vmem:[%s4903 + $0x10] sm:$0xff]
        %v4907 = vld [vmem:[%s4903 + $0x18] sm:$0xff]
        %s4908 = scalar_lea.vmem %s21, 7
        %v4909 = vld [vmem:[%s4908] sm:$0x1]
        %v4911 = vlaneseq
        %v4912 = vshrl.u32 %v4911, 7
        %v4913 = vsub.s32 0, %v4912
        %v4914 = vrot.slane %v4909, %v4913
        %4916 = vmatprep.subr.mxu0 0.0
        %4917 = vmatpush1.msra.mxu0 %v4904
        %4918 = vmatprep.subr.mxu0 0.0
        %4919 = vmatpush1.msra.mxu0 %v4905
        %4920 = vmatprep.subr.mxu0 0.0
        %4921 = vmatpush1.msra.mxu0 %v4906
        %4922 = vmatprep.subr.mxu0 0.0
        %4923 = vmatpush1.msra.mxu0 %v4907
        %4924 = vmatprep.subr.mxu0 0.0
        %4925 = vmatpush1.msra.mxu0 0.0
        %4926 = vmatprep.subr.mxu0 0.0
        %4927 = vmatpush1.msra.mxu0 0.0
        %4928 = vmatprep.subr.mxu0 0.0
        %4929 = vmatpush1.msra.mxu0 0.0
        %4930 = vmatprep.subr.mxu0 0.0
        %4931 = vmatpush1.msra.mxu0 0.0
        %4932 = vmatprep.subr.mxu0 0.0
        %4933 = vmatpush1.msra.mxu0 0.0
        %4934 = vmatprep.subr.mxu0 0.0
        %4935 = vmatpush1.msra.mxu0 0.0
        %4936 = vmatprep.subr.mxu0 0.0
        %4937 = vmatpush1.msra.mxu0 0.0
        %4938 = vmatprep.subr.mxu0 0.0
        %4939 = vmatpush1.msra.mxu0 0.0
        %4940 = vmatprep.subr.mxu0 0.0
        %4941 = vmatpush1.msra.mxu0 0.0
        %4942 = vmatprep.subr.mxu0 0.0
        %4943 = vmatpush1.msra.mxu0 0.0
        %4944 = vmatprep.subr.mxu0 0.0
        %4945 = vmatpush1.msra.mxu0 0.0
        %4946 = vmatprep.subr.mxu0 0.0
        %4947 = vmatpush1.msra.mxu0 0.0
        %4948 = vmatprep.subr.mxu0 0.0
        %4949 = vmatpush1.msra.mxu0 0.0
        %4950 = vmatprep.subr.mxu0 0.0
        %4951 = vmatpush1.msra.mxu0 0.0
        %4952 = vmatprep.subr.mxu0 0.0
        %4953 = vmatpush1.msra.mxu0 0.0
        %4954 = vmatprep.subr.mxu0 0.0
        %4955 = vmatpush1.msra.mxu0 0.0
        %4956 = vmatprep.subr.mxu0 0.0
        %4957 = vmatpush1.msra.mxu0 0.0
        %4958 = vmatprep.subr.mxu0 0.0
        %4959 = vmatpush1.msra.mxu0 0.0
        %4960 = vmatprep.subr.mxu0 0.0
        %4961 = vmatpush1.msra.mxu0 0.0
        %4962 = vmatprep.subr.mxu0 0.0
        %4963 = vmatpush1.msra.mxu0 0.0
        %4964 = vmatprep.subr.mxu0 0.0
        %4965 = vmatpush1.msra.mxu0 0.0
        %4966 = vmatprep.subr.mxu0 0.0
        %4967 = vmatpush1.msra.mxu0 0.0
        %4968 = vmatprep.subr.mxu0 0.0
        %4969 = vmatpush1.msra.mxu0 0.0
        %4970 = vmatprep.subr.mxu0 0.0
        %4971 = vmatpush1.msra.mxu0 0.0
        %4972 = vmatprep.subr.mxu0 0.0
        %4973 = vmatpush1.msra.mxu0 0.0
        %4974 = vmatprep.subr.mxu0 0.0
        %4975 = vmatpush1.msra.mxu0 0.0
        %4976 = vmatprep.subr.mxu0 0.0
        %4977 = vmatpush1.msra.mxu0 0.0
        %4978 = vmatprep.subr.mxu0 0.0
        %4979 = vmatpush1.msra.mxu0 0.0
        %4980 = vmatprep.mubr.f32.mxu0 0.0
        %4981 = vmatmul.mubr.f32.gmra.mrb[0].mxu0 %v3674
        %v4982 = vpop.f32.mrb[0].mxu0
        %v4983 = vadd.f32 %v4914, %v4982
        %v4984 = vpop.f32.mrb[0].mxu0
        %4985 = vdwg.mxu0
        %v4986 = vmul.f32 %v4983, 0.35355338
        %s4987 = scalar_lea.vmem %s23, 224
        %v4988 = vld [vmem:[%s4987] sm:$0xff]
        %v4989 = vld [vmem:[%s4987 + $0x8] sm:$0xff]
        %v4990 = vld [vmem:[%s4987 + $0x10] sm:$0xff]
        %v4991 = vld [vmem:[%s4987 + $0x18] sm:$0xff]
        %s4992 = scalar_lea.vmem %s25, 7
        %v4993 = vld [vmem:[%s4992] sm:$0x1]
        %v4995 = vlaneseq
        %v4996 = vshrl.u32 %v4995, 7
        %v4997 = vsub.s32 0, %v4996
        %v4998 = vrot.slane %v4993, %v4997
        %5000 = vmatprep.subr.mxu0 0.0
        %5001 = vmatpush1.msra.mxu0 %v4988
        %5002 = vmatprep.subr.mxu0 0.0
        %5003 = vmatpush1.msra.mxu0 %v4989
        %5004 = vmatprep.subr.mxu0 0.0
        %5005 = vmatpush1.msra.mxu0 %v4990
        %5006 = vmatprep.subr.mxu0 0.0
        %5007 = vmatpush1.msra.mxu0 %v4991
        %5008 = vmatprep.subr.mxu0 0.0
        %5009 = vmatpush1.msra.mxu0 0.0
        %5010 = vmatprep.subr.mxu0 0.0
        %5011 = vmatpush1.msra.mxu0 0.0
        %5012 = vmatprep.subr.mxu0 0.0
        %5013 = vmatpush1.msra.mxu0 0.0
        %5014 = vmatprep.subr.mxu0 0.0
        %5015 = vmatpush1.msra.mxu0 0.0
        %5016 = vmatprep.subr.mxu0 0.0
        %5017 = vmatpush1.msra.mxu0 0.0
        %5018 = vmatprep.subr.mxu0 0.0
        %5019 = vmatpush1.msra.mxu0 0.0
        %5020 = vmatprep.subr.mxu0 0.0
        %5021 = vmatpush1.msra.mxu0 0.0
        %5022 = vmatprep.subr.mxu0 0.0
        %5023 = vmatpush1.msra.mxu0 0.0
        %5024 = vmatprep.subr.mxu0 0.0
        %5025 = vmatpush1.msra.mxu0 0.0
        %5026 = vmatprep.subr.mxu0 0.0
        %5027 = vmatpush1.msra.mxu0 0.0
        %5028 = vmatprep.subr.mxu0 0.0
        %5029 = vmatpush1.msra.mxu0 0.0
        %5030 = vmatprep.subr.mxu0 0.0
        %5031 = vmatpush1.msra.mxu0 0.0
        %5032 = vmatprep.subr.mxu0 0.0
        %5033 = vmatpush1.msra.mxu0 0.0
        %5034 = vmatprep.subr.mxu0 0.0
        %5035 = vmatpush1.msra.mxu0 0.0
        %5036 = vmatprep.subr.mxu0 0.0
        %5037 = vmatpush1.msra.mxu0 0.0
        %5038 = vmatprep.subr.mxu0 0.0
        %5039 = vmatpush1.msra.mxu0 0.0
        %5040 = vmatprep.subr.mxu0 0.0
        %5041 = vmatpush1.msra.mxu0 0.0
        %5042 = vmatprep.subr.mxu0 0.0
        %5043 = vmatpush1.msra.mxu0 0.0
        %5044 = vmatprep.subr.mxu0 0.0
        %5045 = vmatpush1.msra.mxu0 0.0
        %5046 = vmatprep.subr.mxu0 0.0
        %5047 = vmatpush1.msra.mxu0 0.0
        %5048 = vmatprep.subr.mxu0 0.0
        %5049 = vmatpush1.msra.mxu0 0.0
        %5050 = vmatprep.subr.mxu0 0.0
        %5051 = vmatpush1.msra.mxu0 0.0
        %5052 = vmatprep.subr.mxu0 0.0
        %5053 = vmatpush1.msra.mxu0 0.0
        %5054 = vmatprep.subr.mxu0 0.0
        %5055 = vmatpush1.msra.mxu0 0.0
        %5056 = vmatprep.subr.mxu0 0.0
        %5057 = vmatpush1.msra.mxu0 0.0
        %5058 = vmatprep.subr.mxu0 0.0
        %5059 = vmatpush1.msra.mxu0 0.0
        %5060 = vmatprep.subr.mxu0 0.0
        %5061 = vmatpush1.msra.mxu0 0.0
        %5062 = vmatprep.subr.mxu0 0.0
        %5063 = vmatpush1.msra.mxu0 0.0
        %5064 = vmatprep.mubr.f32.mxu0 0.0
        %5065 = vmatmul.mubr.f32.gmra.mrb[0].mxu0 %v3674
        %v5066 = vpop.f32.mrb[0].mxu0
        %v5067 = vadd.f32 %v4998, %v5066
        %v5068 = vpop.f32.mrb[0].mxu0
        %5069 = vdwg.mxu0
        %s5070 = scalar_lea.vmem %s27, 224
        %v5071 = vld [vmem:[%s5070] sm:$0xff]
        %v5072 = vld [vmem:[%s5070 + $0x8] sm:$0xff]
        %v5073 = vld [vmem:[%s5070 + $0x10] sm:$0xff]
        %v5074 = vld [vmem:[%s5070 + $0x18] sm:$0xff]
        %s5075 = scalar_lea.vmem %s29, 7
        %v5076 = vld [vmem:[%s5075] sm:$0x1]
        %v5078 = vlaneseq
        %v5079 = vshrl.u32 %v5078, 7
        %v5080 = vsub.s32 0, %v5079
        %v5081 = vrot.slane %v5076, %v5080
        %5083 = vmatprep.subr.mxu0 0.0
        %5084 = vmatpush1.msra.mxu0 %v5071
        %5085 = vmatprep.subr.mxu0 0.0
        %5086 = vmatpush1.msra.mxu0 %v5072
        %5087 = vmatprep.subr.mxu0 0.0
        %5088 = vmatpush1.msra.mxu0 %v5073
        %5089 = vmatprep.subr.mxu0 0.0
        %5090 = vmatpush1.msra.mxu0 %v5074
        %5091 = vmatprep.subr.mxu0 0.0
        %5092 = vmatpush1.msra.mxu0 0.0
        %5093 = vmatprep.subr.mxu0 0.0
        %5094 = vmatpush1.msra.mxu0 0.0
        %5095 = vmatprep.subr.mxu0 0.0
        %5096 = vmatpush1.msra.mxu0 0.0
        %5097 = vmatprep.subr.mxu0 0.0
        %5098 = vmatpush1.msra.mxu0 0.0
        %5099 = vmatprep.subr.mxu0 0.0
        %5100 = vmatpush1.msra.mxu0 0.0
        %5101 = vmatprep.subr.mxu0 0.0
        %5102 = vmatpush1.msra.mxu0 0.0
        %5103 = vmatprep.subr.mxu0 0.0
        %5104 = vmatpush1.msra.mxu0 0.0
        %5105 = vmatprep.subr.mxu0 0.0
        %5106 = vmatpush1.msra.mxu0 0.0
        %5107 = vmatprep.subr.mxu0 0.0
        %5108 = vmatpush1.msra.mxu0 0.0
        %5109 = vmatprep.subr.mxu0 0.0
        %5110 = vmatpush1.msra.mxu0 0.0
        %5111 = vmatprep.subr.mxu0 0.0
        %5112 = vmatpush1.msra.mxu0 0.0
        %5113 = vmatprep.subr.mxu0 0.0
        %5114 = vmatpush1.msra.mxu0 0.0
        %5115 = vmatprep.subr.mxu0 0.0
        %5116 = vmatpush1.msra.mxu0 0.0
        %5117 = vmatprep.subr.mxu0 0.0
        %5118 = vmatpush1.msra.mxu0 0.0
        %5119 = vmatprep.subr.mxu0 0.0
        %5120 = vmatpush1.msra.mxu0 0.0
        %5121 = vmatprep.subr.mxu0 0.0
        %5122 = vmatpush1.msra.mxu0 0.0
        %5123 = vmatprep.subr.mxu0 0.0
        %5124 = vmatpush1.msra.mxu0 0.0
        %5125 = vmatprep.subr.mxu0 0.0
        %5126 = vmatpush1.msra.mxu0 0.0
        %5127 = vmatprep.subr.mxu0 0.0
        %5128 = vmatpush1.msra.mxu0 0.0
        %5129 = vmatprep.subr.mxu0 0.0
        %5130 = vmatpush1.msra.mxu0 0.0
        %5131 = vmatprep.subr.mxu0 0.0
        %5132 = vmatpush1.msra.mxu0 0.0
        %5133 = vmatprep.subr.mxu0 0.0
        %5134 = vmatpush1.msra.mxu0 0.0
        %5135 = vmatprep.subr.mxu0 0.0
        %5136 = vmatpush1.msra.mxu0 0.0
        %5137 = vmatprep.subr.mxu0 0.0
        %5138 = vmatpush1.msra.mxu0 0.0
        %5139 = vmatprep.subr.mxu0 0.0
        %5140 = vmatpush1.msra.mxu0 0.0
        %5141 = vmatprep.subr.mxu0 0.0
        %5142 = vmatpush1.msra.mxu0 0.0
        %5143 = vmatprep.subr.mxu0 0.0
        %5144 = vmatpush1.msra.mxu0 0.0
        %5145 = vmatprep.subr.mxu0 0.0
        %5146 = vmatpush1.msra.mxu0 0.0
        %5147 = vmatprep.mubr.f32.mxu0 0.0
        %5148 = vmatmul.mubr.f32.gmra.mrb[0].mxu0 %v3674
        %v5149 = vpop.f32.mrb[0].mxu0
        %v5150 = vadd.f32 %v5081, %v5149
        %v5151 = vpop.f32.mrb[0].mxu0
        %5152 = vdwg.mxu0
        %v5154 = vsel %vm1919, %v4986, 0
        %v5157 = vsel %vm1919, %v5067, 0
        %5159 = vmatprep.subr.mxu0 0.0
        %5160 = vmatpush1.xpose.msra.mxu0 %v5157
        %5161 = vmatprep.subr.mxu0 0.0
        %5162 = vmatpush1.xpose.msra.mxu0 0.0
        %5163 = vmatprep.subr.mxu0 0.0
        %5164 = vmatpush1.xpose.msra.mxu0 0.0
        %5165 = vmatprep.subr.mxu0 0.0
        %5166 = vmatpush1.xpose.msra.mxu0 0.0
        %5167 = vmatprep.subr.mxu0 0.0
        %5168 = vmatpush1.xpose.msra.mxu0 0.0
        %5169 = vmatprep.subr.mxu0 0.0
        %5170 = vmatpush1.xpose.msra.mxu0 0.0
        %5171 = vmatprep.subr.mxu0 0.0
        %5172 = vmatpush1.xpose.msra.mxu0 0.0
        %5173 = vmatprep.subr.mxu0 0.0
        %5174 = vmatpush1.xpose.msra.mxu0 0.0
        %5175 = vmatprep.subr.mxu0 0.0
        %5176 = vmatpush1.xpose.msra.mxu0 0.0
        %5177 = vmatprep.subr.mxu0 0.0
        %5178 = vmatpush1.xpose.msra.mxu0 0.0
        %5179 = vmatprep.subr.mxu0 0.0
        %5180 = vmatpush1.xpose.msra.mxu0 0.0
        %5181 = vmatprep.subr.mxu0 0.0
        %5182 = vmatpush1.xpose.msra.mxu0 0.0
        %5183 = vmatprep.subr.mxu0 0.0
        %5184 = vmatpush1.xpose.msra.mxu0 0.0
        %5185 = vmatprep.subr.mxu0 0.0
        %5186 = vmatpush1.xpose.msra.mxu0 0.0
        %5187 = vmatprep.subr.mxu0 0.0
        %5188 = vmatpush1.xpose.msra.mxu0 0.0
        %5189 = vmatprep.subr.mxu0 0.0
        %5190 = vmatpush1.xpose.msra.mxu0 0.0
        %5191 = vmatprep.subr.mxu0 0.0
        %5192 = vmatpush1.xpose.msra.mxu0 0.0
        %5193 = vmatprep.subr.mxu0 0.0
        %5194 = vmatpush1.xpose.msra.mxu0 0.0
        %5195 = vmatprep.subr.mxu0 0.0
        %5196 = vmatpush1.xpose.msra.mxu0 0.0
        %5197 = vmatprep.subr.mxu0 0.0
        %5198 = vmatpush1.xpose.msra.mxu0 0.0
        %5199 = vmatprep.subr.mxu0 0.0
        %5200 = vmatpush1.xpose.msra.mxu0 0.0
        %5201 = vmatprep.subr.mxu0 0.0
        %5202 = vmatpush1.xpose.msra.mxu0 0.0
        %5203 = vmatprep.subr.mxu0 0.0
        %5204 = vmatpush1.xpose.msra.mxu0 0.0
        %5205 = vmatprep.subr.mxu0 0.0
        %5206 = vmatpush1.xpose.msra.mxu0 0.0
        %5207 = vmatprep.subr.mxu0 0.0
        %5208 = vmatpush1.xpose.msra.mxu0 0.0
        %5209 = vmatprep.subr.mxu0 0.0
        %5210 = vmatpush1.xpose.msra.mxu0 0.0
        %5211 = vmatprep.subr.mxu0 0.0
        %5212 = vmatpush1.xpose.msra.mxu0 0.0
        %5213 = vmatprep.subr.mxu0 0.0
        %5214 = vmatpush1.xpose.msra.mxu0 0.0
        %5215 = vmatprep.subr.mxu0 0.0
        %5216 = vmatpush1.xpose.msra.mxu0 0.0
        %5217 = vmatprep.subr.mxu0 0.0
        %5218 = vmatpush1.xpose.msra.mxu0 0.0
        %5219 = vmatprep.subr.mxu0 0.0
        %5220 = vmatpush1.xpose.msra.mxu0 0.0
        %5221 = vmatprep.subr.mxu0 0.0
        %5222 = vmatpush1.xpose.msra.mxu0 0.0
        %5223 = vmatprep.mubr.f32.mxu0 0.0
        %5224 = vmatmul.mubr.f32.gmra.mrb[0].mxu0 %v5154
        %v5225 = vpop.f32.mrb[0].mxu0
        %v5226 = vadd.f32 0.0, %v5225
        %v5227 = vpop.f32.mrb[0].mxu0
        %5228 = vdwg.mxu0
        %v5229 = vsel %vm1996, %v5226, -inf
        %5230 = vmax.xlane.f32.xlu0 %v5229
        %v5231 = vpop.xlane.xlu0 %5230
        %v5232 = vsub.f32 %v5226, %v5231
        %v5233 = vmul.f32 %v5232, 1.442695
        %v5234 = vpow.pop %v5233
        %v5235 = vsel %vm1996, %v5234, 0.0
        %5236 = vadd.xlane.f32.xlu0 %v5235
        %v5237 = vpop.xlane.xlu0 %5236
        %v5238 = vrcp.pop %v5237
        %v5239 = vmul.f32 %v5234, %v5238
        %v5241 = vsel %vm2345, %v5239, 0
        %v5244 = vsel %vm2349, %v5150, 0
        %5246 = vmatprep.subr.mxu0 0.0
        %5247 = vmatpush1.msra.mxu0 %v5244
        %5248 = vmatprep.subr.mxu0 0.0
        %5249 = vmatpush1.msra.mxu0 0.0
        %5250 = vmatprep.subr.mxu0 0.0
        %5251 = vmatpush1.msra.mxu0 0.0
        %5252 = vmatprep.subr.mxu0 0.0
        %5253 = vmatpush1.msra.mxu0 0.0
        %5254 = vmatprep.subr.mxu0 0.0
        %5255 = vmatpush1.msra.mxu0 0.0
        %5256 = vmatprep.subr.mxu0 0.0
        %5257 = vmatpush1.msra.mxu0 0.0
        %5258 = vmatprep.subr.mxu0 0.0
        %5259 = vmatpush1.msra.mxu0 0.0
        %5260 = vmatprep.subr.mxu0 0.0
        %5261 = vmatpush1.msra.mxu0 0.0
        %5262 = vmatprep.subr.mxu0 0.0
        %5263 = vmatpush1.msra.mxu0 0.0
        %5264 = vmatprep.subr.mxu0 0.0
        %5265 = vmatpush1.msra.mxu0 0.0
        %5266 = vmatprep.subr.mxu0 0.0
        %5267 = vmatpush1.msra.mxu0 0.0
        %5268 = vmatprep.subr.mxu0 0.0
        %5269 = vmatpush1.msra.mxu0 0.0
        %5270 = vmatprep.subr.mxu0 0.0
        %5271 = vmatpush1.msra.mxu0 0.0
        %5272 = vmatprep.subr.mxu0 0.0
        %5273 = vmatpush1.msra.mxu0 0.0
        %5274 = vmatprep.subr.mxu0 0.0
        %5275 = vmatpush1.msra.mxu0 0.0
        %5276 = vmatprep.subr.mxu0 0.0
        %5277 = vmatpush1.msra.mxu0 0.0
        %5278 = vmatprep.subr.mxu0 0.0
        %5279 = vmatpush1.msra.mxu0 0.0
        %5280 = vmatprep.subr.mxu0 0.0
        %5281 = vmatpush1.msra.mxu0 0.0
        %5282 = vmatprep.subr.mxu0 0.0
        %5283 = vmatpush1.msra.mxu0 0.0
        %5284 = vmatprep.subr.mxu0 0.0
        %5285 = vmatpush1.msra.mxu0 0.0
        %5286 = vmatprep.subr.mxu0 0.0
        %5287 = vmatpush1.msra.mxu0 0.0
        %5288 = vmatprep.subr.mxu0 0.0
        %5289 = vmatpush1.msra.mxu0 0.0
        %5290 = vmatprep.subr.mxu0 0.0
        %5291 = vmatpush1.msra.mxu0 0.0
        %5292 = vmatprep.subr.mxu0 0.0
        %5293 = vmatpush1.msra.mxu0 0.0
        %5294 = vmatprep.subr.mxu0 0.0
        %5295 = vmatpush1.msra.mxu0 0.0
        %5296 = vmatprep.subr.mxu0 0.0
        %5297 = vmatpush1.msra.mxu0 0.0
        %5298 = vmatprep.subr.mxu0 0.0
        %5299 = vmatpush1.msra.mxu0 0.0
        %5300 = vmatprep.subr.mxu0 0.0
        %5301 = vmatpush1.msra.mxu0 0.0
        %5302 = vmatprep.subr.mxu0 0.0
        %5303 = vmatpush1.msra.mxu0 0.0
        %5304 = vmatprep.subr.mxu0 0.0
        %5305 = vmatpush1.msra.mxu0 0.0
        %5306 = vmatprep.subr.mxu0 0.0
        %5307 = vmatpush1.msra.mxu0 0.0
        %5308 = vmatprep.subr.mxu0 0.0
        %5309 = vmatpush1.msra.mxu0 0.0
        %5310 = vmatprep.mubr.f32.mxu0 0.0
        %5311 = vmatmul.mubr.f32.gmra.mrb[0].mxu0 %v5241
        %v5312 = vpop.f32.mrb[0].mxu0
        %v5313 = vadd.f32 0.0, %v5312
        %v5314 = vpop.f32.mrb[0].mxu0
        %5315 = vdwg.mxu0
        %v5316 = vadd.f32 %v4902, %v5313
        %s5317 = scalar_lea.vmem %s31, 32
        %v5318 = vld [vmem:[%s5317] sm:$0xff]
        %v5319 = vld [vmem:[%s5317 + $0x8] sm:$0xff]
        %v5320 = vld [vmem:[%s5317 + $0x10] sm:$0xff]
        %v5321 = vld [vmem:[%s5317 + $0x18] sm:$0xff]
        %v5323 = vsel %vm1625, %v5316, 0
        %5325 = vmatprep.subr.mxu0 0.0
        %5326 = vmatpush1.msra.mxu0 %v5318
        %5327 = vmatprep.subr.mxu0 0.0
        %5328 = vmatpush1.msra.mxu0 %v5319
        %5329 = vmatprep.subr.mxu0 0.0
        %5330 = vmatpush1.msra.mxu0 %v5320
        %5331 = vmatprep.subr.mxu0 0.0
        %5332 = vmatpush1.msra.mxu0 %v5321
        %5333 = vmatprep.subr.mxu0 0.0
        %5334 = vmatpush1.msra.mxu0 0.0
        %5335 = vmatprep.subr.mxu0 0.0
        %5336 = vmatpush1.msra.mxu0 0.0
        %5337 = vmatprep.subr.mxu0 0.0
        %5338 = vmatpush1.msra.mxu0 0.0
        %5339 = vmatprep.subr.mxu0 0.0
        %5340 = vmatpush1.msra.mxu0 0.0
        %5341 = vmatprep.subr.mxu0 0.0
        %5342 = vmatpush1.msra.mxu0 0.0
        %5343 = vmatprep.subr.mxu0 0.0
        %5344 = vmatpush1.msra.mxu0 0.0
        %5345 = vmatprep.subr.mxu0 0.0
        %5346 = vmatpush1.msra.mxu0 0.0
        %5347 = vmatprep.subr.mxu0 0.0
        %5348 = vmatpush1.msra.mxu0 0.0
        %5349 = vmatprep.subr.mxu0 0.0
        %5350 = vmatpush1.msra.mxu0 0.0
        %5351 = vmatprep.subr.mxu0 0.0
        %5352 = vmatpush1.msra.mxu0 0.0
        %5353 = vmatprep.subr.mxu0 0.0
        %5354 = vmatpush1.msra.mxu0 0.0
        %5355 = vmatprep.subr.mxu0 0.0
        %5356 = vmatpush1.msra.mxu0 0.0
        %5357 = vmatprep.subr.mxu0 0.0
        %5358 = vmatpush1.msra.mxu0 0.0
        %5359 = vmatprep.subr.mxu0 0.0
        %5360 = vmatpush1.msra.mxu0 0.0
        %5361 = vmatprep.subr.mxu0 0.0
        %5362 = vmatpush1.msra.mxu0 0.0
        %5363 = vmatprep.subr.mxu0 0.0
        %5364 = vmatpush1.msra.mxu0 0.0
        %5365 = vmatprep.subr.mxu0 0.0
        %5366 = vmatpush1.msra.mxu0 0.0
        %5367 = vmatprep.subr.mxu0 0.0
        %5368 = vmatpush1.msra.mxu0 0.0
        %5369 = vmatprep.subr.mxu0 0.0
        %5370 = vmatpush1.msra.mxu0 0.0
        %5371 = vmatprep.subr.mxu0 0.0
        %5372 = vmatpush1.msra.mxu0 0.0
        %5373 = vmatprep.subr.mxu0 0.0
        %5374 = vmatpush1.msra.mxu0 0.0
        %5375 = vmatprep.subr.mxu0 0.0
        %5376 = vmatpush1.msra.mxu0 0.0
        %5377 = vmatprep.subr.mxu0 0.0
        %5378 = vmatpush1.msra.mxu0 0.0
        %5379 = vmatprep.subr.mxu0 0.0
        %5380 = vmatpush1.msra.mxu0 0.0
        %5381 = vmatprep.subr.mxu0 0.0
        %5382 = vmatpush1.msra.mxu0 0.0
        %5383 = vmatprep.subr.mxu0 0.0
        %5384 = vmatpush1.msra.mxu0 0.0
        %5385 = vmatprep.subr.mxu0 0.0
        %5386 = vmatpush1.msra.mxu0 0.0
        %5387 = vmatprep.subr.mxu0 0.0
        %5388 = vmatpush1.msra.mxu0 0.0
        %5389 = vmatprep.mubr.f32.mxu0 0.0
        %5390 = vmatmul.mubr.f32.gmra.mrb[0].mxu0 %v5323
        %v5391 = vpop.f32.mrb[0].mxu0
        %v5392 = vadd.f32 0.0, %v5391
        %v5393 = vpop.f32.mrb[0].mxu0
        %5394 = vdwg.mxu0
        %v5395 = vadd.f32 %v3628, %v5392
        %s5396 = scalar_lea.vmem %s33, 1
        %v5397 = vld [vmem:[%s5396] sm:$0x1]
        %v5399 = vlaneseq
        %v5400 = vshrl.u32 %v5399, 7
        %v5401 = vsub.s32 0, %v5400
        %v5402 = vrot.slane %v5397, %v5401
        %v5404 = vadd.f32 %v5395, %v5402
        %s5405 = scalar_lea.vmem %s35, 1
        %v5406 = vld [vmem:[%s5405] sm:$0x1]
        %s5407 = scalar_lea.vmem %s37, 1
        %v5408 = vld [vmem:[%s5407] sm:$0x1]
        %v5409 = vsel %vm1643, %v5404, 0.0
        %5410 = vadd.xlane.f32.xlu0 %v5409
        %v5411 = vpop.xlane.xlu0 %5410
        %v5412 = vmul.f32 %v5411, %v1647
        %v5413 = vsub.f32 %v5404, %v5412
        %v5414 = vmul.f32 %v5413, %v5413
        %v5415 = vsel %vm1643, %v5414, 0.0
        %5416 = vadd.xlane.f32.xlu0 %v5415
        %v5417 = vpop.xlane.xlu0 %5416
        %v5418 = vmul.f32 %v5417, %v1647
        %v5419 = vadd.f32 %v5418, 1e-05
        %v5420 = vrsqrt.pop %v5419
        %v5421 = vmul.f32 %v5413, %v5420
        %v5423 = vlaneseq
        %v5424 = vshrl.u32 %v5423, 7
        %v5425 = vsub.s32 0, %v5424
        %v5426 = vrot.slane %v5406, %v5425
        %v5428 = vmul.f32 %v5421, %v5426
        %v5430 = vlaneseq
        %v5431 = vshrl.u32 %v5430, 7
        %v5432 = vsub.s32 0, %v5431
        %v5433 = vrot.slane %v5408, %v5432
        %v5435 = vadd.f32 %v5428, %v5433
        %s5436 = scalar_lea.vmem %s39, 32
        %v5437 = vld [vmem:[%s5436] sm:$0xff]
        %v5438 = vld [vmem:[%s5436 + $0x8] sm:$0xff]
        %v5439 = vld [vmem:[%s5436 + $0x10] sm:$0xff]
        %v5440 = vld [vmem:[%s5436 + $0x18] sm:$0xff]
        %s5441 = scalar_lea.vmem %s41, 1
        %v5442 = vld [vmem:[%s5441] sm:$0x1]
        %v5444 = vlaneseq
        %v5445 = vshrl.u32 %v5444, 7
        %v5446 = vsub.s32 0, %v5445
        %v5447 = vrot.slane %v5442, %v5446
        %v5450 = vsel %vm1625, %v5435, 0
        %5452 = vmatprep.subr.mxu0 0.0
        %5453 = vmatpush1.msra.mxu0 %v5437
        %5454 = vmatprep.subr.mxu0 0.0
        %5455 = vmatpush1.msra.mxu0 %v5438
        %5456 = vmatprep.subr.mxu0 0.0
        %5457 = vmatpush1.msra.mxu0 %v5439
        %5458 = vmatprep.subr.mxu0 0.0
        %5459 = vmatpush1.msra.mxu0 %v5440
        %5460 = vmatprep.subr.mxu0 0.0
        %5461 = vmatpush1.msra.mxu0 0.0
        %5462 = vmatprep.subr.mxu0 0.0
        %5463 = vmatpush1.msra.mxu0 0.0
        %5464 = vmatprep.subr.mxu0 0.0
        %5465 = vmatpush1.msra.mxu0 0.0
        %5466 = vmatprep.subr.mxu0 0.0
        %5467 = vmatpush1.msra.mxu0 0.0
        %5468 = vmatprep.subr.mxu0 0.0
        %5469 = vmatpush1.msra.mxu0 0.0
        %5470 = vmatprep.subr.mxu0 0.0
        %5471 = vmatpush1.msra.mxu0 0.0
        %5472 = vmatprep.subr.mxu0 0.0
        %5473 = vmatpush1.msra.mxu0 0.0
        %5474 = vmatprep.subr.mxu0 0.0
        %5475 = vmatpush1.msra.mxu0 0.0
        %5476 = vmatprep.subr.mxu0 0.0
        %5477 = vmatpush1.msra.mxu0 0.0
        %5478 = vmatprep.subr.mxu0 0.0
        %5479 = vmatpush1.msra.mxu0 0.0
        %5480 = vmatprep.subr.mxu0 0.0
        %5481 = vmatpush1.msra.mxu0 0.0
        %5482 = vmatprep.subr.mxu0 0.0
        %5483 = vmatpush1.msra.mxu0 0.0
        %5484 = vmatprep.subr.mxu0 0.0
        %5485 = vmatpush1.msra.mxu0 0.0
        %5486 = vmatprep.subr.mxu0 0.0
        %5487 = vmatpush1.msra.mxu0 0.0
        %5488 = vmatprep.subr.mxu0 0.0
        %5489 = vmatpush1.msra.mxu0 0.0
        %5490 = vmatprep.subr.mxu0 0.0
        %5491 = vmatpush1.msra.mxu0 0.0
        %5492 = vmatprep.subr.mxu0 0.0
        %5493 = vmatpush1.msra.mxu0 0.0
        %5494 = vmatprep.subr.mxu0 0.0
        %5495 = vmatpush1.msra.mxu0 0.0
        %5496 = vmatprep.subr.mxu0 0.0
        %5497 = vmatpush1.msra.mxu0 0.0
        %5498 = vmatprep.subr.mxu0 0.0
        %5499 = vmatpush1.msra.mxu0 0.0
        %5500 = vmatprep.subr.mxu0 0.0
        %5501 = vmatpush1.msra.mxu0 0.0
        %5502 = vmatprep.subr.mxu0 0.0
        %5503 = vmatpush1.msra.mxu0 0.0
        %5504 = vmatprep.subr.mxu0 0.0
        %5505 = vmatpush1.msra.mxu0 0.0
        %5506 = vmatprep.subr.mxu0 0.0
        %5507 = vmatpush1.msra.mxu0 0.0
        %5508 = vmatprep.subr.mxu0 0.0
        %5509 = vmatpush1.msra.mxu0 0.0
        %5510 = vmatprep.subr.mxu0 0.0
        %5511 = vmatpush1.msra.mxu0 0.0
        %5512 = vmatprep.subr.mxu0 0.0
        %5513 = vmatpush1.msra.mxu0 0.0
        %5514 = vmatprep.subr.mxu0 0.0
        %5515 = vmatpush1.msra.mxu0 0.0
        %5516 = vmatprep.mubr.f32.mxu0 0.0
        %5517 = vmatmul.mubr.f32.gmra.mrb[0].mxu0 %v5450
        %v5518 = vpop.f32.mrb[0].mxu0
        %v5519 = vadd.f32 %v5447, %v5518
        %v5520 = vpop.f32.mrb[0].mxu0
        %5521 = vdwg.mxu0
        %v5522 = vmul.f32 %v5519, 0.5
        %v5523 = vmul.f32 %v5519, 0.044715
        %v5524 = vmul.f32 %v5523, %v5519
        %v5525 = vmul.f32 %v5524, %v5519
        %v5526 = vadd.f32 %v5519, %v5525
        %v5527 = vmul.f32 %v5526, 0.7978846
        %v5528 = vtanh.pop %v5527
        %v5529 = vadd.f32 %v5528, 1.0
        %v5530 = vmul.f32 %v5522, %v5529
        %s5531 = scalar_lea.vmem %s43, 128
        %v5532 = vld [vmem:[%s5531] sm:$0xff]
        %v5533 = vld [vmem:[%s5531 + $0x8] sm:$0xff]
        %v5534 = vld [vmem:[%s5531 + $0x10] sm:$0xff]
        %v5535 = vld [vmem:[%s5531 + $0x18] sm:$0xff]
        %v5536 = vld [vmem:[%s5531 + $0x20] sm:$0xff]
        %v5537 = vld [vmem:[%s5531 + $0x28] sm:$0xff]
        %v5538 = vld [vmem:[%s5531 + $0x30] sm:$0xff]
        %v5539 = vld [vmem:[%s5531 + $0x38] sm:$0xff]
        %v5540 = vld [vmem:[%s5531 + $0x40] sm:$0xff]
        %v5541 = vld [vmem:[%s5531 + $0x48] sm:$0xff]
        %v5542 = vld [vmem:[%s5531 + $0x50] sm:$0xff]
        %v5543 = vld [vmem:[%s5531 + $0x58] sm:$0xff]
        %v5544 = vld [vmem:[%s5531 + $0x60] sm:$0xff]
        %v5545 = vld [vmem:[%s5531 + $0x68] sm:$0xff]
        %v5546 = vld [vmem:[%s5531 + $0x70] sm:$0xff]
        %v5547 = vld [vmem:[%s5531 + $0x78] sm:$0xff]
        %s5548 = scalar_lea.vmem %s45, 1
        %v5549 = vld [vmem:[%s5548] sm:$0x1]
        %v5551 = vlaneseq
        %v5552 = vshrl.u32 %v5551, 7
        %v5553 = vsub.s32 0, %v5552
        %v5554 = vrot.slane %v5549, %v5553
        %5556 = vmatprep.subr.mxu0 0.0
        %5557 = vmatpush1.msra.mxu0 %v5532
        %5558 = vmatprep.subr.mxu0 0.0
        %5559 = vmatpush1.msra.mxu0 %v5533
        %5560 = vmatprep.subr.mxu0 0.0
        %5561 = vmatpush1.msra.mxu0 %v5534
        %5562 = vmatprep.subr.mxu0 0.0
        %5563 = vmatpush1.msra.mxu0 %v5535
        %5564 = vmatprep.subr.mxu0 0.0
        %5565 = vmatpush1.msra.mxu0 %v5536
        %5566 = vmatprep.subr.mxu0 0.0
        %5567 = vmatpush1.msra.mxu0 %v5537
        %5568 = vmatprep.subr.mxu0 0.0
        %5569 = vmatpush1.msra.mxu0 %v5538
        %5570 = vmatprep.subr.mxu0 0.0
        %5571 = vmatpush1.msra.mxu0 %v5539
        %5572 = vmatprep.subr.mxu0 0.0
        %5573 = vmatpush1.msra.mxu0 %v5540
        %5574 = vmatprep.subr.mxu0 0.0
        %5575 = vmatpush1.msra.mxu0 %v5541
        %5576 = vmatprep.subr.mxu0 0.0
        %5577 = vmatpush1.msra.mxu0 %v5542
        %5578 = vmatprep.subr.mxu0 0.0
        %5579 = vmatpush1.msra.mxu0 %v5543
        %5580 = vmatprep.subr.mxu0 0.0
        %5581 = vmatpush1.msra.mxu0 %v5544
        %5582 = vmatprep.subr.mxu0 0.0
        %5583 = vmatpush1.msra.mxu0 %v5545
        %5584 = vmatprep.subr.mxu0 0.0
        %5585 = vmatpush1.msra.mxu0 %v5546
        %5586 = vmatprep.subr.mxu0 0.0
        %5587 = vmatpush1.msra.mxu0 %v5547
        %5588 = vmatprep.subr.mxu0 0.0
        %5589 = vmatpush1.msra.mxu0 0.0
        %5590 = vmatprep.subr.mxu0 0.0
        %5591 = vmatpush1.msra.mxu0 0.0
        %5592 = vmatprep.subr.mxu0 0.0
        %5593 = vmatpush1.msra.mxu0 0.0
        %5594 = vmatprep.subr.mxu0 0.0
        %5595 = vmatpush1.msra.mxu0 0.0
        %5596 = vmatprep.subr.mxu0 0.0
        %5597 = vmatpush1.msra.mxu0 0.0
        %5598 = vmatprep.subr.mxu0 0.0
        %5599 = vmatpush1.msra.mxu0 0.0
        %5600 = vmatprep.subr.mxu0 0.0
        %5601 = vmatpush1.msra.mxu0 0.0
        %5602 = vmatprep.subr.mxu0 0.0
        %5603 = vmatpush1.msra.mxu0 0.0
        %5604 = vmatprep.subr.mxu0 0.0
        %5605 = vmatpush1.msra.mxu0 0.0
        %5606 = vmatprep.subr.mxu0 0.0
        %5607 = vmatpush1.msra.mxu0 0.0
        %5608 = vmatprep.subr.mxu0 0.0
        %5609 = vmatpush1.msra.mxu0 0.0
        %5610 = vmatprep.subr.mxu0 0.0
        %5611 = vmatpush1.msra.mxu0 0.0
        %5612 = vmatprep.subr.mxu0 0.0
        %5613 = vmatpush1.msra.mxu0 0.0
        %5614 = vmatprep.subr.mxu0 0.0
        %5615 = vmatpush1.msra.mxu0 0.0
        %5616 = vmatprep.subr.mxu0 0.0
        %5617 = vmatpush1.msra.mxu0 0.0
        %5618 = vmatprep.subr.mxu0 0.0
        %5619 = vmatpush1.msra.mxu0 0.0
        %5620 = vmatprep.mubr.f32.mxu0 0.0
        %5621 = vmatmul.mubr.f32.gmra.mrb[0].mxu0 %v5530
        %v5622 = vpop.f32.mrb[0].mxu0
        %v5623 = vadd.f32 %v5554, %v5622
        %v5624 = vpop.f32.mrb[0].mxu0
        %5625 = vdwg.mxu0
        %v5626 = vadd.f32 %v5404, %v5623
        %v5627 = vld [vmem:[%s47] sm:$0x1]
        %v5628 = vld [vmem:[%s49] sm:$0x1]
        %v5629 = vsel %vm1643, %v5626, 0.0
        %5630 = vadd.xlane.f32.xlu0 %v5629
        %v5631 = vpop.xlane.xlu0 %5630
        %v5632 = vmul.f32 %v5631, %v1647
        %v5633 = vsub.f32 %v5626, %v5632
        %v5634 = vmul.f32 %v5633, %v5633
        %v5635 = vsel %vm1643, %v5634, 0.0
        %5636 = vadd.xlane.f32.xlu0 %v5635
        %v5637 = vpop.xlane.xlu0 %5636
        %v5638 = vmul.f32 %v5637, %v1647
        %v5639 = vadd.f32 %v5638, 1e-05
        %v5640 = vrsqrt.pop %v5639
        %v5641 = vmul.f32 %v5633, %v5640
        %v5643 = vlaneseq
        %v5644 = vshrl.u32 %v5643, 7
        %v5645 = vsub.s32 0, %v5644
        %v5646 = vrot.slane %v5627, %v5645
        %v5648 = vmul.f32 %v5641, %v5646
        %v5650 = vlaneseq
        %v5651 = vshrl.u32 %v5650, 7
        %v5652 = vsub.s32 0, %v5651
        %v5653 = vrot.slane %v5628, %v5652
        %v5655 = vadd.f32 %v5648, %v5653
        %v5656 = vld [vmem:[%s51] sm:$0xff]
        %v5657 = vld [vmem:[%s51 + $0x8] sm:$0xff]
        %v5658 = vld [vmem:[%s51 + $0x10] sm:$0xff]
        %v5659 = vld [vmem:[%s51 + $0x18] sm:$0xff]
        %v5660 = vld [vmem:[%s53] sm:$0x1]
        %v5662 = vlaneseq
        %v5663 = vshrl.u32 %v5662, 7
        %v5664 = vsub.s32 0, %v5663
        %v5665 = vrot.slane %v5660, %v5664
        %v5668 = vsel %vm1625, %v5655, 0
        %5670 = vmatprep.subr.mxu0 0.0
        %5671 = vmatpush1.msra.mxu0 %v5656
        %5672 = vmatprep.subr.mxu0 0.0
        %5673 = vmatpush1.msra.mxu0 %v5657
        %5674 = vmatprep.subr.mxu0 0.0
        %5675 = vmatpush1.msra.mxu0 %v5658
        %5676 = vmatprep.subr.mxu0 0.0
        %5677 = vmatpush1.msra.mxu0 %v5659
        %5678 = vmatprep.subr.mxu0 0.0
        %5679 = vmatpush1.msra.mxu0 0.0
        %5680 = vmatprep.subr.mxu0 0.0
        %5681 = vmatpush1.msra.mxu0 0.0
        %5682 = vmatprep.subr.mxu0 0.0
        %5683 = vmatpush1.msra.mxu0 0.0
        %5684 = vmatprep.subr.mxu0 0.0
        %5685 = vmatpush1.msra.mxu0 0.0
        %5686 = vmatprep.subr.mxu0 0.0
        %5687 = vmatpush1.msra.mxu0 0.0
        %5688 = vmatprep.subr.mxu0 0.0
        %5689 = vmatpush1.msra.mxu0 0.0
        %5690 = vmatprep.subr.mxu0 0.0
        %5691 = vmatpush1.msra.mxu0 0.0
        %5692 = vmatprep.subr.mxu0 0.0
        %5693 = vmatpush1.msra.mxu0 0.0
        %5694 = vmatprep.subr.mxu0 0.0
        %5695 = vmatpush1.msra.mxu0 0.0
        %5696 = vmatprep.subr.mxu0 0.0
        %5697 = vmatpush1.msra.mxu0 0.0
        %5698 = vmatprep.subr.mxu0 0.0
        %5699 = vmatpush1.msra.mxu0 0.0
        %5700 = vmatprep.subr.mxu0 0.0
        %5701 = vmatpush1.msra.mxu0 0.0
        %5702 = vmatprep.subr.mxu0 0.0
        %5703 = vmatpush1.msra.mxu0 0.0
        %5704 = vmatprep.subr.mxu0 0.0
        %5705 = vmatpush1.msra.mxu0 0.0
        %5706 = vmatprep.subr.mxu0 0.0
        %5707 = vmatpush1.msra.mxu0 0.0
        %5708 = vmatprep.subr.mxu0 0.0
        %5709 = vmatpush1.msra.mxu0 0.0
        %5710 = vmatprep.subr.mxu0 0.0
        %5711 = vmatpush1.msra.mxu0 0.0
        %5712 = vmatprep.subr.mxu0 0.0
        %5713 = vmatpush1.msra.mxu0 0.0
        %5714 = vmatprep.subr.mxu0 0.0
        %5715 = vmatpush1.msra.mxu0 0.0
        %5716 = vmatprep.subr.mxu0 0.0
        %5717 = vmatpush1.msra.mxu0 0.0
        %5718 = vmatprep.subr.mxu0 0.0
        %5719 = vmatpush1.msra.mxu0 0.0
        %5720 = vmatprep.subr.mxu0 0.0
        %5721 = vmatpush1.msra.mxu0 0.0
        %5722 = vmatprep.subr.mxu0 0.0
        %5723 = vmatpush1.msra.mxu0 0.0
        %5724 = vmatprep.subr.mxu0 0.0
        %5725 = vmatpush1.msra.mxu0 0.0
        %5726 = vmatprep.subr.mxu0 0.0
        %5727 = vmatpush1.msra.mxu0 0.0
        %5728 = vmatprep.subr.mxu0 0.0
        %5729 = vmatpush1.msra.mxu0 0.0
        %5730 = vmatprep.subr.mxu0 0.0
        %5731 = vmatpush1.msra.mxu0 0.0
        %5732 = vmatprep.subr.mxu0 0.0
        %5733 = vmatpush1.msra.mxu0 0.0
        %5734 = vmatprep.mubr.f32.mxu0 0.0
        %5735 = vmatmul.mubr.f32.gmra.mrb[0].mxu0 %v5668
        %v5736 = vpop.f32.mrb[0].mxu0
        %v5737 = vadd.f32 %v5665, %v5736
        %v5738 = vpop.f32.mrb[0].mxu0
        %5739 = vdwg.mxu0
        %5740 = vst.msk [vmem:[#allocation4] sm:$0x7] %vm1643, %v5737
        %s5741 = sld [smem:[#allocation8 + %s1630]]
        %p5742 = scmp.lt.s32.totalorder %s5741, 2
        %s5743 = scalar_select %p5742, 1, 0
        %s5744 = scvt.s32.f32 %s5743
        %p5745 = scmp.lt.s32.totalorder %s5741, 1
        %s5746 = scalar_select %p5745, %s5741, 1
        %s5747 = sadd.s32 %s5746, 1
        %s5748 = scalar_lea.vmem [#allocation4], %s5747
        %v5749 = vld [vmem:[%s5748] sm:$0x1]
        %v5750 = vstv %s5744
        %v5751 = vmul.f32 %v5749, %v5750
        %v5752 = vld [vmem:[%s55] sm:$0x1]
        %s5753 = ssub.f32 1.0, %s5744
        %v5754 = vstv %s5753
        %v5755 = vmul.f32 %v5752, %v5754
        %v5756 = vadd.f32 %v5751, %v5755
        %5757 = vst.msk [vmem:[#allocation5] sm:$0x1] %vm1628, %v5756
        %s5758 = sld [smem:[#allocation8 + %s1635]]
        %p5759 = scmp.lt.s32.totalorder %s5758, 2
        %s5760 = scalar_select %p5759, 1, 0
        %s5761 = scvt.s32.f32 %s5760
        %p5762 = scmp.lt.s32.totalorder %s5758, 1
        %s5763 = scalar_select %p5762, %s5758, 1
        %s5764 = sadd.s32 %s5763, 1
        %s5765 = scalar_lea.vmem [#allocation4], %s5764
        %v5766 = vld [vmem:[%s5765] sm:$0x1]
        %v5767 = vstv %s5761
        %v5768 = vmul.f32 %v5766, %v5767
        %v5769 = vld [vmem:[%s55] sm:$0x1]
        %s5770 = ssub.f32 1.0, %s5761
        %v5771 = vstv %s5770
        %v5772 = vmul.f32 %v5769, %v5771
        %v5773 = vadd.f32 %v5768, %v5772
        %5774 = vst.msk [vmem:[#allocation5 + $0x1] sm:$0x1] %vm1628, %v5773
        %s5775 = sadd.s32 %s1630, 2
        %s5776 = sld [smem:[#allocation8 + %s5775]]
        %p5777 = scmp.lt.s32.totalorder %s5776, 2
        %s5778 = scalar_select %p5777, 1, 0
        %s5779 = scvt.s32.f32 %s5778
        %p5780 = scmp.lt.s32.totalorder %s5776, 1
        %s5781 = scalar_select %p5780, %s5776, 1
        %s5782 = sadd.s32 %s5781, 1
        %s5783 = scalar_lea.vmem [#allocation4], %s5782
        %v5784 = vld [vmem:[%s5783] sm:$0x1]
        %v5785 = vstv %s5779
        %v5786 = vmul.f32 %v5784, %v5785
        %v5787 = vld [vmem:[%s55] sm:$0x1]
        %s5788 = ssub.f32 1.0, %s5779
        %v5789 = vstv %s5788
        %v5790 = vmul.f32 %v5787, %v5789
        %v5791 = vadd.f32 %v5786, %v5790
        %5792 = vst.msk [vmem:[#allocation5 + $0x2] sm:$0x1] %vm1628, %v5791
        %s5793 = sadd.s32 %s1630, 3
        %s5794 = sld [smem:[#allocation8 + %s5793]]
        %p5795 = scmp.lt.s32.totalorder %s5794, 2
        %s5796 = scalar_select %p5795, 1, 0
        %s5797 = scvt.s32.f32 %s5796
        %p5798 = scmp.lt.s32.totalorder %s5794, 1
        %s5799 = scalar_select %p5798, %s5794, 1
        %s5800 = sadd.s32 %s5799, 1
        %s5801 = scalar_lea.vmem [#allocation4], %s5800
        %v5802 = vld [vmem:[%s5801] sm:$0x1]
        %v5803 = vstv %s5797
        %v5804 = vmul.f32 %v5802, %v5803
        %v5805 = vld [vmem:[%s55] sm:$0x1]
        %s5806 = ssub.f32 1.0, %s5797
        %v5807 = vstv %s5806
        %v5808 = vmul.f32 %v5805, %v5807
        %v5809 = vadd.f32 %v5804, %v5808
        %5810 = vst.msk [vmem:[#allocation5 + $0x3] sm:$0x1] %vm1628, %v5809
        %s5811 = sadd.s32 %s1630, 4
        %s5812 = sld [smem:[#allocation8 + %s5811]]
        %p5813 = scmp.lt.s32.totalorder %s5812, 2
        %s5814 = scalar_select %p5813, 1, 0
        %s5815 = scvt.s32.f32 %s5814
        %p5816 = scmp.lt.s32.totalorder %s5812, 1
        %s5817 = scalar_select %p5816, %s5812, 1
        %s5818 = sadd.s32 %s5817, 1
        %s5819 = scalar_lea.vmem [#allocation4], %s5818
        %v5820 = vld [vmem:[%s5819] sm:$0x1]
        %v5821 = vstv %s5815
        %v5822 = vmul.f32 %v5820, %v5821
        %v5823 = vld [vmem:[%s55] sm:$0x1]
        %s5824 = ssub.f32 1.0, %s5815
        %v5825 = vstv %s5824
        %v5826 = vmul.f32 %v5823, %v5825
        %v5827 = vadd.f32 %v5822, %v5826
        %5828 = vst.msk [vmem:[#allocation5 + $0x4] sm:$0x1] %vm1628, %v5827
        %s5829 = sadd.s32 %s1630, 5
        %s5830 = sld [smem:[#allocation8 + %s5829]]
        %p5831 = scmp.lt.s32.totalorder %s5830, 2
        %s5832 = scalar_select %p5831, 1, 0
        %s5833 = scvt.s32.f32 %s5832
        %p5834 = scmp.lt.s32.totalorder %s5830, 1
        %s5835 = scalar_select %p5834, %s5830, 1
        %s5836 = sadd.s32 %s5835, 1
        %s5837 = scalar_lea.vmem [#allocation4], %s5836
        %v5838 = vld [vmem:[%s5837] sm:$0x1]
        %v5839 = vstv %s5833
        %v5840 = vmul.f32 %v5838, %v5839
        %v5841 = vld [vmem:[%s55] sm:$0x1]
        %s5842 = ssub.f32 1.0, %s5833
        %v5843 = vstv %s5842
        %v5844 = vmul.f32 %v5841, %v5843
        %v5845 = vadd.f32 %v5840, %v5844
        %5846 = vst.msk [vmem:[#allocation5 + $0x5] sm:$0x1] %vm1628, %v5845
        %s5847 = sadd.s32 %s1630, 6
        %s5848 = sld [smem:[#allocation8 + %s5847]]
        %p5849 = scmp.lt.s32.totalorder %s5848, 2
        %s5850 = scalar_select %p5849, 1, 0
        %s5851 = scvt.s32.f32 %s5850
        %p5852 = scmp.lt.s32.totalorder %s5848, 1
        %s5853 = scalar_select %p5852, %s5848, 1
        %s5854 = sadd.s32 %s5853, 1
        %s5855 = scalar_lea.vmem [#allocation4], %s5854
        %v5856 = vld [vmem:[%s5855] sm:$0x1]
        %v5857 = vstv %s5851
        %v5858 = vmul.f32 %v5856, %v5857
        %v5859 = vld [vmem:[%s55] sm:$0x1]
        %s5860 = ssub.f32 1.0, %s5851
        %v5861 = vstv %s5860
        %v5862 = vmul.f32 %v5859, %v5861
        %v5863 = vadd.f32 %v5858, %v5862
        %5864 = vst.msk [vmem:[#allocation5 + $0x6] sm:$0x1] %vm1628, %v5863
        %s5865 = sadd.s32 %s1630, 7
        %s5866 = sld [smem:[#allocation8 + %s5865]]
        %p5867 = scmp.lt.s32.totalorder %s5866, 2
        %s5868 = scalar_select %p5867, 1, 0
        %s5869 = scvt.s32.f32 %s5868
        %p5870 = scmp.lt.s32.totalorder %s5866, 1
        %s5871 = scalar_select %p5870, %s5866, 1
        %s5872 = sadd.s32 %s5871, 1
        %s5873 = scalar_lea.vmem [#allocation4], %s5872
        %v5874 = vld [vmem:[%s5873] sm:$0x1]
        %v5875 = vstv %s5869
        %v5876 = vmul.f32 %v5874, %v5875
        %v5877 = vld [vmem:[%s55] sm:$0x1]
        %s5878 = ssub.f32 1.0, %s5869
        %v5879 = vstv %s5878
        %v5880 = vmul.f32 %v5877, %v5879
        %v5881 = vadd.f32 %v5876, %v5880
        %5882 = vst.msk [vmem:[#allocation5 + $0x7] sm:$0x1] %vm1628, %v5881
        %v5883 = vld [vmem:[#allocation4] sm:$0x1]
        %5884 = vst.msk [vmem:[#allocation5 + $0x8] sm:$0x1] %vm1628, %v5883
        %v5885 = vld [vmem:[#allocation5] sm:$0xff]
        %v5886 = vld [vmem:[#allocation5 + $0x8] sm:$0x1]
        %v5887 = vld [vmem:[%s57] sm:$0xff]
        %v5888 = vld [vmem:[%s57 + $0x8] sm:$0x1]
        %v5889 = vadd.f32 %v5885, %v5887
        %v5890 = vadd.f32 %v5886, %v5888
        %v5891 = vld [vmem:[%s59] sm:$0x1]
        %v5892 = vld [vmem:[%s61] sm:$0x1]
        %v5893 = vsel %vm1625, %v5889, 0.0
        %5894 = vadd.xlane.f32.xlu0 %v5893
        %v5895 = vpop.xlane.xlu0 %5894
        %v5896 = vsel %vm1628, %v5890, 0.0
        %5897 = vadd.xlane.f32.xlu0 %v5896
        %v5898 = vpop.xlane.xlu0 %5897
        %v5899 = vmul.f32 %v5895, %v1647
        %v5900 = vmul.f32 %v5898, %v1647
        %v5901 = vsub.f32 %v5889, %v5899
        %v5902 = vsub.f32 %v5890, %v5900
        %v5903 = vmul.f32 %v5901, %v5901
        %v5904 = vmul.f32 %v5902, %v5902
        %v5905 = vsel %vm1625, %v5903, 0.0
        %5906 = vadd.xlane.f32.xlu0 %v5905
        %v5907 = vpop.xlane.xlu0 %5906
        %v5908 = vsel %vm1628, %v5904, 0.0
        %5909 = vadd.xlane.f32.xlu0 %v5908
        %v5910 = vpop.xlane.xlu0 %5909
        %v5911 = vmul.f32 %v5907, %v1647
        %v5912 = vmul.f32 %v5910, %v1647
        %v5913 = vadd.f32 %v5911, 1e-05
        %v5914 = vadd.f32 %v5912, 1e-05
        %v5915 = vrsqrt.pop %v5913
        %v5916 = vrsqrt.pop %v5914
        %v5917 = vmul.f32 %v5901, %v5915
        %v5918 = vmul.f32 %v5902, %v5916
        %v5920 = vlaneseq
        %v5921 = vshrl.u32 %v5920, 7
        %v5922 = vsub.s32 0, %v5921
        %v5923 = vrot.slane %v5891, %v5922
        %v5925 = vmul.f32 %v5917, %v5923
        %v5926 = vmul.f32 %v5918, %v5923
        %v5928 = vlaneseq
        %v5929 = vshrl.u32 %v5928, 7
        %v5930 = vsub.s32 0, %v5929
        %v5931 = vrot.slane %v5892, %v5930
        %v5933 = vadd.f32 %v5925, %v5931
        %v5934 = vadd.f32 %v5926, %v5931
        %v5935 = vld [vmem:[%s63] sm:$0xff]
        %v5936 = vld [vmem:[%s63 + $0x8] sm:$0xff]
        %v5937 = vld [vmem:[%s63 + $0x10] sm:$0xff]
        %v5938 = vld [vmem:[%s63 + $0x18] sm:$0xff]
        %v5939 = vld [vmem:[%s65] sm:$0x1]
        %v5941 = vlaneseq
        %v5942 = vshrl.u32 %v5941, 7
        %v5943 = vsub.s32 0, %v5942
        %v5944 = vrot.slane %v5939, %v5943
        %v5947 = vsel %vm1625, %v5933, 0
        %v5950 = vsel %vm1625, %v5934, 0
        %5952 = vmatprep.subr.mxu0 0.0
        %5953 = vmatpush1.msra.mxu0 %v5935
        %5954 = vmatprep.subr.mxu0 0.0
        %5955 = vmatpush1.msra.mxu0 %v5936
        %5956 = vmatprep.subr.mxu0 0.0
        %5957 = vmatpush1.msra.mxu0 %v5937
        %5958 = vmatprep.subr.mxu0 0.0
        %5959 = vmatpush1.msra.mxu0 %v5938
        %5960 = vmatprep.subr.mxu0 0.0
        %5961 = vmatpush1.msra.mxu0 0.0
        %5962 = vmatprep.subr.mxu0 0.0
        %5963 = vmatpush1.msra.mxu0 0.0
        %5964 = vmatprep.subr.mxu0 0.0
        %5965 = vmatpush1.msra.mxu0 0.0
        %5966 = vmatprep.subr.mxu0 0.0
        %5967 = vmatpush1.msra.mxu0 0.0
        %5968 = vmatprep.subr.mxu0 0.0
        %5969 = vmatpush1.msra.mxu0 0.0
        %5970 = vmatprep.subr.mxu0 0.0
        %5971 = vmatpush1.msra.mxu0 0.0
        %5972 = vmatprep.subr.mxu0 0.0
        %5973 = vmatpush1.msra.mxu0 0.0
        %5974 = vmatprep.subr.mxu0 0.0
        %5975 = vmatpush1.msra.mxu0 0.0
        %5976 = vmatprep.subr.mxu0 0.0
        %5977 = vmatpush1.msra.mxu0 0.0
        %5978 = vmatprep.subr.mxu0 0.0
        %5979 = vmatpush1.msra.mxu0 0.0
        %5980 = vmatprep.subr.mxu0 0.0
        %5981 = vmatpush1.msra.mxu0 0.0
        %5982 = vmatprep.subr.mxu0 0.0
        %5983 = vmatpush1.msra.mxu0 0.0
        %5984 = vmatprep.subr.mxu0 0.0
        %5985 = vmatpush1.msra.mxu0 0.0
        %5986 = vmatprep.subr.mxu0 0.0
        %5987 = vmatpush1.msra.mxu0 0.0
        %5988 = vmatprep.subr.mxu0 0.0
        %5989 = vmatpush1.msra.mxu0 0.0
        %5990 = vmatprep.subr.mxu0 0.0
        %5991 = vmatpush1.msra.mxu0 0.0
        %5992 = vmatprep.subr.mxu0 0.0
        %5993 = vmatpush1.msra.mxu0 0.0
        %5994 = vmatprep.subr.mxu0 0.0
        %5995 = vmatpush1.msra.mxu0 0.0
        %5996 = vmatprep.subr.mxu0 0.0
        %5997 = vmatpush1.msra.mxu0 0.0
        %5998 = vmatprep.subr.mxu0 0.0
        %5999 = vmatpush1.msra.mxu0 0.0
        %6000 = vmatprep.subr.mxu0 0.0
        %6001 = vmatpush1.msra.mxu0 0.0
        %6002 = vmatprep.subr.mxu0 0.0
        %6003 = vmatpush1.msra.mxu0 0.0
        %6004 = vmatprep.subr.mxu0 0.0
        %6005 = vmatpush1.msra.mxu0 0.0
        %6006 = vmatprep.subr.mxu0 0.0
        %6007 = vmatpush1.msra.mxu0 0.0
        %6008 = vmatprep.subr.mxu0 0.0
        %6009 = vmatpush1.msra.mxu0 0.0
        %6010 = vmatprep.subr.mxu0 0.0
        %6011 = vmatpush1.msra.mxu0 0.0
        %6012 = vmatprep.subr.mxu0 0.0
        %6013 = vmatpush1.msra.mxu0 0.0
        %6014 = vmatprep.subr.mxu0 0.0
        %6015 = vmatpush1.msra.mxu0 0.0
        %6016 = vmatprep.mubr.f32.mxu0 0.0
        %6017 = vmatmul.mubr.f32.gmra.mrb[0].mxu0 %v5947
        %v6018 = vpop.f32.mrb[0].mxu0
        %v6019 = vadd.f32 %v5944, %v6018
        %v6020 = vpop.f32.mrb[0].mxu0
        %6021 = vmatprep.mubr.f32.mxu0 0.0
        %6022 = vmatmul.mubr.f32.gmra.mrb[0].mxu0 %v5950
        %v6023 = vpop.f32.mrb[0].mxu0
        %v6024 = vadd.f32 %v5944, %v6023
        %v6025 = vpop.f32.mrb[0].mxu0
        %6026 = vdwg.mxu0
        %v6027 = vmul.f32 %v6019, 0.35355338
        %v6028 = vmul.f32 %v6024, 0.35355338
        %v6029 = vld [vmem:[%s67] sm:$0xff]
        %v6030 = vld [vmem:[%s67 + $0x8] sm:$0xff]
        %v6031 = vld [vmem:[%s67 + $0x10] sm:$0xff]
        %v6032 = vld [vmem:[%s67 + $0x18] sm:$0xff]
        %v6033 = vld [vmem:[%s69] sm:$0x1]
        %v6035 = vlaneseq
        %v6036 = vshrl.u32 %v6035, 7
        %v6037 = vsub.s32 0, %v6036
        %v6038 = vrot.slane %v6033, %v6037
        %6040 = vmatprep.subr.mxu0 0.0
        %6041 = vmatpush1.msra.mxu0 %v6029
        %6042 = vmatprep.subr.mxu0 0.0
        %6043 = vmatpush1.msra.mxu0 %v6030
        %6044 = vmatprep.subr.mxu0 0.0
        %6045 = vmatpush1.msra.mxu0 %v6031
        %6046 = vmatprep.subr.mxu0 0.0
        %6047 = vmatpush1.msra.mxu0 %v6032
        %6048 = vmatprep.subr.mxu0 0.0
        %6049 = vmatpush1.msra.mxu0 0.0
        %6050 = vmatprep.subr.mxu0 0.0
        %6051 = vmatpush1.msra.mxu0 0.0
        %6052 = vmatprep.subr.mxu0 0.0
        %6053 = vmatpush1.msra.mxu0 0.0
        %6054 = vmatprep.subr.mxu0 0.0
        %6055 = vmatpush1.msra.mxu0 0.0
        %6056 = vmatprep.subr.mxu0 0.0
        %6057 = vmatpush1.msra.mxu0 0.0
        %6058 = vmatprep.subr.mxu0 0.0
        %6059 = vmatpush1.msra.mxu0 0.0
        %6060 = vmatprep.subr.mxu0 0.0
        %6061 = vmatpush1.msra.mxu0 0.0
        %6062 = vmatprep.subr.mxu0 0.0
        %6063 = vmatpush1.msra.mxu0 0.0
        %6064 = vmatprep.subr.mxu0 0.0
        %6065 = vmatpush1.msra.mxu0 0.0
        %6066 = vmatprep.subr.mxu0 0.0
        %6067 = vmatpush1.msra.mxu0 0.0
        %6068 = vmatprep.subr.mxu0 0.0
        %6069 = vmatpush1.msra.mxu0 0.0
        %6070 = vmatprep.subr.mxu0 0.0
        %6071 = vmatpush1.msra.mxu0 0.0
        %6072 = vmatprep.subr.mxu0 0.0
        %6073 = vmatpush1.msra.mxu0 0.0
        %6074 = vmatprep.subr.mxu0 0.0
        %6075 = vmatpush1.msra.mxu0 0.0
        %6076 = vmatprep.subr.mxu0 0.0
        %6077 = vmatpush1.msra.mxu0 0.0
        %6078 = vmatprep.subr.mxu0 0.0
        %6079 = vmatpush1.msra.mxu0 0.0
        %6080 = vmatprep.subr.mxu0 0.0
        %6081 = vmatpush1.msra.mxu0 0.0
        %6082 = vmatprep.subr.mxu0 0.0
        %6083 = vmatpush1.msra.mxu0 0.0
        %6084 = vmatprep.subr.mxu0 0.0
        %6085 = vmatpush1.msra.mxu0 0.0
        %6086 = vmatprep.subr.mxu0 0.0
        %6087 = vmatpush1.msra.mxu0 0.0
        %6088 = vmatprep.subr.mxu0 0.0
        %6089 = vmatpush1.msra.mxu0 0.0
        %6090 = vmatprep.subr.mxu0 0.0
        %6091 = vmatpush1.msra.mxu0 0.0
        %6092 = vmatprep.subr.mxu0 0.0
        %6093 = vmatpush1.msra.mxu0 0.0
        %6094 = vmatprep.subr.mxu0 0.0
        %6095 = vmatpush1.msra.mxu0 0.0
        %6096 = vmatprep.subr.mxu0 0.0
        %6097 = vmatpush1.msra.mxu0 0.0
        %6098 = vmatprep.subr.mxu0 0.0
        %6099 = vmatpush1.msra.mxu0 0.0
        %6100 = vmatprep.subr.mxu0 0.0
        %6101 = vmatpush1.msra.mxu0 0.0
        %6102 = vmatprep.subr.mxu0 0.0
        %6103 = vmatpush1.msra.mxu0 0.0
        %6104 = vmatprep.mubr.f32.mxu0 0.0
        %6105 = vmatmul.mubr.f32.gmra.mrb[0].mxu0 %v5947
        %v6106 = vpop.f32.mrb[0].mxu0
        %v6107 = vadd.f32 %v6038, %v6106
        %v6108 = vpop.f32.mrb[0].mxu0
        %6109 = vmatprep.mubr.f32.mxu0 0.0
        %6110 = vmatmul.mubr.f32.gmra.mrb[0].mxu0 %v5950
        %v6111 = vpop.f32.mrb[0].mxu0
        %v6112 = vadd.f32 %v6038, %v6111
        %v6113 = vpop.f32.mrb[0].mxu0
        %6114 = vdwg.mxu0
        %v6115 = vld [vmem:[%s71] sm:$0xff]
        %v6116 = vld [vmem:[%s71 + $0x8] sm:$0xff]
        %v6117 = vld [vmem:[%s71 + $0x10] sm:$0xff]
        %v6118 = vld [vmem:[%s71 + $0x18] sm:$0xff]
        %v6119 = vld [vmem:[%s73] sm:$0x1]
        %v6121 = vlaneseq
        %v6122 = vshrl.u32 %v6121, 7
        %v6123 = vsub.s32 0, %v6122
        %v6124 = vrot.slane %v6119, %v6123
        %6126 = vmatprep.subr.mxu0 0.0
        %6127 = vmatpush1.msra.mxu0 %v6115
        %6128 = vmatprep.subr.mxu0 0.0
        %6129 = vmatpush1.msra.mxu0 %v6116
        %6130 = vmatprep.subr.mxu0 0.0
        %6131 = vmatpush1.msra.mxu0 %v6117
        %6132 = vmatprep.subr.mxu0 0.0
        %6133 = vmatpush1.msra.mxu0 %v6118
        %6134 = vmatprep.subr.mxu0 0.0
        %6135 = vmatpush1.msra.mxu0 0.0
        %6136 = vmatprep.subr.mxu0 0.0
        %6137 = vmatpush1.msra.mxu0 0.0
        %6138 = vmatprep.subr.mxu0 0.0
        %6139 = vmatpush1.msra.mxu0 0.0
        %6140 = vmatprep.subr.mxu0 0.0
        %6141 = vmatpush1.msra.mxu0 0.0
        %6142 = vmatprep.subr.mxu0 0.0
        %6143 = vmatpush1.msra.mxu0 0.0
        %6144 = vmatprep.subr.mxu0 0.0
        %6145 = vmatpush1.msra.mxu0 0.0
        %6146 = vmatprep.subr.mxu0 0.0
        %6147 = vmatpush1.msra.mxu0 0.0
        %6148 = vmatprep.subr.mxu0 0.0
        %6149 = vmatpush1.msra.mxu0 0.0
        %6150 = vmatprep.subr.mxu0 0.0
        %6151 = vmatpush1.msra.mxu0 0.0
        %6152 = vmatprep.subr.mxu0 0.0
        %6153 = vmatpush1.msra.mxu0 0.0
        %6154 = vmatprep.subr.mxu0 0.0
        %6155 = vmatpush1.msra.mxu0 0.0
        %6156 = vmatprep.subr.mxu0 0.0
        %6157 = vmatpush1.msra.mxu0 0.0
        %6158 = vmatprep.subr.mxu0 0.0
        %6159 = vmatpush1.msra.mxu0 0.0
        %6160 = vmatprep.subr.mxu0 0.0
        %6161 = vmatpush1.msra.mxu0 0.0
        %6162 = vmatprep.subr.mxu0 0.0
        %6163 = vmatpush1.msra.mxu0 0.0
        %6164 = vmatprep.subr.mxu0 0.0
        %6165 = vmatpush1.msra.mxu0 0.0
        %6166 = vmatprep.subr.mxu0 0.0
        %6167 = vmatpush1.msra.mxu0 0.0
        %6168 = vmatprep.subr.mxu0 0.0
        %6169 = vmatpush1.msra.mxu0 0.0
        %6170 = vmatprep.subr.mxu0 0.0
        %6171 = vmatpush1.msra.mxu0 0.0
        %6172 = vmatprep.subr.mxu0 0.0
        %6173 = vmatpush1.msra.mxu0 0.0
        %6174 = vmatprep.subr.mxu0 0.0
        %6175 = vmatpush1.msra.mxu0 0.0
        %6176 = vmatprep.subr.mxu0 0.0
        %6177 = vmatpush1.msra.mxu0 0.0
        %6178 = vmatprep.subr.mxu0 0.0
        %6179 = vmatpush1.msra.mxu0 0.0
        %6180 = vmatprep.subr.mxu0 0.0
        %6181 = vmatpush1.msra.mxu0 0.0
        %6182 = vmatprep.subr.mxu0 0.0
        %6183 = vmatpush1.msra.mxu0 0.0
        %6184 = vmatprep.subr.mxu0 0.0
        %6185 = vmatpush1.msra.mxu0 0.0
        %6186 = vmatprep.subr.mxu0 0.0
        %6187 = vmatpush1.msra.mxu0 0.0
        %6188 = vmatprep.subr.mxu0 0.0
        %6189 = vmatpush1.msra.mxu0 0.0
        %6190 = vmatprep.mubr.f32.mxu0 0.0
        %6191 = vmatmul.mubr.f32.gmra.mrb[0].mxu0 %v5947
        %v6192 = vpop.f32.mrb[0].mxu0
        %v6193 = vadd.f32 %v6124, %v6192
        %v6194 = vpop.f32.mrb[0].mxu0
        %6195 = vmatprep.mubr.f32.mxu0 0.0
        %6196 = vmatmul.mubr.f32.gmra.mrb[0].mxu0 %v5950
        %v6197 = vpop.f32.mrb[0].mxu0
        %v6198 = vadd.f32 %v6124, %v6197
        %v6199 = vpop.f32.mrb[0].mxu0
        %6200 = vdwg.mxu0
        %v6202 = vsel %vm1919, %v6027, 0
        %v6205 = vsel %vm1919, %v6028, 0
        %v6208 = vsel %vm1919, %v6107, 0
        %v6211 = vsel %vm1919, %v6112, 0
        %6213 = vmatprep.subr.mxu0 0.0
        %6214 = vmatpush1.xpose.msra.mxu0 %v6208
        %6215 = vmatprep.subr.mxu0 0.0
        %6216 = vmatpush1.xpose.msra.mxu0 %v6211
        %6217 = vmatprep.subr.mxu0 0.0
        %6218 = vmatpush1.xpose.msra.mxu0 0.0
        %6219 = vmatprep.subr.mxu0 0.0
        %6220 = vmatpush1.xpose.msra.mxu0 0.0
        %6221 = vmatprep.subr.mxu0 0.0
        %6222 = vmatpush1.xpose.msra.mxu0 0.0
        %6223 = vmatprep.subr.mxu0 0.0
        %6224 = vmatpush1.xpose.msra.mxu0 0.0
        %6225 = vmatprep.subr.mxu0 0.0
        %6226 = vmatpush1.xpose.msra.mxu0 0.0
        %6227 = vmatprep.subr.mxu0 0.0
        %6228 = vmatpush1.xpose.msra.mxu0 0.0
        %6229 = vmatprep.subr.mxu0 0.0
        %6230 = vmatpush1.xpose.msra.mxu0 0.0
        %6231 = vmatprep.subr.mxu0 0.0
        %6232 = vmatpush1.xpose.msra.mxu0 0.0
        %6233 = vmatprep.subr.mxu0 0.0
        %6234 = vmatpush1.xpose.msra.mxu0 0.0
        %6235 = vmatprep.subr.mxu0 0.0
        %6236 = vmatpush1.xpose.msra.mxu0 0.0
        %6237 = vmatprep.subr.mxu0 0.0
        %6238 = vmatpush1.xpose.msra.mxu0 0.0
        %6239 = vmatprep.subr.mxu0 0.0
        %6240 = vmatpush1.xpose.msra.mxu0 0.0
        %6241 = vmatprep.subr.mxu0 0.0
        %6242 = vmatpush1.xpose.msra.mxu0 0.0
        %6243 = vmatprep.subr.mxu0 0.0
        %6244 = vmatpush1.xpose.msra.mxu0 0.0
        %6245 = vmatprep.subr.mxu0 0.0
        %6246 = vmatpush1.xpose.msra.mxu0 0.0
        %6247 = vmatprep.subr.mxu0 0.0
        %6248 = vmatpush1.xpose.msra.mxu0 0.0
        %6249 = vmatprep.subr.mxu0 0.0
        %6250 = vmatpush1.xpose.msra.mxu0 0.0
        %6251 = vmatprep.subr.mxu0 0.0
        %6252 = vmatpush1.xpose.msra.mxu0 0.0
        %6253 = vmatprep.subr.mxu0 0.0
        %6254 = vmatpush1.xpose.msra.mxu0 0.0
        %6255 = vmatprep.subr.mxu0 0.0
        %6256 = vmatpush1.xpose.msra.mxu0 0.0
        %6257 = vmatprep.subr.mxu0 0.0
        %6258 = vmatpush1.xpose.msra.mxu0 0.0
        %6259 = vmatprep.subr.mxu0 0.0
        %6260 = vmatpush1.xpose.msra.mxu0 0.0
        %6261 = vmatprep.subr.mxu0 0.0
        %6262 = vmatpush1.xpose.msra.mxu0 0.0
        %6263 = vmatprep.subr.mxu0 0.0
        %6264 = vmatpush1.xpose.msra.mxu0 0.0
        %6265 = vmatprep.subr.mxu0 0.0
        %6266 = vmatpush1.xpose.msra.mxu0 0.0
        %6267 = vmatprep.subr.mxu0 0.0
        %6268 = vmatpush1.xpose.msra.mxu0 0.0
        %6269 = vmatprep.subr.mxu0 0.0
        %6270 = vmatpush1.xpose.msra.mxu0 0.0
        %6271 = vmatprep.subr.mxu0 0.0
        %6272 = vmatpush1.xpose.msra.mxu0 0.0
        %6273 = vmatprep.subr.mxu0 0.0
        %6274 = vmatpush1.xpose.msra.mxu0 0.0
        %6275 = vmatprep.subr.mxu0 0.0
        %6276 = vmatpush1.xpose.msra.mxu0 0.0
        %6277 = vmatprep.mubr.f32.mxu0 0.0
        %6278 = vmatmul.mubr.f32.gmra.mrb[0].mxu0 %v6202
        %v6279 = vpop.f32.mrb[0].mxu0
        %v6280 = vadd.f32 0.0, %v6279
        %v6281 = vpop.f32.mrb[0].mxu0
        %6282 = vmatprep.mubr.f32.mxu0 0.0
        %6283 = vmatmul.mubr.f32.gmra.mrb[0].mxu0 %v6205
        %v6284 = vpop.f32.mrb[0].mxu0
        %v6285 = vadd.f32 0.0, %v6284
        %v6286 = vpop.f32.mrb[0].mxu0
        %6287 = vdwg.mxu0
        %vm6288 = vcmask 72704
        %v6289 = vsel %vm6288, %v6280, -inf
        %6290 = vmax.xlane.f32.xlu0 %v6289
        %v6291 = vpop.xlane.xlu0 %6290
        %vm6292 = vcmask 65536
        %v6293 = vsel %vm6292, %v6285, -inf
        %6294 = vmax.xlane.f32.xlu0 %v6293
        %v6295 = vpop.xlane.xlu0 %6294
        %v6296 = vsub.f32 %v6280, %v6291
        %v6297 = vsub.f32 %v6285, %v6295
        %v6298 = vmul.f32 %v6296, 1.442695
        %v6299 = vpow.pop %v6298
        %v6300 = vmul.f32 %v6297, 1.442695
        %v6301 = vpow.pop %v6300
        %v6302 = vsel %vm6288, %v6299, 0.0
        %6303 = vadd.xlane.f32.xlu0 %v6302
        %v6304 = vpop.xlane.xlu0 %6303
        %v6305 = vsel %vm6292, %v6301, 0.0
        %6306 = vadd.xlane.f32.xlu0 %v6305
        %v6307 = vpop.xlane.xlu0 %6306
        %v6308 = vrcp.pop %v6304
        %v6309 = vrcp.pop %v6307
        %v6310 = vmul.f32 %v6299, %v6308
        %v6311 = vmul.f32 %v6301, %v6309
        %s6312 = scalar_lea.vmem %s63, 32
        %v6313 = vld [vmem:[%s6312] sm:$0xff]
        %v6314 = vld [vmem:[%s6312 + $0x8] sm:$0xff]
        %v6315 = vld [vmem:[%s6312 + $0x10] sm:$0xff]
        %v6316 = vld [vmem:[%s6312 + $0x18] sm:$0xff]
        %s6317 = scalar_lea.vmem %s65, 1
        %v6318 = vld [vmem:[%s6317] sm:$0x1]
        %v6320 = vlaneseq
        %v6321 = vshrl.u32 %v6320, 7
        %v6322 = vsub.s32 0, %v6321
        %v6323 = vrot.slane %v6318, %v6322
        %6325 = vmatprep.subr.mxu0 0.0
        %6326 = vmatpush1.msra.mxu0 %v6313
        %6327 = vmatprep.subr.mxu0 0.0
        %6328 = vmatpush1.msra.mxu0 %v6314
        %6329 = vmatprep.subr.mxu0 0.0
        %6330 = vmatpush1.msra.mxu0 %v6315
        %6331 = vmatprep.subr.mxu0 0.0
        %6332 = vmatpush1.msra.mxu0 %v6316
        %6333 = vmatprep.subr.mxu0 0.0
        %6334 = vmatpush1.msra.mxu0 0.0
        %6335 = vmatprep.subr.mxu0 0.0
        %6336 = vmatpush1.msra.mxu0 0.0
        %6337 = vmatprep.subr.mxu0 0.0
        %6338 = vmatpush1.msra.mxu0 0.0
        %6339 = vmatprep.subr.mxu0 0.0
        %6340 = vmatpush1.msra.mxu0 0.0
        %6341 = vmatprep.subr.mxu0 0.0
        %6342 = vmatpush1.msra.mxu0 0.0
        %6343 = vmatprep.subr.mxu0 0.0
        %6344 = vmatpush1.msra.mxu0 0.0
        %6345 = vmatprep.subr.mxu0 0.0
        %6346 = vmatpush1.msra.mxu0 0.0
        %6347 = vmatprep.subr.mxu0 0.0
        %6348 = vmatpush1.msra.mxu0 0.0
        %6349 = vmatprep.subr.mxu0 0.0
        %6350 = vmatpush1.msra.mxu0 0.0
        %6351 = vmatprep.subr.mxu0 0.0
        %6352 = vmatpush1.msra.mxu0 0.0
        %6353 = vmatprep.subr.mxu0 0.0
        %6354 = vmatpush1.msra.mxu0 0.0
        %6355 = vmatprep.subr.mxu0 0.0
        %6356 = vmatpush1.msra.mxu0 0.0
        %6357 = vmatprep.subr.mxu0 0.0
        %6358 = vmatpush1.msra.mxu0 0.0
        %6359 = vmatprep.subr.mxu0 0.0
        %6360 = vmatpush1.msra.mxu0 0.0
        %6361 = vmatprep.subr.mxu0 0.0
        %6362 = vmatpush1.msra.mxu0 0.0
        %6363 = vmatprep.subr.mxu0 0.0
        %6364 = vmatpush1.msra.mxu0 0.0
        %6365 = vmatprep.subr.mxu0 0.0
        %6366 = vmatpush1.msra.mxu0 0.0
        %6367 = vmatprep.subr.mxu0 0.0
        %6368 = vmatpush1.msra.mxu0 0.0
        %6369 = vmatprep.subr.mxu0 0.0
        %6370 = vmatpush1.msra.mxu0 0.0
        %6371 = vmatprep.subr.mxu0 0.0
        %6372 = vmatpush1.msra.mxu0 0.0
        %6373 = vmatprep.subr.mxu0 0.0
        %6374 = vmatpush1.msra.mxu0 0.0
        %6375 = vmatprep.subr.mxu0 0.0
        %6376 = vmatpush1.msra.mxu0 0.0
        %6377 = vmatprep.subr.mxu0 0.0
        %6378 = vmatpush1.msra.mxu0 0.0
        %6379 = vmatprep.subr.mxu0 0.0
        %6380 = vmatpush1.msra.mxu0 0.0
        %6381 = vmatprep.subr.mxu0 0.0
        %6382 = vmatpush1.msra.mxu0 0.0
        %6383 = vmatprep.subr.mxu0 0.0
        %6384 = vmatpush1.msra.mxu0 0.0
        %6385 = vmatprep.subr.mxu0 0.0
        %6386 = vmatpush1.msra.mxu0 0.0
        %6387 = vmatprep.subr.mxu0 0.0
        %6388 = vmatpush1.msra.mxu0 0.0
        %6389 = vmatprep.mubr.f32.mxu0 0.0
        %6390 = vmatmul.mubr.f32.gmra.mrb[0].mxu0 %v5947
        %v6391 = vpop.f32.mrb[0].mxu0
        %v6392 = vadd.f32 %v6323, %v6391
        %v6393 = vpop.f32.mrb[0].mxu0
        %6394 = vmatprep.mubr.f32.mxu0 0.0
        %6395 = vmatmul.mubr.f32.gmra.mrb[0].mxu0 %v5950
        %v6396 = vpop.f32.mrb[0].mxu0
        %v6397 = vadd.f32 %v6323, %v6396
        %v6398 = vpop.f32.mrb[0].mxu0
        %6399 = vdwg.mxu0
        %v6400 = vmul.f32 %v6392, 0.35355338
        %v6401 = vmul.f32 %v6397, 0.35355338
        %s6402 = scalar_lea.vmem %s67, 32
        %v6403 = vld [vmem:[%s6402] sm:$0xff]
        %v6404 = vld [vmem:[%s6402 + $0x8] sm:$0xff]
        %v6405 = vld [vmem:[%s6402 + $0x10] sm:$0xff]
        %v6406 = vld [vmem:[%s6402 + $0x18] sm:$0xff]
        %s6407 = scalar_lea.vmem %s69, 1
        %v6408 = vld [vmem:[%s6407] sm:$0x1]
        %v6410 = vlaneseq
        %v6411 = vshrl.u32 %v6410, 7
        %v6412 = vsub.s32 0, %v6411
        %v6413 = vrot.slane %v6408, %v6412
        %6415 = vmatprep.subr.mxu0 0.0
        %6416 = vmatpush1.msra.mxu0 %v6403
        %6417 = vmatprep.subr.mxu0 0.0
        %6418 = vmatpush1.msra.mxu0 %v6404
        %6419 = vmatprep.subr.mxu0 0.0
        %6420 = vmatpush1.msra.mxu0 %v6405
        %6421 = vmatprep.subr.mxu0 0.0
        %6422 = vmatpush1.msra.mxu0 %v6406
        %6423 = vmatprep.subr.mxu0 0.0
        %6424 = vmatpush1.msra.mxu0 0.0
        %6425 = vmatprep.subr.mxu0 0.0
        %6426 = vmatpush1.msra.mxu0 0.0
        %6427 = vmatprep.subr.mxu0 0.0
        %6428 = vmatpush1.msra.mxu0 0.0
        %6429 = vmatprep.subr.mxu0 0.0
        %6430 = vmatpush1.msra.mxu0 0.0
        %6431 = vmatprep.subr.mxu0 0.0
        %6432 = vmatpush1.msra.mxu0 0.0
        %6433 = vmatprep.subr.mxu0 0.0
        %6434 = vmatpush1.msra.mxu0 0.0
        %6435 = vmatprep.subr.mxu0 0.0
        %6436 = vmatpush1.msra.mxu0 0.0
        %6437 = vmatprep.subr.mxu0 0.0
        %6438 = vmatpush1.msra.mxu0 0.0
        %6439 = vmatprep.subr.mxu0 0.0
        %6440 = vmatpush1.msra.mxu0 0.0
        %6441 = vmatprep.subr.mxu0 0.0
        %6442 = vmatpush1.msra.mxu0 0.0
        %6443 = vmatprep.subr.mxu0 0.0
        %6444 = vmatpush1.msra.mxu0 0.0
        %6445 = vmatprep.subr.mxu0 0.0
        %6446 = vmatpush1.msra.mxu0 0.0
        %6447 = vmatprep.subr.mxu0 0.0
        %6448 = vmatpush1.msra.mxu0 0.0
        %6449 = vmatprep.subr.mxu0 0.0
        %6450 = vmatpush1.msra.mxu0 0.0
        %6451 = vmatprep.subr.mxu0 0.0
        %6452 = vmatpush1.msra.mxu0 0.0
        %6453 = vmatprep.subr.mxu0 0.0
        %6454 = vmatpush1.msra.mxu0 0.0
        %6455 = vmatprep.subr.mxu0 0.0
        %6456 = vmatpush1.msra.mxu0 0.0
        %6457 = vmatprep.subr.mxu0 0.0
        %6458 = vmatpush1.msra.mxu0 0.0
        %6459 = vmatprep.subr.mxu0 0.0
        %6460 = vmatpush1.msra.mxu0 0.0
        %6461 = vmatprep.subr.mxu0 0.0
        %6462 = vmatpush1.msra.mxu0 0.0
        %6463 = vmatprep.subr.mxu0 0.0
        %6464 = vmatpush1.msra.mxu0 0.0
        %6465 = vmatprep.subr.mxu0 0.0
        %6466 = vmatpush1.msra.mxu0 0.0
        %6467 = vmatprep.subr.mxu0 0.0
        %6468 = vmatpush1.msra.mxu0 0.0
        %6469 = vmatprep.subr.mxu0 0.0
        %6470 = vmatpush1.msra.mxu0 0.0
        %6471 = vmatprep.subr.mxu0 0.0
        %6472 = vmatpush1.msra.mxu0 0.0
        %6473 = vmatprep.subr.mxu0 0.0
        %6474 = vmatpush1.msra.mxu0 0.0
        %6475 = vmatprep.subr.mxu0 0.0
        %6476 = vmatpush1.msra.mxu0 0.0
        %6477 = vmatprep.subr.mxu0 0.0
        %6478 = vmatpush1.msra.mxu0 0.0
        %6479 = vmatprep.mubr.f32.mxu0 0.0
        %6480 = vmatmul.mubr.f32.gmra.mrb[0].mxu0 %v5947
        %v6481 = vpop.f32.mrb[0].mxu0
        %v6482 = vadd.f32 %v6413, %v6481
        %v6483 = vpop.f32.mrb[0].mxu0
        %6484 = vmatprep.mubr.f32.mxu0 0.0
        %6485 = vmatmul.mubr.f32.gmra.mrb[0].mxu0 %v5950
        %v6486 = vpop.f32.mrb[0].mxu0
        %v6487 = vadd.f32 %v6413, %v6486
        %v6488 = vpop.f32.mrb[0].mxu0
        %6489 = vdwg.mxu0
        %s6490 = scalar_lea.vmem %s71, 32
        %v6491 = vld [vmem:[%s6490] sm:$0xff]
        %v6492 = vld [vmem:[%s6490 + $0x8] sm:$0xff]
        %v6493 = vld [vmem:[%s6490 + $0x10] sm:$0xff]
        %v6494 = vld [vmem:[%s6490 + $0x18] sm:$0xff]
        %s6495 = scalar_lea.vmem %s73, 1
        %v6496 = vld [vmem:[%s6495] sm:$0x1]
        %v6498 = vlaneseq
        %v6499 = vshrl.u32 %v6498, 7
        %v6500 = vsub.s32 0, %v6499
        %v6501 = vrot.slane %v6496, %v6500
        %6503 = vmatprep.subr.mxu0 0.0
        %6504 = vmatpush1.msra.mxu0 %v6491
        %6505 = vmatprep.subr.mxu0 0.0
        %6506 = vmatpush1.msra.mxu0 %v6492
        %6507 = vmatprep.subr.mxu0 0.0
        %6508 = vmatpush1.msra.mxu0 %v6493
        %6509 = vmatprep.subr.mxu0 0.0
        %6510 = vmatpush1.msra.mxu0 %v6494
        %6511 = vmatprep.subr.mxu0 0.0
        %6512 = vmatpush1.msra.mxu0 0.0
        %6513 = vmatprep.subr.mxu0 0.0
        %6514 = vmatpush1.msra.mxu0 0.0
        %6515 = vmatprep.subr.mxu0 0.0
        %6516 = vmatpush1.msra.mxu0 0.0
        %6517 = vmatprep.subr.mxu0 0.0
        %6518 = vmatpush1.msra.mxu0 0.0
        %6519 = vmatprep.subr.mxu0 0.0
        %6520 = vmatpush1.msra.mxu0 0.0
        %6521 = vmatprep.subr.mxu0 0.0
        %6522 = vmatpush1.msra.mxu0 0.0
        %6523 = vmatprep.subr.mxu0 0.0
        %6524 = vmatpush1.msra.mxu0 0.0
        %6525 = vmatprep.subr.mxu0 0.0
        %6526 = vmatpush1.msra.mxu0 0.0
        %6527 = vmatprep.subr.mxu0 0.0
        %6528 = vmatpush1.msra.mxu0 0.0
        %6529 = vmatprep.subr.mxu0 0.0
        %6530 = vmatpush1.msra.mxu0 0.0
        %6531 = vmatprep.subr.mxu0 0.0
        %6532 = vmatpush1.msra.mxu0 0.0
        %6533 = vmatprep.subr.mxu0 0.0
        %6534 = vmatpush1.msra.mxu0 0.0
        %6535 = vmatprep.subr.mxu0 0.0
        %6536 = vmatpush1.msra.mxu0 0.0
        %6537 = vmatprep.subr.mxu0 0.0
        %6538 = vmatpush1.msra.mxu0 0.0
        %6539 = vmatprep.subr.mxu0 0.0
        %6540 = vmatpush1.msra.mxu0 0.0
        %6541 = vmatprep.subr.mxu0 0.0
        %6542 = vmatpush1.msra.mxu0 0.0
        %6543 = vmatprep.subr.mxu0 0.0
        %6544 = vmatpush1.msra.mxu0 0.0
        %6545 = vmatprep.subr.mxu0 0.0
        %6546 = vmatpush1.msra.mxu0 0.0
        %6547 = vmatprep.subr.mxu0 0.0
        %6548 = vmatpush1.msra.mxu0 0.0
        %6549 = vmatprep.subr.mxu0 0.0
        %6550 = vmatpush1.msra.mxu0 0.0
        %6551 = vmatprep.subr.mxu0 0.0
        %6552 = vmatpush1.msra.mxu0 0.0
        %6553 = vmatprep.subr.mxu0 0.0
        %6554 = vmatpush1.msra.mxu0 0.0
        %6555 = vmatprep.subr.mxu0 0.0
        %6556 = vmatpush1.msra.mxu0 0.0
        %6557 = vmatprep.subr.mxu0 0.0
        %6558 = vmatpush1.msra.mxu0 0.0
        %6559 = vmatprep.subr.mxu0 0.0
        %6560 = vmatpush1.msra.mxu0 0.0
        %6561 = vmatprep.subr.mxu0 0.0
        %6562 = vmatpush1.msra.mxu0 0.0
        %6563 = vmatprep.subr.mxu0 0.0
        %6564 = vmatpush1.msra.mxu0 0.0
        %6565 = vmatprep.subr.mxu0 0.0
        %6566 = vmatpush1.msra.mxu0 0.0
        %6567 = vmatprep.mubr.f32.mxu0 0.0
        %6568 = vmatmul.mubr.f32.gmra.mrb[0].mxu0 %v5947
        %v6569 = vpop.f32.mrb[0].mxu0
        %v6570 = vadd.f32 %v6501, %v6569
        %v6571 = vpop.f32.mrb[0].mxu0
        %6572 = vmatprep.mubr.f32.mxu0 0.0
        %6573 = vmatmul.mubr.f32.gmra.mrb[0].mxu0 %v5950
        %v6574 = vpop.f32.mrb[0].mxu0
        %v6575 = vadd.f32 %v6501, %v6574
        %v6576 = vpop.f32.mrb[0].mxu0
        %6577 = vdwg.mxu0
        %v6579 = vsel %vm1919, %v6400, 0
        %v6582 = vsel %vm1919, %v6401, 0
        %v6585 = vsel %vm1919, %v6482, 0
        %v6588 = vsel %vm1919, %v6487, 0
        %6590 = vmatprep.subr.mxu0 0.0
        %6591 = vmatpush1.xpose.msra.mxu0 %v6585
        %6592 = vmatprep.subr.mxu0 0.0
        %6593 = vmatpush1.xpose.msra.mxu0 %v6588
        %6594 = vmatprep.subr.mxu0 0.0
        %6595 = vmatpush1.xpose.msra.mxu0 0.0
        %6596 = vmatprep.subr.mxu0 0.0
        %6597 = vmatpush1.xpose.msra.mxu0 0.0
        %6598 = vmatprep.subr.mxu0 0.0
        %6599 = vmatpush1.xpose.msra.mxu0 0.0
        %6600 = vmatprep.subr.mxu0 0.0
        %6601 = vmatpush1.xpose.msra.mxu0 0.0
        %6602 = vmatprep.subr.mxu0 0.0
        %6603 = vmatpush1.xpose.msra.mxu0 0.0
        %6604 = vmatprep.subr.mxu0 0.0
        %6605 = vmatpush1.xpose.msra.mxu0 0.0
        %6606 = vmatprep.subr.mxu0 0.0
        %6607 = vmatpush1.xpose.msra.mxu0 0.0
        %6608 = vmatprep.subr.mxu0 0.0
        %6609 = vmatpush1.xpose.msra.mxu0 0.0
        %6610 = vmatprep.subr.mxu0 0.0
        %6611 = vmatpush1.xpose.msra.mxu0 0.0
        %6612 = vmatprep.subr.mxu0 0.0
        %6613 = vmatpush1.xpose.msra.mxu0 0.0
        %6614 = vmatprep.subr.mxu0 0.0
        %6615 = vmatpush1.xpose.msra.mxu0 0.0
        %6616 = vmatprep.subr.mxu0 0.0
        %6617 = vmatpush1.xpose.msra.mxu0 0.0
        %6618 = vmatprep.subr.mxu0 0.0
        %6619 = vmatpush1.xpose.msra.mxu0 0.0
        %6620 = vmatprep.subr.mxu0 0.0
        %6621 = vmatpush1.xpose.msra.mxu0 0.0
        %6622 = vmatprep.subr.mxu0 0.0
        %6623 = vmatpush1.xpose.msra.mxu0 0.0
        %6624 = vmatprep.subr.mxu0 0.0
        %6625 = vmatpush1.xpose.msra.mxu0 0.0
        %6626 = vmatprep.subr.mxu0 0.0
        %6627 = vmatpush1.xpose.msra.mxu0 0.0
        %6628 = vmatprep.subr.mxu0 0.0
        %6629 = vmatpush1.xpose.msra.mxu0 0.0
        %6630 = vmatprep.subr.mxu0 0.0
        %6631 = vmatpush1.xpose.msra.mxu0 0.0
        %6632 = vmatprep.subr.mxu0 0.0
        %6633 = vmatpush1.xpose.msra.mxu0 0.0
        %6634 = vmatprep.subr.mxu0 0.0
        %6635 = vmatpush1.xpose.msra.mxu0 0.0
        %6636 = vmatprep.subr.mxu0 0.0
        %6637 = vmatpush1.xpose.msra.mxu0 0.0
        %6638 = vmatprep.subr.mxu0 0.0
        %6639 = vmatpush1.xpose.msra.mxu0 0.0
        %6640 = vmatprep.subr.mxu0 0.0
        %6641 = vmatpush1.xpose.msra.mxu0 0.0
        %6642 = vmatprep.subr.mxu0 0.0
        %6643 = vmatpush1.xpose.msra.mxu0 0.0
        %6644 = vmatprep.subr.mxu0 0.0
        %6645 = vmatpush1.xpose.msra.mxu0 0.0
        %6646 = vmatprep.subr.mxu0 0.0
        %6647 = vmatpush1.xpose.msra.mxu0 0.0
        %6648 = vmatprep.subr.mxu0 0.0
        %6649 = vmatpush1.xpose.msra.mxu0 0.0
        %6650 = vmatprep.subr.mxu0 0.0
        %6651 = vmatpush1.xpose.msra.mxu0 0.0
        %6652 = vmatprep.subr.mxu0 0.0
        %6653 = vmatpush1.xpose.msra.mxu0 0.0
        %6654 = vmatprep.mubr.f32.mxu0 0.0
        %6655 = vmatmul.mubr.f32.gmra.mrb[0].mxu0 %v6579
        %v6656 = vpop.f32.mrb[0].mxu0
        %v6657 = vadd.f32 0.0, %v6656
        %v6658 = vpop.f32.mrb[0].mxu0
        %6659 = vmatprep.mubr.f32.mxu0 0.0
        %6660 = vmatmul.mubr.f32.gmra.mrb[0].mxu0 %v6582
        %v6661 = vpop.f32.mrb[0].mxu0
        %v6662 = vadd.f32 0.0, %v6661
        %v6663 = vpop.f32.mrb[0].mxu0
        %6664 = vdwg.mxu0
        %v6665 = vsel %vm6288, %v6657, -inf
        %6666 = vmax.xlane.f32.xlu0 %v6665
        %v6667 = vpop.xlane.xlu0 %6666
        %v6668 = vsel %vm6292, %v6662, -inf
        %6669 = vmax.xlane.f32.xlu0 %v6668
        %v6670 = vpop.xlane.xlu0 %6669
        %v6671 = vsub.f32 %v6657, %v6667
        %v6672 = vsub.f32 %v6662, %v6670
        %v6673 = vmul.f32 %v6671, 1.442695
        %v6674 = vpow.pop %v6673
        %v6675 = vmul.f32 %v6672, 1.442695
        %v6676 = vpow.pop %v6675
        %v6677 = vsel %vm6288, %v6674, 0.0
        %6678 = vadd.xlane.f32.xlu0 %v6677
        %v6679 = vpop.xlane.xlu0 %6678
        %v6680 = vsel %vm6292, %v6676, 0.0
        %6681 = vadd.xlane.f32.xlu0 %v6680
        %v6682 = vpop.xlane.xlu0 %6681
        %v6683 = vrcp.pop %v6679
        %v6684 = vrcp.pop %v6682
        %v6685 = vmul.f32 %v6674, %v6683
        %v6686 = vmul.f32 %v6676, %v6684
        %v6688 = vsel %vm6288, %v6685, 0
        %v6691 = vsel %vm6288, %v6686, 0
        %vm6693 = vcmask 1040384
        %v6695 = vsel %vm6693, %v6575, 0
        %6697 = vmatprep.subr.mxu0 0.0
        %6698 = vmatpush1.msra.mxu0 %v6570
        %6699 = vmatprep.subr.mxu0 0.0
        %6700 = vmatpush1.msra.mxu0 %v6695
        %6701 = vmatprep.subr.mxu0 0.0
        %6702 = vmatpush1.msra.mxu0 0.0
        %6703 = vmatprep.subr.mxu0 0.0
        %6704 = vmatpush1.msra.mxu0 0.0
        %6705 = vmatprep.subr.mxu0 0.0
        %6706 = vmatpush1.msra.mxu0 0.0
        %6707 = vmatprep.subr.mxu0 0.0
        %6708 = vmatpush1.msra.mxu0 0.0
        %6709 = vmatprep.subr.mxu0 0.0
        %6710 = vmatpush1.msra.mxu0 0.0
        %6711 = vmatprep.subr.mxu0 0.0
        %6712 = vmatpush1.msra.mxu0 0.0
        %6713 = vmatprep.subr.mxu0 0.0
        %6714 = vmatpush1.msra.mxu0 0.0
        %6715 = vmatprep.subr.mxu0 0.0
        %6716 = vmatpush1.msra.mxu0 0.0
        %6717 = vmatprep.subr.mxu0 0.0
        %6718 = vmatpush1.msra.mxu0 0.0
        %6719 = vmatprep.subr.mxu0 0.0
        %6720 = vmatpush1.msra.mxu0 0.0
        %6721 = vmatprep.subr.mxu0 0.0
        %6722 = vmatpush1.msra.mxu0 0.0
        %6723 = vmatprep.subr.mxu0 0.0
        %6724 = vmatpush1.msra.mxu0 0.0
        %6725 = vmatprep.subr.mxu0 0.0
        %6726 = vmatpush1.msra.mxu0 0.0
        %6727 = vmatprep.subr.mxu0 0.0
        %6728 = vmatpush1.msra.mxu0 0.0
        %6729 = vmatprep.subr.mxu0 0.0
        %6730 = vmatpush1.msra.mxu0 0.0
        %6731 = vmatprep.subr.mxu0 0.0
        %6732 = vmatpush1.msra.mxu0 0.0
        %6733 = vmatprep.subr.mxu0 0.0
        %6734 = vmatpush1.msra.mxu0 0.0
        %6735 = vmatprep.subr.mxu0 0.0
        %6736 = vmatpush1.msra.mxu0 0.0
        %6737 = vmatprep.subr.mxu0 0.0
        %6738 = vmatpush1.msra.mxu0 0.0
        %6739 = vmatprep.subr.mxu0 0.0
        %6740 = vmatpush1.msra.mxu0 0.0
        %6741 = vmatprep.subr.mxu0 0.0
        %6742 = vmatpush1.msra.mxu0 0.0
        %6743 = vmatprep.subr.mxu0 0.0
        %6744 = vmatpush1.msra.mxu0 0.0
        %6745 = vmatprep.subr.mxu0 0.0
        %6746 = vmatpush1.msra.mxu0 0.0
        %6747 = vmatprep.subr.mxu0 0.0
        %6748 = vmatpush1.msra.mxu0 0.0
        %6749 = vmatprep.subr.mxu0 0.0
        %6750 = vmatpush1.msra.mxu0 0.0
        %6751 = vmatprep.subr.mxu0 0.0
        %6752 = vmatpush1.msra.mxu0 0.0
        %6753 = vmatprep.subr.mxu0 0.0
        %6754 = vmatpush1.msra.mxu0 0.0
        %6755 = vmatprep.subr.mxu0 0.0
        %6756 = vmatpush1.msra.mxu0 0.0
        %6757 = vmatprep.subr.mxu0 0.0
        %6758 = vmatpush1.msra.mxu0 0.0
        %6759 = vmatprep.subr.mxu0 0.0
        %6760 = vmatpush1.msra.mxu0 0.0
        %6761 = vmatprep.mubr.f32.mxu0 0.0
        %6762 = vmatmul.mubr.f32.gmra.mrb[0].mxu0 %v6688
        %v6763 = vpop.f32.mrb[0].mxu0
        %v6764 = vadd.f32 0.0, %v6763
        %v6765 = vpop.f32.mrb[0].mxu0
        %6766 = vmatprep.mubr.f32.mxu0 0.0
        %6767 = vmatmul.mubr.f32.gmra.mrb[0].mxu0 %v6691
        %v6768 = vpop.f32.mrb[0].mxu0
        %v6769 = vadd.f32 0.0, %v6768
        %v6770 = vpop.f32.mrb[0].mxu0
        %6771 = vdwg.mxu0
        %v6773 = vsel %vm6288, %v6310, 0
        %v6776 = vsel %vm6288, %v6311, 0
        %v6779 = vsel %vm6693, %v6198, 0
        %6781 = vmatprep.subr.mxu0 0.0
        %6782 = vmatpush1.msra.mxu0 %v6193
        %6783 = vmatprep.subr.mxu0 0.0
        %6784 = vmatpush1.msra.mxu0 %v6779
        %6785 = vmatprep.subr.mxu0 0.0
        %6786 = vmatpush1.msra.mxu0 0.0
        %6787 = vmatprep.subr.mxu0 0.0
        %6788 = vmatpush1.msra.mxu0 0.0
        %6789 = vmatprep.subr.mxu0 0.0
        %6790 = vmatpush1.msra.mxu0 0.0
        %6791 = vmatprep.subr.mxu0 0.0
        %6792 = vmatpush1.msra.mxu0 0.0
        %6793 = vmatprep.subr.mxu0 0.0
        %6794 = vmatpush1.msra.mxu0 0.0
        %6795 = vmatprep.subr.mxu0 0.0
        %6796 = vmatpush1.msra.mxu0 0.0
        %6797 = vmatprep.subr.mxu0 0.0
        %6798 = vmatpush1.msra.mxu0 0.0
        %6799 = vmatprep.subr.mxu0 0.0
        %6800 = vmatpush1.msra.mxu0 0.0
        %6801 = vmatprep.subr.mxu0 0.0
        %6802 = vmatpush1.msra.mxu0 0.0
        %6803 = vmatprep.subr.mxu0 0.0
        %6804 = vmatpush1.msra.mxu0 0.0
        %6805 = vmatprep.subr.mxu0 0.0
        %6806 = vmatpush1.msra.mxu0 0.0
        %6807 = vmatprep.subr.mxu0 0.0
        %6808 = vmatpush1.msra.mxu0 0.0
        %6809 = vmatprep.subr.mxu0 0.0
        %6810 = vmatpush1.msra.mxu0 0.0
        %6811 = vmatprep.subr.mxu0 0.0
        %6812 = vmatpush1.msra.mxu0 0.0
        %6813 = vmatprep.subr.mxu0 0.0
        %6814 = vmatpush1.msra.mxu0 0.0
        %6815 = vmatprep.subr.mxu0 0.0
        %6816 = vmatpush1.msra.mxu0 0.0
        %6817 = vmatprep.subr.mxu0 0.0
        %6818 = vmatpush1.msra.mxu0 0.0
        %6819 = vmatprep.subr.mxu0 0.0
        %6820 = vmatpush1.msra.mxu0 0.0
        %6821 = vmatprep.subr.mxu0 0.0
        %6822 = vmatpush1.msra.mxu0 0.0
        %6823 = vmatprep.subr.mxu0 0.0
        %6824 = vmatpush1.msra.mxu0 0.0
        %6825 = vmatprep.subr.mxu0 0.0
        %6826 = vmatpush1.msra.mxu0 0.0
        %6827 = vmatprep.subr.mxu0 0.0
        %6828 = vmatpush1.msra.mxu0 0.0
        %6829 = vmatprep.subr.mxu0 0.0
        %6830 = vmatpush1.msra.mxu0 0.0
        %6831 = vmatprep.subr.mxu0 0.0
        %6832 = vmatpush1.msra.mxu0 0.0
        %6833 = vmatprep.subr.mxu0 0.0
        %6834 = vmatpush1.msra.mxu0 0.0
        %6835 = vmatprep.subr.mxu0 0.0
        %6836 = vmatpush1.msra.mxu0 0.0
        %6837 = vmatprep.subr.mxu0 0.0
        %6838 = vmatpush1.msra.mxu0 0.0
        %6839 = vmatprep.subr.mxu0 0.0
        %6840 = vmatpush1.msra.mxu0 0.0
        %6841 = vmatprep.subr.mxu0 0.0
        %6842 = vmatpush1.msra.mxu0 0.0
        %6843 = vmatprep.subr.mxu0 0.0
        %6844 = vmatpush1.msra.mxu0 0.0
        %6845 = vmatprep.mubr.f32.mxu0 0.0
        %6846 = vmatmul.mubr.f32.gmra.mrb[0].mxu0 %v6773
        %v6847 = vpop.f32.mrb[0].mxu0
        %v6848 = vadd.f32 %v6764, %v6847
        %v6849 = vpop.f32.mrb[0].mxu0
        %6850 = vmatprep.mubr.f32.mxu0 0.0
        %6851 = vmatmul.mubr.f32.gmra.mrb[0].mxu0 %v6776
        %v6852 = vpop.f32.mrb[0].mxu0
        %v6853 = vadd.f32 %v6769, %v6852
        %v6854 = vpop.f32.mrb[0].mxu0
        %6855 = vdwg.mxu0
        %s6856 = scalar_lea.vmem %s63, 64
        %v6857 = vld [vmem:[%s6856] sm:$0xff]
        %v6858 = vld [vmem:[%s6856 + $0x8] sm:$0xff]
        %v6859 = vld [vmem:[%s6856 + $0x10] sm:$0xff]
        %v6860 = vld [vmem:[%s6856 + $0x18] sm:$0xff]
        %s6861 = scalar_lea.vmem %s65, 2
        %v6862 = vld [vmem:[%s6861] sm:$0x1]
        %v6864 = vlaneseq
        %v6865 = vshrl.u32 %v6864, 7
        %v6866 = vsub.s32 0, %v6865
        %v6867 = vrot.slane %v6862, %v6866
        %6869 = vmatprep.subr.mxu0 0.0
        %6870 = vmatpush1.msra.mxu0 %v6857
        %6871 = vmatprep.subr.mxu0 0.0
        %6872 = vmatpush1.msra.mxu0 %v6858
        %6873 = vmatprep.subr.mxu0 0.0
        %6874 = vmatpush1.msra.mxu0 %v6859
        %6875 = vmatprep.subr.mxu0 0.0
        %6876 = vmatpush1.msra.mxu0 %v6860
        %6877 = vmatprep.subr.mxu0 0.0
        %6878 = vmatpush1.msra.mxu0 0.0
        %6879 = vmatprep.subr.mxu0 0.0
        %6880 = vmatpush1.msra.mxu0 0.0
        %6881 = vmatprep.subr.mxu0 0.0
        %6882 = vmatpush1.msra.mxu0 0.0
        %6883 = vmatprep.subr.mxu0 0.0
        %6884 = vmatpush1.msra.mxu0 0.0
        %6885 = vmatprep.subr.mxu0 0.0
        %6886 = vmatpush1.msra.mxu0 0.0
        %6887 = vmatprep.subr.mxu0 0.0
        %6888 = vmatpush1.msra.mxu0 0.0
        %6889 = vmatprep.subr.mxu0 0.0
        %6890 = vmatpush1.msra.mxu0 0.0
        %6891 = vmatprep.subr.mxu0 0.0
        %6892 = vmatpush1.msra.mxu0 0.0
        %6893 = vmatprep.subr.mxu0 0.0
        %6894 = vmatpush1.msra.mxu0 0.0
        %6895 = vmatprep.subr.mxu0 0.0
        %6896 = vmatpush1.msra.mxu0 0.0
        %6897 = vmatprep.subr.mxu0 0.0
        %6898 = vmatpush1.msra.mxu0 0.0
        %6899 = vmatprep.subr.mxu0 0.0
        %6900 = vmatpush1.msra.mxu0 0.0
        %6901 = vmatprep.subr.mxu0 0.0
        %6902 = vmatpush1.msra.mxu0 0.0
        %6903 = vmatprep.subr.mxu0 0.0
        %6904 = vmatpush1.msra.mxu0 0.0
        %6905 = vmatprep.subr.mxu0 0.0
        %6906 = vmatpush1.msra.mxu0 0.0
        %6907 = vmatprep.subr.mxu0 0.0
        %6908 = vmatpush1.msra.mxu0 0.0
        %6909 = vmatprep.subr.mxu0 0.0
        %6910 = vmatpush1.msra.mxu0 0.0
        %6911 = vmatprep.subr.mxu0 0.0
        %6912 = vmatpush1.msra.mxu0 0.0
        %6913 = vmatprep.subr.mxu0 0.0
        %6914 = vmatpush1.msra.mxu0 0.0
        %6915 = vmatprep.subr.mxu0 0.0
        %6916 = vmatpush1.msra.mxu0 0.0
        %6917 = vmatprep.subr.mxu0 0.0
        %6918 = vmatpush1.msra.mxu0 0.0
        %6919 = vmatprep.subr.mxu0 0.0
        %6920 = vmatpush1.msra.mxu0 0.0
        %6921 = vmatprep.subr.mxu0 0.0
        %6922 = vmatpush1.msra.mxu0 0.0
        %6923 = vmatprep.subr.mxu0 0.0
        %6924 = vmatpush1.msra.mxu0 0.0
        %6925 = vmatprep.subr.mxu0 0.0
        %6926 = vmatpush1.msra.mxu0 0.0
        %6927 = vmatprep.subr.mxu0 0.0
        %6928 = vmatpush1.msra.mxu0 0.0
        %6929 = vmatprep.subr.mxu0 0.0
        %6930 = vmatpush1.msra.mxu0 0.0
        %6931 = vmatprep.subr.mxu0 0.0
        %6932 = vmatpush1.msra.mxu0 0.0
        %6933 = vmatprep.mubr.f32.mxu0 0.0
        %6934 = vmatmul.mubr.f32.gmra.mrb[0].mxu0 %v5947
        %v6935 = vpop.f32.mrb[0].mxu0
        %v6936 = vadd.f32 %v6867, %v6935
        %v6937 = vpop.f32.mrb[0].mxu0
        %6938 = vmatprep.mubr.f32.mxu0 0.0
        %6939 = vmatmul.mubr.f32.gmra.mrb[0].mxu0 %v5950
        %v6940 = vpop.f32.mrb[0].mxu0
        %v6941 = vadd.f32 %v6867, %v6940
        %v6942 = vpop.f32.mrb[0].mxu0
        %6943 = vdwg.mxu0
        %v6944 = vmul.f32 %v6936, 0.35355338
        %v6945 = vmul.f32 %v6941, 0.35355338
        %s6946 = scalar_lea.vmem %s67, 64
        %v6947 = vld [vmem:[%s6946] sm:$0xff]
        %v6948 = vld [vmem:[%s6946 + $0x8] sm:$0xff]
        %v6949 = vld [vmem:[%s6946 + $0x10] sm:$0xff]
        %v6950 = vld [vmem:[%s6946 + $0x18] sm:$0xff]
        %s6951 = scalar_lea.vmem %s69, 2
        %v6952 = vld [vmem:[%s6951] sm:$0x1]
        %v6954 = vlaneseq
        %v6955 = vshrl.u32 %v6954, 7
        %v6956 = vsub.s32 0, %v6955
        %v6957 = vrot.slane %v6952, %v6956
        %6959 = vmatprep.subr.mxu0 0.0
        %6960 = vmatpush1.msra.mxu0 %v6947
        %6961 = vmatprep.subr.mxu0 0.0
        %6962 = vmatpush1.msra.mxu0 %v6948
        %6963 = vmatprep.subr.mxu0 0.0
        %6964 = vmatpush1.msra.mxu0 %v6949
        %6965 = vmatprep.subr.mxu0 0.0
        %6966 = vmatpush1.msra.mxu0 %v6950
        %6967 = vmatprep.subr.mxu0 0.0
        %6968 = vmatpush1.msra.mxu0 0.0
        %6969 = vmatprep.subr.mxu0 0.0
        %6970 = vmatpush1.msra.mxu0 0.0
        %6971 = vmatprep.subr.mxu0 0.0
        %6972 = vmatpush1.msra.mxu0 0.0
        %6973 = vmatprep.subr.mxu0 0.0
        %6974 = vmatpush1.msra.mxu0 0.0
        %6975 = vmatprep.subr.mxu0 0.0
        %6976 = vmatpush1.msra.mxu0 0.0
        %6977 = vmatprep.subr.mxu0 0.0
        %6978 = vmatpush1.msra.mxu0 0.0
        %6979 = vmatprep.subr.mxu0 0.0
        %6980 = vmatpush1.msra.mxu0 0.0
        %6981 = vmatprep.subr.mxu0 0.0
        %6982 = vmatpush1.msra.mxu0 0.0
        %6983 = vmatprep.subr.mxu0 0.0
        %6984 = vmatpush1.msra.mxu0 0.0
        %6985 = vmatprep.subr.mxu0 0.0
        %6986 = vmatpush1.msra.mxu0 0.0
        %6987 = vmatprep.subr.mxu0 0.0
        %6988 = vmatpush1.msra.mxu0 0.0
        %6989 = vmatprep.subr.mxu0 0.0
        %6990 = vmatpush1.msra.mxu0 0.0
        %6991 = vmatprep.subr.mxu0 0.0
        %6992 = vmatpush1.msra.mxu0 0.0
        %6993 = vmatprep.subr.mxu0 0.0
        %6994 = vmatpush1.msra.mxu0 0.0
        %6995 = vmatprep.subr.mxu0 0.0
        %6996 = vmatpush1.msra.mxu0 0.0
        %6997 = vmatprep.subr.mxu0 0.0
        %6998 = vmatpush1.msra.mxu0 0.0
        %6999 = vmatprep.subr.mxu0 0.0
        %7000 = vmatpush1.msra.mxu0 0.0
        %7001 = vmatprep.subr.mxu0 0.0
        %7002 = vmatpush1.msra.mxu0 0.0
        %7003 = vmatprep.subr.mxu0 0.0
        %7004 = vmatpush1.msra.mxu0 0.0
        %7005 = vmatprep.subr.mxu0 0.0
        %7006 = vmatpush1.msra.mxu0 0.0
        %7007 = vmatprep.subr.mxu0 0.0
        %7008 = vmatpush1.msra.mxu0 0.0
        %7009 = vmatprep.subr.mxu0 0.0
        %7010 = vmatpush1.msra.mxu0 0.0
        %7011 = vmatprep.subr.mxu0 0.0
        %7012 = vmatpush1.msra.mxu0 0.0
        %7013 = vmatprep.subr.mxu0 0.0
        %7014 = vmatpush1.msra.mxu0 0.0
        %7015 = vmatprep.subr.mxu0 0.0
        %7016 = vmatpush1.msra.mxu0 0.0
        %7017 = vmatprep.subr.mxu0 0.0
        %7018 = vmatpush1.msra.mxu0 0.0
        %7019 = vmatprep.subr.mxu0 0.0
        %7020 = vmatpush1.msra.mxu0 0.0
        %7021 = vmatprep.subr.mxu0 0.0
        %7022 = vmatpush1.msra.mxu0 0.0
        %7023 = vmatprep.mubr.f32.mxu0 0.0
        %7024 = vmatmul.mubr.f32.gmra.mrb[0].mxu0 %v5947
        %v7025 = vpop.f32.mrb[0].mxu0
        %v7026 = vadd.f32 %v6957, %v7025
        %v7027 = vpop.f32.mrb[0].mxu0
        %7028 = vmatprep.mubr.f32.mxu0 0.0
        %7029 = vmatmul.mubr.f32.gmra.mrb[0].mxu0 %v5950
        %v7030 = vpop.f32.mrb[0].mxu0
        %v7031 = vadd.f32 %v6957, %v7030
        %v7032 = vpop.f32.mrb[0].mxu0
        %7033 = vdwg.mxu0
        %s7034 = scalar_lea.vmem %s71, 64
        %v7035 = vld [vmem:[%s7034] sm:$0xff]
        %v7036 = vld [vmem:[%s7034 + $0x8] sm:$0xff]
        %v7037 = vld [vmem:[%s7034 + $0x10] sm:$0xff]
        %v7038 = vld [vmem:[%s7034 + $0x18] sm:$0xff]
        %s7039 = scalar_lea.vmem %s73, 2
        %v7040 = vld [vmem:[%s7039] sm:$0x1]
        %v7042 = vlaneseq
        %v7043 = vshrl.u32 %v7042, 7
        %v7044 = vsub.s32 0, %v7043
        %v7045 = vrot.slane %v7040, %v7044
        %7047 = vmatprep.subr.mxu0 0.0
        %7048 = vmatpush1.msra.mxu0 %v7035
        %7049 = vmatprep.subr.mxu0 0.0
        %7050 = vmatpush1.msra.mxu0 %v7036
        %7051 = vmatprep.subr.mxu0 0.0
        %7052 = vmatpush1.msra.mxu0 %v7037
        %7053 = vmatprep.subr.mxu0 0.0
        %7054 = vmatpush1.msra.mxu0 %v7038
        %7055 = vmatprep.subr.mxu0 0.0
        %7056 = vmatpush1.msra.mxu0 0.0
        %7057 = vmatprep.subr.mxu0 0.0
        %7058 = vmatpush1.msra.mxu0 0.0
        %7059 = vmatprep.subr.mxu0 0.0
        %7060 = vmatpush1.msra.mxu0 0.0
        %7061 = vmatprep.subr.mxu0 0.0
        %7062 = vmatpush1.msra.mxu0 0.0
        %7063 = vmatprep.subr.mxu0 0.0
        %7064 = vmatpush1.msra.mxu0 0.0
        %7065 = vmatprep.subr.mxu0 0.0
        %7066 = vmatpush1.msra.mxu0 0.0
        %7067 = vmatprep.subr.mxu0 0.0
        %7068 = vmatpush1.msra.mxu0 0.0
        %7069 = vmatprep.subr.mxu0 0.0
        %7070 = vmatpush1.msra.mxu0 0.0
        %7071 = vmatprep.subr.mxu0 0.0
        %7072 = vmatpush1.msra.mxu0 0.0
        %7073 = vmatprep.subr.mxu0 0.0
        %7074 = vmatpush1.msra.mxu0 0.0
        %7075 = vmatprep.subr.mxu0 0.0
        %7076 = vmatpush1.msra.mxu0 0.0
        %7077 = vmatprep.subr.mxu0 0.0
        %7078 = vmatpush1.msra.mxu0 0.0
        %7079 = vmatprep.subr.mxu0 0.0
        %7080 = vmatpush1.msra.mxu0 0.0
        %7081 = vmatprep.subr.mxu0 0.0
        %7082 = vmatpush1.msra.mxu0 0.0
        %7083 = vmatprep.subr.mxu0 0.0
        %7084 = vmatpush1.msra.mxu0 0.0
        %7085 = vmatprep.subr.mxu0 0.0
        %7086 = vmatpush1.msra.mxu0 0.0
        %7087 = vmatprep.subr.mxu0 0.0
        %7088 = vmatpush1.msra.mxu0 0.0
        %7089 = vmatprep.subr.mxu0 0.0
        %7090 = vmatpush1.msra.mxu0 0.0
        %7091 = vmatprep.subr.mxu0 0.0
        %7092 = vmatpush1.msra.mxu0 0.0
        %7093 = vmatprep.subr.mxu0 0.0
        %7094 = vmatpush1.msra.mxu0 0.0
        %7095 = vmatprep.subr.mxu0 0.0
        %7096 = vmatpush1.msra.mxu0 0.0
        %7097 = vmatprep.subr.mxu0 0.0
        %7098 = vmatpush1.msra.mxu0 0.0
        %7099 = vmatprep.subr.mxu0 0.0
        %7100 = vmatpush1.msra.mxu0 0.0
        %7101 = vmatprep.subr.mxu0 0.0
        %7102 = vmatpush1.msra.mxu0 0.0
        %7103 = vmatprep.subr.mxu0 0.0
        %7104 = vmatpush1.msra.mxu0 0.0
        %7105 = vmatprep.subr.mxu0 0.0
        %7106 = vmatpush1.msra.mxu0 0.0
        %7107 = vmatprep.subr.mxu0 0.0
        %7108 = vmatpush1.msra.mxu0 0.0
        %7109 = vmatprep.subr.mxu0 0.0
        %7110 = vmatpush1.msra.mxu0 0.0
        %7111 = vmatprep.mubr.f32.mxu0 0.0
        %7112 = vmatmul.mubr.f32.gmra.mrb[0].mxu0 %v5947
        %v7113 = vpop.f32.mrb[0].mxu0
        %v7114 = vadd.f32 %v7045, %v7113
        %v7115 = vpop.f32.mrb[0].mxu0
        %7116 = vmatprep.mubr.f32.mxu0 0.0
        %7117 = vmatmul.mubr.f32.gmra.mrb[0].mxu0 %v5950
        %v7118 = vpop.f32.mrb[0].mxu0
        %v7119 = vadd.f32 %v7045, %v7118
        %v7120 = vpop.f32.mrb[0].mxu0
        %7121 = vdwg.mxu0
        %v7123 = vsel %vm1919, %v6944, 0
        %v7126 = vsel %vm1919, %v6945, 0
        %v7129 = vsel %vm1919, %v7026, 0
        %v7132 = vsel %vm1919, %v7031, 0
        %7134 = vmatprep.subr.mxu0 0.0
        %7135 = vmatpush1.xpose.msra.mxu0 %v7129
        %7136 = vmatprep.subr.mxu0 0.0
        %7137 = vmatpush1.xpose.msra.mxu0 %v7132
        %7138 = vmatprep.subr.mxu0 0.0
        %7139 = vmatpush1.xpose.msra.mxu0 0.0
        %7140 = vmatprep.subr.mxu0 0.0
        %7141 = vmatpush1.xpose.msra.mxu0 0.0
        %7142 = vmatprep.subr.mxu0 0.0
        %7143 = vmatpush1.xpose.msra.mxu0 0.0
        %7144 = vmatprep.subr.mxu0 0.0
        %7145 = vmatpush1.xpose.msra.mxu0 0.0
        %7146 = vmatprep.subr.mxu0 0.0
        %7147 = vmatpush1.xpose.msra.mxu0 0.0
        %7148 = vmatprep.subr.mxu0 0.0
        %7149 = vmatpush1.xpose.msra.mxu0 0.0
        %7150 = vmatprep.subr.mxu0 0.0
        %7151 = vmatpush1.xpose.msra.mxu0 0.0
        %7152 = vmatprep.subr.mxu0 0.0
        %7153 = vmatpush1.xpose.msra.mxu0 0.0
        %7154 = vmatprep.subr.mxu0 0.0
        %7155 = vmatpush1.xpose.msra.mxu0 0.0
        %7156 = vmatprep.subr.mxu0 0.0
        %7157 = vmatpush1.xpose.msra.mxu0 0.0
        %7158 = vmatprep.subr.mxu0 0.0
        %7159 = vmatpush1.xpose.msra.mxu0 0.0
        %7160 = vmatprep.subr.mxu0 0.0
        %7161 = vmatpush1.xpose.msra.mxu0 0.0
        %7162 = vmatprep.subr.mxu0 0.0
        %7163 = vmatpush1.xpose.msra.mxu0 0.0
        %7164 = vmatprep.subr.mxu0 0.0
        %7165 = vmatpush1.xpose.msra.mxu0 0.0
        %7166 = vmatprep.subr.mxu0 0.0
        %7167 = vmatpush1.xpose.msra.mxu0 0.0
        %7168 = vmatprep.subr.mxu0 0.0
        %7169 = vmatpush1.xpose.msra.mxu0 0.0
        %7170 = vmatprep.subr.mxu0 0.0
        %7171 = vmatpush1.xpose.msra.mxu0 0.0
        %7172 = vmatprep.subr.mxu0 0.0
        %7173 = vmatpush1.xpose.msra.mxu0 0.0
        %7174 = vmatprep.subr.mxu0 0.0
        %7175 = vmatpush1.xpose.msra.mxu0 0.0
        %7176 = vmatprep.subr.mxu0 0.0
        %7177 = vmatpush1.xpose.msra.mxu0 0.0
        %7178 = vmatprep.subr.mxu0 0.0
        %7179 = vmatpush1.xpose.msra.mxu0 0.0
        %7180 = vmatprep.subr.mxu0 0.0
        %7181 = vmatpush1.xpose.msra.mxu0 0.0
        %7182 = vmatprep.subr.mxu0 0.0
        %7183 = vmatpush1.xpose.msra.mxu0 0.0
        %7184 = vmatprep.subr.mxu0 0.0
        %7185 = vmatpush1.xpose.msra.mxu0 0.0
        %7186 = vmatprep.subr.mxu0 0.0
        %7187 = vmatpush1.xpose.msra.mxu0 0.0
        %7188 = vmatprep.subr.mxu0 0.0
        %7189 = vmatpush1.xpose.msra.mxu0 0.0
        %7190 = vmatprep.subr.mxu0 0.0
        %7191 = vmatpush1.xpose.msra.mxu0 0.0
        %7192 = vmatprep.subr.mxu0 0.0
        %7193 = vmatpush1.xpose.msra.mxu0 0.0
        %7194 = vmatprep.subr.mxu0 0.0
        %7195 = vmatpush1.xpose.msra.mxu0 0.0
        %7196 = vmatprep.subr.mxu0 0.0
        %7197 = vmatpush1.xpose.msra.mxu0 0.0
        %7198 = vmatprep.mubr.f32.mxu0 0.0
        %7199 = vmatmul.mubr.f32.gmra.mrb[0].mxu0 %v7123
        %v7200 = vpop.f32.mrb[0].mxu0
        %v7201 = vadd.f32 0.0, %v7200
        %v7202 = vpop.f32.mrb[0].mxu0
        %7203 = vmatprep.mubr.f32.mxu0 0.0
        %7204 = vmatmul.mubr.f32.gmra.mrb[0].mxu0 %v7126
        %v7205 = vpop.f32.mrb[0].mxu0
        %v7206 = vadd.f32 0.0, %v7205
        %v7207 = vpop.f32.mrb[0].mxu0
        %7208 = vdwg.mxu0
        %v7209 = vsel %vm6288, %v7201, -inf
        %7210 = vmax.xlane.f32.xlu0 %v7209
        %v7211 = vpop.xlane.xlu0 %7210
        %v7212 = vsel %vm6292, %v7206, -inf
        %7213 = vmax.xlane.f32.xlu0 %v7212
        %v7214 = vpop.xlane.xlu0 %7213
        %v7215 = vsub.f32 %v7201, %v7211
        %v7216 = vsub.f32 %v7206, %v7214
        %v7217 = vmul.f32 %v7215, 1.442695
        %v7218 = vpow.pop %v7217
        %v7219 = vmul.f32 %v7216, 1.442695
        %v7220 = vpow.pop %v7219
        %v7221 = vsel %vm6288, %v7218, 0.0
        %7222 = vadd.xlane.f32.xlu0 %v7221
        %v7223 = vpop.xlane.xlu0 %7222
        %v7224 = vsel %vm6292, %v7220, 0.0
        %7225 = vadd.xlane.f32.xlu0 %v7224
        %v7226 = vpop.xlane.xlu0 %7225
        %v7227 = vrcp.pop %v7223
        %v7228 = vrcp.pop %v7226
        %v7229 = vmul.f32 %v7218, %v7227
        %v7230 = vmul.f32 %v7220, %v7228
        %v7232 = vsel %vm6288, %v7229, 0
        %v7235 = vsel %vm6288, %v7230, 0
        %v7238 = vsel %vm6693, %v7119, 0
        %7240 = vmatprep.subr.mxu0 0.0
        %7241 = vmatpush1.msra.mxu0 %v7114
        %7242 = vmatprep.subr.mxu0 0.0
        %7243 = vmatpush1.msra.mxu0 %v7238
        %7244 = vmatprep.subr.mxu0 0.0
        %7245 = vmatpush1.msra.mxu0 0.0
        %7246 = vmatprep.subr.mxu0 0.0
        %7247 = vmatpush1.msra.mxu0 0.0
        %7248 = vmatprep.subr.mxu0 0.0
        %7249 = vmatpush1.msra.mxu0 0.0
        %7250 = vmatprep.subr.mxu0 0.0
        %7251 = vmatpush1.msra.mxu0 0.0
        %7252 = vmatprep.subr.mxu0 0.0
        %7253 = vmatpush1.msra.mxu0 0.0
        %7254 = vmatprep.subr.mxu0 0.0
        %7255 = vmatpush1.msra.mxu0 0.0
        %7256 = vmatprep.subr.mxu0 0.0
        %7257 = vmatpush1.msra.mxu0 0.0
        %7258 = vmatprep.subr.mxu0 0.0
        %7259 = vmatpush1.msra.mxu0 0.0
        %7260 = vmatprep.subr.mxu0 0.0
        %7261 = vmatpush1.msra.mxu0 0.0
        %7262 = vmatprep.subr.mxu0 0.0
        %7263 = vmatpush1.msra.mxu0 0.0
        %7264 = vmatprep.subr.mxu0 0.0
        %7265 = vmatpush1.msra.mxu0 0.0
        %7266 = vmatprep.subr.mxu0 0.0
        %7267 = vmatpush1.msra.mxu0 0.0
        %7268 = vmatprep.subr.mxu0 0.0
        %7269 = vmatpush1.msra.mxu0 0.0
        %7270 = vmatprep.subr.mxu0 0.0
        %7271 = vmatpush1.msra.mxu0 0.0
        %7272 = vmatprep.subr.mxu0 0.0
        %7273 = vmatpush1.msra.mxu0 0.0
        %7274 = vmatprep.subr.mxu0 0.0
        %7275 = vmatpush1.msra.mxu0 0.0
        %7276 = vmatprep.subr.mxu0 0.0
        %7277 = vmatpush1.msra.mxu0 0.0
        %7278 = vmatprep.subr.mxu0 0.0
        %7279 = vmatpush1.msra.mxu0 0.0
        %7280 = vmatprep.subr.mxu0 0.0
        %7281 = vmatpush1.msra.mxu0 0.0
        %7282 = vmatprep.subr.mxu0 0.0
        %7283 = vmatpush1.msra.mxu0 0.0
        %7284 = vmatprep.subr.mxu0 0.0
        %7285 = vmatpush1.msra.mxu0 0.0
        %7286 = vmatprep.subr.mxu0 0.0
        %7287 = vmatpush1.msra.mxu0 0.0
        %7288 = vmatprep.subr.mxu0 0.0
        %7289 = vmatpush1.msra.mxu0 0.0
        %7290 = vmatprep.subr.mxu0 0.0
        %7291 = vmatpush1.msra.mxu0 0.0
        %7292 = vmatprep.subr.mxu0 0.0
        %7293 = vmatpush1.msra.mxu0 0.0
        %7294 = vmatprep.subr.mxu0 0.0
        %7295 = vmatpush1.msra.mxu0 0.0
        %7296 = vmatprep.subr.mxu0 0.0
        %7297 = vmatpush1.msra.mxu0 0.0
        %7298 = vmatprep.subr.mxu0 0.0
        %7299 = vmatpush1.msra.mxu0 0.0
        %7300 = vmatprep.subr.mxu0 0.0
        %7301 = vmatpush1.msra.mxu0 0.0
        %7302 = vmatprep.subr.mxu0 0.0
        %7303 = vmatpush1.msra.mxu0 0.0
        %7304 = vmatprep.mubr.f32.mxu0 0.0
        %7305 = vmatmul.mubr.f32.gmra.mrb[0].mxu0 %v7232
        %v7306 = vpop.f32.mrb[0].mxu0
        %v7307 = vadd.f32 0.0, %v7306
        %v7308 = vpop.f32.mrb[0].mxu0
        %7309 = vmatprep.mubr.f32.mxu0 0.0
        %7310 = vmatmul.mubr.f32.gmra.mrb[0].mxu0 %v7235
        %v7311 = vpop.f32.mrb[0].mxu0
        %v7312 = vadd.f32 0.0, %v7311
        %v7313 = vpop.f32.mrb[0].mxu0
        %7314 = vdwg.mxu0
        %v7315 = vadd.f32 %v6848, %v7307
        %v7316 = vadd.f32 %v6853, %v7312
        %s7317 = scalar_lea.vmem %s63, 96
        %v7318 = vld [vmem:[%s7317] sm:$0xff]
        %v7319 = vld [vmem:[%s7317 + $0x8] sm:$0xff]
        %v7320 = vld [vmem:[%s7317 + $0x10] sm:$0xff]
        %v7321 = vld [vmem:[%s7317 + $0x18] sm:$0xff]
        %s7322 = scalar_lea.vmem %s65, 3
        %v7323 = vld [vmem:[%s7322] sm:$0x1]
        %v7325 = vlaneseq
        %v7326 = vshrl.u32 %v7325, 7
        %v7327 = vsub.s32 0, %v7326
        %v7328 = vrot.slane %v7323, %v7327
        %7330 = vmatprep.subr.mxu0 0.0
        %7331 = vmatpush1.msra.mxu0 %v7318
        %7332 = vmatprep.subr.mxu0 0.0
        %7333 = vmatpush1.msra.mxu0 %v7319
        %7334 = vmatprep.subr.mxu0 0.0
        %7335 = vmatpush1.msra.mxu0 %v7320
        %7336 = vmatprep.subr.mxu0 0.0
        %7337 = vmatpush1.msra.mxu0 %v7321
        %7338 = vmatprep.subr.mxu0 0.0
        %7339 = vmatpush1.msra.mxu0 0.0
        %7340 = vmatprep.subr.mxu0 0.0
        %7341 = vmatpush1.msra.mxu0 0.0
        %7342 = vmatprep.subr.mxu0 0.0
        %7343 = vmatpush1.msra.mxu0 0.0
        %7344 = vmatprep.subr.mxu0 0.0
        %7345 = vmatpush1.msra.mxu0 0.0
        %7346 = vmatprep.subr.mxu0 0.0
        %7347 = vmatpush1.msra.mxu0 0.0
        %7348 = vmatprep.subr.mxu0 0.0
        %7349 = vmatpush1.msra.mxu0 0.0
        %7350 = vmatprep.subr.mxu0 0.0
        %7351 = vmatpush1.msra.mxu0 0.0
        %7352 = vmatprep.subr.mxu0 0.0
        %7353 = vmatpush1.msra.mxu0 0.0
        %7354 = vmatprep.subr.mxu0 0.0
        %7355 = vmatpush1.msra.mxu0 0.0
        %7356 = vmatprep.subr.mxu0 0.0
        %7357 = vmatpush1.msra.mxu0 0.0
        %7358 = vmatprep.subr.mxu0 0.0
        %7359 = vmatpush1.msra.mxu0 0.0
        %7360 = vmatprep.subr.mxu0 0.0
        %7361 = vmatpush1.msra.mxu0 0.0
        %7362 = vmatprep.subr.mxu0 0.0
        %7363 = vmatpush1.msra.mxu0 0.0
        %7364 = vmatprep.subr.mxu0 0.0
        %7365 = vmatpush1.msra.mxu0 0.0
        %7366 = vmatprep.subr.mxu0 0.0
        %7367 = vmatpush1.msra.mxu0 0.0
        %7368 = vmatprep.subr.mxu0 0.0
        %7369 = vmatpush1.msra.mxu0 0.0
        %7370 = vmatprep.subr.mxu0 0.0
        %7371 = vmatpush1.msra.mxu0 0.0
        %7372 = vmatprep.subr.mxu0 0.0
        %7373 = vmatpush1.msra.mxu0 0.0
        %7374 = vmatprep.subr.mxu0 0.0
        %7375 = vmatpush1.msra.mxu0 0.0
        %7376 = vmatprep.subr.mxu0 0.0
        %7377 = vmatpush1.msra.mxu0 0.0
        %7378 = vmatprep.subr.mxu0 0.0
        %7379 = vmatpush1.msra.mxu0 0.0
        %7380 = vmatprep.subr.mxu0 0.0
        %7381 = vmatpush1.msra.mxu0 0.0
        %7382 = vmatprep.subr.mxu0 0.0
        %7383 = vmatpush1.msra.mxu0 0.0
        %7384 = vmatprep.subr.mxu0 0.0
        %7385 = vmatpush1.msra.mxu0 0.0
        %7386 = vmatprep.subr.mxu0 0.0
        %7387 = vmatpush1.msra.mxu0 0.0
        %7388 = vmatprep.subr.mxu0 0.0
        %7389 = vmatpush1.msra.mxu0 0.0
        %7390 = vmatprep.subr.mxu0 0.0
        %7391 = vmatpush1.msra.mxu0 0.0
        %7392 = vmatprep.subr.mxu0 0.0
        %7393 = vmatpush1.msra.mxu0 0.0
        %7394 = vmatprep.mubr.f32.mxu0 0.0
        %7395 = vmatmul.mubr.f32.gmra.mrb[0].mxu0 %v5947
        %v7396 = vpop.f32.mrb[0].mxu0
        %v7397 = vadd.f32 %v7328, %v7396
        %v7398 = vpop.f32.mrb[0].mxu0
        %7399 = vmatprep.mubr.f32.mxu0 0.0
        %7400 = vmatmul.mubr.f32.gmra.mrb[0].mxu0 %v5950
        %v7401 = vpop.f32.mrb[0].mxu0
        %v7402 = vadd.f32 %v7328, %v7401
        %v7403 = vpop.f32.mrb[0].mxu0
        %7404 = vdwg.mxu0
        %v7405 = vmul.f32 %v7397, 0.35355338
        %v7406 = vmul.f32 %v7402, 0.35355338
        %s7407 = scalar_lea.vmem %s67, 96
        %v7408 = vld [vmem:[%s7407] sm:$0xff]
        %v7409 = vld [vmem:[%s7407 + $0x8] sm:$0xff]
        %v7410 = vld [vmem:[%s7407 + $0x10] sm:$0xff]
        %v7411 = vld [vmem:[%s7407 + $0x18] sm:$0xff]
        %s7412 = scalar_lea.vmem %s69, 3
        %v7413 = vld [vmem:[%s7412] sm:$0x1]
        %v7415 = vlaneseq
        %v7416 = vshrl.u32 %v7415, 7
        %v7417 = vsub.s32 0, %v7416
        %v7418 = vrot.slane %v7413, %v7417
        %7420 = vmatprep.subr.mxu0 0.0
        %7421 = vmatpush1.msra.mxu0 %v7408
        %7422 = vmatprep.subr.mxu0 0.0
        %7423 = vmatpush1.msra.mxu0 %v7409
        %7424 = vmatprep.subr.mxu0 0.0
        %7425 = vmatpush1.msra.mxu0 %v7410
        %7426 = vmatprep.subr.mxu0 0.0
        %7427 = vmatpush1.msra.mxu0 %v7411
        %7428 = vmatprep.subr.mxu0 0.0
        %7429 = vmatpush1.msra.mxu0 0.0
        %7430 = vmatprep.subr.mxu0 0.0
        %7431 = vmatpush1.msra.mxu0 0.0
        %7432 = vmatprep.subr.mxu0 0.0
        %7433 = vmatpush1.msra.mxu0 0.0
        %7434 = vmatprep.subr.mxu0 0.0
        %7435 = vmatpush1.msra.mxu0 0.0
        %7436 = vmatprep.subr.mxu0 0.0
        %7437 = vmatpush1.msra.mxu0 0.0
        %7438 = vmatprep.subr.mxu0 0.0
        %7439 = vmatpush1.msra.mxu0 0.0
        %7440 = vmatprep.subr.mxu0 0.0
        %7441 = vmatpush1.msra.mxu0 0.0
        %7442 = vmatprep.subr.mxu0 0.0
        %7443 = vmatpush1.msra.mxu0 0.0
        %7444 = vmatprep.subr.mxu0 0.0
        %7445 = vmatpush1.msra.mxu0 0.0
        %7446 = vmatprep.subr.mxu0 0.0
        %7447 = vmatpush1.msra.mxu0 0.0
        %7448 = vmatprep.subr.mxu0 0.0
        %7449 = vmatpush1.msra.mxu0 0.0
        %7450 = vmatprep.subr.mxu0 0.0
        %7451 = vmatpush1.msra.mxu0 0.0
        %7452 = vmatprep.subr.mxu0 0.0
        %7453 = vmatpush1.msra.mxu0 0.0
        %7454 = vmatprep.subr.mxu0 0.0
        %7455 = vmatpush1.msra.mxu0 0.0
        %7456 = vmatprep.subr.mxu0 0.0
        %7457 = vmatpush1.msra.mxu0 0.0
        %7458 = vmatprep.subr.mxu0 0.0
        %7459 = vmatpush1.msra.mxu0 0.0
        %7460 = vmatprep.subr.mxu0 0.0
        %7461 = vmatpush1.msra.mxu0 0.0
        %7462 = vmatprep.subr.mxu0 0.0
        %7463 = vmatpush1.msra.mxu0 0.0
        %7464 = vmatprep.subr.mxu0 0.0
        %7465 = vmatpush1.msra.mxu0 0.0
        %7466 = vmatprep.subr.mxu0 0.0
        %7467 = vmatpush1.msra.mxu0 0.0
        %7468 = vmatprep.subr.mxu0 0.0
        %7469 = vmatpush1.msra.mxu0 0.0
        %7470 = vmatprep.subr.mxu0 0.0
        %7471 = vmatpush1.msra.mxu0 0.0
        %7472 = vmatprep.subr.mxu0 0.0
        %7473 = vmatpush1.msra.mxu0 0.0
        %7474 = vmatprep.subr.mxu0 0.0
        %7475 = vmatpush1.msra.mxu0 0.0
        %7476 = vmatprep.subr.mxu0 0.0
        %7477 = vmatpush1.msra.mxu0 0.0
        %7478 = vmatprep.subr.mxu0 0.0
        %7479 = vmatpush1.msra.mxu0 0.0
        %7480 = vmatprep.subr.mxu0 0.0
        %7481 = vmatpush1.msra.mxu0 0.0
        %7482 = vmatprep.subr.mxu0 0.0
        %7483 = vmatpush1.msra.mxu0 0.0
        %7484 = vmatprep.mubr.f32.mxu0 0.0
        %7485 = vmatmul.mubr.f32.gmra.mrb[0].mxu0 %v5947
        %v7486 = vpop.f32.mrb[0].mxu0
        %v7487 = vadd.f32 %v7418, %v7486
        %v7488 = vpop.f32.mrb[0].mxu0
        %7489 = vmatprep.mubr.f32.mxu0 0.0
        %7490 = vmatmul.mubr.f32.gmra.mrb[0].mxu0 %v5950
        %v7491 = vpop.f32.mrb[0].mxu0
        %v7492 = vadd.f32 %v7418, %v7491
        %v7493 = vpop.f32.mrb[0].mxu0
        %7494 = vdwg.mxu0
        %s7495 = scalar_lea.vmem %s71, 96
        %v7496 = vld [vmem:[%s7495] sm:$0xff]
        %v7497 = vld [vmem:[%s7495 + $0x8] sm:$0xff]
        %v7498 = vld [vmem:[%s7495 + $0x10] sm:$0xff]
        %v7499 = vld [vmem:[%s7495 + $0x18] sm:$0xff]
        %s7500 = scalar_lea.vmem %s73, 3
        %v7501 = vld [vmem:[%s7500] sm:$0x1]
        %v7503 = vlaneseq
        %v7504 = vshrl.u32 %v7503, 7
        %v7505 = vsub.s32 0, %v7504
        %v7506 = vrot.slane %v7501, %v7505
        %7508 = vmatprep.subr.mxu0 0.0
        %7509 = vmatpush1.msra.mxu0 %v7496
        %7510 = vmatprep.subr.mxu0 0.0
        %7511 = vmatpush1.msra.mxu0 %v7497
        %7512 = vmatprep.subr.mxu0 0.0
        %7513 = vmatpush1.msra.mxu0 %v7498
        %7514 = vmatprep.subr.mxu0 0.0
        %7515 = vmatpush1.msra.mxu0 %v7499
        %7516 = vmatprep.subr.mxu0 0.0
        %7517 = vmatpush1.msra.mxu0 0.0
        %7518 = vmatprep.subr.mxu0 0.0
        %7519 = vmatpush1.msra.mxu0 0.0
        %7520 = vmatprep.subr.mxu0 0.0
        %7521 = vmatpush1.msra.mxu0 0.0
        %7522 = vmatprep.subr.mxu0 0.0
        %7523 = vmatpush1.msra.mxu0 0.0
        %7524 = vmatprep.subr.mxu0 0.0
        %7525 = vmatpush1.msra.mxu0 0.0
        %7526 = vmatprep.subr.mxu0 0.0
        %7527 = vmatpush1.msra.mxu0 0.0
        %7528 = vmatprep.subr.mxu0 0.0
        %7529 = vmatpush1.msra.mxu0 0.0
        %7530 = vmatprep.subr.mxu0 0.0
        %7531 = vmatpush1.msra.mxu0 0.0
        %7532 = vmatprep.subr.mxu0 0.0
        %7533 = vmatpush1.msra.mxu0 0.0
        %7534 = vmatprep.subr.mxu0 0.0
        %7535 = vmatpush1.msra.mxu0 0.0
        %7536 = vmatprep.subr.mxu0 0.0
        %7537 = vmatpush1.msra.mxu0 0.0
        %7538 = vmatprep.subr.mxu0 0.0
        %7539 = vmatpush1.msra.mxu0 0.0
        %7540 = vmatprep.subr.mxu0 0.0
        %7541 = vmatpush1.msra.mxu0 0.0
        %7542 = vmatprep.subr.mxu0 0.0
        %7543 = vmatpush1.msra.mxu0 0.0
        %7544 = vmatprep.subr.mxu0 0.0
        %7545 = vmatpush1.msra.mxu0 0.0
        %7546 = vmatprep.subr.mxu0 0.0
        %7547 = vmatpush1.msra.mxu0 0.0
        %7548 = vmatprep.subr.mxu0 0.0
        %7549 = vmatpush1.msra.mxu0 0.0
        %7550 = vmatprep.subr.mxu0 0.0
        %7551 = vmatpush1.msra.mxu0 0.0
        %7552 = vmatprep.subr.mxu0 0.0
        %7553 = vmatpush1.msra.mxu0 0.0
        %7554 = vmatprep.subr.mxu0 0.0
        %7555 = vmatpush1.msra.mxu0 0.0
        %7556 = vmatprep.subr.mxu0 0.0
        %7557 = vmatpush1.msra.mxu0 0.0
        %7558 = vmatprep.subr.mxu0 0.0
        %7559 = vmatpush1.msra.mxu0 0.0
        %7560 = vmatprep.subr.mxu0 0.0
        %7561 = vmatpush1.msra.mxu0 0.0
        %7562 = vmatprep.subr.mxu0 0.0
        %7563 = vmatpush1.msra.mxu0 0.0
        %7564 = vmatprep.subr.mxu0 0.0
        %7565 = vmatpush1.msra.mxu0 0.0
        %7566 = vmatprep.subr.mxu0 0.0
        %7567 = vmatpush1.msra.mxu0 0.0
        %7568 = vmatprep.subr.mxu0 0.0
        %7569 = vmatpush1.msra.mxu0 0.0
        %7570 = vmatprep.subr.mxu0 0.0
        %7571 = vmatpush1.msra.mxu0 0.0
        %7572 = vmatprep.mubr.f32.mxu0 0.0
        %7573 = vmatmul.mubr.f32.gmra.mrb[0].mxu0 %v5947
        %v7574 = vpop.f32.mrb[0].mxu0
        %v7575 = vadd.f32 %v7506, %v7574
        %v7576 = vpop.f32.mrb[0].mxu0
        %7577 = vmatprep.mubr.f32.mxu0 0.0
        %7578 = vmatmul.mubr.f32.gmra.mrb[0].mxu0 %v5950
        %v7579 = vpop.f32.mrb[0].mxu0
        %v7580 = vadd.f32 %v7506, %v7579
        %v7581 = vpop.f32.mrb[0].mxu0
        %7582 = vdwg.mxu0
        %v7584 = vsel %vm1919, %v7405, 0
        %v7587 = vsel %vm1919, %v7406, 0
        %v7590 = vsel %vm1919, %v7487, 0
        %v7593 = vsel %vm1919, %v7492, 0
        %7595 = vmatprep.subr.mxu0 0.0
        %7596 = vmatpush1.xpose.msra.mxu0 %v7590
        %7597 = vmatprep.subr.mxu0 0.0
        %7598 = vmatpush1.xpose.msra.mxu0 %v7593
        %7599 = vmatprep.subr.mxu0 0.0
        %7600 = vmatpush1.xpose.msra.mxu0 0.0
        %7601 = vmatprep.subr.mxu0 0.0
        %7602 = vmatpush1.xpose.msra.mxu0 0.0
        %7603 = vmatprep.subr.mxu0 0.0
        %7604 = vmatpush1.xpose.msra.mxu0 0.0
        %7605 = vmatprep.subr.mxu0 0.0
        %7606 = vmatpush1.xpose.msra.mxu0 0.0
        %7607 = vmatprep.subr.mxu0 0.0
        %7608 = vmatpush1.xpose.msra.mxu0 0.0
        %7609 = vmatprep.subr.mxu0 0.0
        %7610 = vmatpush1.xpose.msra.mxu0 0.0
        %7611 = vmatprep.subr.mxu0 0.0
        %7612 = vmatpush1.xpose.msra.mxu0 0.0
        %7613 = vmatprep.subr.mxu0 0.0
        %7614 = vmatpush1.xpose.msra.mxu0 0.0
        %7615 = vmatprep.subr.mxu0 0.0
        %7616 = vmatpush1.xpose.msra.mxu0 0.0
        %7617 = vmatprep.subr.mxu0 0.0
        %7618 = vmatpush1.xpose.msra.mxu0 0.0
        %7619 = vmatprep.subr.mxu0 0.0
        %7620 = vmatpush1.xpose.msra.mxu0 0.0
        %7621 = vmatprep.subr.mxu0 0.0
        %7622 = vmatpush1.xpose.msra.mxu0 0.0
        %7623 = vmatprep.subr.mxu0 0.0
        %7624 = vmatpush1.xpose.msra.mxu0 0.0
        %7625 = vmatprep.subr.mxu0 0.0
        %7626 = vmatpush1.xpose.msra.mxu0 0.0
        %7627 = vmatprep.subr.mxu0 0.0
        %7628 = vmatpush1.xpose.msra.mxu0 0.0
        %7629 = vmatprep.subr.mxu0 0.0
        %7630 = vmatpush1.xpose.msra.mxu0 0.0
        %7631 = vmatprep.subr.mxu0 0.0
        %7632 = vmatpush1.xpose.msra.mxu0 0.0
        %7633 = vmatprep.subr.mxu0 0.0
        %7634 = vmatpush1.xpose.msra.mxu0 0.0
        %7635 = vmatprep.subr.mxu0 0.0
        %7636 = vmatpush1.xpose.msra.mxu0 0.0
        %7637 = vmatprep.subr.mxu0 0.0
        %7638 = vmatpush1.xpose.msra.mxu0 0.0
        %7639 = vmatprep.subr.mxu0 0.0
        %7640 = vmatpush1.xpose.msra.mxu0 0.0
        %7641 = vmatprep.subr.mxu0 0.0
        %7642 = vmatpush1.xpose.msra.mxu0 0.0
        %7643 = vmatprep.subr.mxu0 0.0
        %7644 = vmatpush1.xpose.msra.mxu0 0.0
        %7645 = vmatprep.subr.mxu0 0.0
        %7646 = vmatpush1.xpose.msra.mxu0 0.0
        %7647 = vmatprep.subr.mxu0 0.0
        %7648 = vmatpush1.xpose.msra.mxu0 0.0
        %7649 = vmatprep.subr.mxu0 0.0
        %7650 = vmatpush1.xpose.msra.mxu0 0.0
        %7651 = vmatprep.subr.mxu0 0.0
        %7652 = vmatpush1.xpose.msra.mxu0 0.0
        %7653 = vmatprep.subr.mxu0 0.0
        %7654 = vmatpush1.xpose.msra.mxu0 0.0
        %7655 = vmatprep.subr.mxu0 0.0
        %7656 = vmatpush1.xpose.msra.mxu0 0.0
        %7657 = vmatprep.subr.mxu0 0.0
        %7658 = vmatpush1.xpose.msra.mxu0 0.0
        %7659 = vmatprep.mubr.f32.mxu0 0.0
        %7660 = vmatmul.mubr.f32.gmra.mrb[0].mxu0 %v7584
        %v7661 = vpop.f32.mrb[0].mxu0
        %v7662 = vadd.f32 0.0, %v7661
        %v7663 = vpop.f32.mrb[0].mxu0
        %7664 = vmatprep.mubr.f32.mxu0 0.0
        %7665 = vmatmul.mubr.f32.gmra.mrb[0].mxu0 %v7587
        %v7666 = vpop.f32.mrb[0].mxu0
        %v7667 = vadd.f32 0.0, %v7666
        %v7668 = vpop.f32.mrb[0].mxu0
        %7669 = vdwg.mxu0
        %v7670 = vsel %vm6288, %v7662, -inf
        %7671 = vmax.xlane.f32.xlu0 %v7670
        %v7672 = vpop.xlane.xlu0 %7671
        %v7673 = vsel %vm6292, %v7667, -inf
        %7674 = vmax.xlane.f32.xlu0 %v7673
        %v7675 = vpop.xlane.xlu0 %7674
        %v7676 = vsub.f32 %v7662, %v7672
        %v7677 = vsub.f32 %v7667, %v7675
        %v7678 = vmul.f32 %v7676, 1.442695
        %v7679 = vpow.pop %v7678
        %v7680 = vmul.f32 %v7677, 1.442695
        %v7681 = vpow.pop %v7680
        %v7682 = vsel %vm6288, %v7679, 0.0
        %7683 = vadd.xlane.f32.xlu0 %v7682
        %v7684 = vpop.xlane.xlu0 %7683
        %v7685 = vsel %vm6292, %v7681, 0.0
        %7686 = vadd.xlane.f32.xlu0 %v7685
        %v7687 = vpop.xlane.xlu0 %7686
        %v7688 = vrcp.pop %v7684
        %v7689 = vrcp.pop %v7687
        %v7690 = vmul.f32 %v7679, %v7688
        %v7691 = vmul.f32 %v7681, %v7689
        %v7693 = vsel %vm6288, %v7690, 0
        %v7696 = vsel %vm6288, %v7691, 0
        %v7699 = vsel %vm6693, %v7580, 0
        %7701 = vmatprep.subr.mxu0 0.0
        %7702 = vmatpush1.msra.mxu0 %v7575
        %7703 = vmatprep.subr.mxu0 0.0
        %7704 = vmatpush1.msra.mxu0 %v7699
        %7705 = vmatprep.subr.mxu0 0.0
        %7706 = vmatpush1.msra.mxu0 0.0
        %7707 = vmatprep.subr.mxu0 0.0
        %7708 = vmatpush1.msra.mxu0 0.0
        %7709 = vmatprep.subr.mxu0 0.0
        %7710 = vmatpush1.msra.mxu0 0.0
        %7711 = vmatprep.subr.mxu0 0.0
        %7712 = vmatpush1.msra.mxu0 0.0
        %7713 = vmatprep.subr.mxu0 0.0
        %7714 = vmatpush1.msra.mxu0 0.0
        %7715 = vmatprep.subr.mxu0 0.0
        %7716 = vmatpush1.msra.mxu0 0.0
        %7717 = vmatprep.subr.mxu0 0.0
        %7718 = vmatpush1.msra.mxu0 0.0
        %7719 = vmatprep.subr.mxu0 0.0
        %7720 = vmatpush1.msra.mxu0 0.0
        %7721 = vmatprep.subr.mxu0 0.0
        %7722 = vmatpush1.msra.mxu0 0.0
        %7723 = vmatprep.subr.mxu0 0.0
        %7724 = vmatpush1.msra.mxu0 0.0
        %7725 = vmatprep.subr.mxu0 0.0
        %7726 = vmatpush1.msra.mxu0 0.0
        %7727 = vmatprep.subr.mxu0 0.0
        %7728 = vmatpush1.msra.mxu0 0.0
        %7729 = vmatprep.subr.mxu0 0.0
        %7730 = vmatpush1.msra.mxu0 0.0
        %7731 = vmatprep.subr.mxu0 0.0
        %7732 = vmatpush1.msra.mxu0 0.0
        %7733 = vmatprep.subr.mxu0 0.0
        %7734 = vmatpush1.msra.mxu0 0.0
        %7735 = vmatprep.subr.mxu0 0.0
        %7736 = vmatpush1.msra.mxu0 0.0
        %7737 = vmatprep.subr.mxu0 0.0
        %7738 = vmatpush1.msra.mxu0 0.0
        %7739 = vmatprep.subr.mxu0 0.0
        %7740 = vmatpush1.msra.mxu0 0.0
        %7741 = vmatprep.subr.mxu0 0.0
        %7742 = vmatpush1.msra.mxu0 0.0
        %7743 = vmatprep.subr.mxu0 0.0
        %7744 = vmatpush1.msra.mxu0 0.0
        %7745 = vmatprep.subr.mxu0 0.0
        %7746 = vmatpush1.msra.mxu0 0.0
        %7747 = vmatprep.subr.mxu0 0.0
        %7748 = vmatpush1.msra.mxu0 0.0
        %7749 = vmatprep.subr.mxu0 0.0
        %7750 = vmatpush1.msra.mxu0 0.0
        %7751 = vmatprep.subr.mxu0 0.0
        %7752 = vmatpush1.msra.mxu0 0.0
        %7753 = vmatprep.subr.mxu0 0.0
        %7754 = vmatpush1.msra.mxu0 0.0
        %7755 = vmatprep.subr.mxu0 0.0
        %7756 = vmatpush1.msra.mxu0 0.0
        %7757 = vmatprep.subr.mxu0 0.0
        %7758 = vmatpush1.msra.mxu0 0.0
        %7759 = vmatprep.subr.mxu0 0.0
        %7760 = vmatpush1.msra.mxu0 0.0
        %7761 = vmatprep.subr.mxu0 0.0
        %7762 = vmatpush1.msra.mxu0 0.0
        %7763 = vmatprep.subr.mxu0 0.0
        %7764 = vmatpush1.msra.mxu0 0.0
        %7765 = vmatprep.mubr.f32.mxu0 0.0
        %7766 = vmatmul.mubr.f32.gmra.mrb[0].mxu0 %v7693
        %v7767 = vpop.f32.mrb[0].mxu0
        %v7768 = vadd.f32 0.0, %v7767
        %v7769 = vpop.f32.mrb[0].mxu0
        %7770 = vmatprep.mubr.f32.mxu0 0.0
        %7771 = vmatmul.mubr.f32.gmra.mrb[0].mxu0 %v7696
        %v7772 = vpop.f32.mrb[0].mxu0
        %v7773 = vadd.f32 0.0, %v7772
        %v7774 = vpop.f32.mrb[0].mxu0
        %7775 = vdwg.mxu0
        %v7776 = vadd.f32 %v7315, %v7768
        %v7777 = vadd.f32 %v7316, %v7773
        %v7778 = vld [vmem:[%s75] sm:$0xff]
        %v7779 = vld [vmem:[%s75 + $0x8] sm:$0xff]
        %v7780 = vld [vmem:[%s75 + $0x10] sm:$0xff]
        %v7781 = vld [vmem:[%s75 + $0x18] sm:$0xff]
        %v7783 = vsel %vm1625, %v7776, 0
        %v7786 = vsel %vm1625, %v7777, 0
        %7788 = vmatprep.subr.mxu0 0.0
        %7789 = vmatpush1.msra.mxu0 %v7778
        %7790 = vmatprep.subr.mxu0 0.0
        %7791 = vmatpush1.msra.mxu0 %v7779
        %7792 = vmatprep.subr.mxu0 0.0
        %7793 = vmatpush1.msra.mxu0 %v7780
        %7794 = vmatprep.subr.mxu0 0.0
        %7795 = vmatpush1.msra.mxu0 %v7781
        %7796 = vmatprep.subr.mxu0 0.0
        %7797 = vmatpush1.msra.mxu0 0.0
        %7798 = vmatprep.subr.mxu0 0.0
        %7799 = vmatpush1.msra.mxu0 0.0
        %7800 = vmatprep.subr.mxu0 0.0
        %7801 = vmatpush1.msra.mxu0 0.0
        %7802 = vmatprep.subr.mxu0 0.0
        %7803 = vmatpush1.msra.mxu0 0.0
        %7804 = vmatprep.subr.mxu0 0.0
        %7805 = vmatpush1.msra.mxu0 0.0
        %7806 = vmatprep.subr.mxu0 0.0
        %7807 = vmatpush1.msra.mxu0 0.0
        %7808 = vmatprep.subr.mxu0 0.0
        %7809 = vmatpush1.msra.mxu0 0.0
        %7810 = vmatprep.subr.mxu0 0.0
        %7811 = vmatpush1.msra.mxu0 0.0
        %7812 = vmatprep.subr.mxu0 0.0
        %7813 = vmatpush1.msra.mxu0 0.0
        %7814 = vmatprep.subr.mxu0 0.0
        %7815 = vmatpush1.msra.mxu0 0.0
        %7816 = vmatprep.subr.mxu0 0.0
        %7817 = vmatpush1.msra.mxu0 0.0
        %7818 = vmatprep.subr.mxu0 0.0
        %7819 = vmatpush1.msra.mxu0 0.0
        %7820 = vmatprep.subr.mxu0 0.0
        %7821 = vmatpush1.msra.mxu0 0.0
        %7822 = vmatprep.subr.mxu0 0.0
        %7823 = vmatpush1.msra.mxu0 0.0
        %7824 = vmatprep.subr.mxu0 0.0
        %7825 = vmatpush1.msra.mxu0 0.0
        %7826 = vmatprep.subr.mxu0 0.0
        %7827 = vmatpush1.msra.mxu0 0.0
        %7828 = vmatprep.subr.mxu0 0.0
        %7829 = vmatpush1.msra.mxu0 0.0
        %7830 = vmatprep.subr.mxu0 0.0
        %7831 = vmatpush1.msra.mxu0 0.0
        %7832 = vmatprep.subr.mxu0 0.0
        %7833 = vmatpush1.msra.mxu0 0.0
        %7834 = vmatprep.subr.mxu0 0.0
        %7835 = vmatpush1.msra.mxu0 0.0
        %7836 = vmatprep.subr.mxu0 0.0
        %7837 = vmatpush1.msra.mxu0 0.0
        %7838 = vmatprep.subr.mxu0 0.0
        %7839 = vmatpush1.msra.mxu0 0.0
        %7840 = vmatprep.subr.mxu0 0.0
        %7841 = vmatpush1.msra.mxu0 0.0
        %7842 = vmatprep.subr.mxu0 0.0
        %7843 = vmatpush1.msra.mxu0 0.0
        %7844 = vmatprep.subr.mxu0 0.0
        %7845 = vmatpush1.msra.mxu0 0.0
        %7846 = vmatprep.subr.mxu0 0.0
        %7847 = vmatpush1.msra.mxu0 0.0
        %7848 = vmatprep.subr.mxu0 0.0
        %7849 = vmatpush1.msra.mxu0 0.0
        %7850 = vmatprep.subr.mxu0 0.0
        %7851 = vmatpush1.msra.mxu0 0.0
        %7852 = vmatprep.mubr.f32.mxu0 0.0
        %7853 = vmatmul.mubr.f32.gmra.mrb[0].mxu0 %v7783
        %v7854 = vpop.f32.mrb[0].mxu0
        %v7855 = vadd.f32 0.0, %v7854
        %v7856 = vpop.f32.mrb[0].mxu0
        %7857 = vmatprep.mubr.f32.mxu0 0.0
        %7858 = vmatmul.mubr.f32.gmra.mrb[0].mxu0 %v7786
        %v7859 = vpop.f32.mrb[0].mxu0
        %v7860 = vadd.f32 0.0, %v7859
        %v7861 = vpop.f32.mrb[0].mxu0
        %7862 = vdwg.mxu0
        %v7863 = vadd.f32 %v5889, %v7855
        %v7864 = vadd.f32 %v5890, %v7860
        %v7865 = vld [vmem:[%s77] sm:$0x1]
        %v7867 = vlaneseq
        %v7868 = vshrl.u32 %v7867, 7
        %v7869 = vsub.s32 0, %v7868
        %v7870 = vrot.slane %v7865, %v7869
        %v7872 = vadd.f32 %v7863, %v7870
        %v7873 = vadd.f32 %v7864, %v7870
        %v7874 = vld [vmem:[%s79] sm:$0x1]
        %v7875 = vld [vmem:[%s81] sm:$0x1]
        %v7876 = vsel %vm1625, %v7872, 0.0
        %7877 = vadd.xlane.f32.xlu0 %v7876
        %v7878 = vpop.xlane.xlu0 %7877
        %v7879 = vsel %vm1628, %v7873, 0.0
        %7880 = vadd.xlane.f32.xlu0 %v7879
        %v7881 = vpop.xlane.xlu0 %7880
        %v7882 = vmul.f32 %v7878, %v1647
        %v7883 = vmul.f32 %v7881, %v1647
        %v7884 = vsub.f32 %v7872, %v7882
        %v7885 = vsub.f32 %v7873, %v7883
        %v7886 = vmul.f32 %v7884, %v7884
        %v7887 = vmul.f32 %v7885, %v7885
        %v7888 = vsel %vm1625, %v7886, 0.0
        %7889 = vadd.xlane.f32.xlu0 %v7888
        %v7890 = vpop.xlane.xlu0 %7889
        %v7891 = vsel %vm1628, %v7887, 0.0
        %7892 = vadd.xlane.f32.xlu0 %v7891
        %v7893 = vpop.xlane.xlu0 %7892
        %v7894 = vmul.f32 %v7890, %v1647
        %v7895 = vmul.f32 %v7893, %v1647
        %v7896 = vadd.f32 %v7894, 1e-05
        %v7897 = vadd.f32 %v7895, 1e-05
        %v7898 = vrsqrt.pop %v7896
        %v7899 = vrsqrt.pop %v7897
        %v7900 = vmul.f32 %v7884, %v7898
        %v7901 = vmul.f32 %v7885, %v7899
        %v7903 = vlaneseq
        %v7904 = vshrl.u32 %v7903, 7
        %v7905 = vsub.s32 0, %v7904
        %v7906 = vrot.slane %v7874, %v7905
        %v7908 = vmul.f32 %v7900, %v7906
        %v7909 = vmul.f32 %v7901, %v7906
        %v7911 = vlaneseq
        %v7912 = vshrl.u32 %v7911, 7
        %v7913 = vsub.s32 0, %v7912
        %v7914 = vrot.slane %v7875, %v7913
        %v7916 = vadd.f32 %v7908, %v7914
        %v7917 = vadd.f32 %v7909, %v7914
        %v7918 = vld [vmem:[%s83] sm:$0xff]
        %v7919 = vld [vmem:[%s83 + $0x8] sm:$0xff]
        %v7920 = vld [vmem:[%s83 + $0x10] sm:$0xff]
        %v7921 = vld [vmem:[%s83 + $0x18] sm:$0xff]
        %v7922 = vld [vmem:[#allocation9] sm:$0x1]
        %v7924 = vlaneseq
        %v7925 = vshrl.u32 %v7924, 7
        %v7926 = vsub.s32 0, %v7925
        %v7927 = vrot.slane %v7922, %v7926
        %v7930 = vsel %vm1625, %v7916, 0
        %v7933 = vsel %vm1625, %v7917, 0
        %7935 = vmatprep.subr.mxu0 0.0
        %7936 = vmatpush1.msra.mxu0 %v7918
        %7937 = vmatprep.subr.mxu0 0.0
        %7938 = vmatpush1.msra.mxu0 %v7919
        %7939 = vmatprep.subr.mxu0 0.0
        %7940 = vmatpush1.msra.mxu0 %v7920
        %7941 = vmatprep.subr.mxu0 0.0
        %7942 = vmatpush1.msra.mxu0 %v7921
        %7943 = vmatprep.subr.mxu0 0.0
        %7944 = vmatpush1.msra.mxu0 0.0
        %7945 = vmatprep.subr.mxu0 0.0
        %7946 = vmatpush1.msra.mxu0 0.0
        %7947 = vmatprep.subr.mxu0 0.0
        %7948 = vmatpush1.msra.mxu0 0.0
        %7949 = vmatprep.subr.mxu0 0.0
        %7950 = vmatpush1.msra.mxu0 0.0
        %7951 = vmatprep.subr.mxu0 0.0
        %7952 = vmatpush1.msra.mxu0 0.0
        %7953 = vmatprep.subr.mxu0 0.0
        %7954 = vmatpush1.msra.mxu0 0.0
        %7955 = vmatprep.subr.mxu0 0.0
        %7956 = vmatpush1.msra.mxu0 0.0
        %7957 = vmatprep.subr.mxu0 0.0
        %7958 = vmatpush1.msra.mxu0 0.0
        %7959 = vmatprep.subr.mxu0 0.0
        %7960 = vmatpush1.msra.mxu0 0.0
        %7961 = vmatprep.subr.mxu0 0.0
        %7962 = vmatpush1.msra.mxu0 0.0
        %7963 = vmatprep.subr.mxu0 0.0
        %7964 = vmatpush1.msra.mxu0 0.0
        %7965 = vmatprep.subr.mxu0 0.0
        %7966 = vmatpush1.msra.mxu0 0.0
        %7967 = vmatprep.subr.mxu0 0.0
        %7968 = vmatpush1.msra.mxu0 0.0
        %7969 = vmatprep.subr.mxu0 0.0
        %7970 = vmatpush1.msra.mxu0 0.0
        %7971 = vmatprep.subr.mxu0 0.0
        %7972 = vmatpush1.msra.mxu0 0.0
        %7973 = vmatprep.subr.mxu0 0.0
        %7974 = vmatpush1.msra.mxu0 0.0
        %7975 = vmatprep.subr.mxu0 0.0
        %7976 = vmatpush1.msra.mxu0 0.0
        %7977 = vmatprep.subr.mxu0 0.0
        %7978 = vmatpush1.msra.mxu0 0.0
        %7979 = vmatprep.subr.mxu0 0.0
        %7980 = vmatpush1.msra.mxu0 0.0
        %7981 = vmatprep.subr.mxu0 0.0
        %7982 = vmatpush1.msra.mxu0 0.0
        %7983 = vmatprep.subr.mxu0 0.0
        %7984 = vmatpush1.msra.mxu0 0.0
        %7985 = vmatprep.subr.mxu0 0.0
        %7986 = vmatpush1.msra.mxu0 0.0
        %7987 = vmatprep.subr.mxu0 0.0
        %7988 = vmatpush1.msra.mxu0 0.0
        %7989 = vmatprep.subr.mxu0 0.0
        %7990 = vmatpush1.msra.mxu0 0.0
        %7991 = vmatprep.subr.mxu0 0.0
        %7992 = vmatpush1.msra.mxu0 0.0
        %7993 = vmatprep.subr.mxu0 0.0
        %7994 = vmatpush1.msra.mxu0 0.0
        %7995 = vmatprep.subr.mxu0 0.0
        %7996 = vmatpush1.msra.mxu0 0.0
        %7997 = vmatprep.subr.mxu0 0.0
        %7998 = vmatpush1.msra.mxu0 0.0
        %7999 = vmatprep.mubr.f32.mxu0 0.0
        %8000 = vmatmul.mubr.f32.gmra.mrb[0].mxu0 %v7930
        %v8001 = vpop.f32.mrb[0].mxu0
        %v8002 = vadd.f32 %v7927, %v8001
        %v8003 = vpop.f32.mrb[0].mxu0
        %8004 = vmatprep.mubr.f32.mxu0 0.0
        %8005 = vmatmul.mubr.f32.gmra.mrb[0].mxu0 %v7933
        %v8006 = vpop.f32.mrb[0].mxu0
        %v8007 = vadd.f32 %v7927, %v8006
        %v8008 = vpop.f32.mrb[0].mxu0
        %8009 = vdwg.mxu0
        %v8010 = vmul.f32 %v8002, 0.5
        %v8011 = vmul.f32 %v8007, 0.5
        %v8012 = vmul.f32 %v8002, 0.044715
        %v8013 = vmul.f32 %v8007, 0.044715
        %v8014 = vmul.f32 %v8012, %v8002
        %v8015 = vmul.f32 %v8013, %v8007
        %v8016 = vmul.f32 %v8014, %v8002
        %v8017 = vmul.f32 %v8015, %v8007
        %v8018 = vadd.f32 %v8002, %v8016
        %v8019 = vadd.f32 %v8007, %v8017
        %v8020 = vmul.f32 %v8018, 0.7978846
        %v8021 = vmul.f32 %v8019, 0.7978846
        %v8022 = vtanh.pop %v8020
        %v8023 = vtanh.pop %v8021
        %v8024 = vadd.f32 %v8022, 1.0
        %v8025 = vadd.f32 %v8023, 1.0
        %v8026 = vmul.f32 %v8010, %v8024
        %v8027 = vmul.f32 %v8011, %v8025
        %v8028 = vld [vmem:[%s87] sm:$0xff]
        %v8029 = vld [vmem:[%s87 + $0x8] sm:$0xff]
        %v8030 = vld [vmem:[%s87 + $0x10] sm:$0xff]
        %v8031 = vld [vmem:[%s87 + $0x18] sm:$0xff]
        %v8032 = vld [vmem:[%s87 + $0x20] sm:$0xff]
        %v8033 = vld [vmem:[%s87 + $0x28] sm:$0xff]
        %v8034 = vld [vmem:[%s87 + $0x30] sm:$0xff]
        %v8035 = vld [vmem:[%s87 + $0x38] sm:$0xff]
        %v8036 = vld [vmem:[%s87 + $0x40] sm:$0xff]
        %v8037 = vld [vmem:[%s87 + $0x48] sm:$0xff]
        %v8038 = vld [vmem:[%s87 + $0x50] sm:$0xff]
        %v8039 = vld [vmem:[%s87 + $0x58] sm:$0xff]
        %v8040 = vld [vmem:[%s87 + $0x60] sm:$0xff]
        %v8041 = vld [vmem:[%s87 + $0x68] sm:$0xff]
        %v8042 = vld [vmem:[%s87 + $0x70] sm:$0xff]
        %v8043 = vld [vmem:[%s87 + $0x78] sm:$0xff]
        %v8044 = vld [vmem:[#allocation12] sm:$0x1]
        %v8046 = vlaneseq
        %v8047 = vshrl.u32 %v8046, 7
        %v8048 = vsub.s32 0, %v8047
        %v8049 = vrot.slane %v8044, %v8048
        %8051 = vmatprep.subr.mxu0 0.0
        %8052 = vmatpush1.msra.mxu0 %v8028
        %8053 = vmatprep.subr.mxu0 0.0
        %8054 = vmatpush1.msra.mxu0 %v8029
        %8055 = vmatprep.subr.mxu0 0.0
        %8056 = vmatpush1.msra.mxu0 %v8030
        %8057 = vmatprep.subr.mxu0 0.0
        %8058 = vmatpush1.msra.mxu0 %v8031
        %8059 = vmatprep.subr.mxu0 0.0
        %8060 = vmatpush1.msra.mxu0 %v8032
        %8061 = vmatprep.subr.mxu0 0.0
        %8062 = vmatpush1.msra.mxu0 %v8033
        %8063 = vmatprep.subr.mxu0 0.0
        %8064 = vmatpush1.msra.mxu0 %v8034
        %8065 = vmatprep.subr.mxu0 0.0
        %8066 = vmatpush1.msra.mxu0 %v8035
        %8067 = vmatprep.subr.mxu0 0.0
        %8068 = vmatpush1.msra.mxu0 %v8036
        %8069 = vmatprep.subr.mxu0 0.0
        %8070 = vmatpush1.msra.mxu0 %v8037
        %8071 = vmatprep.subr.mxu0 0.0
        %8072 = vmatpush1.msra.mxu0 %v8038
        %8073 = vmatprep.subr.mxu0 0.0
        %8074 = vmatpush1.msra.mxu0 %v8039
        %8075 = vmatprep.subr.mxu0 0.0
        %8076 = vmatpush1.msra.mxu0 %v8040
        %8077 = vmatprep.subr.mxu0 0.0
        %8078 = vmatpush1.msra.mxu0 %v8041
        %8079 = vmatprep.subr.mxu0 0.0
        %8080 = vmatpush1.msra.mxu0 %v8042
        %8081 = vmatprep.subr.mxu0 0.0
        %8082 = vmatpush1.msra.mxu0 %v8043
        %8083 = vmatprep.subr.mxu0 0.0
        %8084 = vmatpush1.msra.mxu0 0.0
        %8085 = vmatprep.subr.mxu0 0.0
        %8086 = vmatpush1.msra.mxu0 0.0
        %8087 = vmatprep.subr.mxu0 0.0
        %8088 = vmatpush1.msra.mxu0 0.0
        %8089 = vmatprep.subr.mxu0 0.0
        %8090 = vmatpush1.msra.mxu0 0.0
        %8091 = vmatprep.subr.mxu0 0.0
        %8092 = vmatpush1.msra.mxu0 0.0
        %8093 = vmatprep.subr.mxu0 0.0
        %8094 = vmatpush1.msra.mxu0 0.0
        %8095 = vmatprep.subr.mxu0 0.0
        %8096 = vmatpush1.msra.mxu0 0.0
        %8097 = vmatprep.subr.mxu0 0.0
        %8098 = vmatpush1.msra.mxu0 0.0
        %8099 = vmatprep.subr.mxu0 0.0
        %8100 = vmatpush1.msra.mxu0 0.0
        %8101 = vmatprep.subr.mxu0 0.0
        %8102 = vmatpush1.msra.mxu0 0.0
        %8103 = vmatprep.subr.mxu0 0.0
        %8104 = vmatpush1.msra.mxu0 0.0
        %8105 = vmatprep.subr.mxu0 0.0
        %8106 = vmatpush1.msra.mxu0 0.0
        %8107 = vmatprep.subr.mxu0 0.0
        %8108 = vmatpush1.msra.mxu0 0.0
        %8109 = vmatprep.subr.mxu0 0.0
        %8110 = vmatpush1.msra.mxu0 0.0
        %8111 = vmatprep.subr.mxu0 0.0
        %8112 = vmatpush1.msra.mxu0 0.0
        %8113 = vmatprep.subr.mxu0 0.0
        %8114 = vmatpush1.msra.mxu0 0.0
        %8115 = vmatprep.mubr.f32.mxu0 0.0
        %8116 = vmatmul.mubr.f32.gmra.mrb[0].mxu0 %v8026
        %v8117 = vpop.f32.mrb[0].mxu0
        %v8118 = vadd.f32 %v8049, %v8117
        %v8119 = vpop.f32.mrb[0].mxu0
        %8120 = vmatprep.mubr.f32.mxu0 0.0
        %8121 = vmatmul.mubr.f32.gmra.mrb[0].mxu0 %v8027
        %v8122 = vpop.f32.mrb[0].mxu0
        %v8123 = vpop.f32.mrb[0].mxu0
        %8124 = vdwg.mxu0
        %v8125 = vadd.f32 %v7872, %v8118
        %v8126 = vld [vmem:[#allocation14] sm:$0x1]
        %v8127 = vld [vmem:[#allocation15] sm:$0x1]
        %v8128 = vsel %vm1625, %v8125, 0.0
        %8129 = vadd.xlane.f32.xlu0 %v8128
        %v8130 = vpop.xlane.xlu0 %8129
        %v8131 = vmul.f32 %v8130, %v1647
        %v8132 = vsub.f32 %v8125, %v8131
        %v8133 = vmul.f32 %v8132, %v8132
        %v8134 = vsel %vm1625, %v8133, 0.0
        %8135 = vadd.xlane.f32.xlu0 %v8134
        %v8136 = vpop.xlane.xlu0 %8135
        %v8137 = vmul.f32 %v8136, %v1647
        %v8138 = vadd.f32 %v8137, 1e-05
        %v8139 = vrsqrt.pop %v8138
        %v8140 = vmul.f32 %v8132, %v8139
        %v8142 = vlaneseq
        %v8143 = vshrl.u32 %v8142, 7
        %v8144 = vsub.s32 0, %v8143
        %v8145 = vrot.slane %v8126, %v8144
        %v8147 = vmul.f32 %v8140, %v8145
        %v8149 = vlaneseq
        %v8150 = vshrl.u32 %v8149, 7
        %v8151 = vsub.s32 0, %v8150
        %v8152 = vrot.slane %v8127, %v8151
        %v8154 = vadd.f32 %v8147, %v8152
        %v8155 = vld [vmem:[%s95] sm:$0xff]
        %v8156 = vld [vmem:[%s95 + $0x8] sm:$0xff]
        %v8157 = vld [vmem:[%s95 + $0x10] sm:$0xff]
        %v8158 = vld [vmem:[%s95 + $0x18] sm:$0xff]
        %v8159 = vld [vmem:[%s95 + $0x20] sm:$0xff]
        %v8160 = vld [vmem:[%s95 + $0x28] sm:$0xff]
        %v8161 = vld [vmem:[%s95 + $0x30] sm:$0xff]
        %v8162 = vld [vmem:[%s95 + $0x38] sm:$0xff]
        %v8163 = vld [vmem:[%s97] sm:$0x3]
        %v8165 = vlaneseq
        %v8166 = vshrl.u32 %v8165, 7
        %v8167 = vsub.s32 0, %v8166
        %v8168 = vrot.slane %v8163, %v8167
        %v8169 = vlaneseq
        %v8170 = vshrl.u32 %v8169, 7
        %v8171 = vsub.s32 1, %v8170
        %v8172 = vrot.slane %v8163, %v8171
        %v8176 = vsel %vm1625, %v8154, 0
        %8178 = vmatprep.subr.mxu0 %v8156
        %8179 = vmatpush1.msra.mxu0 %v8155
        %8180 = vmatprep.subr.mxu0 %v8158
        %8181 = vmatpush1.msra.mxu0 %v8157
        %8182 = vmatprep.subr.mxu0 %v8160
        %8183 = vmatpush1.msra.mxu0 %v8159
        %8184 = vmatprep.subr.mxu0 %v8162
        %8185 = vmatpush1.msra.mxu0 %v8161
        %8186 = vmatprep.subr.mxu0 0.0
        %8187 = vmatpush1.msra.mxu0 0.0
        %8188 = vmatprep.subr.mxu0 0.0
        %8189 = vmatpush1.msra.mxu0 0.0
        %8190 = vmatprep.subr.mxu0 0.0
        %8191 = vmatpush1.msra.mxu0 0.0
        %8192 = vmatprep.subr.mxu0 0.0
        %8193 = vmatpush1.msra.mxu0 0.0
        %8194 = vmatprep.subr.mxu0 0.0
        %8195 = vmatpush1.msra.mxu0 0.0
        %8196 = vmatprep.subr.mxu0 0.0
        %8197 = vmatpush1.msra.mxu0 0.0
        %8198 = vmatprep.subr.mxu0 0.0
        %8199 = vmatpush1.msra.mxu0 0.0
        %8200 = vmatprep.subr.mxu0 0.0
        %8201 = vmatpush1.msra.mxu0 0.0
        %8202 = vmatprep.subr.mxu0 0.0
        %8203 = vmatpush1.msra.mxu0 0.0
        %8204 = vmatprep.subr.mxu0 0.0
        %8205 = vmatpush1.msra.mxu0 0.0
        %8206 = vmatprep.subr.mxu0 0.0
        %8207 = vmatpush1.msra.mxu0 0.0
        %8208 = vmatprep.subr.mxu0 0.0
        %8209 = vmatpush1.msra.mxu0 0.0
        %8210 = vmatprep.subr.mxu0 0.0
        %8211 = vmatpush1.msra.mxu0 0.0
        %8212 = vmatprep.subr.mxu0 0.0
        %8213 = vmatpush1.msra.mxu0 0.0
        %8214 = vmatprep.subr.mxu0 0.0
        %8215 = vmatpush1.msra.mxu0 0.0
        %8216 = vmatprep.subr.mxu0 0.0
        %8217 = vmatpush1.msra.mxu0 0.0
        %8218 = vmatprep.subr.mxu0 0.0
        %8219 = vmatpush1.msra.mxu0 0.0
        %8220 = vmatprep.subr.mxu0 0.0
        %8221 = vmatpush1.msra.mxu0 0.0
        %8222 = vmatprep.subr.mxu0 0.0
        %8223 = vmatpush1.msra.mxu0 0.0
        %8224 = vmatprep.subr.mxu0 0.0
        %8225 = vmatpush1.msra.mxu0 0.0
        %8226 = vmatprep.subr.mxu0 0.0
        %8227 = vmatpush1.msra.mxu0 0.0
        %8228 = vmatprep.subr.mxu0 0.0
        %8229 = vmatpush1.msra.mxu0 0.0
        %8230 = vmatprep.subr.mxu0 0.0
        %8231 = vmatpush1.msra.mxu0 0.0
        %8232 = vmatprep.subr.mxu0 0.0
        %8233 = vmatpush1.msra.mxu0 0.0
        %8234 = vmatprep.subr.mxu0 0.0
        %8235 = vmatpush1.msra.mxu0 0.0
        %8236 = vmatprep.subr.mxu0 0.0
        %8237 = vmatpush1.msra.mxu0 0.0
        %8238 = vmatprep.subr.mxu0 0.0
        %8239 = vmatpush1.msra.mxu0 0.0
        %8240 = vmatprep.subr.mxu0 0.0
        %8241 = vmatpush1.msra.mxu0 0.0
        %8242 = vmatprep.mubr.f32.mxu0 0.0
        %8243 = vmatmul.mubr.f32.gmra.mrb[0].mxu0 %v8176
        %v8244 = vpop.f32.mrb[0].mxu0
        %v8245 = vadd.f32 %v8168, %v8244
        %v8246 = vpop.f32.mrb[0].mxu0
        %v8247 = vadd.f32 %v8172, %v8246
        %8248 = vdwg.mxu0
        %8249 = vst [vmem:[%s1506] sm:$0xff] %v8245
        %8250 = vst.msk [vmem:[%s1506 + $0x8] sm:$0xff] %vm1551, %v8247
        %v8251 = vld [vmem:[%s1516] sm:$0xff]
        %v8252 = vld [vmem:[%s1516 + $0x8] sm:$0xff]
        %v8253 = vsub.f32 %v8245, %v8251
        %v8254 = vsub.f32 %v8247, %v8252
        %v8255 = vmul.f32 %v8253, %v8253
        %v8256 = vmul.f32 %v8254, %v8254
        %v8257 = vsel %vm1551, %v8256, 0.0
        %v8258 = vadd.f32 %v8255, %v8257
        %8259 = vadd.xlane.f32.xlu0 %v8258
        %v8260 = vpop.xlane.xlu0 %8259
        %v8261 = vrcp.pop 192.0
        %v8262 = vmul.f32 %v8260, %v8261
        %v8263 = vld [vmem:[%s1520] sm:$0xff]
        %v8264 = vmul.f32 %v8262, %v8263
        %vm8265 = vcmask 7168
        %v8266 = vsel %vm8265, %v8264, 0.0
        %v8267 = vrot.slane %v8266, 4
        %v8268 = vadd.f32 %v8266, %v8267
        %v8269 = vrot.slane %v8268, 2
        %v8270 = vadd.f32 %v8268, %v8269
        %v8271 = vrot.slane %v8270, 1
        %v8272 = vadd.f32 %v8270, %v8271
        %vm8273 = vcmask 0
        %8274 = vst.msk [vmem:[%s1523] sm:$0x1] %vm8273, %v8272
        %s8275 = sand.u32 %s1134, 1
        %s8276 = scalar_lea.sflag [#allocation11], %s8275
        %s8277 = sand.u32 %s1134, 1
        %s8278 = smul.addr %s8277, 16
        %s8279 = scalar_lea.vmem [#allocation17], %s8278
        %p8280 = scmp.lt.s32.totalorder %s129, 1
        %s8281 = scalar_select %p8280, %s129, 1
        %s8282 = scalar_lea.vmem %s101, %s8281
        // Predicated region
        $region225: #{forward.1} parent=207 // pred_check
          %p8283 = pneg %p1144
        $region226: #{forward.1} parent=207 // pred_check_branch
          %8285 = sbr.rel (%p8283) target = $region228
        $region227: #{forward.1} parent=207 // pred_region
          %s8287 = ssub.s32 256, 256
          %8288 = vsyncadd %s8276, %s8287
          %s8289 = smul.addr %s129, 2
          %s8290 = smul.addr %s8289, 128
          %s8291 = scalar_lea.hbm %s99, %s8290
          %s8293 = sshll.u32 %s8279, 4
          %s8294 = int_to_ptr.vmem [resolvable:$true] %s8293
          %8296 = dma.vmem_to_hbm [thread:$0]  %s8294, 256, %s8291, %s8276
        $region228: #{forward.1} parent=207 // pred_fallthru
          _
        // Predicated region
        $region229: #{forward.1} parent=207 // pred_check
          %p8297 = pneg %p1170
        $region230: #{forward.1} parent=207 // pred_check_branch
          %8299 = sbr.rel (%p8297) target = $region232
        $region231: #{forward.1} parent=207 // pred_region
          _
        $region232: #{forward.1} parent=207 // pred_fallthru
          _
      $region208: #{forward.1} parent=5 // pred_fallthru
        _
      %p8300 = scmp.le.s32.totalorder 2, %s124
      // Predicated region
      $region233: #{forward.1} parent=5 // pred_check
        %p8301 = pneg %p8300
      $region234: #{forward.1} parent=5 // pred_check_branch
        %8303 = sbr.rel (%p8301) target = $region236
      $region235: #{forward.1} parent=5 // pred_region
        %s8304 = ssub.s32 %s124, 2
        // Predicated region
        $region237: #{forward.1} parent=235 // pred_check
          %p8305 = pneg %p1150
        $region238: #{forward.1} parent=235 // pred_check_branch
          %8307 = sbr.rel (%p8305) target = $region240
        $region239: #{forward.1} parent=235 // pred_region
          %s8308 = sand.u32 %s1135, 1
          %s8309 = scalar_lea.sflag [#allocation11], %s8308
          %s8310 = sand.u32 %s1135, 1
          %s8311 = smul.addr %s8310, 16
          %s8312 = scalar_lea.vmem [#allocation17], %s8311
          %8313 = dma.done %s8309, 256
        $region240: #{forward.1} parent=235 // pred_fallthru
          _
        // Predicated region
        $region241: #{forward.1} parent=235 // pred_check
          %p8314 = pneg %p1176
        $region242: #{forward.1} parent=235 // pred_check_branch
          %8316 = sbr.rel (%p8314) target = $region244
        $region243: #{forward.1} parent=235 // pred_region
          %p8317 = scmp.lt.s32.totalorder %s130, 1
          %s8318 = scalar_select %p8317, %s130, 1
          %s8319 = scalar_lea.vmem %s101, %s8318
        $region244: #{forward.1} parent=235 // pred_fallthru
          _
      $region236: #{forward.1} parent=5 // pred_fallthru
        _
    $region6: #{forward.1} parent=1 // loop_footer
      %s128 = sadd.s32 1, %s124
    $region7: #{forward.1} parent=1 // loop_footer_branch
      %123 = sbr.rel target = $region3
    $region8: #{forward.1} parent=1 // loop_exit
      _
    %8320 = vsyncpa [#allocation10], 1
    %s8321 = scalar_lea.sflag [#allocation10], 1
    %8322 = vsyncpa %s8321, 1
    %8323 = vsyncpa [#allocation13], 1
    %8324 = vsyncpa [#allocation16], 1
    %8325 = vsyncpa [#allocation11], 1
    %s8326 = scalar_lea.sflag [#allocation11], 1
    %8327 = vsyncpa %s8326, 1

</llo_original>
